<compile_context>
chip_gen: v7x
topology: tpu7x:2x2x1
jax: 0.10.0
libtpu: 0.0.40
codegen_flags: <defaults>
</compile_context>

<pallas_src>
import jax
import jax.numpy as jnp
from jax import lax
from jax.experimental import pallas as pl
from jax.experimental.pallas import tpu as pltpu

K_NEIGHBORS = 10


# ----------------------------------------------------------------------------
# In-kernel helper
# ----------------------------------------------------------------------------
def _softmax_last(x):
    m = jnp.max(x, axis=-1, keepdims=True)
    e = jnp.exp(x - m)
    return e * pl.reciprocal(jnp.sum(e, axis=-1, keepdims=True), approx=True)


# ----------------------------------------------------------------------------
# Fused Pallas kernel (one batch element per grid step)
# ----------------------------------------------------------------------------
def dam_fused_kernel(x_ref, rgb_ref,
                     tbs_ref, tbb_ref, tpgw_ref, tpgb_ref, ww_ref, wb_ref,
                     cw_ref, cb_ref, fwr_ref, fwc_ref, fb_ref,
                     out_ref):
    f32 = jnp.float32
    bf16 = jnp.bfloat16

    x = x_ref[0]                                                   # (C, HW) f32
    x16 = x.astype(bf16)

    # ---- get_ocr_vector: softmax over HW, prototypes pb = ss @ x^T ----------
    ss = _softmax_last(x).astype(bf16)                             # (C, HW)
    pb = lax.dot_general(ss, x16, (((1,), (1,)), ((), ())),
                         preferred_element_type=f32)               # (N, C) rows = prototypes

    # ---- Transformer: BN1d(eval)+ReLU, merged theta|phi|g, attention, W ----
    feat = jnp.maximum(pb * tbs_ref[...] + tbb_ref[...], 0.0).astype(bf16)
    tpg = jnp.dot(feat, tpgw_ref[...], preferred_element_type=f32) + tpgb_ref[...]
    ci = tpg.shape[1] // 3
    th = tpg[:, :ci].astype(bf16)
    ph = tpg[:, ci:2 * ci].astype(bf16)
    gx = tpg[:, 2 * ci:].astype(bf16)
    att = _softmax_last(lax.dot_general(th, ph, (((1,), (1,)), ((), ())),
                                        preferred_element_type=f32))
    y = jnp.dot(att.astype(bf16), gx, preferred_element_type=f32)
    wy = jnp.dot(y.astype(bf16), ww_ref[...], preferred_element_type=f32) + wb_ref[...]
    g = pb + wy                                                    # (N, C) att_prototype_block

    # ---- 3 DGCNN edge-conv blocks, k-NN computed in-kernel ------------------
    n = g.shape[0]
    rid = lax.broadcasted_iota(jnp.int32, (n, n), 0)
    cid = lax.broadcasted_iota(jnp.int32, (n, n), 1)
    diag = rid == cid
    for blk in range(3):
        # k-NN score: per-row ordering identical to -||g_i - g_j||^2
        inner = lax.dot_general(g, g, (((1,), (1,)), ((), ())),
                                preferred_element_type=f32)        # (N, N) Gram (f32: exact selection)
        sq_j = jnp.sum(jnp.where(diag, inner, 0.0), axis=0, keepdims=True)  # (1, N) = ||g_j||^2
        score = 2.0 * inner - sq_j

        # iterative top-k -> (K*N, N) one-hot gather matrix (kk-major, self included)
        sels = []
        for _ in range(K_NEIGHBORS):
            m = jnp.max(score, axis=-1, keepdims=True)
            first = jnp.min(jnp.where(score >= m, cid, n),
                            axis=-1, keepdims=True)                # lowest-index argmax (tie-break)
            oh = cid == first
            sels.append(oh.astype(bf16))                           # exact 0/1 in bf16
            score = jnp.where(oh, -jnp.inf, score)
        sel = jnp.concatenate(sels, axis=0)                        # (K*N, N)

        # edge conv: one (N, 2C) push of [Wa*s | (Wb-Wa)*s], gather, max_k, leaky
        a2 = jnp.dot(g.astype(bf16), cw_ref[blk], preferred_element_type=f32)   # (N, 2C)
        d = a2.shape[1] // 2
        a_nbr = a2[:, :d].astype(bf16)                             # BN scale folded into weight
        a_ctr = a2[:, d:] + cb_ref[blk]                            # + folded BN shift
        yn = jnp.dot(sel, a_nbr, preferred_element_type=f32)       # (K*N, C) gathered neighbours
        acc = yn[:n]
        for kk in range(1, K_NEIGHBORS):
            acc = jnp.maximum(acc, yn[kk * n:(kk + 1) * n])        # max over k (tile-aligned slices)
        t = acc + a_ctr
        g = jnp.where(t > 0, t, 0.2 * t)                           # LeakyReLU(0.2) once, after max

    # ---- correlation map (stays in VMEM) + rgb fusion (BN folded) + ReLU ----
    pn = (g * lax.rsqrt(jnp.sum(g * g, axis=1, keepdims=True) + 1e-12)).astype(bf16)
    xn = (x * lax.rsqrt(jnp.sum(x * x, axis=0, keepdims=True) + 1e-12)).astype(bf16)
    cm = jnp.dot(pn, xn, preferred_element_type=f32)               # (N, HW)
    rgb16 = rgb_ref[0].astype(bf16)
    fused = (jnp.dot(fwr_ref[...], rgb16, preferred_element_type=f32)
             + jnp.dot(fwc_ref[...], cm.astype(bf16), preferred_element_type=f32)
             + fb_ref[...])
    out_ref[0] = jnp.maximum(fused, 0.0)


# ----------------------------------------------------------------------------
# pallas_call wrapper
# ----------------------------------------------------------------------------
def domain_alignment_forward(rgb, rgb_sq, params):
    B, Ch, H, W = rgb_sq.shape
    Cin = rgb.shape[1]
    HW = H * W
    Ci3 = params["tpg_w"].shape[1]
    Ci = Ci3 // 3
    x_flat = rgb_sq.reshape(B, Ch, HW)
    rgb_flat = rgb.reshape(B, Cin, HW)

    def whole(shape):
        nd = len(shape)
        return pl.BlockSpec(shape, lambda b, _n=nd: (0,) * _n)

    out = pl.pallas_call(
        dam_fused_kernel,
        out_shape=jax.ShapeDtypeStruct((B, Cin, HW), jnp.float32),
        grid=(B,),
        in_specs=[pl.BlockSpec((1, Ch, HW), lambda b: (b, 0, 0)),
                  pl.BlockSpec((1, Cin, HW), lambda b: (b, 0, 0)),
                  whole((1, Ch)), whole((1, Ch)),
                  whole((Ch, Ci3)), whole((1, Ci3)),
                  whole((Ci, Ch)), whole((1, Ch)),
                  whole((3, Ch, 2 * Ch)), whole((3, 1, Ch)),
                  whole((Cin, Cin)), whole((Cin, Ch)), whole((Cin, 1))],
        out_specs=pl.BlockSpec((1, Cin, HW), lambda b: (b, 0, 0)),
        compiler_params=pltpu.CompilerParams(
            dimension_semantics=("parallel",)),
    )(x_flat, rgb_flat,
      params["tf_bn_s"], params["tf_bn_b"], params["tpg_w"], params["tpg_b"],
      params["W_w"], params["W_b"], params["conv_w"], params["conv_b"],
      params["fuse_w_rgb"], params["fuse_w_cm"], params["fuse_b"])
    return out.reshape(B, Cin, H, W)


# ----------------------------------------------------------------------------
# Deterministic parameter initialization (BN folded to eval-mode scale/shift)
# ----------------------------------------------------------------------------
def _bn_fold(kg, kb, c, eps=1e-5):
    gamma = 1.0 + 0.1 * jax.random.normal(kg, (c,), jnp.float32)
    beta = 0.1 * jax.random.normal(kb, (c,), jnp.float32)
    mean = jnp.zeros((c,), jnp.float32)
    var = jnp.ones((c,), jnp.float32)
    scale = gamma / jnp.sqrt(var + eps)
    shift = beta - mean * scale
    return scale, shift


def init_params(cin, ch, key):
    ci = ch // 2
    keys = jax.random.split(key, 32)
    ki = iter(keys)

    def lin(k, fi, fo):
        return jax.random.normal(k, (fi, fo), jnp.float32) / jnp.sqrt(jnp.float32(fi))

    def bias(k, n):
        return 0.01 * jax.random.normal(k, (1, n), jnp.float32)

    # Transformer (theta/phi/g merged into one weight -> one MXU push in-kernel)
    tbs, tbb = _bn_fold(next(ki), next(ki), ch)
    tpg_w = jnp.concatenate([lin(next(ki), ch, ci) for _ in range(3)], axis=1)   # (C, 3Ci)
    tpg_b = jnp.concatenate([bias(next(ki), ci) for _ in range(3)], axis=1)      # (1, 3Ci)
    W_w = lin(next(ki), ci, ch)
    W_b = bias(next(ki), ch)

    # 3 edge-conv blocks: Conv2d(2C->C,1x1,no bias) + BN2d(eval) folded into
    # one (C, 2C) weight [Wa*s | (Wb-Wa)*s] and a (1, C) shift.
    conv_w, conv_b = [], []
    for _ in range(3):
        s, b = _bn_fold(next(ki), next(ki), ch)
        w2 = lin(next(ki), 2 * ch, ch)
        wa = w2[:ch] * s[None, :]
        wc = (w2[ch:] - w2[:ch]) * s[None, :]
        conv_w.append(jnp.concatenate([wa, wc], axis=1))
        conv_b.append(b.reshape(1, ch))

    # rgb fusion: Conv2d(cin+ch -> cin, 1x1, bias) + BN2d(eval) + ReLU; BN folded,
    # weight split (rgb / correlation-map halves) so the channel concat never exists.
    fs, fsh = _bn_fold(next(ki), next(ki), cin)
    fw = (jax.random.normal(next(ki), (cin, cin + ch), jnp.float32)
          / jnp.sqrt(jnp.float32(cin + ch)))
    fb0 = 0.01 * jax.random.normal(next(ki), (cin,), jnp.float32)

    return {
        "tf_bn_s": tbs.reshape(1, ch), "tf_bn_b": tbb.reshape(1, ch),
        "tpg_w": tpg_w.astype(jnp.bfloat16), "tpg_b": tpg_b,
        "W_w": W_w.astype(jnp.bfloat16), "W_b": W_b,
        "conv_w": jnp.stack(conv_w).astype(jnp.bfloat16),    # (3, C, 2C)
        "conv_b": jnp.stack(conv_b),                          # (3, 1, C)
        "fuse_w_rgb": (fw[:, :cin] * fs[:, None]).astype(jnp.bfloat16),
        "fuse_w_cm": (fw[:, cin:] * fs[:, None]).astype(jnp.bfloat16),
        "fuse_b": (fb0 * fs + fsh).reshape(cin, 1),
    }


# ----------------------------------------------------------------------------
if __name__ == "__main__":
    B, Cin, Ch, H, W = 2, 4, 32, 16, 16   # hidden_channels=32 (>= k=10 prototypes)
    key = jax.random.PRNGKey(0)
    k_rgb, k_sq = jax.random.split(key)
    rgb = jax.random.normal(k_rgb, (B, Cin, H, W), jnp.float32)
    rgb_sq = jax.random.normal(k_sq, (B, Ch, H, W), jnp.float32)

    params = init_params(Cin, Ch, jax.random.PRNGKey(42))

    out = jax.jit(domain_alignment_forward)(rgb, rgb_sq, params)
    out = jax.block_until_ready(out)
    assert out.shape == (B, Cin, H, W), out.shape
    assert bool(jnp.all(jnp.isfinite(out)))
    print("KERNEL_OK")
</pallas_src>

<mosaic_0001>
module attributes {stable_mosaic.version = 11 : i64} {
  func.func @dam_fused_kernel(%arg0: i32, %arg1: memref<1x32x256xf32, #tpu.memory_space<vmem>>, %arg2: memref<1x4x256xf32, #tpu.memory_space<vmem>>, %arg3: memref<1x32xf32, #tpu.memory_space<vmem>>, %arg4: memref<1x32xf32, #tpu.memory_space<vmem>>, %arg5: memref<32x48xbf16, #tpu.memory_space<vmem>>, %arg6: memref<1x48xf32, #tpu.memory_space<vmem>>, %arg7: memref<16x32xbf16, #tpu.memory_space<vmem>>, %arg8: memref<1x32xf32, #tpu.memory_space<vmem>>, %arg9: memref<3x32x64xbf16, #tpu.memory_space<vmem>>, %arg10: memref<3x1x32xf32, #tpu.memory_space<vmem>>, %arg11: memref<4x4xbf16, #tpu.memory_space<vmem>>, %arg12: memref<4x32xbf16, #tpu.memory_space<vmem>>, %arg13: memref<4x1xf32, #tpu.memory_space<vmem>>, %arg14: memref<1x4x256xf32, #tpu.memory_space<vmem>>) attributes {dimension_semantics = [#tpu.dimension_semantics<parallel>], iteration_bounds = array<i64: 2>, scalar_prefetch = 0 : i64, scratch_operands = 0 : i64, tpu.core_type = #tpu.core_type<tc>, window_params = [{transform_indices = @transform_0, window_bounds = array<i64: 1, 32, 256>}, {transform_indices = @transform_1, window_bounds = array<i64: 1, 4, 256>}, {pipeline_mode = #tpu.pipeline_mode<synchronous>, transform_indices = @transform_2, window_bounds = array<i64: 1, 32>}, {pipeline_mode = #tpu.pipeline_mode<synchronous>, transform_indices = @transform_3, window_bounds = array<i64: 1, 32>}, {pipeline_mode = #tpu.pipeline_mode<synchronous>, transform_indices = @transform_4, window_bounds = array<i64: 32, 48>}, {pipeline_mode = #tpu.pipeline_mode<synchronous>, transform_indices = @transform_5, window_bounds = array<i64: 1, 48>}, {pipeline_mode = #tpu.pipeline_mode<synchronous>, transform_indices = @transform_6, window_bounds = array<i64: 16, 32>}, {pipeline_mode = #tpu.pipeline_mode<synchronous>, transform_indices = @transform_7, window_bounds = array<i64: 1, 32>}, {pipeline_mode = #tpu.pipeline_mode<synchronous>, transform_indices = @transform_8, window_bounds = array<i64: 3, 32, 64>}, {pipeline_mode = #tpu.pipeline_mode<synchronous>, transform_indices = @transform_9, window_bounds = array<i64: 3, 1, 32>}, {pipeline_mode = #tpu.pipeline_mode<synchronous>, transform_indices = @transform_10, window_bounds = array<i64: 4, 4>}, {pipeline_mode = #tpu.pipeline_mode<synchronous>, transform_indices = @transform_11, window_bounds = array<i64: 4, 32>}, {pipeline_mode = #tpu.pipeline_mode<synchronous>, transform_indices = @transform_12, window_bounds = array<i64: 4, 1>}, {transform_indices = @transform_13, window_bounds = array<i64: 1, 4, 256>}]} {
    %c0 = arith.constant 0 : index
    %c0_0 = arith.constant 0 : index
    %c0_1 = arith.constant 0 : index
    %0 = vector.load %arg1[%c0, %c0_0, %c0_1] : memref<1x32x256xf32, #tpu.memory_space<vmem>>, vector<1x32x256xf32>
    %1 = vector.shape_cast %0 : vector<1x32x256xf32> to vector<32x256xf32>
    %2 = arith.truncf %1 : vector<32x256xf32> to vector<32x256xbf16>
    %cst = arith.constant dense<0xFF800000> : vector<32xf32>
    %3 = vector.multi_reduction <maximumf>, %1, %cst [1] : vector<32x256xf32> to vector<32xf32>
    %4 = vector.shape_cast %3 : vector<32xf32> to vector<32x1xf32>
    %5 = vector.broadcast %4 : vector<32x1xf32> to vector<32x256xf32>
    %6 = arith.subf %1, %5 : vector<32x256xf32>
    %7 = math.exp %6 : vector<32x256xf32>
    %cst_2 = arith.constant dense<0.000000e+00> : vector<32xf32>
    %8 = vector.multi_reduction <add>, %7, %cst_2 [1] : vector<32x256xf32> to vector<32xf32>
    %9 = vector.shape_cast %8 : vector<32xf32> to vector<32x1xf32>
    %10 = tpu.reciprocal %9 {approx = true} : vector<32x1xf32> -> vector<32x1xf32>
    %11 = vector.broadcast %10 : vector<32x1xf32> to vector<32x256xf32>
    %12 = arith.mulf %7, %11 : vector<32x256xf32>
    %13 = arith.truncf %12 : vector<32x256xf32> to vector<32x256xbf16>
    %cst_3 = arith.constant dense<0.000000e+00> : vector<32x32xf32>
    %14 = tpu.matmul %13, %2, %cst_3 {dimension_numbers = #tpu.dot_dimension_numbers<[1], [1], [0], [0], [0, 0, 1, 0], [], []>} : vector<32x256xbf16>, vector<32x256xbf16>, vector<32x32xf32> -> vector<32x32xf32>
    %c0_4 = arith.constant 0 : index
    %c0_5 = arith.constant 0 : index
    %15 = vector.load %arg3[%c0_4, %c0_5] : memref<1x32xf32, #tpu.memory_space<vmem>>, vector<1x32xf32>
    %16 = vector.broadcast %15 : vector<1x32xf32> to vector<32x32xf32>
    %17 = arith.mulf %14, %16 : vector<32x32xf32>
    %c0_6 = arith.constant 0 : index
    %c0_7 = arith.constant 0 : index
    %18 = vector.load %arg4[%c0_6, %c0_7] : memref<1x32xf32, #tpu.memory_space<vmem>>, vector<1x32xf32>
    %19 = vector.broadcast %18 : vector<1x32xf32> to vector<32x32xf32>
    %20 = arith.addf %17, %19 : vector<32x32xf32>
    %cst_8 = arith.constant 0.000000e+00 : f32
    %21 = vector.broadcast %cst_8 : f32 to vector<32x32xf32>
    %22 = arith.maximumf %20, %21 : vector<32x32xf32>
    %23 = arith.truncf %22 : vector<32x32xf32> to vector<32x32xbf16>
    %c0_9 = arith.constant 0 : index
    %c0_10 = arith.constant 0 : index
    %24 = vector.load %arg5[%c0_9, %c0_10] : memref<32x48xbf16, #tpu.memory_space<vmem>>, vector<32x48xbf16>
    %cst_11 = arith.constant dense<0.000000e+00> : vector<32x48xf32>
    %25 = tpu.matmul %23, %24, %cst_11 {dimension_numbers = #tpu.dot_dimension_numbers<[1], [0], [0], [1], [0, 0, 1, 1], [], []>} : vector<32x32xbf16>, vector<32x48xbf16>, vector<32x48xf32> -> vector<32x48xf32>
    %c0_12 = arith.constant 0 : index
    %c0_13 = arith.constant 0 : index
    %26 = vector.load %arg6[%c0_12, %c0_13] : memref<1x48xf32, #tpu.memory_space<vmem>>, vector<1x48xf32>
    %27 = vector.broadcast %26 : vector<1x48xf32> to vector<32x48xf32>
    %28 = arith.addf %25, %27 : vector<32x48xf32>
    %29 = vector.extract_strided_slice %28 {offsets = [0, 0], sizes = [32, 16], strides = [1, 1]} : vector<32x48xf32> to vector<32x16xf32>
    %30 = arith.truncf %29 : vector<32x16xf32> to vector<32x16xbf16>
    %31 = vector.extract_strided_slice %28 {offsets = [0, 16], sizes = [32, 16], strides = [1, 1]} : vector<32x48xf32> to vector<32x16xf32>
    %32 = arith.truncf %31 : vector<32x16xf32> to vector<32x16xbf16>
    %33 = vector.extract_strided_slice %28 {offsets = [0, 32], sizes = [32, 16], strides = [1, 1]} : vector<32x48xf32> to vector<32x16xf32>
    %34 = arith.truncf %33 : vector<32x16xf32> to vector<32x16xbf16>
    %cst_14 = arith.constant dense<0.000000e+00> : vector<32x32xf32>
    %35 = tpu.matmul %30, %32, %cst_14 {dimension_numbers = #tpu.dot_dimension_numbers<[1], [1], [0], [0], [0, 0, 1, 0], [], []>} : vector<32x16xbf16>, vector<32x16xbf16>, vector<32x32xf32> -> vector<32x32xf32>
    %cst_15 = arith.constant dense<0xFF800000> : vector<32xf32>
    %36 = vector.multi_reduction <maximumf>, %35, %cst_15 [1] : vector<32x32xf32> to vector<32xf32>
    %37 = vector.shape_cast %36 : vector<32xf32> to vector<32x1xf32>
    %38 = vector.broadcast %37 : vector<32x1xf32> to vector<32x32xf32>
    %39 = arith.subf %35, %38 : vector<32x32xf32>
    %40 = math.exp %39 : vector<32x32xf32>
    %cst_16 = arith.constant dense<0.000000e+00> : vector<32xf32>
    %41 = vector.multi_reduction <add>, %40, %cst_16 [1] : vector<32x32xf32> to vector<32xf32>
    %42 = vector.shape_cast %41 : vector<32xf32> to vector<32x1xf32>
    %43 = tpu.reciprocal %42 {approx = true} : vector<32x1xf32> -> vector<32x1xf32>
    %44 = vector.broadcast %43 : vector<32x1xf32> to vector<32x32xf32>
    %45 = arith.mulf %40, %44 : vector<32x32xf32>
    %46 = arith.truncf %45 : vector<32x32xf32> to vector<32x32xbf16>
    %cst_17 = arith.constant dense<0.000000e+00> : vector<32x16xf32>
    %47 = tpu.matmul %46, %34, %cst_17 {dimension_numbers = #tpu.dot_dimension_numbers<[1], [0], [0], [1], [0, 0, 1, 1], [], []>} : vector<32x32xbf16>, vector<32x16xbf16>, vector<32x16xf32> -> vector<32x16xf32>
    %48 = arith.truncf %47 : vector<32x16xf32> to vector<32x16xbf16>
    %c0_18 = arith.constant 0 : index
    %c0_19 = arith.constant 0 : index
    %49 = vector.load %arg7[%c0_18, %c0_19] : memref<16x32xbf16, #tpu.memory_space<vmem>>, vector<16x32xbf16>
    %cst_20 = arith.constant dense<0.000000e+00> : vector<32x32xf32>
    %50 = tpu.matmul %48, %49, %cst_20 {dimension_numbers = #tpu.dot_dimension_numbers<[1], [0], [0], [1], [0, 0, 1, 1], [], []>} : vector<32x16xbf16>, vector<16x32xbf16>, vector<32x32xf32> -> vector<32x32xf32>
    %c0_21 = arith.constant 0 : index
    %c0_22 = arith.constant 0 : index
    %51 = vector.load %arg8[%c0_21, %c0_22] : memref<1x32xf32, #tpu.memory_space<vmem>>, vector<1x32xf32>
    %52 = vector.broadcast %51 : vector<1x32xf32> to vector<32x32xf32>
    %53 = arith.addf %50, %52 : vector<32x32xf32>
    %54 = arith.addf %14, %53 : vector<32x32xf32>
    %55 = tpu.iota {dimensions = array<i32: 0>} : vector<32x32xi32>
    %56 = tpu.iota {dimensions = array<i32: 1>} : vector<32x32xi32>
    %57 = arith.cmpi eq, %55, %56 : vector<32x32xi32>
    %cst_23 = arith.constant dense<0.000000e+00> : vector<32x32xf32>
    %58 = tpu.matmul %54, %54, %cst_23 {dimension_numbers = #tpu.dot_dimension_numbers<[1], [1], [0], [0], [0, 0, 1, 0], [], []>} : vector<32x32xf32>, vector<32x32xf32>, vector<32x32xf32> -> vector<32x32xf32>
    %cst_24 = arith.constant 0.000000e+00 : f32
    %59 = vector.broadcast %cst_24 : f32 to vector<32x32xf32>
    %60 = arith.select %57, %58, %59 : vector<32x32xi1>, vector<32x32xf32>
    %cst_25 = arith.constant dense<0.000000e+00> : vector<32xf32>
    %61 = vector.multi_reduction <add>, %60, %cst_25 [0] : vector<32x32xf32> to vector<32xf32>
    %62 = vector.shape_cast %61 : vector<32xf32> to vector<1x32xf32>
    %cst_26 = arith.constant 2.000000e+00 : f32
    %63 = vector.broadcast %cst_26 : f32 to vector<32x32xf32>
    %64 = arith.mulf %63, %58 : vector<32x32xf32>
    %65 = vector.broadcast %62 : vector<1x32xf32> to vector<32x32xf32>
    %66 = arith.subf %64, %65 : vector<32x32xf32>
    %cst_27 = arith.constant dense<0xFF800000> : vector<32xf32>
    %67 = vector.multi_reduction <maximumf>, %66, %cst_27 [1] : vector<32x32xf32> to vector<32xf32>
    %68 = vector.shape_cast %67 : vector<32xf32> to vector<32x1xf32>
    %69 = vector.broadcast %68 : vector<32x1xf32> to vector<32x32xf32>
    %70 = arith.cmpf oge, %66, %69 : vector<32x32xf32>
    %c32_i32 = arith.constant 32 : i32
    %71 = vector.broadcast %c32_i32 : i32 to vector<32x32xi32>
    %72 = arith.select %70, %56, %71 : vector<32x32xi1>, vector<32x32xi32>
    %cst_28 = arith.constant dense<2147483647> : vector<32xi32>
    %73 = vector.multi_reduction <minsi>, %72, %cst_28 [1] : vector<32x32xi32> to vector<32xi32>
    %74 = vector.shape_cast %73 : vector<32xi32> to vector<32x1xi32>
    %75 = vector.broadcast %74 : vector<32x1xi32> to vector<32x32xi32>
    %76 = arith.cmpi eq, %56, %75 : vector<32x32xi32>
    %77 = arith.extui %76 : vector<32x32xi1> to vector<32x32xi32>
    %78 = arith.sitofp %77 : vector<32x32xi32> to vector<32x32xf32>
    %79 = arith.truncf %78 : vector<32x32xf32> to vector<32x32xbf16>
    %cst_29 = arith.constant 0xFF800000 : f32
    %80 = vector.broadcast %cst_29 : f32 to vector<32x32xf32>
    %81 = arith.select %76, %80, %66 : vector<32x32xi1>, vector<32x32xf32>
    %cst_30 = arith.constant dense<0xFF800000> : vector<32xf32>
    %82 = vector.multi_reduction <maximumf>, %81, %cst_30 [1] : vector<32x32xf32> to vector<32xf32>
    %83 = vector.shape_cast %82 : vector<32xf32> to vector<32x1xf32>
    %84 = vector.broadcast %83 : vector<32x1xf32> to vector<32x32xf32>
    %85 = arith.cmpf oge, %81, %84 : vector<32x32xf32>
    %c32_i32_31 = arith.constant 32 : i32
    %86 = vector.broadcast %c32_i32_31 : i32 to vector<32x32xi32>
    %87 = arith.select %85, %56, %86 : vector<32x32xi1>, vector<32x32xi32>
    %cst_32 = arith.constant dense<2147483647> : vector<32xi32>
    %88 = vector.multi_reduction <minsi>, %87, %cst_32 [1] : vector<32x32xi32> to vector<32xi32>
    %89 = vector.shape_cast %88 : vector<32xi32> to vector<32x1xi32>
    %90 = vector.broadcast %89 : vector<32x1xi32> to vector<32x32xi32>
    %91 = arith.cmpi eq, %56, %90 : vector<32x32xi32>
    %92 = arith.extui %91 : vector<32x32xi1> to vector<32x32xi32>
    %93 = arith.sitofp %92 : vector<32x32xi32> to vector<32x32xf32>
    %94 = arith.truncf %93 : vector<32x32xf32> to vector<32x32xbf16>
    %cst_33 = arith.constant 0xFF800000 : f32
    %95 = vector.broadcast %cst_33 : f32 to vector<32x32xf32>
    %96 = arith.select %91, %95, %81 : vector<32x32xi1>, vector<32x32xf32>
    %cst_34 = arith.constant dense<0xFF800000> : vector<32xf32>
    %97 = vector.multi_reduction <maximumf>, %96, %cst_34 [1] : vector<32x32xf32> to vector<32xf32>
    %98 = vector.shape_cast %97 : vector<32xf32> to vector<32x1xf32>
    %99 = vector.broadcast %98 : vector<32x1xf32> to vector<32x32xf32>
    %100 = arith.cmpf oge, %96, %99 : vector<32x32xf32>
    %c32_i32_35 = arith.constant 32 : i32
    %101 = vector.broadcast %c32_i32_35 : i32 to vector<32x32xi32>
    %102 = arith.select %100, %56, %101 : vector<32x32xi1>, vector<32x32xi32>
    %cst_36 = arith.constant dense<2147483647> : vector<32xi32>
    %103 = vector.multi_reduction <minsi>, %102, %cst_36 [1] : vector<32x32xi32> to vector<32xi32>
    %104 = vector.shape_cast %103 : vector<32xi32> to vector<32x1xi32>
    %105 = vector.broadcast %104 : vector<32x1xi32> to vector<32x32xi32>
    %106 = arith.cmpi eq, %56, %105 : vector<32x32xi32>
    %107 = arith.extui %106 : vector<32x32xi1> to vector<32x32xi32>
    %108 = arith.sitofp %107 : vector<32x32xi32> to vector<32x32xf32>
    %109 = arith.truncf %108 : vector<32x32xf32> to vector<32x32xbf16>
    %cst_37 = arith.constant 0xFF800000 : f32
    %110 = vector.broadcast %cst_37 : f32 to vector<32x32xf32>
    %111 = arith.select %106, %110, %96 : vector<32x32xi1>, vector<32x32xf32>
    %cst_38 = arith.constant dense<0xFF800000> : vector<32xf32>
    %112 = vector.multi_reduction <maximumf>, %111, %cst_38 [1] : vector<32x32xf32> to vector<32xf32>
    %113 = vector.shape_cast %112 : vector<32xf32> to vector<32x1xf32>
    %114 = vector.broadcast %113 : vector<32x1xf32> to vector<32x32xf32>
    %115 = arith.cmpf oge, %111, %114 : vector<32x32xf32>
    %c32_i32_39 = arith.constant 32 : i32
    %116 = vector.broadcast %c32_i32_39 : i32 to vector<32x32xi32>
    %117 = arith.select %115, %56, %116 : vector<32x32xi1>, vector<32x32xi32>
    %cst_40 = arith.constant dense<2147483647> : vector<32xi32>
    %118 = vector.multi_reduction <minsi>, %117, %cst_40 [1] : vector<32x32xi32> to vector<32xi32>
    %119 = vector.shape_cast %118 : vector<32xi32> to vector<32x1xi32>
    %120 = vector.broadcast %119 : vector<32x1xi32> to vector<32x32xi32>
    %121 = arith.cmpi eq, %56, %120 : vector<32x32xi32>
    %122 = arith.extui %121 : vector<32x32xi1> to vector<32x32xi32>
    %123 = arith.sitofp %122 : vector<32x32xi32> to vector<32x32xf32>
    %124 = arith.truncf %123 : vector<32x32xf32> to vector<32x32xbf16>
    %cst_41 = arith.constant 0xFF800000 : f32
    %125 = vector.broadcast %cst_41 : f32 to vector<32x32xf32>
    %126 = arith.select %121, %125, %111 : vector<32x32xi1>, vector<32x32xf32>
    %cst_42 = arith.constant dense<0xFF800000> : vector<32xf32>
    %127 = vector.multi_reduction <maximumf>, %126, %cst_42 [1] : vector<32x32xf32> to vector<32xf32>
    %128 = vector.shape_cast %127 : vector<32xf32> to vector<32x1xf32>
    %129 = vector.broadcast %128 : vector<32x1xf32> to vector<32x32xf32>
    %130 = arith.cmpf oge, %126, %129 : vector<32x32xf32>
    %c32_i32_43 = arith.constant 32 : i32
    %131 = vector.broadcast %c32_i32_43 : i32 to vector<32x32xi32>
    %132 = arith.select %130, %56, %131 : vector<32x32xi1>, vector<32x32xi32>
    %cst_44 = arith.constant dense<2147483647> : vector<32xi32>
    %133 = vector.multi_reduction <minsi>, %132, %cst_44 [1] : vector<32x32xi32> to vector<32xi32>
    %134 = vector.shape_cast %133 : vector<32xi32> to vector<32x1xi32>
    %135 = vector.broadcast %134 : vector<32x1xi32> to vector<32x32xi32>
    %136 = arith.cmpi eq, %56, %135 : vector<32x32xi32>
    %137 = arith.extui %136 : vector<32x32xi1> to vector<32x32xi32>
    %138 = arith.sitofp %137 : vector<32x32xi32> to vector<32x32xf32>
    %139 = arith.truncf %138 : vector<32x32xf32> to vector<32x32xbf16>
    %cst_45 = arith.constant 0xFF800000 : f32
    %140 = vector.broadcast %cst_45 : f32 to vector<32x32xf32>
    %141 = arith.select %136, %140, %126 : vector<32x32xi1>, vector<32x32xf32>
    %cst_46 = arith.constant dense<0xFF800000> : vector<32xf32>
    %142 = vector.multi_reduction <maximumf>, %141, %cst_46 [1] : vector<32x32xf32> to vector<32xf32>
    %143 = vector.shape_cast %142 : vector<32xf32> to vector<32x1xf32>
    %144 = vector.broadcast %143 : vector<32x1xf32> to vector<32x32xf32>
    %145 = arith.cmpf oge, %141, %144 : vector<32x32xf32>
    %c32_i32_47 = arith.constant 32 : i32
    %146 = vector.broadcast %c32_i32_47 : i32 to vector<32x32xi32>
    %147 = arith.select %145, %56, %146 : vector<32x32xi1>, vector<32x32xi32>
    %cst_48 = arith.constant dense<2147483647> : vector<32xi32>
    %148 = vector.multi_reduction <minsi>, %147, %cst_48 [1] : vector<32x32xi32> to vector<32xi32>
    %149 = vector.shape_cast %148 : vector<32xi32> to vector<32x1xi32>
    %150 = vector.broadcast %149 : vector<32x1xi32> to vector<32x32xi32>
    %151 = arith.cmpi eq, %56, %150 : vector<32x32xi32>
    %152 = arith.extui %151 : vector<32x32xi1> to vector<32x32xi32>
    %153 = arith.sitofp %152 : vector<32x32xi32> to vector<32x32xf32>
    %154 = arith.truncf %153 : vector<32x32xf32> to vector<32x32xbf16>
    %cst_49 = arith.constant 0xFF800000 : f32
    %155 = vector.broadcast %cst_49 : f32 to vector<32x32xf32>
    %156 = arith.select %151, %155, %141 : vector<32x32xi1>, vector<32x32xf32>
    %cst_50 = arith.constant dense<0xFF800000> : vector<32xf32>
    %157 = vector.multi_reduction <maximumf>, %156, %cst_50 [1] : vector<32x32xf32> to vector<32xf32>
    %158 = vector.shape_cast %157 : vector<32xf32> to vector<32x1xf32>
    %159 = vector.broadcast %158 : vector<32x1xf32> to vector<32x32xf32>
    %160 = arith.cmpf oge, %156, %159 : vector<32x32xf32>
    %c32_i32_51 = arith.constant 32 : i32
    %161 = vector.broadcast %c32_i32_51 : i32 to vector<32x32xi32>
    %162 = arith.select %160, %56, %161 : vector<32x32xi1>, vector<32x32xi32>
    %cst_52 = arith.constant dense<2147483647> : vector<32xi32>
    %163 = vector.multi_reduction <minsi>, %162, %cst_52 [1] : vector<32x32xi32> to vector<32xi32>
    %164 = vector.shape_cast %163 : vector<32xi32> to vector<32x1xi32>
    %165 = vector.broadcast %164 : vector<32x1xi32> to vector<32x32xi32>
    %166 = arith.cmpi eq, %56, %165 : vector<32x32xi32>
    %167 = arith.extui %166 : vector<32x32xi1> to vector<32x32xi32>
    %168 = arith.sitofp %167 : vector<32x32xi32> to vector<32x32xf32>
    %169 = arith.truncf %168 : vector<32x32xf32> to vector<32x32xbf16>
    %cst_53 = arith.constant 0xFF800000 : f32
    %170 = vector.broadcast %cst_53 : f32 to vector<32x32xf32>
    %171 = arith.select %166, %170, %156 : vector<32x32xi1>, vector<32x32xf32>
    %cst_54 = arith.constant dense<0xFF800000> : vector<32xf32>
    %172 = vector.multi_reduction <maximumf>, %171, %cst_54 [1] : vector<32x32xf32> to vector<32xf32>
    %173 = vector.shape_cast %172 : vector<32xf32> to vector<32x1xf32>
    %174 = vector.broadcast %173 : vector<32x1xf32> to vector<32x32xf32>
    %175 = arith.cmpf oge, %171, %174 : vector<32x32xf32>
    %c32_i32_55 = arith.constant 32 : i32
    %176 = vector.broadcast %c32_i32_55 : i32 to vector<32x32xi32>
    %177 = arith.select %175, %56, %176 : vector<32x32xi1>, vector<32x32xi32>
    %cst_56 = arith.constant dense<2147483647> : vector<32xi32>
    %178 = vector.multi_reduction <minsi>, %177, %cst_56 [1] : vector<32x32xi32> to vector<32xi32>
    %179 = vector.shape_cast %178 : vector<32xi32> to vector<32x1xi32>
    %180 = vector.broadcast %179 : vector<32x1xi32> to vector<32x32xi32>
    %181 = arith.cmpi eq, %56, %180 : vector<32x32xi32>
    %182 = arith.extui %181 : vector<32x32xi1> to vector<32x32xi32>
    %183 = arith.sitofp %182 : vector<32x32xi32> to vector<32x32xf32>
    %184 = arith.truncf %183 : vector<32x32xf32> to vector<32x32xbf16>
    %cst_57 = arith.constant 0xFF800000 : f32
    %185 = vector.broadcast %cst_57 : f32 to vector<32x32xf32>
    %186 = arith.select %181, %185, %171 : vector<32x32xi1>, vector<32x32xf32>
    %cst_58 = arith.constant dense<0xFF800000> : vector<32xf32>
    %187 = vector.multi_reduction <maximumf>, %186, %cst_58 [1] : vector<32x32xf32> to vector<32xf32>
    %188 = vector.shape_cast %187 : vector<32xf32> to vector<32x1xf32>
    %189 = vector.broadcast %188 : vector<32x1xf32> to vector<32x32xf32>
    %190 = arith.cmpf oge, %186, %189 : vector<32x32xf32>
    %c32_i32_59 = arith.constant 32 : i32
    %191 = vector.broadcast %c32_i32_59 : i32 to vector<32x32xi32>
    %192 = arith.select %190, %56, %191 : vector<32x32xi1>, vector<32x32xi32>
    %cst_60 = arith.constant dense<2147483647> : vector<32xi32>
    %193 = vector.multi_reduction <minsi>, %192, %cst_60 [1] : vector<32x32xi32> to vector<32xi32>
    %194 = vector.shape_cast %193 : vector<32xi32> to vector<32x1xi32>
    %195 = vector.broadcast %194 : vector<32x1xi32> to vector<32x32xi32>
    %196 = arith.cmpi eq, %56, %195 : vector<32x32xi32>
    %197 = arith.extui %196 : vector<32x32xi1> to vector<32x32xi32>
    %198 = arith.sitofp %197 : vector<32x32xi32> to vector<32x32xf32>
    %199 = arith.truncf %198 : vector<32x32xf32> to vector<32x32xbf16>
    %cst_61 = arith.constant 0xFF800000 : f32
    %200 = vector.broadcast %cst_61 : f32 to vector<32x32xf32>
    %201 = arith.select %196, %200, %186 : vector<32x32xi1>, vector<32x32xf32>
    %cst_62 = arith.constant dense<0xFF800000> : vector<32xf32>
    %202 = vector.multi_reduction <maximumf>, %201, %cst_62 [1] : vector<32x32xf32> to vector<32xf32>
    %203 = vector.shape_cast %202 : vector<32xf32> to vector<32x1xf32>
    %204 = vector.broadcast %203 : vector<32x1xf32> to vector<32x32xf32>
    %205 = arith.cmpf oge, %201, %204 : vector<32x32xf32>
    %c32_i32_63 = arith.constant 32 : i32
    %206 = vector.broadcast %c32_i32_63 : i32 to vector<32x32xi32>
    %207 = arith.select %205, %56, %206 : vector<32x32xi1>, vector<32x32xi32>
    %cst_64 = arith.constant dense<2147483647> : vector<32xi32>
    %208 = vector.multi_reduction <minsi>, %207, %cst_64 [1] : vector<32x32xi32> to vector<32xi32>
    %209 = vector.shape_cast %208 : vector<32xi32> to vector<32x1xi32>
    %210 = vector.broadcast %209 : vector<32x1xi32> to vector<32x32xi32>
    %211 = arith.cmpi eq, %56, %210 : vector<32x32xi32>
    %212 = arith.extui %211 : vector<32x32xi1> to vector<32x32xi32>
    %213 = arith.sitofp %212 : vector<32x32xi32> to vector<32x32xf32>
    %214 = arith.truncf %213 : vector<32x32xf32> to vector<32x32xbf16>
    %215 = tpu.concatenate %79, %94, %109, %124, %139, %154, %169, %184, %199, %214 in 0 : vector<32x32xbf16>, vector<32x32xbf16>, vector<32x32xbf16>, vector<32x32xbf16>, vector<32x32xbf16>, vector<32x32xbf16>, vector<32x32xbf16>, vector<32x32xbf16>, vector<32x32xbf16>, vector<32x32xbf16> -> vector<320x32xbf16>
    %216 = arith.truncf %54 : vector<32x32xf32> to vector<32x32xbf16>
    %c0_65 = arith.constant 0 : index
    %c0_66 = arith.constant 0 : index
    %c0_67 = arith.constant 0 : index
    %217 = vector.load %arg9[%c0_65, %c0_66, %c0_67] : memref<3x32x64xbf16, #tpu.memory_space<vmem>>, vector<1x32x64xbf16>
    %218 = vector.shape_cast %217 : vector<1x32x64xbf16> to vector<32x64xbf16>
    %cst_68 = arith.constant dense<0.000000e+00> : vector<32x64xf32>
    %219 = tpu.matmul %216, %218, %cst_68 {dimension_numbers = #tpu.dot_dimension_numbers<[1], [0], [0], [1], [0, 0, 1, 1], [], []>} : vector<32x32xbf16>, vector<32x64xbf16>, vector<32x64xf32> -> vector<32x64xf32>
    %220 = vector.extract_strided_slice %219 {offsets = [0, 0], sizes = [32, 32], strides = [1, 1]} : vector<32x64xf32> to vector<32x32xf32>
    %221 = arith.truncf %220 : vector<32x32xf32> to vector<32x32xbf16>
    %222 = vector.extract_strided_slice %219 {offsets = [0, 32], sizes = [32, 32], strides = [1, 1]} : vector<32x64xf32> to vector<32x32xf32>
    %c0_69 = arith.constant 0 : index
    %c0_70 = arith.constant 0 : index
    %c0_71 = arith.constant 0 : index
    %223 = vector.load %arg10[%c0_69, %c0_70, %c0_71] : memref<3x1x32xf32, #tpu.memory_space<vmem>>, vector<1x1x32xf32>
    %224 = vector.shape_cast %223 : vector<1x1x32xf32> to vector<1x32xf32>
    %225 = vector.broadcast %224 : vector<1x32xf32> to vector<32x32xf32>
    %226 = arith.addf %222, %225 : vector<32x32xf32>
    %cst_72 = arith.constant dense<0.000000e+00> : vector<320x32xf32>
    %227 = tpu.matmul %215, %221, %cst_72 {dimension_numbers = #tpu.dot_dimension_numbers<[1], [0], [0], [1], [0, 0, 1, 1], [], []>} : vector<320x32xbf16>, vector<32x32xbf16>, vector<320x32xf32> -> vector<320x32xf32>
    %228 = vector.extract_strided_slice %227 {offsets = [0, 0], sizes = [32, 32], strides = [1, 1]} : vector<320x32xf32> to vector<32x32xf32>
    %229 = vector.extract_strided_slice %227 {offsets = [32, 0], sizes = [32, 32], strides = [1, 1]} : vector<320x32xf32> to vector<32x32xf32>
    %230 = arith.maximumf %228, %229 : vector<32x32xf32>
    %231 = vector.extract_strided_slice %227 {offsets = [64, 0], sizes = [32, 32], strides = [1, 1]} : vector<320x32xf32> to vector<32x32xf32>
    %232 = arith.maximumf %230, %231 : vector<32x32xf32>
    %233 = vector.extract_strided_slice %227 {offsets = [96, 0], sizes = [32, 32], strides = [1, 1]} : vector<320x32xf32> to vector<32x32xf32>
    %234 = arith.maximumf %232, %233 : vector<32x32xf32>
    %235 = vector.extract_strided_slice %227 {offsets = [128, 0], sizes = [32, 32], strides = [1, 1]} : vector<320x32xf32> to vector<32x32xf32>
    %236 = arith.maximumf %234, %235 : vector<32x32xf32>
    %237 = vector.extract_strided_slice %227 {offsets = [160, 0], sizes = [32, 32], strides = [1, 1]} : vector<320x32xf32> to vector<32x32xf32>
    %238 = arith.maximumf %236, %237 : vector<32x32xf32>
    %239 = vector.extract_strided_slice %227 {offsets = [192, 0], sizes = [32, 32], strides = [1, 1]} : vector<320x32xf32> to vector<32x32xf32>
    %240 = arith.maximumf %238, %239 : vector<32x32xf32>
    %241 = vector.extract_strided_slice %227 {offsets = [224, 0], sizes = [32, 32], strides = [1, 1]} : vector<320x32xf32> to vector<32x32xf32>
    %242 = arith.maximumf %240, %241 : vector<32x32xf32>
    %243 = vector.extract_strided_slice %227 {offsets = [256, 0], sizes = [32, 32], strides = [1, 1]} : vector<320x32xf32> to vector<32x32xf32>
    %244 = arith.maximumf %242, %243 : vector<32x32xf32>
    %245 = vector.extract_strided_slice %227 {offsets = [288, 0], sizes = [32, 32], strides = [1, 1]} : vector<320x32xf32> to vector<32x32xf32>
    %246 = arith.maximumf %244, %245 : vector<32x32xf32>
    %247 = arith.addf %246, %226 : vector<32x32xf32>
    %cst_73 = arith.constant 0.000000e+00 : f32
    %248 = vector.broadcast %cst_73 : f32 to vector<32x32xf32>
    %249 = arith.cmpf ogt, %247, %248 : vector<32x32xf32>
    %cst_74 = arith.constant 2.000000e-01 : f32
    %250 = vector.broadcast %cst_74 : f32 to vector<32x32xf32>
    %251 = arith.mulf %250, %247 : vector<32x32xf32>
    %252 = arith.select %249, %247, %251 : vector<32x32xi1>, vector<32x32xf32>
    %cst_75 = arith.constant dense<0.000000e+00> : vector<32x32xf32>
    %253 = tpu.matmul %252, %252, %cst_75 {dimension_numbers = #tpu.dot_dimension_numbers<[1], [1], [0], [0], [0, 0, 1, 0], [], []>} : vector<32x32xf32>, vector<32x32xf32>, vector<32x32xf32> -> vector<32x32xf32>
    %cst_76 = arith.constant 0.000000e+00 : f32
    %254 = vector.broadcast %cst_76 : f32 to vector<32x32xf32>
    %255 = arith.select %57, %253, %254 : vector<32x32xi1>, vector<32x32xf32>
    %cst_77 = arith.constant dense<0.000000e+00> : vector<32xf32>
    %256 = vector.multi_reduction <add>, %255, %cst_77 [0] : vector<32x32xf32> to vector<32xf32>
    %257 = vector.shape_cast %256 : vector<32xf32> to vector<1x32xf32>
    %cst_78 = arith.constant 2.000000e+00 : f32
    %258 = vector.broadcast %cst_78 : f32 to vector<32x32xf32>
    %259 = arith.mulf %258, %253 : vector<32x32xf32>
    %260 = vector.broadcast %257 : vector<1x32xf32> to vector<32x32xf32>
    %261 = arith.subf %259, %260 : vector<32x32xf32>
    %cst_79 = arith.constant dense<0xFF800000> : vector<32xf32>
    %262 = vector.multi_reduction <maximumf>, %261, %cst_79 [1] : vector<32x32xf32> to vector<32xf32>
    %263 = vector.shape_cast %262 : vector<32xf32> to vector<32x1xf32>
    %264 = vector.broadcast %263 : vector<32x1xf32> to vector<32x32xf32>
    %265 = arith.cmpf oge, %261, %264 : vector<32x32xf32>
    %c32_i32_80 = arith.constant 32 : i32
    %266 = vector.broadcast %c32_i32_80 : i32 to vector<32x32xi32>
    %267 = arith.select %265, %56, %266 : vector<32x32xi1>, vector<32x32xi32>
    %cst_81 = arith.constant dense<2147483647> : vector<32xi32>
    %268 = vector.multi_reduction <minsi>, %267, %cst_81 [1] : vector<32x32xi32> to vector<32xi32>
    %269 = vector.shape_cast %268 : vector<32xi32> to vector<32x1xi32>
    %270 = vector.broadcast %269 : vector<32x1xi32> to vector<32x32xi32>
    %271 = arith.cmpi eq, %56, %270 : vector<32x32xi32>
    %272 = arith.extui %271 : vector<32x32xi1> to vector<32x32xi32>
    %273 = arith.sitofp %272 : vector<32x32xi32> to vector<32x32xf32>
    %274 = arith.truncf %273 : vector<32x32xf32> to vector<32x32xbf16>
    %cst_82 = arith.constant 0xFF800000 : f32
    %275 = vector.broadcast %cst_82 : f32 to vector<32x32xf32>
    %276 = arith.select %271, %275, %261 : vector<32x32xi1>, vector<32x32xf32>
    %cst_83 = arith.constant dense<0xFF800000> : vector<32xf32>
    %277 = vector.multi_reduction <maximumf>, %276, %cst_83 [1] : vector<32x32xf32> to vector<32xf32>
    %278 = vector.shape_cast %277 : vector<32xf32> to vector<32x1xf32>
    %279 = vector.broadcast %278 : vector<32x1xf32> to vector<32x32xf32>
    %280 = arith.cmpf oge, %276, %279 : vector<32x32xf32>
    %c32_i32_84 = arith.constant 32 : i32
    %281 = vector.broadcast %c32_i32_84 : i32 to vector<32x32xi32>
    %282 = arith.select %280, %56, %281 : vector<32x32xi1>, vector<32x32xi32>
    %cst_85 = arith.constant dense<2147483647> : vector<32xi32>
    %283 = vector.multi_reduction <minsi>, %282, %cst_85 [1] : vector<32x32xi32> to vector<32xi32>
    %284 = vector.shape_cast %283 : vector<32xi32> to vector<32x1xi32>
    %285 = vector.broadcast %284 : vector<32x1xi32> to vector<32x32xi32>
    %286 = arith.cmpi eq, %56, %285 : vector<32x32xi32>
    %287 = arith.extui %286 : vector<32x32xi1> to vector<32x32xi32>
    %288 = arith.sitofp %287 : vector<32x32xi32> to vector<32x32xf32>
    %289 = arith.truncf %288 : vector<32x32xf32> to vector<32x32xbf16>
    %cst_86 = arith.constant 0xFF800000 : f32
    %290 = vector.broadcast %cst_86 : f32 to vector<32x32xf32>
    %291 = arith.select %286, %290, %276 : vector<32x32xi1>, vector<32x32xf32>
    %cst_87 = arith.constant dense<0xFF800000> : vector<32xf32>
    %292 = vector.multi_reduction <maximumf>, %291, %cst_87 [1] : vector<32x32xf32> to vector<32xf32>
    %293 = vector.shape_cast %292 : vector<32xf32> to vector<32x1xf32>
    %294 = vector.broadcast %293 : vector<32x1xf32> to vector<32x32xf32>
    %295 = arith.cmpf oge, %291, %294 : vector<32x32xf32>
    %c32_i32_88 = arith.constant 32 : i32
    %296 = vector.broadcast %c32_i32_88 : i32 to vector<32x32xi32>
    %297 = arith.select %295, %56, %296 : vector<32x32xi1>, vector<32x32xi32>
    %cst_89 = arith.constant dense<2147483647> : vector<32xi32>
    %298 = vector.multi_reduction <minsi>, %297, %cst_89 [1] : vector<32x32xi32> to vector<32xi32>
    %299 = vector.shape_cast %298 : vector<32xi32> to vector<32x1xi32>
    %300 = vector.broadcast %299 : vector<32x1xi32> to vector<32x32xi32>
    %301 = arith.cmpi eq, %56, %300 : vector<32x32xi32>
    %302 = arith.extui %301 : vector<32x32xi1> to vector<32x32xi32>
    %303 = arith.sitofp %302 : vector<32x32xi32> to vector<32x32xf32>
    %304 = arith.truncf %303 : vector<32x32xf32> to vector<32x32xbf16>
    %cst_90 = arith.constant 0xFF800000 : f32
    %305 = vector.broadcast %cst_90 : f32 to vector<32x32xf32>
    %306 = arith.select %301, %305, %291 : vector<32x32xi1>, vector<32x32xf32>
    %cst_91 = arith.constant dense<0xFF800000> : vector<32xf32>
    %307 = vector.multi_reduction <maximumf>, %306, %cst_91 [1] : vector<32x32xf32> to vector<32xf32>
    %308 = vector.shape_cast %307 : vector<32xf32> to vector<32x1xf32>
    %309 = vector.broadcast %308 : vector<32x1xf32> to vector<32x32xf32>
    %310 = arith.cmpf oge, %306, %309 : vector<32x32xf32>
    %c32_i32_92 = arith.constant 32 : i32
    %311 = vector.broadcast %c32_i32_92 : i32 to vector<32x32xi32>
    %312 = arith.select %310, %56, %311 : vector<32x32xi1>, vector<32x32xi32>
    %cst_93 = arith.constant dense<2147483647> : vector<32xi32>
    %313 = vector.multi_reduction <minsi>, %312, %cst_93 [1] : vector<32x32xi32> to vector<32xi32>
    %314 = vector.shape_cast %313 : vector<32xi32> to vector<32x1xi32>
    %315 = vector.broadcast %314 : vector<32x1xi32> to vector<32x32xi32>
    %316 = arith.cmpi eq, %56, %315 : vector<32x32xi32>
    %317 = arith.extui %316 : vector<32x32xi1> to vector<32x32xi32>
    %318 = arith.sitofp %317 : vector<32x32xi32> to vector<32x32xf32>
    %319 = arith.truncf %318 : vector<32x32xf32> to vector<32x32xbf16>
    %cst_94 = arith.constant 0xFF800000 : f32
    %320 = vector.broadcast %cst_94 : f32 to vector<32x32xf32>
    %321 = arith.select %316, %320, %306 : vector<32x32xi1>, vector<32x32xf32>
    %cst_95 = arith.constant dense<0xFF800000> : vector<32xf32>
    %322 = vector.multi_reduction <maximumf>, %321, %cst_95 [1] : vector<32x32xf32> to vector<32xf32>
    %323 = vector.shape_cast %322 : vector<32xf32> to vector<32x1xf32>
    %324 = vector.broadcast %323 : vector<32x1xf32> to vector<32x32xf32>
    %325 = arith.cmpf oge, %321, %324 : vector<32x32xf32>
    %c32_i32_96 = arith.constant 32 : i32
    %326 = vector.broadcast %c32_i32_96 : i32 to vector<32x32xi32>
    %327 = arith.select %325, %56, %326 : vector<32x32xi1>, vector<32x32xi32>
    %cst_97 = arith.constant dense<2147483647> : vector<32xi32>
    %328 = vector.multi_reduction <minsi>, %327, %cst_97 [1] : vector<32x32xi32> to vector<32xi32>
    %329 = vector.shape_cast %328 : vector<32xi32> to vector<32x1xi32>
    %330 = vector.broadcast %329 : vector<32x1xi32> to vector<32x32xi32>
    %331 = arith.cmpi eq, %56, %330 : vector<32x32xi32>
    %332 = arith.extui %331 : vector<32x32xi1> to vector<32x32xi32>
    %333 = arith.sitofp %332 : vector<32x32xi32> to vector<32x32xf32>
    %334 = arith.truncf %333 : vector<32x32xf32> to vector<32x32xbf16>
    %cst_98 = arith.constant 0xFF800000 : f32
    %335 = vector.broadcast %cst_98 : f32 to vector<32x32xf32>
    %336 = arith.select %331, %335, %321 : vector<32x32xi1>, vector<32x32xf32>
    %cst_99 = arith.constant dense<0xFF800000> : vector<32xf32>
    %337 = vector.multi_reduction <maximumf>, %336, %cst_99 [1] : vector<32x32xf32> to vector<32xf32>
    %338 = vector.shape_cast %337 : vector<32xf32> to vector<32x1xf32>
    %339 = vector.broadcast %338 : vector<32x1xf32> to vector<32x32xf32>
    %340 = arith.cmpf oge, %336, %339 : vector<32x32xf32>
    %c32_i32_100 = arith.constant 32 : i32
    %341 = vector.broadcast %c32_i32_100 : i32 to vector<32x32xi32>
    %342 = arith.select %340, %56, %341 : vector<32x32xi1>, vector<32x32xi32>
    %cst_101 = arith.constant dense<2147483647> : vector<32xi32>
    %343 = vector.multi_reduction <minsi>, %342, %cst_101 [1] : vector<32x32xi32> to vector<32xi32>
    %344 = vector.shape_cast %343 : vector<32xi32> to vector<32x1xi32>
    %345 = vector.broadcast %344 : vector<32x1xi32> to vector<32x32xi32>
    %346 = arith.cmpi eq, %56, %345 : vector<32x32xi32>
    %347 = arith.extui %346 : vector<32x32xi1> to vector<32x32xi32>
    %348 = arith.sitofp %347 : vector<32x32xi32> to vector<32x32xf32>
    %349 = arith.truncf %348 : vector<32x32xf32> to vector<32x32xbf16>
    %cst_102 = arith.constant 0xFF800000 : f32
    %350 = vector.broadcast %cst_102 : f32 to vector<32x32xf32>
    %351 = arith.select %346, %350, %336 : vector<32x32xi1>, vector<32x32xf32>
    %cst_103 = arith.constant dense<0xFF800000> : vector<32xf32>
    %352 = vector.multi_reduction <maximumf>, %351, %cst_103 [1] : vector<32x32xf32> to vector<32xf32>
    %353 = vector.shape_cast %352 : vector<32xf32> to vector<32x1xf32>
    %354 = vector.broadcast %353 : vector<32x1xf32> to vector<32x32xf32>
    %355 = arith.cmpf oge, %351, %354 : vector<32x32xf32>
    %c32_i32_104 = arith.constant 32 : i32
    %356 = vector.broadcast %c32_i32_104 : i32 to vector<32x32xi32>
    %357 = arith.select %355, %56, %356 : vector<32x32xi1>, vector<32x32xi32>
    %cst_105 = arith.constant dense<2147483647> : vector<32xi32>
    %358 = vector.multi_reduction <minsi>, %357, %cst_105 [1] : vector<32x32xi32> to vector<32xi32>
    %359 = vector.shape_cast %358 : vector<32xi32> to vector<32x1xi32>
    %360 = vector.broadcast %359 : vector<32x1xi32> to vector<32x32xi32>
    %361 = arith.cmpi eq, %56, %360 : vector<32x32xi32>
    %362 = arith.extui %361 : vector<32x32xi1> to vector<32x32xi32>
    %363 = arith.sitofp %362 : vector<32x32xi32> to vector<32x32xf32>
    %364 = arith.truncf %363 : vector<32x32xf32> to vector<32x32xbf16>
    %cst_106 = arith.constant 0xFF800000 : f32
    %365 = vector.broadcast %cst_106 : f32 to vector<32x32xf32>
    %366 = arith.select %361, %365, %351 : vector<32x32xi1>, vector<32x32xf32>
    %cst_107 = arith.constant dense<0xFF800000> : vector<32xf32>
    %367 = vector.multi_reduction <maximumf>, %366, %cst_107 [1] : vector<32x32xf32> to vector<32xf32>
    %368 = vector.shape_cast %367 : vector<32xf32> to vector<32x1xf32>
    %369 = vector.broadcast %368 : vector<32x1xf32> to vector<32x32xf32>
    %370 = arith.cmpf oge, %366, %369 : vector<32x32xf32>
    %c32_i32_108 = arith.constant 32 : i32
    %371 = vector.broadcast %c32_i32_108 : i32 to vector<32x32xi32>
    %372 = arith.select %370, %56, %371 : vector<32x32xi1>, vector<32x32xi32>
    %cst_109 = arith.constant dense<2147483647> : vector<32xi32>
    %373 = vector.multi_reduction <minsi>, %372, %cst_109 [1] : vector<32x32xi32> to vector<32xi32>
    %374 = vector.shape_cast %373 : vector<32xi32> to vector<32x1xi32>
    %375 = vector.broadcast %374 : vector<32x1xi32> to vector<32x32xi32>
    %376 = arith.cmpi eq, %56, %375 : vector<32x32xi32>
    %377 = arith.extui %376 : vector<32x32xi1> to vector<32x32xi32>
    %378 = arith.sitofp %377 : vector<32x32xi32> to vector<32x32xf32>
    %379 = arith.truncf %378 : vector<32x32xf32> to vector<32x32xbf16>
    %cst_110 = arith.constant 0xFF800000 : f32
    %380 = vector.broadcast %cst_110 : f32 to vector<32x32xf32>
    %381 = arith.select %376, %380, %366 : vector<32x32xi1>, vector<32x32xf32>
    %cst_111 = arith.constant dense<0xFF800000> : vector<32xf32>
    %382 = vector.multi_reduction <maximumf>, %381, %cst_111 [1] : vector<32x32xf32> to vector<32xf32>
    %383 = vector.shape_cast %382 : vector<32xf32> to vector<32x1xf32>
    %384 = vector.broadcast %383 : vector<32x1xf32> to vector<32x32xf32>
    %385 = arith.cmpf oge, %381, %384 : vector<32x32xf32>
    %c32_i32_112 = arith.constant 32 : i32
    %386 = vector.broadcast %c32_i32_112 : i32 to vector<32x32xi32>
    %387 = arith.select %385, %56, %386 : vector<32x32xi1>, vector<32x32xi32>
    %cst_113 = arith.constant dense<2147483647> : vector<32xi32>
    %388 = vector.multi_reduction <minsi>, %387, %cst_113 [1] : vector<32x32xi32> to vector<32xi32>
    %389 = vector.shape_cast %388 : vector<32xi32> to vector<32x1xi32>
    %390 = vector.broadcast %389 : vector<32x1xi32> to vector<32x32xi32>
    %391 = arith.cmpi eq, %56, %390 : vector<32x32xi32>
    %392 = arith.extui %391 : vector<32x32xi1> to vector<32x32xi32>
    %393 = arith.sitofp %392 : vector<32x32xi32> to vector<32x32xf32>
    %394 = arith.truncf %393 : vector<32x32xf32> to vector<32x32xbf16>
    %cst_114 = arith.constant 0xFF800000 : f32
    %395 = vector.broadcast %cst_114 : f32 to vector<32x32xf32>
    %396 = arith.select %391, %395, %381 : vector<32x32xi1>, vector<32x32xf32>
    %cst_115 = arith.constant dense<0xFF800000> : vector<32xf32>
    %397 = vector.multi_reduction <maximumf>, %396, %cst_115 [1] : vector<32x32xf32> to vector<32xf32>
    %398 = vector.shape_cast %397 : vector<32xf32> to vector<32x1xf32>
    %399 = vector.broadcast %398 : vector<32x1xf32> to vector<32x32xf32>
    %400 = arith.cmpf oge, %396, %399 : vector<32x32xf32>
    %c32_i32_116 = arith.constant 32 : i32
    %401 = vector.broadcast %c32_i32_116 : i32 to vector<32x32xi32>
    %402 = arith.select %400, %56, %401 : vector<32x32xi1>, vector<32x32xi32>
    %cst_117 = arith.constant dense<2147483647> : vector<32xi32>
    %403 = vector.multi_reduction <minsi>, %402, %cst_117 [1] : vector<32x32xi32> to vector<32xi32>
    %404 = vector.shape_cast %403 : vector<32xi32> to vector<32x1xi32>
    %405 = vector.broadcast %404 : vector<32x1xi32> to vector<32x32xi32>
    %406 = arith.cmpi eq, %56, %405 : vector<32x32xi32>
    %407 = arith.extui %406 : vector<32x32xi1> to vector<32x32xi32>
    %408 = arith.sitofp %407 : vector<32x32xi32> to vector<32x32xf32>
    %409 = arith.truncf %408 : vector<32x32xf32> to vector<32x32xbf16>
    %410 = tpu.concatenate %274, %289, %304, %319, %334, %349, %364, %379, %394, %409 in 0 : vector<32x32xbf16>, vector<32x32xbf16>, vector<32x32xbf16>, vector<32x32xbf16>, vector<32x32xbf16>, vector<32x32xbf16>, vector<32x32xbf16>, vector<32x32xbf16>, vector<32x32xbf16>, vector<32x32xbf16> -> vector<320x32xbf16>
    %411 = arith.truncf %252 : vector<32x32xf32> to vector<32x32xbf16>
    %c1 = arith.constant 1 : index
    %c0_118 = arith.constant 0 : index
    %c0_119 = arith.constant 0 : index
    %412 = vector.load %arg9[%c1, %c0_118, %c0_119] : memref<3x32x64xbf16, #tpu.memory_space<vmem>>, vector<1x32x64xbf16>
    %413 = vector.shape_cast %412 : vector<1x32x64xbf16> to vector<32x64xbf16>
    %cst_120 = arith.constant dense<0.000000e+00> : vector<32x64xf32>
    %414 = tpu.matmul %411, %413, %cst_120 {dimension_numbers = #tpu.dot_dimension_numbers<[1], [0], [0], [1], [0, 0, 1, 1], [], []>} : vector<32x32xbf16>, vector<32x64xbf16>, vector<32x64xf32> -> vector<32x64xf32>
    %415 = vector.extract_strided_slice %414 {offsets = [0, 0], sizes = [32, 32], strides = [1, 1]} : vector<32x64xf32> to vector<32x32xf32>
    %416 = arith.truncf %415 : vector<32x32xf32> to vector<32x32xbf16>
    %417 = vector.extract_strided_slice %414 {offsets = [0, 32], sizes = [32, 32], strides = [1, 1]} : vector<32x64xf32> to vector<32x32xf32>
    %c1_121 = arith.constant 1 : index
    %c0_122 = arith.constant 0 : index
    %c0_123 = arith.constant 0 : index
    %418 = vector.load %arg10[%c1_121, %c0_122, %c0_123] : memref<3x1x32xf32, #tpu.memory_space<vmem>>, vector<1x1x32xf32>
    %419 = vector.shape_cast %418 : vector<1x1x32xf32> to vector<1x32xf32>
    %420 = vector.broadcast %419 : vector<1x32xf32> to vector<32x32xf32>
    %421 = arith.addf %417, %420 : vector<32x32xf32>
    %cst_124 = arith.constant dense<0.000000e+00> : vector<320x32xf32>
    %422 = tpu.matmul %410, %416, %cst_124 {dimension_numbers = #tpu.dot_dimension_numbers<[1], [0], [0], [1], [0, 0, 1, 1], [], []>} : vector<320x32xbf16>, vector<32x32xbf16>, vector<320x32xf32> -> vector<320x32xf32>
    %423 = vector.extract_strided_slice %422 {offsets = [0, 0], sizes = [32, 32], strides = [1, 1]} : vector<320x32xf32> to vector<32x32xf32>
    %424 = vector.extract_strided_slice %422 {offsets = [32, 0], sizes = [32, 32], strides = [1, 1]} : vector<320x32xf32> to vector<32x32xf32>
    %425 = arith.maximumf %423, %424 : vector<32x32xf32>
    %426 = vector.extract_strided_slice %422 {offsets = [64, 0], sizes = [32, 32], strides = [1, 1]} : vector<320x32xf32> to vector<32x32xf32>
    %427 = arith.maximumf %425, %426 : vector<32x32xf32>
    %428 = vector.extract_strided_slice %422 {offsets = [96, 0], sizes = [32, 32], strides = [1, 1]} : vector<320x32xf32> to vector<32x32xf32>
    %429 = arith.maximumf %427, %428 : vector<32x32xf32>
    %430 = vector.extract_strided_slice %422 {offsets = [128, 0], sizes = [32, 32], strides = [1, 1]} : vector<320x32xf32> to vector<32x32xf32>
    %431 = arith.maximumf %429, %430 : vector<32x32xf32>
    %432 = vector.extract_strided_slice %422 {offsets = [160, 0], sizes = [32, 32], strides = [1, 1]} : vector<320x32xf32> to vector<32x32xf32>
    %433 = arith.maximumf %431, %432 : vector<32x32xf32>
    %434 = vector.extract_strided_slice %422 {offsets = [192, 0], sizes = [32, 32], strides = [1, 1]} : vector<320x32xf32> to vector<32x32xf32>
    %435 = arith.maximumf %433, %434 : vector<32x32xf32>
    %436 = vector.extract_strided_slice %422 {offsets = [224, 0], sizes = [32, 32], strides = [1, 1]} : vector<320x32xf32> to vector<32x32xf32>
    %437 = arith.maximumf %435, %436 : vector<32x32xf32>
    %438 = vector.extract_strided_slice %422 {offsets = [256, 0], sizes = [32, 32], strides = [1, 1]} : vector<320x32xf32> to vector<32x32xf32>
    %439 = arith.maximumf %437, %438 : vector<32x32xf32>
    %440 = vector.extract_strided_slice %422 {offsets = [288, 0], sizes = [32, 32], strides = [1, 1]} : vector<320x32xf32> to vector<32x32xf32>
    %441 = arith.maximumf %439, %440 : vector<32x32xf32>
    %442 = arith.addf %441, %421 : vector<32x32xf32>
    %cst_125 = arith.constant 0.000000e+00 : f32
    %443 = vector.broadcast %cst_125 : f32 to vector<32x32xf32>
    %444 = arith.cmpf ogt, %442, %443 : vector<32x32xf32>
    %cst_126 = arith.constant 2.000000e-01 : f32
    %445 = vector.broadcast %cst_126 : f32 to vector<32x32xf32>
    %446 = arith.mulf %445, %442 : vector<32x32xf32>
    %447 = arith.select %444, %442, %446 : vector<32x32xi1>, vector<32x32xf32>
    %cst_127 = arith.constant dense<0.000000e+00> : vector<32x32xf32>
    %448 = tpu.matmul %447, %447, %cst_127 {dimension_numbers = #tpu.dot_dimension_numbers<[1], [1], [0], [0], [0, 0, 1, 0], [], []>} : vector<32x32xf32>, vector<32x32xf32>, vector<32x32xf32> -> vector<32x32xf32>
    %cst_128 = arith.constant 0.000000e+00 : f32
    %449 = vector.broadcast %cst_128 : f32 to vector<32x32xf32>
    %450 = arith.select %57, %448, %449 : vector<32x32xi1>, vector<32x32xf32>
    %cst_129 = arith.constant dense<0.000000e+00> : vector<32xf32>
    %451 = vector.multi_reduction <add>, %450, %cst_129 [0] : vector<32x32xf32> to vector<32xf32>
    %452 = vector.shape_cast %451 : vector<32xf32> to vector<1x32xf32>
    %cst_130 = arith.constant 2.000000e+00 : f32
    %453 = vector.broadcast %cst_130 : f32 to vector<32x32xf32>
    %454 = arith.mulf %453, %448 : vector<32x32xf32>
    %455 = vector.broadcast %452 : vector<1x32xf32> to vector<32x32xf32>
    %456 = arith.subf %454, %455 : vector<32x32xf32>
    %cst_131 = arith.constant dense<0xFF800000> : vector<32xf32>
    %457 = vector.multi_reduction <maximumf>, %456, %cst_131 [1] : vector<32x32xf32> to vector<32xf32>
    %458 = vector.shape_cast %457 : vector<32xf32> to vector<32x1xf32>
    %459 = vector.broadcast %458 : vector<32x1xf32> to vector<32x32xf32>
    %460 = arith.cmpf oge, %456, %459 : vector<32x32xf32>
    %c32_i32_132 = arith.constant 32 : i32
    %461 = vector.broadcast %c32_i32_132 : i32 to vector<32x32xi32>
    %462 = arith.select %460, %56, %461 : vector<32x32xi1>, vector<32x32xi32>
    %cst_133 = arith.constant dense<2147483647> : vector<32xi32>
    %463 = vector.multi_reduction <minsi>, %462, %cst_133 [1] : vector<32x32xi32> to vector<32xi32>
    %464 = vector.shape_cast %463 : vector<32xi32> to vector<32x1xi32>
    %465 = vector.broadcast %464 : vector<32x1xi32> to vector<32x32xi32>
    %466 = arith.cmpi eq, %56, %465 : vector<32x32xi32>
    %467 = arith.extui %466 : vector<32x32xi1> to vector<32x32xi32>
    %468 = arith.sitofp %467 : vector<32x32xi32> to vector<32x32xf32>
    %469 = arith.truncf %468 : vector<32x32xf32> to vector<32x32xbf16>
    %cst_134 = arith.constant 0xFF800000 : f32
    %470 = vector.broadcast %cst_134 : f32 to vector<32x32xf32>
    %471 = arith.select %466, %470, %456 : vector<32x32xi1>, vector<32x32xf32>
    %cst_135 = arith.constant dense<0xFF800000> : vector<32xf32>
    %472 = vector.multi_reduction <maximumf>, %471, %cst_135 [1] : vector<32x32xf32> to vector<32xf32>
    %473 = vector.shape_cast %472 : vector<32xf32> to vector<32x1xf32>
    %474 = vector.broadcast %473 : vector<32x1xf32> to vector<32x32xf32>
    %475 = arith.cmpf oge, %471, %474 : vector<32x32xf32>
    %c32_i32_136 = arith.constant 32 : i32
    %476 = vector.broadcast %c32_i32_136 : i32 to vector<32x32xi32>
    %477 = arith.select %475, %56, %476 : vector<32x32xi1>, vector<32x32xi32>
    %cst_137 = arith.constant dense<2147483647> : vector<32xi32>
    %478 = vector.multi_reduction <minsi>, %477, %cst_137 [1] : vector<32x32xi32> to vector<32xi32>
    %479 = vector.shape_cast %478 : vector<32xi32> to vector<32x1xi32>
    %480 = vector.broadcast %479 : vector<32x1xi32> to vector<32x32xi32>
    %481 = arith.cmpi eq, %56, %480 : vector<32x32xi32>
    %482 = arith.extui %481 : vector<32x32xi1> to vector<32x32xi32>
    %483 = arith.sitofp %482 : vector<32x32xi32> to vector<32x32xf32>
    %484 = arith.truncf %483 : vector<32x32xf32> to vector<32x32xbf16>
    %cst_138 = arith.constant 0xFF800000 : f32
    %485 = vector.broadcast %cst_138 : f32 to vector<32x32xf32>
    %486 = arith.select %481, %485, %471 : vector<32x32xi1>, vector<32x32xf32>
    %cst_139 = arith.constant dense<0xFF800000> : vector<32xf32>
    %487 = vector.multi_reduction <maximumf>, %486, %cst_139 [1] : vector<32x32xf32> to vector<32xf32>
    %488 = vector.shape_cast %487 : vector<32xf32> to vector<32x1xf32>
    %489 = vector.broadcast %488 : vector<32x1xf32> to vector<32x32xf32>
    %490 = arith.cmpf oge, %486, %489 : vector<32x32xf32>
    %c32_i32_140 = arith.constant 32 : i32
    %491 = vector.broadcast %c32_i32_140 : i32 to vector<32x32xi32>
    %492 = arith.select %490, %56, %491 : vector<32x32xi1>, vector<32x32xi32>
    %cst_141 = arith.constant dense<2147483647> : vector<32xi32>
    %493 = vector.multi_reduction <minsi>, %492, %cst_141 [1] : vector<32x32xi32> to vector<32xi32>
    %494 = vector.shape_cast %493 : vector<32xi32> to vector<32x1xi32>
    %495 = vector.broadcast %494 : vector<32x1xi32> to vector<32x32xi32>
    %496 = arith.cmpi eq, %56, %495 : vector<32x32xi32>
    %497 = arith.extui %496 : vector<32x32xi1> to vector<32x32xi32>
    %498 = arith.sitofp %497 : vector<32x32xi32> to vector<32x32xf32>
    %499 = arith.truncf %498 : vector<32x32xf32> to vector<32x32xbf16>
    %cst_142 = arith.constant 0xFF800000 : f32
    %500 = vector.broadcast %cst_142 : f32 to vector<32x32xf32>
    %501 = arith.select %496, %500, %486 : vector<32x32xi1>, vector<32x32xf32>
    %cst_143 = arith.constant dense<0xFF800000> : vector<32xf32>
    %502 = vector.multi_reduction <maximumf>, %501, %cst_143 [1] : vector<32x32xf32> to vector<32xf32>
    %503 = vector.shape_cast %502 : vector<32xf32> to vector<32x1xf32>
    %504 = vector.broadcast %503 : vector<32x1xf32> to vector<32x32xf32>
    %505 = arith.cmpf oge, %501, %504 : vector<32x32xf32>
    %c32_i32_144 = arith.constant 32 : i32
    %506 = vector.broadcast %c32_i32_144 : i32 to vector<32x32xi32>
    %507 = arith.select %505, %56, %506 : vector<32x32xi1>, vector<32x32xi32>
    %cst_145 = arith.constant dense<2147483647> : vector<32xi32>
    %508 = vector.multi_reduction <minsi>, %507, %cst_145 [1] : vector<32x32xi32> to vector<32xi32>
    %509 = vector.shape_cast %508 : vector<32xi32> to vector<32x1xi32>
    %510 = vector.broadcast %509 : vector<32x1xi32> to vector<32x32xi32>
    %511 = arith.cmpi eq, %56, %510 : vector<32x32xi32>
    %512 = arith.extui %511 : vector<32x32xi1> to vector<32x32xi32>
    %513 = arith.sitofp %512 : vector<32x32xi32> to vector<32x32xf32>
    %514 = arith.truncf %513 : vector<32x32xf32> to vector<32x32xbf16>
    %cst_146 = arith.constant 0xFF800000 : f32
    %515 = vector.broadcast %cst_146 : f32 to vector<32x32xf32>
    %516 = arith.select %511, %515, %501 : vector<32x32xi1>, vector<32x32xf32>
    %cst_147 = arith.constant dense<0xFF800000> : vector<32xf32>
    %517 = vector.multi_reduction <maximumf>, %516, %cst_147 [1] : vector<32x32xf32> to vector<32xf32>
    %518 = vector.shape_cast %517 : vector<32xf32> to vector<32x1xf32>
    %519 = vector.broadcast %518 : vector<32x1xf32> to vector<32x32xf32>
    %520 = arith.cmpf oge, %516, %519 : vector<32x32xf32>
    %c32_i32_148 = arith.constant 32 : i32
    %521 = vector.broadcast %c32_i32_148 : i32 to vector<32x32xi32>
    %522 = arith.select %520, %56, %521 : vector<32x32xi1>, vector<32x32xi32>
    %cst_149 = arith.constant dense<2147483647> : vector<32xi32>
    %523 = vector.multi_reduction <minsi>, %522, %cst_149 [1] : vector<32x32xi32> to vector<32xi32>
    %524 = vector.shape_cast %523 : vector<32xi32> to vector<32x1xi32>
    %525 = vector.broadcast %524 : vector<32x1xi32> to vector<32x32xi32>
    %526 = arith.cmpi eq, %56, %525 : vector<32x32xi32>
    %527 = arith.extui %526 : vector<32x32xi1> to vector<32x32xi32>
    %528 = arith.sitofp %527 : vector<32x32xi32> to vector<32x32xf32>
    %529 = arith.truncf %528 : vector<32x32xf32> to vector<32x32xbf16>
    %cst_150 = arith.constant 0xFF800000 : f32
    %530 = vector.broadcast %cst_150 : f32 to vector<32x32xf32>
    %531 = arith.select %526, %530, %516 : vector<32x32xi1>, vector<32x32xf32>
    %cst_151 = arith.constant dense<0xFF800000> : vector<32xf32>
    %532 = vector.multi_reduction <maximumf>, %531, %cst_151 [1] : vector<32x32xf32> to vector<32xf32>
    %533 = vector.shape_cast %532 : vector<32xf32> to vector<32x1xf32>
    %534 = vector.broadcast %533 : vector<32x1xf32> to vector<32x32xf32>
    %535 = arith.cmpf oge, %531, %534 : vector<32x32xf32>
    %c32_i32_152 = arith.constant 32 : i32
    %536 = vector.broadcast %c32_i32_152 : i32 to vector<32x32xi32>
    %537 = arith.select %535, %56, %536 : vector<32x32xi1>, vector<32x32xi32>
    %cst_153 = arith.constant dense<2147483647> : vector<32xi32>
    %538 = vector.multi_reduction <minsi>, %537, %cst_153 [1] : vector<32x32xi32> to vector<32xi32>
    %539 = vector.shape_cast %538 : vector<32xi32> to vector<32x1xi32>
    %540 = vector.broadcast %539 : vector<32x1xi32> to vector<32x32xi32>
    %541 = arith.cmpi eq, %56, %540 : vector<32x32xi32>
    %542 = arith.extui %541 : vector<32x32xi1> to vector<32x32xi32>
    %543 = arith.sitofp %542 : vector<32x32xi32> to vector<32x32xf32>
    %544 = arith.truncf %543 : vector<32x32xf32> to vector<32x32xbf16>
    %cst_154 = arith.constant 0xFF800000 : f32
    %545 = vector.broadcast %cst_154 : f32 to vector<32x32xf32>
    %546 = arith.select %541, %545, %531 : vector<32x32xi1>, vector<32x32xf32>
    %cst_155 = arith.constant dense<0xFF800000> : vector<32xf32>
    %547 = vector.multi_reduction <maximumf>, %546, %cst_155 [1] : vector<32x32xf32> to vector<32xf32>
    %548 = vector.shape_cast %547 : vector<32xf32> to vector<32x1xf32>
    %549 = vector.broadcast %548 : vector<32x1xf32> to vector<32x32xf32>
    %550 = arith.cmpf oge, %546, %549 : vector<32x32xf32>
    %c32_i32_156 = arith.constant 32 : i32
    %551 = vector.broadcast %c32_i32_156 : i32 to vector<32x32xi32>
    %552 = arith.select %550, %56, %551 : vector<32x32xi1>, vector<32x32xi32>
    %cst_157 = arith.constant dense<2147483647> : vector<32xi32>
    %553 = vector.multi_reduction <minsi>, %552, %cst_157 [1] : vector<32x32xi32> to vector<32xi32>
    %554 = vector.shape_cast %553 : vector<32xi32> to vector<32x1xi32>
    %555 = vector.broadcast %554 : vector<32x1xi32> to vector<32x32xi32>
    %556 = arith.cmpi eq, %56, %555 : vector<32x32xi32>
    %557 = arith.extui %556 : vector<32x32xi1> to vector<32x32xi32>
    %558 = arith.sitofp %557 : vector<32x32xi32> to vector<32x32xf32>
    %559 = arith.truncf %558 : vector<32x32xf32> to vector<32x32xbf16>
    %cst_158 = arith.constant 0xFF800000 : f32
    %560 = vector.broadcast %cst_158 : f32 to vector<32x32xf32>
    %561 = arith.select %556, %560, %546 : vector<32x32xi1>, vector<32x32xf32>
    %cst_159 = arith.constant dense<0xFF800000> : vector<32xf32>
    %562 = vector.multi_reduction <maximumf>, %561, %cst_159 [1] : vector<32x32xf32> to vector<32xf32>
    %563 = vector.shape_cast %562 : vector<32xf32> to vector<32x1xf32>
    %564 = vector.broadcast %563 : vector<32x1xf32> to vector<32x32xf32>
    %565 = arith.cmpf oge, %561, %564 : vector<32x32xf32>
    %c32_i32_160 = arith.constant 32 : i32
    %566 = vector.broadcast %c32_i32_160 : i32 to vector<32x32xi32>
    %567 = arith.select %565, %56, %566 : vector<32x32xi1>, vector<32x32xi32>
    %cst_161 = arith.constant dense<2147483647> : vector<32xi32>
    %568 = vector.multi_reduction <minsi>, %567, %cst_161 [1] : vector<32x32xi32> to vector<32xi32>
    %569 = vector.shape_cast %568 : vector<32xi32> to vector<32x1xi32>
    %570 = vector.broadcast %569 : vector<32x1xi32> to vector<32x32xi32>
    %571 = arith.cmpi eq, %56, %570 : vector<32x32xi32>
    %572 = arith.extui %571 : vector<32x32xi1> to vector<32x32xi32>
    %573 = arith.sitofp %572 : vector<32x32xi32> to vector<32x32xf32>
    %574 = arith.truncf %573 : vector<32x32xf32> to vector<32x32xbf16>
    %cst_162 = arith.constant 0xFF800000 : f32
    %575 = vector.broadcast %cst_162 : f32 to vector<32x32xf32>
    %576 = arith.select %571, %575, %561 : vector<32x32xi1>, vector<32x32xf32>
    %cst_163 = arith.constant dense<0xFF800000> : vector<32xf32>
    %577 = vector.multi_reduction <maximumf>, %576, %cst_163 [1] : vector<32x32xf32> to vector<32xf32>
    %578 = vector.shape_cast %577 : vector<32xf32> to vector<32x1xf32>
    %579 = vector.broadcast %578 : vector<32x1xf32> to vector<32x32xf32>
    %580 = arith.cmpf oge, %576, %579 : vector<32x32xf32>
    %c32_i32_164 = arith.constant 32 : i32
    %581 = vector.broadcast %c32_i32_164 : i32 to vector<32x32xi32>
    %582 = arith.select %580, %56, %581 : vector<32x32xi1>, vector<32x32xi32>
    %cst_165 = arith.constant dense<2147483647> : vector<32xi32>
    %583 = vector.multi_reduction <minsi>, %582, %cst_165 [1] : vector<32x32xi32> to vector<32xi32>
    %584 = vector.shape_cast %583 : vector<32xi32> to vector<32x1xi32>
    %585 = vector.broadcast %584 : vector<32x1xi32> to vector<32x32xi32>
    %586 = arith.cmpi eq, %56, %585 : vector<32x32xi32>
    %587 = arith.extui %586 : vector<32x32xi1> to vector<32x32xi32>
    %588 = arith.sitofp %587 : vector<32x32xi32> to vector<32x32xf32>
    %589 = arith.truncf %588 : vector<32x32xf32> to vector<32x32xbf16>
    %cst_166 = arith.constant 0xFF800000 : f32
    %590 = vector.broadcast %cst_166 : f32 to vector<32x32xf32>
    %591 = arith.select %586, %590, %576 : vector<32x32xi1>, vector<32x32xf32>
    %cst_167 = arith.constant dense<0xFF800000> : vector<32xf32>
    %592 = vector.multi_reduction <maximumf>, %591, %cst_167 [1] : vector<32x32xf32> to vector<32xf32>
    %593 = vector.shape_cast %592 : vector<32xf32> to vector<32x1xf32>
    %594 = vector.broadcast %593 : vector<32x1xf32> to vector<32x32xf32>
    %595 = arith.cmpf oge, %591, %594 : vector<32x32xf32>
    %c32_i32_168 = arith.constant 32 : i32
    %596 = vector.broadcast %c32_i32_168 : i32 to vector<32x32xi32>
    %597 = arith.select %595, %56, %596 : vector<32x32xi1>, vector<32x32xi32>
    %cst_169 = arith.constant dense<2147483647> : vector<32xi32>
    %598 = vector.multi_reduction <minsi>, %597, %cst_169 [1] : vector<32x32xi32> to vector<32xi32>
    %599 = vector.shape_cast %598 : vector<32xi32> to vector<32x1xi32>
    %600 = vector.broadcast %599 : vector<32x1xi32> to vector<32x32xi32>
    %601 = arith.cmpi eq, %56, %600 : vector<32x32xi32>
    %602 = arith.extui %601 : vector<32x32xi1> to vector<32x32xi32>
    %603 = arith.sitofp %602 : vector<32x32xi32> to vector<32x32xf32>
    %604 = arith.truncf %603 : vector<32x32xf32> to vector<32x32xbf16>
    %605 = tpu.concatenate %469, %484, %499, %514, %529, %544, %559, %574, %589, %604 in 0 : vector<32x32xbf16>, vector<32x32xbf16>, vector<32x32xbf16>, vector<32x32xbf16>, vector<32x32xbf16>, vector<32x32xbf16>, vector<32x32xbf16>, vector<32x32xbf16>, vector<32x32xbf16>, vector<32x32xbf16> -> vector<320x32xbf16>
    %606 = arith.truncf %447 : vector<32x32xf32> to vector<32x32xbf16>
    %c2 = arith.constant 2 : index
    %c0_170 = arith.constant 0 : index
    %c0_171 = arith.constant 0 : index
    %607 = vector.load %arg9[%c2, %c0_170, %c0_171] : memref<3x32x64xbf16, #tpu.memory_space<vmem>>, vector<1x32x64xbf16>
    %608 = vector.shape_cast %607 : vector<1x32x64xbf16> to vector<32x64xbf16>
    %cst_172 = arith.constant dense<0.000000e+00> : vector<32x64xf32>
    %609 = tpu.matmul %606, %608, %cst_172 {dimension_numbers = #tpu.dot_dimension_numbers<[1], [0], [0], [1], [0, 0, 1, 1], [], []>} : vector<32x32xbf16>, vector<32x64xbf16>, vector<32x64xf32> -> vector<32x64xf32>
    %610 = vector.extract_strided_slice %609 {offsets = [0, 0], sizes = [32, 32], strides = [1, 1]} : vector<32x64xf32> to vector<32x32xf32>
    %611 = arith.truncf %610 : vector<32x32xf32> to vector<32x32xbf16>
    %612 = vector.extract_strided_slice %609 {offsets = [0, 32], sizes = [32, 32], strides = [1, 1]} : vector<32x64xf32> to vector<32x32xf32>
    %c2_173 = arith.constant 2 : index
    %c0_174 = arith.constant 0 : index
    %c0_175 = arith.constant 0 : index
    %613 = vector.load %arg10[%c2_173, %c0_174, %c0_175] : memref<3x1x32xf32, #tpu.memory_space<vmem>>, vector<1x1x32xf32>
    %614 = vector.shape_cast %613 : vector<1x1x32xf32> to vector<1x32xf32>
    %615 = vector.broadcast %614 : vector<1x32xf32> to vector<32x32xf32>
    %616 = arith.addf %612, %615 : vector<32x32xf32>
    %cst_176 = arith.constant dense<0.000000e+00> : vector<320x32xf32>
    %617 = tpu.matmul %605, %611, %cst_176 {dimension_numbers = #tpu.dot_dimension_numbers<[1], [0], [0], [1], [0, 0, 1, 1], [], []>} : vector<320x32xbf16>, vector<32x32xbf16>, vector<320x32xf32> -> vector<320x32xf32>
    %618 = vector.extract_strided_slice %617 {offsets = [0, 0], sizes = [32, 32], strides = [1, 1]} : vector<320x32xf32> to vector<32x32xf32>
    %619 = vector.extract_strided_slice %617 {offsets = [32, 0], sizes = [32, 32], strides = [1, 1]} : vector<320x32xf32> to vector<32x32xf32>
    %620 = arith.maximumf %618, %619 : vector<32x32xf32>
    %621 = vector.extract_strided_slice %617 {offsets = [64, 0], sizes = [32, 32], strides = [1, 1]} : vector<320x32xf32> to vector<32x32xf32>
    %622 = arith.maximumf %620, %621 : vector<32x32xf32>
    %623 = vector.extract_strided_slice %617 {offsets = [96, 0], sizes = [32, 32], strides = [1, 1]} : vector<320x32xf32> to vector<32x32xf32>
    %624 = arith.maximumf %622, %623 : vector<32x32xf32>
    %625 = vector.extract_strided_slice %617 {offsets = [128, 0], sizes = [32, 32], strides = [1, 1]} : vector<320x32xf32> to vector<32x32xf32>
    %626 = arith.maximumf %624, %625 : vector<32x32xf32>
    %627 = vector.extract_strided_slice %617 {offsets = [160, 0], sizes = [32, 32], strides = [1, 1]} : vector<320x32xf32> to vector<32x32xf32>
    %628 = arith.maximumf %626, %627 : vector<32x32xf32>
    %629 = vector.extract_strided_slice %617 {offsets = [192, 0], sizes = [32, 32], strides = [1, 1]} : vector<320x32xf32> to vector<32x32xf32>
    %630 = arith.maximumf %628, %629 : vector<32x32xf32>
    %631 = vector.extract_strided_slice %617 {offsets = [224, 0], sizes = [32, 32], strides = [1, 1]} : vector<320x32xf32> to vector<32x32xf32>
    %632 = arith.maximumf %630, %631 : vector<32x32xf32>
    %633 = vector.extract_strided_slice %617 {offsets = [256, 0], sizes = [32, 32], strides = [1, 1]} : vector<320x32xf32> to vector<32x32xf32>
    %634 = arith.maximumf %632, %633 : vector<32x32xf32>
    %635 = vector.extract_strided_slice %617 {offsets = [288, 0], sizes = [32, 32], strides = [1, 1]} : vector<320x32xf32> to vector<32x32xf32>
    %636 = arith.maximumf %634, %635 : vector<32x32xf32>
    %637 = arith.addf %636, %616 : vector<32x32xf32>
    %cst_177 = arith.constant 0.000000e+00 : f32
    %638 = vector.broadcast %cst_177 : f32 to vector<32x32xf32>
    %639 = arith.cmpf ogt, %637, %638 : vector<32x32xf32>
    %cst_178 = arith.constant 2.000000e-01 : f32
    %640 = vector.broadcast %cst_178 : f32 to vector<32x32xf32>
    %641 = arith.mulf %640, %637 : vector<32x32xf32>
    %642 = arith.select %639, %637, %641 : vector<32x32xi1>, vector<32x32xf32>
    %643 = arith.mulf %642, %642 : vector<32x32xf32>
    %cst_179 = arith.constant dense<0.000000e+00> : vector<32xf32>
    %644 = vector.multi_reduction <add>, %643, %cst_179 [1] : vector<32x32xf32> to vector<32xf32>
    %645 = vector.shape_cast %644 : vector<32xf32> to vector<32x1xf32>
    %cst_180 = arith.constant 9.99999996E-13 : f32
    %646 = vector.broadcast %cst_180 : f32 to vector<32x1xf32>
    %647 = arith.addf %645, %646 : vector<32x1xf32>
    %648 = math.rsqrt %647 : vector<32x1xf32>
    %649 = vector.broadcast %648 : vector<32x1xf32> to vector<32x32xf32>
    %650 = arith.mulf %642, %649 : vector<32x32xf32>
    %651 = arith.truncf %650 : vector<32x32xf32> to vector<32x32xbf16>
    %652 = arith.mulf %1, %1 : vector<32x256xf32>
    %cst_181 = arith.constant dense<0.000000e+00> : vector<256xf32>
    %653 = vector.multi_reduction <add>, %652, %cst_181 [0] : vector<32x256xf32> to vector<256xf32>
    %654 = vector.shape_cast %653 : vector<256xf32> to vector<1x256xf32>
    %cst_182 = arith.constant 9.99999996E-13 : f32
    %655 = vector.broadcast %cst_182 : f32 to vector<1x256xf32>
    %656 = arith.addf %654, %655 : vector<1x256xf32>
    %657 = math.rsqrt %656 : vector<1x256xf32>
    %658 = vector.broadcast %657 : vector<1x256xf32> to vector<32x256xf32>
    %659 = arith.mulf %1, %658 : vector<32x256xf32>
    %660 = arith.truncf %659 : vector<32x256xf32> to vector<32x256xbf16>
    %cst_183 = arith.constant dense<0.000000e+00> : vector<32x256xf32>
    %661 = tpu.matmul %651, %660, %cst_183 {dimension_numbers = #tpu.dot_dimension_numbers<[1], [0], [0], [1], [0, 0, 1, 1], [], []>} : vector<32x32xbf16>, vector<32x256xbf16>, vector<32x256xf32> -> vector<32x256xf32>
    %c0_184 = arith.constant 0 : index
    %c0_185 = arith.constant 0 : index
    %c0_186 = arith.constant 0 : index
    %662 = vector.load %arg2[%c0_184, %c0_185, %c0_186] : memref<1x4x256xf32, #tpu.memory_space<vmem>>, vector<1x4x256xf32>
    %663 = vector.shape_cast %662 : vector<1x4x256xf32> to vector<4x256xf32>
    %664 = arith.truncf %663 : vector<4x256xf32> to vector<4x256xbf16>
    %c0_187 = arith.constant 0 : index
    %c0_188 = arith.constant 0 : index
    %665 = vector.load %arg11[%c0_187, %c0_188] : memref<4x4xbf16, #tpu.memory_space<vmem>>, vector<4x4xbf16>
    %cst_189 = arith.constant dense<0.000000e+00> : vector<4x256xf32>
    %666 = tpu.matmul %665, %664, %cst_189 {dimension_numbers = #tpu.dot_dimension_numbers<[1], [0], [0], [1], [0, 0, 1, 1], [], []>} : vector<4x4xbf16>, vector<4x256xbf16>, vector<4x256xf32> -> vector<4x256xf32>
    %c0_190 = arith.constant 0 : index
    %c0_191 = arith.constant 0 : index
    %667 = vector.load %arg12[%c0_190, %c0_191] : memref<4x32xbf16, #tpu.memory_space<vmem>>, vector<4x32xbf16>
    %668 = arith.truncf %661 : vector<32x256xf32> to vector<32x256xbf16>
    %cst_192 = arith.constant dense<0.000000e+00> : vector<4x256xf32>
    %669 = tpu.matmul %667, %668, %cst_192 {dimension_numbers = #tpu.dot_dimension_numbers<[1], [0], [0], [1], [0, 0, 1, 1], [], []>} : vector<4x32xbf16>, vector<32x256xbf16>, vector<4x256xf32> -> vector<4x256xf32>
    %670 = arith.addf %666, %669 : vector<4x256xf32>
    %c0_193 = arith.constant 0 : index
    %c0_194 = arith.constant 0 : index
    %671 = vector.load %arg13[%c0_193, %c0_194] : memref<4x1xf32, #tpu.memory_space<vmem>>, vector<4x1xf32>
    %672 = vector.broadcast %671 : vector<4x1xf32> to vector<4x256xf32>
    %673 = arith.addf %670, %672 : vector<4x256xf32>
    %cst_195 = arith.constant 0.000000e+00 : f32
    %674 = vector.broadcast %cst_195 : f32 to vector<4x256xf32>
    %675 = arith.maximumf %673, %674 : vector<4x256xf32>
    %c0_196 = arith.constant 0 : index
    %c0_197 = arith.constant 0 : index
    %c0_198 = arith.constant 0 : index
    %676 = vector.load %arg14[%c0_196, %c0_197, %c0_198] : memref<1x4x256xf32, #tpu.memory_space<vmem>>, vector<1x4x256xf32>
    %677 = vector.shape_cast %676 : vector<1x4x256xf32> to vector<4x256xf32>
    %678 = vector.shape_cast %675 : vector<4x256xf32> to vector<1x4x256xf32>
    tpu.vector_store %arg14[%c0_196, %c0_197, %c0_198], %678 {strides = array<i32>} : memref<1x4x256xf32, #tpu.memory_space<vmem>>, vector<1x4x256xf32>,
    return
  }
  func.func @transform_0(%arg0: i32) -> (i32, i32, i32) {
    %c0_i32 = arith.constant 0 : i32
    %c0_i32_0 = arith.constant 0 : i32
    %c0_i32_1 = arith.constant 0 : i32
    return %arg0, %c0_i32, %c0_i32_0 : i32, i32, i32
  }
  func.func @transform_1(%arg0: i32) -> (i32, i32, i32) {
    %c0_i32 = arith.constant 0 : i32
    %c0_i32_0 = arith.constant 0 : i32
    %c0_i32_1 = arith.constant 0 : i32
    return %arg0, %c0_i32, %c0_i32_0 : i32, i32, i32
  }
  func.func @transform_2(%arg0: i32) -> (i32, i32) {
    %c0_i32 = arith.constant 0 : i32
    %c0_i32_0 = arith.constant 0 : i32
    %c0_i32_1 = arith.constant 0 : i32
    return %c0_i32, %c0_i32_0 : i32, i32
  }
  func.func @transform_3(%arg0: i32) -> (i32, i32) {
    %c0_i32 = arith.constant 0 : i32
    %c0_i32_0 = arith.constant 0 : i32
    %c0_i32_1 = arith.constant 0 : i32
    return %c0_i32, %c0_i32_0 : i32, i32
  }
  func.func @transform_4(%arg0: i32) -> (i32, i32) {
    %c0_i32 = arith.constant 0 : i32
    %c0_i32_0 = arith.constant 0 : i32
    %c0_i32_1 = arith.constant 0 : i32
    return %c0_i32, %c0_i32_0 : i32, i32
  }
  func.func @transform_5(%arg0: i32) -> (i32, i32) {
    %c0_i32 = arith.constant 0 : i32
    %c0_i32_0 = arith.constant 0 : i32
    %c0_i32_1 = arith.constant 0 : i32
    return %c0_i32, %c0_i32_0 : i32, i32
  }
  func.func @transform_6(%arg0: i32) -> (i32, i32) {
    %c0_i32 = arith.constant 0 : i32
    %c0_i32_0 = arith.constant 0 : i32
    %c0_i32_1 = arith.constant 0 : i32
    return %c0_i32, %c0_i32_0 : i32, i32
  }
  func.func @transform_7(%arg0: i32) -> (i32, i32) {
    %c0_i32 = arith.constant 0 : i32
    %c0_i32_0 = arith.constant 0 : i32
    %c0_i32_1 = arith.constant 0 : i32
    return %c0_i32, %c0_i32_0 : i32, i32
  }
  func.func @transform_8(%arg0: i32) -> (i32, i32, i32) {
    %c0_i32 = arith.constant 0 : i32
    %c0_i32_0 = arith.constant 0 : i32
    %c0_i32_1 = arith.constant 0 : i32
    %c0_i32_2 = arith.constant 0 : i32
    return %c0_i32, %c0_i32_0, %c0_i32_1 : i32, i32, i32
  }
  func.func @transform_9(%arg0: i32) -> (i32, i32, i32) {
    %c0_i32 = arith.constant 0 : i32
    %c0_i32_0 = arith.constant 0 : i32
    %c0_i32_1 = arith.constant 0 : i32
    %c0_i32_2 = arith.constant 0 : i32
    return %c0_i32, %c0_i32_0, %c0_i32_1 : i32, i32, i32
  }
  func.func @transform_10(%arg0: i32) -> (i32, i32) {
    %c0_i32 = arith.constant 0 : i32
    %c0_i32_0 = arith.constant 0 : i32
    %c0_i32_1 = arith.constant 0 : i32
    return %c0_i32, %c0_i32_0 : i32, i32
  }
  func.func @transform_11(%arg0: i32) -> (i32, i32) {
    %c0_i32 = arith.constant 0 : i32
    %c0_i32_0 = arith.constant 0 : i32
    %c0_i32_1 = arith.constant 0 : i32
    return %c0_i32, %c0_i32_0 : i32, i32
  }
  func.func @transform_12(%arg0: i32) -> (i32, i32) {
    %c0_i32 = arith.constant 0 : i32
    %c0_i32_0 = arith.constant 0 : i32
    %c0_i32_1 = arith.constant 0 : i32
    return %c0_i32, %c0_i32_0 : i32, i32
  }
  func.func @transform_13(%arg0: i32) -> (i32, i32, i32) {
    %c0_i32 = arith.constant 0 : i32
    %c0_i32_0 = arith.constant 0 : i32
    %c0_i32_1 = arith.constant 0 : i32
    return %arg0, %c0_i32, %c0_i32_0 : i32, i32, i32
  }
}

</mosaic_0001>

<llo_original>
// kernel: domain_alignment_forward.1
$region0: #{domain_alignment_forward.1}
  #allocation0 [shape = 'u32[]', space=smem, size = 0x4, offset = 0x4, fixed_abs, tag = 'smem constant byte address 0x4 - core index']
  #allocation1 [shape = 'u32[144,128]{1,0:T(1,128)}', space=vmem, size = 0x12000, scoped, tag = 'internal scratch']
  %s0 = inlined_call_operand.vmem [shape: f32[2,32,256], index: 0, kind: input, shape index: {}]
  %s1 = inlined_call_operand.vmem [shape: f32[2,4,256], index: 1, kind: input, shape index: {}]
  %s2 = inlined_call_operand.vmem [shape: f32[1,32], index: 2, kind: input, shape index: {}]
  %s3 = inlined_call_operand.vmem [shape: f32[1,32], index: 3, kind: input, shape index: {}]
  %s4 = inlined_call_operand.vmem [shape: bf16[32,48], index: 4, kind: input, shape index: {}]
  %s5 = inlined_call_operand.vmem [shape: f32[1,48], index: 5, kind: input, shape index: {}]
  %s6 = inlined_call_operand.vmem [shape: bf16[16,32], index: 6, kind: input, shape index: {}]
  %s7 = inlined_call_operand.vmem [shape: f32[1,32], index: 7, kind: input, shape index: {}]
  %s8 = inlined_call_operand.vmem [shape: bf16[3,32,64], index: 8, kind: input, shape index: {}]
  %s9 = inlined_call_operand.vmem [shape: f32[3,1,32], index: 9, kind: input, shape index: {}]
  %s10 = inlined_call_operand.vmem [shape: bf16[4,4], index: 10, kind: input, shape index: {}]
  %s11 = inlined_call_operand.vmem [shape: bf16[4,32], index: 11, kind: input, shape index: {}]
  %s12 = inlined_call_operand.vmem [shape: f32[4,1], index: 12, kind: input, shape index: {}]
  %s13 = inlined_call_operand.vmem [shape: f32[2,4,256], index: 13, kind: output, shape index: {}]
  %s14 = sld [smem:[#allocation0]]
  $region85: #{domain_alignment_forward.1} parent=0
    _
  %s16 = ssub.s32 1, %s14
  %s17 = scalar_select 0, %s16, %s14
  loop: start=0, step=1, limit=4
  $region2: #{domain_alignment_forward.1} parent=0 // loop_pre_header
    _
  $region3: #{domain_alignment_forward.1} parent=0 // loop_header
    %s19 = sphi 0, %s23
    %p20 = scmp.ge.s32.totalorder %s19, 4
    %s29 = sphi 0, %s31
    %s32 = sphi 0, %s29
    %s33 = sphi 0, %s32
    %s49 = sphi 0, %s33
    %s55 = sphi 0, %s57
    %s58 = sphi 0, %s55
    %s59 = sphi 0, %s58
    %s75 = sphi 0, %s59
    %s79 = sphi 0, %s79
    %s81 = sphi 0, %s79
    %s82 = sphi 0, %s81
    %s96 = sphi 0, %s82
    %s100 = sphi 0, %s100
    %s102 = sphi 0, %s100
    %s103 = sphi 0, %s102
    %s117 = sphi 0, %s103
    %s121 = sphi 0, %s121
    %s123 = sphi 0, %s121
    %s124 = sphi 0, %s123
    %s138 = sphi 0, %s124
    %s142 = sphi 0, %s142
    %s144 = sphi 0, %s142
    %s145 = sphi 0, %s144
    %s159 = sphi 0, %s145
    %s163 = sphi 0, %s163
    %s165 = sphi 0, %s163
    %s166 = sphi 0, %s165
    %s180 = sphi 0, %s166
    %s184 = sphi 0, %s184
    %s186 = sphi 0, %s184
    %s187 = sphi 0, %s186
    %s201 = sphi 0, %s187
    %s205 = sphi 0, %s205
    %s207 = sphi 0, %s205
    %s208 = sphi 0, %s207
    %s222 = sphi 0, %s208
    %s226 = sphi 0, %s226
    %s228 = sphi 0, %s226
    %s229 = sphi 0, %s228
    %s243 = sphi 0, %s229
    %s247 = sphi 0, %s247
    %s249 = sphi 0, %s247
    %s250 = sphi 0, %s249
    %s264 = sphi 0, %s250
    %s268 = sphi 0, %s268
    %s270 = sphi 0, %s268
    %s271 = sphi 0, %s270
    %s285 = sphi 0, %s271
    %s289 = sphi 0, %s289
    %s291 = sphi 0, %s289
    %s292 = sphi 0, %s291
    %s306 = sphi 0, %s292
    %s312 = sphi 0, %s314
    %s315 = sphi 0, %s312
    %s316 = sphi 0, %s315
    %s332 = sphi 0, %s316
  $region4: #{domain_alignment_forward.1} parent=0 // loop_header_branch
    %22 = sbr.rel (%p20) target = $region8
  $region5: #{domain_alignment_forward.1} parent=0 // loop_body
    %s24 = ssub.s32 %s19, 1
    %s25 = ssub.s32 %s19, 2
    %s26 = sadd.s32 %s19, 1
    %s27 = ssub.s32 %s19, %s26
    %p28 = scmp.eq.s32.totalorder %s27, 0
    %s30 = sadd.s32 %s29, 1
    %s31 = scalar_select %p28, %s29, %s30
    %p34 = pneg %p28
    %p35 = scmp.eq.s32.totalorder %s19, 1
    %p36 = por %p34, %p35
    %p37 = scmp.ne.s32.totalorder %s29, %s32
    %p38 = scmp.eq.s32.totalorder %s19, 0
    %p39 = por %p37, %p38
    %p40 = scmp.ne.s32.totalorder %s29, %s32
    %p41 = scmp.eq.s32.totalorder %s24, 1
    %p42 = por %p40, %p41
    %p43 = scmp.ne.s32.totalorder %s32, %s33
    %p44 = scmp.eq.s32.totalorder %s24, 0
    %p45 = por %p43, %p44
    %p46 = scmp.ne.s32.totalorder %s32, %s33
    %p47 = scmp.eq.s32.totalorder %s25, 1
    %p48 = por %p46, %p47
    %p50 = scmp.ne.s32.totalorder %s33, %s49
    %p51 = scmp.eq.s32.totalorder %s25, 0
    %p52 = por %p50, %p51
    %s53 = ssub.s32 %s19, %s26
    %p54 = scmp.eq.s32.totalorder %s53, 0
    %s56 = sadd.s32 %s55, 1
    %s57 = scalar_select %p54, %s55, %s56
    %p60 = pneg %p54
    %p61 = scmp.eq.s32.totalorder %s19, 1
    %p62 = por %p60, %p61
    %p63 = scmp.ne.s32.totalorder %s55, %s58
    %p64 = scmp.eq.s32.totalorder %s19, 0
    %p65 = por %p63, %p64
    %p66 = scmp.ne.s32.totalorder %s55, %s58
    %p67 = scmp.eq.s32.totalorder %s24, 1
    %p68 = por %p66, %p67
    %p69 = scmp.ne.s32.totalorder %s58, %s59
    %p70 = scmp.eq.s32.totalorder %s24, 0
    %p71 = por %p69, %p70
    %p72 = scmp.ne.s32.totalorder %s58, %s59
    %p73 = scmp.eq.s32.totalorder %s25, 1
    %p74 = por %p72, %p73
    %p76 = scmp.ne.s32.totalorder %s59, %s75
    %p77 = scmp.eq.s32.totalorder %s25, 0
    %p78 = por %p76, %p77
    %s80 = sadd.s32 %s79, 1
    %p83 = scmp.eq.s32.totalorder %s19, 1
    %p84 = scmp.ne.s32.totalorder %s79, %s81
    %p85 = scmp.eq.s32.totalorder %s19, 0
    %p86 = por %p84, %p85
    %p87 = scmp.ne.s32.totalorder %s79, %s81
    %p88 = scmp.eq.s32.totalorder %s24, 1
    %p89 = por %p87, %p88
    %p90 = scmp.ne.s32.totalorder %s81, %s82
    %p91 = scmp.eq.s32.totalorder %s24, 0
    %p92 = por %p90, %p91
    %p93 = scmp.ne.s32.totalorder %s81, %s82
    %p94 = scmp.eq.s32.totalorder %s25, 1
    %p95 = por %p93, %p94
    %p97 = scmp.ne.s32.totalorder %s82, %s96
    %p98 = scmp.eq.s32.totalorder %s25, 0
    %p99 = por %p97, %p98
    %s101 = sadd.s32 %s100, 1
    %p104 = scmp.eq.s32.totalorder %s19, 1
    %p105 = scmp.ne.s32.totalorder %s100, %s102
    %p106 = scmp.eq.s32.totalorder %s19, 0
    %p107 = por %p105, %p106
    %p108 = scmp.ne.s32.totalorder %s100, %s102
    %p109 = scmp.eq.s32.totalorder %s24, 1
    %p110 = por %p108, %p109
    %p111 = scmp.ne.s32.totalorder %s102, %s103
    %p112 = scmp.eq.s32.totalorder %s24, 0
    %p113 = por %p111, %p112
    %p114 = scmp.ne.s32.totalorder %s102, %s103
    %p115 = scmp.eq.s32.totalorder %s25, 1
    %p116 = por %p114, %p115
    %p118 = scmp.ne.s32.totalorder %s103, %s117
    %p119 = scmp.eq.s32.totalorder %s25, 0
    %p120 = por %p118, %p119
    %s122 = sadd.s32 %s121, 1
    %p125 = scmp.eq.s32.totalorder %s19, 1
    %p126 = scmp.ne.s32.totalorder %s121, %s123
    %p127 = scmp.eq.s32.totalorder %s19, 0
    %p128 = por %p126, %p127
    %p129 = scmp.ne.s32.totalorder %s121, %s123
    %p130 = scmp.eq.s32.totalorder %s24, 1
    %p131 = por %p129, %p130
    %p132 = scmp.ne.s32.totalorder %s123, %s124
    %p133 = scmp.eq.s32.totalorder %s24, 0
    %p134 = por %p132, %p133
    %p135 = scmp.ne.s32.totalorder %s123, %s124
    %p136 = scmp.eq.s32.totalorder %s25, 1
    %p137 = por %p135, %p136
    %p139 = scmp.ne.s32.totalorder %s124, %s138
    %p140 = scmp.eq.s32.totalorder %s25, 0
    %p141 = por %p139, %p140
    %s143 = sadd.s32 %s142, 1
    %p146 = scmp.eq.s32.totalorder %s19, 1
    %p147 = scmp.ne.s32.totalorder %s142, %s144
    %p148 = scmp.eq.s32.totalorder %s19, 0
    %p149 = por %p147, %p148
    %p150 = scmp.ne.s32.totalorder %s142, %s144
    %p151 = scmp.eq.s32.totalorder %s24, 1
    %p152 = por %p150, %p151
    %p153 = scmp.ne.s32.totalorder %s144, %s145
    %p154 = scmp.eq.s32.totalorder %s24, 0
    %p155 = por %p153, %p154
    %p156 = scmp.ne.s32.totalorder %s144, %s145
    %p157 = scmp.eq.s32.totalorder %s25, 1
    %p158 = por %p156, %p157
    %p160 = scmp.ne.s32.totalorder %s145, %s159
    %p161 = scmp.eq.s32.totalorder %s25, 0
    %p162 = por %p160, %p161
    %s164 = sadd.s32 %s163, 1
    %p167 = scmp.eq.s32.totalorder %s19, 1
    %p168 = scmp.ne.s32.totalorder %s163, %s165
    %p169 = scmp.eq.s32.totalorder %s19, 0
    %p170 = por %p168, %p169
    %p171 = scmp.ne.s32.totalorder %s163, %s165
    %p172 = scmp.eq.s32.totalorder %s24, 1
    %p173 = por %p171, %p172
    %p174 = scmp.ne.s32.totalorder %s165, %s166
    %p175 = scmp.eq.s32.totalorder %s24, 0
    %p176 = por %p174, %p175
    %p177 = scmp.ne.s32.totalorder %s165, %s166
    %p178 = scmp.eq.s32.totalorder %s25, 1
    %p179 = por %p177, %p178
    %p181 = scmp.ne.s32.totalorder %s166, %s180
    %p182 = scmp.eq.s32.totalorder %s25, 0
    %p183 = por %p181, %p182
    %s185 = sadd.s32 %s184, 1
    %p188 = scmp.eq.s32.totalorder %s19, 1
    %p189 = scmp.ne.s32.totalorder %s184, %s186
    %p190 = scmp.eq.s32.totalorder %s19, 0
    %p191 = por %p189, %p190
    %p192 = scmp.ne.s32.totalorder %s184, %s186
    %p193 = scmp.eq.s32.totalorder %s24, 1
    %p194 = por %p192, %p193
    %p195 = scmp.ne.s32.totalorder %s186, %s187
    %p196 = scmp.eq.s32.totalorder %s24, 0
    %p197 = por %p195, %p196
    %p198 = scmp.ne.s32.totalorder %s186, %s187
    %p199 = scmp.eq.s32.totalorder %s25, 1
    %p200 = por %p198, %p199
    %p202 = scmp.ne.s32.totalorder %s187, %s201
    %p203 = scmp.eq.s32.totalorder %s25, 0
    %p204 = por %p202, %p203
    %s206 = sadd.s32 %s205, 1
    %p209 = scmp.eq.s32.totalorder %s19, 1
    %p210 = scmp.ne.s32.totalorder %s205, %s207
    %p211 = scmp.eq.s32.totalorder %s19, 0
    %p212 = por %p210, %p211
    %p213 = scmp.ne.s32.totalorder %s205, %s207
    %p214 = scmp.eq.s32.totalorder %s24, 1
    %p215 = por %p213, %p214
    %p216 = scmp.ne.s32.totalorder %s207, %s208
    %p217 = scmp.eq.s32.totalorder %s24, 0
    %p218 = por %p216, %p217
    %p219 = scmp.ne.s32.totalorder %s207, %s208
    %p220 = scmp.eq.s32.totalorder %s25, 1
    %p221 = por %p219, %p220
    %p223 = scmp.ne.s32.totalorder %s208, %s222
    %p224 = scmp.eq.s32.totalorder %s25, 0
    %p225 = por %p223, %p224
    %s227 = sadd.s32 %s226, 1
    %p230 = scmp.eq.s32.totalorder %s19, 1
    %p231 = scmp.ne.s32.totalorder %s226, %s228
    %p232 = scmp.eq.s32.totalorder %s19, 0
    %p233 = por %p231, %p232
    %p234 = scmp.ne.s32.totalorder %s226, %s228
    %p235 = scmp.eq.s32.totalorder %s24, 1
    %p236 = por %p234, %p235
    %p237 = scmp.ne.s32.totalorder %s228, %s229
    %p238 = scmp.eq.s32.totalorder %s24, 0
    %p239 = por %p237, %p238
    %p240 = scmp.ne.s32.totalorder %s228, %s229
    %p241 = scmp.eq.s32.totalorder %s25, 1
    %p242 = por %p240, %p241
    %p244 = scmp.ne.s32.totalorder %s229, %s243
    %p245 = scmp.eq.s32.totalorder %s25, 0
    %p246 = por %p244, %p245
    %s248 = sadd.s32 %s247, 1
    %p251 = scmp.eq.s32.totalorder %s19, 1
    %p252 = scmp.ne.s32.totalorder %s247, %s249
    %p253 = scmp.eq.s32.totalorder %s19, 0
    %p254 = por %p252, %p253
    %p255 = scmp.ne.s32.totalorder %s247, %s249
    %p256 = scmp.eq.s32.totalorder %s24, 1
    %p257 = por %p255, %p256
    %p258 = scmp.ne.s32.totalorder %s249, %s250
    %p259 = scmp.eq.s32.totalorder %s24, 0
    %p260 = por %p258, %p259
    %p261 = scmp.ne.s32.totalorder %s249, %s250
    %p262 = scmp.eq.s32.totalorder %s25, 1
    %p263 = por %p261, %p262
    %p265 = scmp.ne.s32.totalorder %s250, %s264
    %p266 = scmp.eq.s32.totalorder %s25, 0
    %p267 = por %p265, %p266
    %s269 = sadd.s32 %s268, 1
    %p272 = scmp.eq.s32.totalorder %s19, 1
    %p273 = scmp.ne.s32.totalorder %s268, %s270
    %p274 = scmp.eq.s32.totalorder %s19, 0
    %p275 = por %p273, %p274
    %p276 = scmp.ne.s32.totalorder %s268, %s270
    %p277 = scmp.eq.s32.totalorder %s24, 1
    %p278 = por %p276, %p277
    %p279 = scmp.ne.s32.totalorder %s270, %s271
    %p280 = scmp.eq.s32.totalorder %s24, 0
    %p281 = por %p279, %p280
    %p282 = scmp.ne.s32.totalorder %s270, %s271
    %p283 = scmp.eq.s32.totalorder %s25, 1
    %p284 = por %p282, %p283
    %p286 = scmp.ne.s32.totalorder %s271, %s285
    %p287 = scmp.eq.s32.totalorder %s25, 0
    %p288 = por %p286, %p287
    %s290 = sadd.s32 %s289, 1
    %p293 = scmp.eq.s32.totalorder %s19, 1
    %p294 = scmp.ne.s32.totalorder %s289, %s291
    %p295 = scmp.eq.s32.totalorder %s19, 0
    %p296 = por %p294, %p295
    %p297 = scmp.ne.s32.totalorder %s289, %s291
    %p298 = scmp.eq.s32.totalorder %s24, 1
    %p299 = por %p297, %p298
    %p300 = scmp.ne.s32.totalorder %s291, %s292
    %p301 = scmp.eq.s32.totalorder %s24, 0
    %p302 = por %p300, %p301
    %p303 = scmp.ne.s32.totalorder %s291, %s292
    %p304 = scmp.eq.s32.totalorder %s25, 1
    %p305 = por %p303, %p304
    %p307 = scmp.ne.s32.totalorder %s292, %s306
    %p308 = scmp.eq.s32.totalorder %s25, 0
    %p309 = por %p307, %p308
    %s310 = ssub.s32 %s19, %s26
    %p311 = scmp.eq.s32.totalorder %s310, 0
    %s313 = sadd.s32 %s312, 1
    %s314 = scalar_select %p311, %s312, %s313
    %p317 = pneg %p311
    %p318 = scmp.eq.s32.totalorder %s19, 1
    %p319 = por %p317, %p318
    %p320 = scmp.ne.s32.totalorder %s312, %s315
    %p321 = scmp.eq.s32.totalorder %s19, 0
    %p322 = por %p320, %p321
    %p323 = scmp.ne.s32.totalorder %s312, %s315
    %p324 = scmp.eq.s32.totalorder %s24, 1
    %p325 = por %p323, %p324
    %p326 = scmp.ne.s32.totalorder %s315, %s316
    %p327 = scmp.eq.s32.totalorder %s24, 0
    %p328 = por %p326, %p327
    %p329 = scmp.ne.s32.totalorder %s315, %s316
    %p330 = scmp.eq.s32.totalorder %s25, 1
    %p331 = por %p329, %p330
    %p333 = scmp.ne.s32.totalorder %s316, %s332
    %p334 = scmp.eq.s32.totalorder %s25, 0
    %p335 = por %p333, %p334
    %p336 = scmp.le.s32.totalorder 1, %s19
    %p337 = scmp.lt.s32.totalorder %s19, 3
    %p338 = pnand %p336, %p337
    %p339 = pneg %p338
    // Predicated region
    $region9: #{domain_alignment_forward.1} parent=5 // pred_check
      _
    $region10: #{domain_alignment_forward.1} parent=5 // pred_check_branch
      %341 = sbr.rel (%p338) target = $region12
    $region11: #{domain_alignment_forward.1} parent=5 // pred_region
      %s342 = ssub.s32 %s19, 1
      // Predicated region
      $region13: #{domain_alignment_forward.1} parent=11 // pred_check
        %p343 = pneg %p92
      $region14: #{domain_alignment_forward.1} parent=11 // pred_check_branch
        %345 = sbr.rel (%p343) target = $region16
      $region15: #{domain_alignment_forward.1} parent=11 // pred_region
        _
      $region16: #{domain_alignment_forward.1} parent=11 // pred_fallthru
        _
      // Predicated region
      $region17: #{domain_alignment_forward.1} parent=11 // pred_check
        %p346 = pneg %p113
      $region18: #{domain_alignment_forward.1} parent=11 // pred_check_branch
        %348 = sbr.rel (%p346) target = $region20
      $region19: #{domain_alignment_forward.1} parent=11 // pred_region
        _
      $region20: #{domain_alignment_forward.1} parent=11 // pred_fallthru
        _
      // Predicated region
      $region21: #{domain_alignment_forward.1} parent=11 // pred_check
        %p349 = pneg %p134
      $region22: #{domain_alignment_forward.1} parent=11 // pred_check_branch
        %351 = sbr.rel (%p349) target = $region24
      $region23: #{domain_alignment_forward.1} parent=11 // pred_region
        _
      $region24: #{domain_alignment_forward.1} parent=11 // pred_fallthru
        _
      // Predicated region
      $region25: #{domain_alignment_forward.1} parent=11 // pred_check
        %p352 = pneg %p155
      $region26: #{domain_alignment_forward.1} parent=11 // pred_check_branch
        %354 = sbr.rel (%p352) target = $region28
      $region27: #{domain_alignment_forward.1} parent=11 // pred_region
        _
      $region28: #{domain_alignment_forward.1} parent=11 // pred_fallthru
        _
      // Predicated region
      $region29: #{domain_alignment_forward.1} parent=11 // pred_check
        %p355 = pneg %p176
      $region30: #{domain_alignment_forward.1} parent=11 // pred_check_branch
        %357 = sbr.rel (%p355) target = $region32
      $region31: #{domain_alignment_forward.1} parent=11 // pred_region
        _
      $region32: #{domain_alignment_forward.1} parent=11 // pred_fallthru
        _
      // Predicated region
      $region33: #{domain_alignment_forward.1} parent=11 // pred_check
        %p358 = pneg %p197
      $region34: #{domain_alignment_forward.1} parent=11 // pred_check_branch
        %360 = sbr.rel (%p358) target = $region36
      $region35: #{domain_alignment_forward.1} parent=11 // pred_region
        _
      $region36: #{domain_alignment_forward.1} parent=11 // pred_fallthru
        _
      // Predicated region
      $region37: #{domain_alignment_forward.1} parent=11 // pred_check
        %p361 = pneg %p218
      $region38: #{domain_alignment_forward.1} parent=11 // pred_check_branch
        %363 = sbr.rel (%p361) target = $region40
      $region39: #{domain_alignment_forward.1} parent=11 // pred_region
        _
      $region40: #{domain_alignment_forward.1} parent=11 // pred_fallthru
        _
      // Predicated region
      $region41: #{domain_alignment_forward.1} parent=11 // pred_check
        %p364 = pneg %p239
      $region42: #{domain_alignment_forward.1} parent=11 // pred_check_branch
        %366 = sbr.rel (%p364) target = $region44
      $region43: #{domain_alignment_forward.1} parent=11 // pred_region
        _
      $region44: #{domain_alignment_forward.1} parent=11 // pred_fallthru
        _
      // Predicated region
      $region45: #{domain_alignment_forward.1} parent=11 // pred_check
        %p367 = pneg %p260
      $region46: #{domain_alignment_forward.1} parent=11 // pred_check_branch
        %369 = sbr.rel (%p367) target = $region48
      $region47: #{domain_alignment_forward.1} parent=11 // pred_region
        _
      $region48: #{domain_alignment_forward.1} parent=11 // pred_fallthru
        _
      // Predicated region
      $region49: #{domain_alignment_forward.1} parent=11 // pred_check
        %p370 = pneg %p281
      $region50: #{domain_alignment_forward.1} parent=11 // pred_check_branch
        %372 = sbr.rel (%p370) target = $region52
      $region51: #{domain_alignment_forward.1} parent=11 // pred_region
        _
      $region52: #{domain_alignment_forward.1} parent=11 // pred_fallthru
        _
      // Predicated region
      $region53: #{domain_alignment_forward.1} parent=11 // pred_check
        %p373 = pneg %p302
      $region54: #{domain_alignment_forward.1} parent=11 // pred_check_branch
        %375 = sbr.rel (%p373) target = $region56
      $region55: #{domain_alignment_forward.1} parent=11 // pred_region
        _
      $region56: #{domain_alignment_forward.1} parent=11 // pred_fallthru
        _
    $region12: #{domain_alignment_forward.1} parent=5 // pred_fallthru
      _
    %p376 = scmp.lt.s32.totalorder %s19, 2
    // Predicated region
    $region57: #{domain_alignment_forward.1} parent=5 // pred_check
      %p377 = pneg %p376
    $region58: #{domain_alignment_forward.1} parent=5 // pred_check_branch
      %379 = sbr.rel (%p377) target = $region60
    $region59: #{domain_alignment_forward.1} parent=5 // pred_region
      // Predicated region
      $region61: #{domain_alignment_forward.1} parent=59 // pred_check
        %p380 = pneg %p39
      $region62: #{domain_alignment_forward.1} parent=59 // pred_check_branch
        %382 = sbr.rel (%p380) target = $region64
      $region63: #{domain_alignment_forward.1} parent=59 // pred_region
        %p383 = scmp.lt.s32.totalorder %s19, 1
        %s384 = scalar_select %p383, %s19, 1
        %s385 = smul.addr %s384, 8
        %s386 = smul.addr %s385, 8
        %s387 = scalar_lea.vmem %s0, %s386
      $region64: #{domain_alignment_forward.1} parent=59 // pred_fallthru
        _
      // Predicated region
      $region65: #{domain_alignment_forward.1} parent=59 // pred_check
        %p388 = pneg %p65
      $region66: #{domain_alignment_forward.1} parent=59 // pred_check_branch
        %390 = sbr.rel (%p388) target = $region68
      $region67: #{domain_alignment_forward.1} parent=59 // pred_region
        %p391 = scmp.lt.s32.totalorder %s19, 1
        %s392 = scalar_select %p391, %s19, 1
        %s393 = smul.addr %s392, 2
        %s394 = smul.addr %s393, 4
        %s395 = scalar_lea.vmem %s1, %s394
      $region68: #{domain_alignment_forward.1} parent=59 // pred_fallthru
        _
    $region60: #{domain_alignment_forward.1} parent=5 // pred_fallthru
      _
    %p396 = scmp.le.s32.totalorder 1, %s19
    %p397 = scmp.lt.s32.totalorder %s19, 3
    %p398 = pnand %p396, %p397
    %p399 = pneg %p398
    // Predicated region
    $region69: #{domain_alignment_forward.1} parent=5 // pred_check
      _
    $region70: #{domain_alignment_forward.1} parent=5 // pred_check_branch
      %401 = sbr.rel (%p398) target = $region72
    $region71: #{domain_alignment_forward.1} parent=5 // pred_region
      %s402 = ssub.s32 %s19, 1
      %p403 = scmp.lt.s32.totalorder %s24, 1
      %s404 = scalar_select %p403, %s24, 1
      %s405 = smul.addr %s404, 8
      %s406 = smul.addr %s405, 8
      %s407 = scalar_lea.vmem %s0, %s406
      %p408 = pneg %p45
      %p409 = pneg %p42
      %p410 = scmp.lt.s32.totalorder %s24, 1
      %s411 = scalar_select %p410, %s24, 1
      %s412 = smul.addr %s411, 2
      %s413 = smul.addr %s412, 4
      %s414 = scalar_lea.vmem %s1, %s413
      %p415 = pneg %p71
      %p416 = pneg %p68
      %p417 = pneg %p92
      %p418 = pneg %p89
      %p419 = pneg %p113
      %p420 = pneg %p110
      %p421 = pneg %p134
      %p422 = pneg %p131
      %p423 = pneg %p155
      %p424 = pneg %p152
      %p425 = pneg %p176
      %p426 = pneg %p173
      %p427 = pneg %p197
      %p428 = pneg %p194
      %p429 = pneg %p218
      %p430 = pneg %p215
      %p431 = pneg %p239
      %p432 = pneg %p236
      %p433 = pneg %p260
      %p434 = pneg %p257
      %p435 = pneg %p281
      %p436 = pneg %p278
      %p437 = pneg %p302
      %p438 = pneg %p299
      %p439 = pneg %p328
      %p440 = pneg %p325
      %p441 = scmp.lt.s32.totalorder %s24, 1
      %s442 = scalar_select %p441, %s24, 1
      %s443 = smul.addr %s442, 2
      %s444 = smul.addr %s443, 4
      %s445 = scalar_lea.vmem %s13, %s444
      %p446 = scmp.lt.s32.totalorder %s24, 1
      %s447 = scalar_select %p446, %s24, 1
      %s448 = smul.addr %s447, 8
      %s449 = smul.addr %s448, 8
      %s450 = scalar_lea.vmem %s0, %s449
      %p451 = scmp.lt.s32.totalorder %s24, 1
      %s452 = scalar_select %p451, %s24, 1
      %s453 = smul.addr %s452, 2
      %s454 = smul.addr %s453, 4
      %s455 = scalar_lea.vmem %s1, %s454
      %p456 = scmp.lt.s32.totalorder %s24, 1
      %s457 = scalar_select %p456, %s24, 1
      %s458 = smul.addr %s457, 2
      %s459 = smul.addr %s458, 4
      %s460 = scalar_lea.vmem %s13, %s459
      %v462 = vld [vmem:[%s450] sm:$0xff]
      %v463 = vld [vmem:[%s450 + $0x8] sm:$0xff]
      %v464 = vld [vmem:[%s450 + $0x10] sm:$0xff]
      %v465 = vld [vmem:[%s450 + $0x18] sm:$0xff]
      %v466 = vld [vmem:[%s450 + $0x20] sm:$0xff]
      %v467 = vld [vmem:[%s450 + $0x28] sm:$0xff]
      %v468 = vld [vmem:[%s450 + $0x30] sm:$0xff]
      %v469 = vld [vmem:[%s450 + $0x38] sm:$0xff]
      %v470 = vpack.c.bf16 %v464, %v462
      %v471 = vpack.c.bf16 %v465, %v463
      %v472 = vpack.c.bf16 %v468, %v466
      %v473 = vpack.c.bf16 %v469, %v467
      %v474 = vmax.f32 %v462, %v463
      %475 = vmax.xlane.f32.xlu0 %v474
      %v476 = vpop.xlane.xlu0 %475
      %v477 = vmax.f32 %v464, %v465
      %478 = vmax.xlane.f32.xlu0 %v477
      %v479 = vpop.xlane.xlu0 %478
      %v480 = vmax.f32 %v466, %v467
      %481 = vmax.xlane.f32.xlu0 %v480
      %v482 = vpop.xlane.xlu0 %481
      %v483 = vmax.f32 %v468, %v469
      %484 = vmax.xlane.f32.xlu0 %v483
      %v485 = vpop.xlane.xlu0 %484
      %v486 = vsub.f32 %v462, %v476
      %v487 = vsub.f32 %v463, %v476
      %v488 = vsub.f32 %v464, %v479
      %v489 = vsub.f32 %v465, %v479
      %v490 = vsub.f32 %v466, %v482
      %v491 = vsub.f32 %v467, %v482
      %v492 = vsub.f32 %v468, %v485
      %v493 = vsub.f32 %v469, %v485
      %v494 = vmul.f32 %v486, 1.442695
      %v495 = vpow.pop %v494
      %v496 = vmul.f32 %v487, 1.442695
      %v497 = vpow.pop %v496
      %v498 = vmul.f32 %v488, 1.442695
      %v499 = vpow.pop %v498
      %v500 = vmul.f32 %v489, 1.442695
      %v501 = vpow.pop %v500
      %v502 = vmul.f32 %v490, 1.442695
      %v503 = vpow.pop %v502
      %v504 = vmul.f32 %v491, 1.442695
      %v505 = vpow.pop %v504
      %v506 = vmul.f32 %v492, 1.442695
      %v507 = vpow.pop %v506
      %v508 = vmul.f32 %v493, 1.442695
      %v509 = vpow.pop %v508
      %v510 = vadd.f32 %v495, %v497
      %511 = vadd.xlane.f32.xlu0 %v510
      %v512 = vpop.xlane.xlu0 %511
      %v513 = vadd.f32 %v499, %v501
      %514 = vadd.xlane.f32.xlu0 %v513
      %v515 = vpop.xlane.xlu0 %514
      %v516 = vadd.f32 %v503, %v505
      %517 = vadd.xlane.f32.xlu0 %v516
      %v518 = vpop.xlane.xlu0 %517
      %v519 = vadd.f32 %v507, %v509
      %520 = vadd.xlane.f32.xlu0 %v519
      %v521 = vpop.xlane.xlu0 %520
      %v522 = vrcp.pop %v512
      %v523 = vrcp.pop %v515
      %v524 = vrcp.pop %v518
      %v525 = vrcp.pop %v521
      %v526 = vmul.f32 %v495, %v522
      %v527 = vmul.f32 %v497, %v522
      %v528 = vmul.f32 %v499, %v523
      %v529 = vmul.f32 %v501, %v523
      %v530 = vmul.f32 %v503, %v524
      %v531 = vmul.f32 %v505, %v524
      %v532 = vmul.f32 %v507, %v525
      %v533 = vmul.f32 %v509, %v525
      %v534 = vpack.c.bf16 %v528, %v526
      %v535 = vpack.c.bf16 %v529, %v527
      %v536 = vpack.c.bf16 %v532, %v530
      %v537 = vpack.c.bf16 %v533, %v531
      %538 = vmatprep.subr.bf16.mxu0 %v471
      %539 = vmatpush1.bf16.xpose.msra.mxu0 %v470
      %540 = vmatprep.subr.bf16.mxu0 %v473
      %541 = vmatpush1.bf16.xpose.msra.mxu0 %v472
      %542 = vmatprep.subr.bf16.mxu0 0
      %543 = vmatpush1.bf16.xpose.msra.mxu0 0
      %544 = vmatprep.subr.bf16.mxu0 0
      %545 = vmatpush1.bf16.xpose.msra.mxu0 0
      %546 = vmatprep.subr.bf16.mxu0 0
      %547 = vmatpush1.bf16.xpose.msra.mxu0 0
      %548 = vmatprep.subr.bf16.mxu0 0
      %549 = vmatpush1.bf16.xpose.msra.mxu0 0
      %550 = vmatprep.subr.bf16.mxu0 0
      %551 = vmatpush1.bf16.xpose.msra.mxu0 0
      %552 = vmatprep.subr.bf16.mxu0 0
      %553 = vmatpush1.bf16.xpose.msra.mxu0 0
      %554 = vmatprep.subr.bf16.mxu0 0
      %555 = vmatpush1.bf16.xpose.msra.mxu0 0
      %556 = vmatprep.subr.bf16.mxu0 0
      %557 = vmatpush1.bf16.xpose.msra.mxu0 0
      %558 = vmatprep.subr.bf16.mxu0 0
      %559 = vmatpush1.bf16.xpose.msra.mxu0 0
      %560 = vmatprep.subr.bf16.mxu0 0
      %561 = vmatpush1.bf16.xpose.msra.mxu0 0
      %562 = vmatprep.subr.bf16.mxu0 0
      %563 = vmatpush1.bf16.xpose.msra.mxu0 0
      %564 = vmatprep.subr.bf16.mxu0 0
      %565 = vmatpush1.bf16.xpose.msra.mxu0 0
      %566 = vmatprep.subr.bf16.mxu0 0
      %567 = vmatpush1.bf16.xpose.msra.mxu0 0
      %568 = vmatprep.subr.bf16.mxu0 0
      %569 = vmatpush1.bf16.xpose.msra.mxu0 0
      %570 = vmatprep.mubr.bf16.mxu0 %v535
      %571 = vmatmul.mubr.bf16.gmra.mrb[0].mxu0 %v534
      %v572 = vpop.f32.mrb[0].mxu0
      %v573 = vadd.f32 0.0, %v572
      %v574 = vpop.f32.mrb[0].mxu0
      %v575 = vpop.f32.mrb[0].mxu0
      %v576 = vadd.f32 0.0, %v575
      %v577 = vpop.f32.mrb[0].mxu0
      %578 = vmatprep.mubr.bf16.mxu0 %v537
      %579 = vmatmul.mubr.bf16.gmra.mrb[0].mxu0 %v536
      %v580 = vpop.f32.mrb[0].mxu0
      %v581 = vadd.f32 0.0, %v580
      %v582 = vpop.f32.mrb[0].mxu0
      %v583 = vpop.f32.mrb[0].mxu0
      %v584 = vadd.f32 0.0, %v583
      %v585 = vpop.f32.mrb[0].mxu0
      %586 = vdwg.mxu0
      %v587 = vld [vmem:[%s2] sm:$0x1]
      %v589 = vlaneseq
      %v590 = vshrl.u32 %v589, 7
      %v591 = vsub.s32 0, %v590
      %v592 = vrot.slane %v587, %v591
      %v594 = vmul.f32 %v573, %v592
      %v595 = vmul.f32 %v576, %v592
      %v596 = vmul.f32 %v581, %v592
      %v597 = vmul.f32 %v584, %v592
      %v598 = vld [vmem:[%s3] sm:$0x1]
      %v600 = vlaneseq
      %v601 = vshrl.u32 %v600, 7
      %v602 = vsub.s32 0, %v601
      %v603 = vrot.slane %v598, %v602
      %v605 = vadd.f32 %v594, %v603
      %v606 = vadd.f32 %v595, %v603
      %v607 = vadd.f32 %v596, %v603
      %v608 = vadd.f32 %v597, %v603
      %v609 = vmax.f32 %v605, 0.0
      %v610 = vmax.f32 %v606, 0.0
      %v611 = vmax.f32 %v607, 0.0
      %v612 = vmax.f32 %v608, 0.0
      %v613 = vpack.c.bf16 %v610, %v609
      %v614 = vpack.c.bf16 %v612, %v611
      %v615 = vld [vmem:[%s4] sm:$0xf]
      %v616 = vld [vmem:[%s4 + $0x4] sm:$0xf]
      %v617 = vld [vmem:[%s4 + $0x8] sm:$0xf]
      %v618 = vld [vmem:[%s4 + $0xc] sm:$0xf]
      %v619 = vld [vmem:[%s5] sm:$0x1]
      %v621 = vlaneseq
      %v622 = vshrl.u32 %v621, 7
      %v623 = vsub.s32 0, %v622
      %v624 = vrot.slane %v619, %v623
      %v630 = vunpack.c.l.b16 %v615
      %v631 = vunpack.c.l.b16 %v616
      %v632 = vunpack.c.l.b16 %v617
      %v633 = vunpack.c.l.b16 %v618
      %v634 = vpack.c.b16 %v631, %v630
      %v635 = vpack.c.b16 %v633, %v632
      %vm638 = vcmask 261120
      %v640 = vsel %vm638, %v613, 0
      %v643 = vsel %vm638, %v614, 0
      %645 = vmatprep.subr.bf16.mxu0 0
      %646 = vmatpush1.bf16.msra.mxu0 %v634
      %647 = vmatprep.subr.bf16.mxu0 0
      %648 = vmatpush1.bf16.msra.mxu0 %v635
      %649 = vmatprep.subr.bf16.mxu0 0
      %650 = vmatpush1.bf16.msra.mxu0 0
      %651 = vmatprep.subr.bf16.mxu0 0
      %652 = vmatpush1.bf16.msra.mxu0 0
      %653 = vmatprep.subr.bf16.mxu0 0
      %654 = vmatpush1.bf16.msra.mxu0 0
      %655 = vmatprep.subr.bf16.mxu0 0
      %656 = vmatpush1.bf16.msra.mxu0 0
      %657 = vmatprep.subr.bf16.mxu0 0
      %658 = vmatpush1.bf16.msra.mxu0 0
      %659 = vmatprep.subr.bf16.mxu0 0
      %660 = vmatpush1.bf16.msra.mxu0 0
      %661 = vmatprep.subr.bf16.mxu0 0
      %662 = vmatpush1.bf16.msra.mxu0 0
      %663 = vmatprep.subr.bf16.mxu0 0
      %664 = vmatpush1.bf16.msra.mxu0 0
      %665 = vmatprep.subr.bf16.mxu0 0
      %666 = vmatpush1.bf16.msra.mxu0 0
      %667 = vmatprep.subr.bf16.mxu0 0
      %668 = vmatpush1.bf16.msra.mxu0 0
      %669 = vmatprep.subr.bf16.mxu0 0
      %670 = vmatpush1.bf16.msra.mxu0 0
      %671 = vmatprep.subr.bf16.mxu0 0
      %672 = vmatpush1.bf16.msra.mxu0 0
      %673 = vmatprep.subr.bf16.mxu0 0
      %674 = vmatpush1.bf16.msra.mxu0 0
      %675 = vmatprep.subr.bf16.mxu0 0
      %676 = vmatpush1.bf16.msra.mxu0 0
      %677 = vmatprep.mubr.bf16.mxu0 0
      %678 = vmatmul.mubr.bf16.gmra.mrb[0].mxu0 %v640
      %v679 = vpop.f32.mrb[0].mxu0
      %v680 = vadd.f32 %v624, %v679
      %v681 = vpop.f32.mrb[0].mxu0
      %v682 = vpop.f32.mrb[0].mxu0
      %v683 = vadd.f32 %v624, %v682
      %v684 = vpop.f32.mrb[0].mxu0
      %685 = vmatprep.mubr.bf16.mxu0 0
      %686 = vmatmul.mubr.bf16.gmra.mrb[0].mxu0 %v643
      %v687 = vpop.f32.mrb[0].mxu0
      %v688 = vadd.f32 %v624, %v687
      %v689 = vpop.f32.mrb[0].mxu0
      %v690 = vpop.f32.mrb[0].mxu0
      %v691 = vadd.f32 %v624, %v690
      %v692 = vpop.f32.mrb[0].mxu0
      %693 = vdwg.mxu0
      %v694 = vpack.c.bf16 %v683, %v680
      %v695 = vpack.c.bf16 %v691, %v688
      %698 = vrot.lane.b32.xlu0 %v694, 112
      %v699 = vpop.permute.xlu0 %698
      %700 = vrot.lane.b32.xlu0 %v695, 112
      %v701 = vpop.permute.xlu0 %700
      %vm702 = vcmask 130048
      %v704 = vsel %vm702, %v694, 0
      %v707 = vsel %vm702, %v695, 0
      %v710 = vsel %vm702, %v699, 0
      %v713 = vsel %vm702, %v701, 0
      %715 = vmatprep.subr.bf16.mxu0 0
      %716 = vmatpush1.bf16.xpose.msra.mxu0 %v710
      %717 = vmatprep.subr.bf16.mxu0 0
      %718 = vmatpush1.bf16.xpose.msra.mxu0 %v713
      %719 = vmatprep.subr.bf16.mxu0 0
      %720 = vmatpush1.bf16.xpose.msra.mxu0 0
      %721 = vmatprep.subr.bf16.mxu0 0
      %722 = vmatpush1.bf16.xpose.msra.mxu0 0
      %723 = vmatprep.subr.bf16.mxu0 0
      %724 = vmatpush1.bf16.xpose.msra.mxu0 0
      %725 = vmatprep.subr.bf16.mxu0 0
      %726 = vmatpush1.bf16.xpose.msra.mxu0 0
      %727 = vmatprep.subr.bf16.mxu0 0
      %728 = vmatpush1.bf16.xpose.msra.mxu0 0
      %729 = vmatprep.subr.bf16.mxu0 0
      %730 = vmatpush1.bf16.xpose.msra.mxu0 0
      %731 = vmatprep.subr.bf16.mxu0 0
      %732 = vmatpush1.bf16.xpose.msra.mxu0 0
      %733 = vmatprep.subr.bf16.mxu0 0
      %734 = vmatpush1.bf16.xpose.msra.mxu0 0
      %735 = vmatprep.subr.bf16.mxu0 0
      %736 = vmatpush1.bf16.xpose.msra.mxu0 0
      %737 = vmatprep.subr.bf16.mxu0 0
      %738 = vmatpush1.bf16.xpose.msra.mxu0 0
      %739 = vmatprep.subr.bf16.mxu0 0
      %740 = vmatpush1.bf16.xpose.msra.mxu0 0
      %741 = vmatprep.subr.bf16.mxu0 0
      %742 = vmatpush1.bf16.xpose.msra.mxu0 0
      %743 = vmatprep.subr.bf16.mxu0 0
      %744 = vmatpush1.bf16.xpose.msra.mxu0 0
      %745 = vmatprep.subr.bf16.mxu0 0
      %746 = vmatpush1.bf16.xpose.msra.mxu0 0
      %747 = vmatprep.mubr.bf16.mxu0 0
      %748 = vmatmul.mubr.bf16.gmra.mrb[0].mxu0 %v704
      %v749 = vpop.f32.mrb[0].mxu0
      %v750 = vadd.f32 0.0, %v749
      %v751 = vpop.f32.mrb[0].mxu0
      %v752 = vpop.f32.mrb[0].mxu0
      %v753 = vadd.f32 0.0, %v752
      %v754 = vpop.f32.mrb[0].mxu0
      %755 = vmatprep.mubr.bf16.mxu0 0
      %756 = vmatmul.mubr.bf16.gmra.mrb[0].mxu0 %v707
      %v757 = vpop.f32.mrb[0].mxu0
      %v758 = vadd.f32 0.0, %v757
      %v759 = vpop.f32.mrb[0].mxu0
      %v760 = vpop.f32.mrb[0].mxu0
      %v761 = vadd.f32 0.0, %v760
      %v762 = vpop.f32.mrb[0].mxu0
      %763 = vdwg.mxu0
      %v764 = vsel %vm638, %v750, -inf
      %765 = vmax.xlane.f32.xlu0 %v764
      %v766 = vpop.xlane.xlu0 %765
      %v767 = vsel %vm638, %v753, -inf
      %768 = vmax.xlane.f32.xlu0 %v767
      %v769 = vpop.xlane.xlu0 %768
      %v770 = vsel %vm638, %v758, -inf
      %771 = vmax.xlane.f32.xlu0 %v770
      %v772 = vpop.xlane.xlu0 %771
      %v773 = vsel %vm638, %v761, -inf
      %774 = vmax.xlane.f32.xlu0 %v773
      %v775 = vpop.xlane.xlu0 %774
      %v776 = vsub.f32 %v750, %v766
      %v777 = vsub.f32 %v753, %v769
      %v778 = vsub.f32 %v758, %v772
      %v779 = vsub.f32 %v761, %v775
      %v780 = vmul.f32 %v776, 1.442695
      %v781 = vpow.pop %v780
      %v782 = vmul.f32 %v777, 1.442695
      %v783 = vpow.pop %v782
      %v784 = vmul.f32 %v778, 1.442695
      %v785 = vpow.pop %v784
      %v786 = vmul.f32 %v779, 1.442695
      %v787 = vpow.pop %v786
      %v788 = vsel %vm638, %v781, 0.0
      %789 = vadd.xlane.f32.xlu0 %v788
      %v790 = vpop.xlane.xlu0 %789
      %v791 = vsel %vm638, %v783, 0.0
      %792 = vadd.xlane.f32.xlu0 %v791
      %v793 = vpop.xlane.xlu0 %792
      %v794 = vsel %vm638, %v785, 0.0
      %795 = vadd.xlane.f32.xlu0 %v794
      %v796 = vpop.xlane.xlu0 %795
      %v797 = vsel %vm638, %v787, 0.0
      %798 = vadd.xlane.f32.xlu0 %v797
      %v799 = vpop.xlane.xlu0 %798
      %v800 = vrcp.pop %v790
      %v801 = vrcp.pop %v793
      %v802 = vrcp.pop %v796
      %v803 = vrcp.pop %v799
      %v804 = vmul.f32 %v781, %v800
      %v805 = vmul.f32 %v783, %v801
      %v806 = vmul.f32 %v785, %v802
      %v807 = vmul.f32 %v787, %v803
      %v808 = vpack.c.bf16 %v805, %v804
      %v809 = vpack.c.bf16 %v807, %v806
      %810 = vrot.lane.b32.xlu0 %v694, 96
      %v811 = vpop.permute.xlu0 %810
      %812 = vrot.lane.b32.xlu0 %v695, 96
      %v813 = vpop.permute.xlu0 %812
      %v817 = vsel %vm638, %v808, 0
      %v820 = vsel %vm638, %v809, 0
      %822 = vmatprep.subr.bf16.mxu0 0
      %823 = vmatpush1.bf16.msra.mxu0 %v811
      %824 = vmatprep.subr.bf16.mxu0 0
      %825 = vmatpush1.bf16.msra.mxu0 %v813
      %826 = vmatprep.subr.bf16.mxu0 0
      %827 = vmatpush1.bf16.msra.mxu0 0
      %828 = vmatprep.subr.bf16.mxu0 0
      %829 = vmatpush1.bf16.msra.mxu0 0
      %830 = vmatprep.subr.bf16.mxu0 0
      %831 = vmatpush1.bf16.msra.mxu0 0
      %832 = vmatprep.subr.bf16.mxu0 0
      %833 = vmatpush1.bf16.msra.mxu0 0
      %834 = vmatprep.subr.bf16.mxu0 0
      %835 = vmatpush1.bf16.msra.mxu0 0
      %836 = vmatprep.subr.bf16.mxu0 0
      %837 = vmatpush1.bf16.msra.mxu0 0
      %838 = vmatprep.subr.bf16.mxu0 0
      %839 = vmatpush1.bf16.msra.mxu0 0
      %840 = vmatprep.subr.bf16.mxu0 0
      %841 = vmatpush1.bf16.msra.mxu0 0
      %842 = vmatprep.subr.bf16.mxu0 0
      %843 = vmatpush1.bf16.msra.mxu0 0
      %844 = vmatprep.subr.bf16.mxu0 0
      %845 = vmatpush1.bf16.msra.mxu0 0
      %846 = vmatprep.subr.bf16.mxu0 0
      %847 = vmatpush1.bf16.msra.mxu0 0
      %848 = vmatprep.subr.bf16.mxu0 0
      %849 = vmatpush1.bf16.msra.mxu0 0
      %850 = vmatprep.subr.bf16.mxu0 0
      %851 = vmatpush1.bf16.msra.mxu0 0
      %852 = vmatprep.subr.bf16.mxu0 0
      %853 = vmatpush1.bf16.msra.mxu0 0
      %854 = vmatprep.mubr.bf16.mxu0 0
      %855 = vmatmul.mubr.bf16.gmra.mrb[0].mxu0 %v817
      %v856 = vpop.f32.mrb[0].mxu0
      %v857 = vadd.f32 0.0, %v856
      %v858 = vpop.f32.mrb[0].mxu0
      %v859 = vpop.f32.mrb[0].mxu0
      %v860 = vadd.f32 0.0, %v859
      %v861 = vpop.f32.mrb[0].mxu0
      %862 = vmatprep.mubr.bf16.mxu0 0
      %863 = vmatmul.mubr.bf16.gmra.mrb[0].mxu0 %v820
      %v864 = vpop.f32.mrb[0].mxu0
      %v865 = vadd.f32 0.0, %v864
      %v866 = vpop.f32.mrb[0].mxu0
      %v867 = vpop.f32.mrb[0].mxu0
      %v868 = vadd.f32 0.0, %v867
      %v869 = vpop.f32.mrb[0].mxu0
      %870 = vdwg.mxu0
      %v871 = vpack.c.bf16 %v860, %v857
      %v872 = vpack.c.bf16 %v868, %v865
      %v873 = vld [vmem:[%s6] sm:$0xf]
      %v874 = vld [vmem:[%s6 + $0x4] sm:$0xf]
      %v875 = vld [vmem:[%s7] sm:$0x1]
      %v877 = vlaneseq
      %v878 = vshrl.u32 %v877, 7
      %v879 = vsub.s32 0, %v878
      %v880 = vrot.slane %v875, %v879
      %v884 = vunpack.c.l.b16 %v873
      %v885 = vunpack.c.l.b16 %v874
      %v886 = vpack.c.b16 %v885, %v884
      %v889 = vsel %vm702, %v871, 0
      %v892 = vsel %vm702, %v872, 0
      %894 = vmatprep.subr.bf16.mxu0 0
      %895 = vmatpush1.bf16.msra.mxu0 %v886
      %896 = vmatprep.subr.bf16.mxu0 0
      %897 = vmatpush1.bf16.msra.mxu0 0
      %898 = vmatprep.subr.bf16.mxu0 0
      %899 = vmatpush1.bf16.msra.mxu0 0
      %900 = vmatprep.subr.bf16.mxu0 0
      %901 = vmatpush1.bf16.msra.mxu0 0
      %902 = vmatprep.subr.bf16.mxu0 0
      %903 = vmatpush1.bf16.msra.mxu0 0
      %904 = vmatprep.subr.bf16.mxu0 0
      %905 = vmatpush1.bf16.msra.mxu0 0
      %906 = vmatprep.subr.bf16.mxu0 0
      %907 = vmatpush1.bf16.msra.mxu0 0
      %908 = vmatprep.subr.bf16.mxu0 0
      %909 = vmatpush1.bf16.msra.mxu0 0
      %910 = vmatprep.subr.bf16.mxu0 0
      %911 = vmatpush1.bf16.msra.mxu0 0
      %912 = vmatprep.subr.bf16.mxu0 0
      %913 = vmatpush1.bf16.msra.mxu0 0
      %914 = vmatprep.subr.bf16.mxu0 0
      %915 = vmatpush1.bf16.msra.mxu0 0
      %916 = vmatprep.subr.bf16.mxu0 0
      %917 = vmatpush1.bf16.msra.mxu0 0
      %918 = vmatprep.subr.bf16.mxu0 0
      %919 = vmatpush1.bf16.msra.mxu0 0
      %920 = vmatprep.subr.bf16.mxu0 0
      %921 = vmatpush1.bf16.msra.mxu0 0
      %922 = vmatprep.subr.bf16.mxu0 0
      %923 = vmatpush1.bf16.msra.mxu0 0
      %924 = vmatprep.subr.bf16.mxu0 0
      %925 = vmatpush1.bf16.msra.mxu0 0
      %926 = vmatprep.mubr.bf16.mxu0 0
      %927 = vmatmul.mubr.bf16.gmra.mrb[0].mxu0 %v889
      %v928 = vpop.f32.mrb[0].mxu0
      %v929 = vadd.f32 %v880, %v928
      %v930 = vpop.f32.mrb[0].mxu0
      %v931 = vpop.f32.mrb[0].mxu0
      %v932 = vadd.f32 %v880, %v931
      %v933 = vpop.f32.mrb[0].mxu0
      %934 = vmatprep.mubr.bf16.mxu0 0
      %935 = vmatmul.mubr.bf16.gmra.mrb[0].mxu0 %v892
      %v936 = vpop.f32.mrb[0].mxu0
      %v937 = vadd.f32 %v880, %v936
      %v938 = vpop.f32.mrb[0].mxu0
      %v939 = vpop.f32.mrb[0].mxu0
      %v940 = vadd.f32 %v880, %v939
      %v941 = vpop.f32.mrb[0].mxu0
      %942 = vdwg.mxu0
      %v943 = vadd.f32 %v573, %v929
      %v944 = vadd.f32 %v576, %v932
      %v945 = vadd.f32 %v581, %v937
      %v946 = vadd.f32 %v584, %v940
      %v947 = vlaneseq
      %v948 = vshrl.u32 %v947, 7
      %v949 = vadd.s32 %v948, 8
      %v950 = vadd.s32 %v948, 16
      %v951 = vadd.s32 %v948, 24
      %v952 = vlaneseq
      %v953 = vand.u32 %v952, 127
      %vm954 = vcmp.eq.s32.totalorder %v948, %v953
      %vm955 = vcmp.eq.s32.totalorder %v949, %v953
      %vm956 = vcmp.eq.s32.totalorder %v950, %v953
      %vm957 = vcmp.eq.s32.totalorder %v951, %v953
      %v959 = vsel %vm638, %v943, 0
      %v962 = vsel %vm638, %v944, 0
      %v965 = vsel %vm638, %v945, 0
      %v968 = vsel %vm638, %v946, 0
      %970 = vmatprep.subr.mxu0 0.0
      %971 = vmatpush1.xpose.msra.mxu0 %v959
      %972 = vmatprep.subr.mxu0 0.0
      %973 = vmatpush1.xpose.msra.mxu0 %v962
      %974 = vmatprep.subr.mxu0 0.0
      %975 = vmatpush1.xpose.msra.mxu0 %v965
      %976 = vmatprep.subr.mxu0 0.0
      %977 = vmatpush1.xpose.msra.mxu0 %v968
      %978 = vmatprep.subr.mxu0 0.0
      %979 = vmatpush1.xpose.msra.mxu0 0.0
      %980 = vmatprep.subr.mxu0 0.0
      %981 = vmatpush1.xpose.msra.mxu0 0.0
      %982 = vmatprep.subr.mxu0 0.0
      %983 = vmatpush1.xpose.msra.mxu0 0.0
      %984 = vmatprep.subr.mxu0 0.0
      %985 = vmatpush1.xpose.msra.mxu0 0.0
      %986 = vmatprep.subr.mxu0 0.0
      %987 = vmatpush1.xpose.msra.mxu0 0.0
      %988 = vmatprep.subr.mxu0 0.0
      %989 = vmatpush1.xpose.msra.mxu0 0.0
      %990 = vmatprep.subr.mxu0 0.0
      %991 = vmatpush1.xpose.msra.mxu0 0.0
      %992 = vmatprep.subr.mxu0 0.0
      %993 = vmatpush1.xpose.msra.mxu0 0.0
      %994 = vmatprep.subr.mxu0 0.0
      %995 = vmatpush1.xpose.msra.mxu0 0.0
      %996 = vmatprep.subr.mxu0 0.0
      %997 = vmatpush1.xpose.msra.mxu0 0.0
      %998 = vmatprep.subr.mxu0 0.0
      %999 = vmatpush1.xpose.msra.mxu0 0.0
      %1000 = vmatprep.subr.mxu0 0.0
      %1001 = vmatpush1.xpose.msra.mxu0 0.0
      %1002 = vmatprep.subr.mxu0 0.0
      %1003 = vmatpush1.xpose.msra.mxu0 0.0
      %1004 = vmatprep.subr.mxu0 0.0
      %1005 = vmatpush1.xpose.msra.mxu0 0.0
      %1006 = vmatprep.subr.mxu0 0.0
      %1007 = vmatpush1.xpose.msra.mxu0 0.0
      %1008 = vmatprep.subr.mxu0 0.0
      %1009 = vmatpush1.xpose.msra.mxu0 0.0
      %1010 = vmatprep.subr.mxu0 0.0
      %1011 = vmatpush1.xpose.msra.mxu0 0.0
      %1012 = vmatprep.subr.mxu0 0.0
      %1013 = vmatpush1.xpose.msra.mxu0 0.0
      %1014 = vmatprep.subr.mxu0 0.0
      %1015 = vmatpush1.xpose.msra.mxu0 0.0
      %1016 = vmatprep.subr.mxu0 0.0
      %1017 = vmatpush1.xpose.msra.mxu0 0.0
      %1018 = vmatprep.subr.mxu0 0.0
      %1019 = vmatpush1.xpose.msra.mxu0 0.0
      %1020 = vmatprep.subr.mxu0 0.0
      %1021 = vmatpush1.xpose.msra.mxu0 0.0
      %1022 = vmatprep.subr.mxu0 0.0
      %1023 = vmatpush1.xpose.msra.mxu0 0.0
      %1024 = vmatprep.subr.mxu0 0.0
      %1025 = vmatpush1.xpose.msra.mxu0 0.0
      %1026 = vmatprep.subr.mxu0 0.0
      %1027 = vmatpush1.xpose.msra.mxu0 0.0
      %1028 = vmatprep.subr.mxu0 0.0
      %1029 = vmatpush1.xpose.msra.mxu0 0.0
      %1030 = vmatprep.subr.mxu0 0.0
      %1031 = vmatpush1.xpose.msra.mxu0 0.0
      %1032 = vmatprep.subr.mxu0 0.0
      %1033 = vmatpush1.xpose.msra.mxu0 0.0
      %1034 = vmatprep.mubr.f32.mxu0 0.0
      %1035 = vmatmul.mubr.f32.gmra.mrb[0].mxu0 %v959
      %v1036 = vpop.f32.mrb[0].mxu0
      %v1037 = vadd.f32 0.0, %v1036
      %v1038 = vpop.f32.mrb[0].mxu0
      %1039 = vmatprep.mubr.f32.mxu0 0.0
      %1040 = vmatmul.mubr.f32.gmra.mrb[0].mxu0 %v962
      %v1041 = vpop.f32.mrb[0].mxu0
      %v1042 = vadd.f32 0.0, %v1041
      %v1043 = vpop.f32.mrb[0].mxu0
      %1044 = vmatprep.mubr.f32.mxu0 0.0
      %1045 = vmatmul.mubr.f32.gmra.mrb[0].mxu0 %v965
      %v1046 = vpop.f32.mrb[0].mxu0
      %v1047 = vadd.f32 0.0, %v1046
      %v1048 = vpop.f32.mrb[0].mxu0
      %1049 = vmatprep.mubr.f32.mxu0 0.0
      %1050 = vmatmul.mubr.f32.gmra.mrb[0].mxu0 %v968
      %v1051 = vpop.f32.mrb[0].mxu0
      %v1052 = vadd.f32 0.0, %v1051
      %v1053 = vpop.f32.mrb[0].mxu0
      %1054 = vdwg.mxu0
      %v1055 = vsel %vm954, %v1037, 0.0
      %v1056 = vsel %vm955, %v1042, 0.0
      %v1057 = vsel %vm956, %v1047, 0.0
      %v1058 = vsel %vm957, %v1052, 0.0
      %v1059 = vsel %vm638, %v1055, 0.0
      %v1060 = vsel %vm638, %v1056, 0.0
      %v1061 = vadd.f32 %v1059, %v1060
      %v1062 = vsel %vm638, %v1057, 0.0
      %v1063 = vadd.f32 %v1061, %v1062
      %v1064 = vsel %vm638, %v1058, 0.0
      %v1065 = vadd.f32 %v1063, %v1064
      %v1066 = vrot.slane %v1065, 4
      %v1067 = vadd.f32 %v1065, %v1066
      %v1068 = vrot.slane %v1067, 2
      %v1069 = vadd.f32 %v1067, %v1068
      %v1070 = vrot.slane %v1069, 1
      %v1071 = vadd.f32 %v1069, %v1070
      %v1072 = vmul.f32 %v1037, 2.0
      %v1073 = vmul.f32 %v1042, 2.0
      %v1074 = vmul.f32 %v1047, 2.0
      %v1075 = vmul.f32 %v1052, 2.0
      %v1076 = vsub.f32 %v1072, %v1071
      %v1077 = vsub.f32 %v1073, %v1071
      %v1078 = vsub.f32 %v1074, %v1071
      %v1079 = vsub.f32 %v1075, %v1071
      %v1080 = vsel %vm638, %v1076, -inf
      %1081 = vmax.xlane.f32.xlu0 %v1080
      %v1082 = vpop.xlane.xlu0 %1081
      %v1083 = vsel %vm638, %v1077, -inf
      %1084 = vmax.xlane.f32.xlu0 %v1083
      %v1085 = vpop.xlane.xlu0 %1084
      %v1086 = vsel %vm638, %v1078, -inf
      %1087 = vmax.xlane.f32.xlu0 %v1086
      %v1088 = vpop.xlane.xlu0 %1087
      %v1089 = vsel %vm638, %v1079, -inf
      %1090 = vmax.xlane.f32.xlu0 %v1089
      %v1091 = vpop.xlane.xlu0 %1090
      %vm1092 = vcmp.ge.f32.partialorder %v1076, %v1082
      %vm1093 = vcmp.ge.f32.partialorder %v1077, %v1085
      %vm1094 = vcmp.ge.f32.partialorder %v1078, %v1088
      %vm1095 = vcmp.ge.f32.partialorder %v1079, %v1091
      %v1096 = vsel %vm1092, %v953, 32
      %v1097 = vsel %vm1093, %v953, 32
      %v1098 = vsel %vm1094, %v953, 32
      %v1099 = vsel %vm1095, %v953, 32
      %v1100 = vsel %vm638, %v1096, 2147483647
      %v1101 = vand.u32 %v1100, 65535
      %v1102 = vshra.s32 %v1100, 16
      %v1103 = vcvt.s32.f32 %v1101
      %v1104 = vcvt.s32.f32 %v1102
      %1105 = vmin.xlane.f32.xlu0 %v1104
      %v1106 = vpop.xlane.xlu0 %1105
      %vm1107 = vcmp.eq.f32.partialorder %v1104, %v1106
      %v1108 = vsel %vm1107, %v1103, inf
      %1109 = vmin.xlane.f32.xlu0 %v1108
      %v1110 = vpop.xlane.xlu0 %1109
      %v1111 = vcvt.f32.s32 %v1110
      %v1112 = vcvt.f32.s32 %v1106
      %v1113 = vshll.u32 %v1112, 16
      %v1114 = vadd.s32 %v1113, %v1111
      %v1115 = vsel %vm638, %v1097, 2147483647
      %v1116 = vand.u32 %v1115, 65535
      %v1117 = vshra.s32 %v1115, 16
      %v1118 = vcvt.s32.f32 %v1116
      %v1119 = vcvt.s32.f32 %v1117
      %1120 = vmin.xlane.f32.xlu0 %v1119
      %v1121 = vpop.xlane.xlu0 %1120
      %vm1122 = vcmp.eq.f32.partialorder %v1119, %v1121
      %v1123 = vsel %vm1122, %v1118, inf
      %1124 = vmin.xlane.f32.xlu0 %v1123
      %v1125 = vpop.xlane.xlu0 %1124
      %v1126 = vcvt.f32.s32 %v1125
      %v1127 = vcvt.f32.s32 %v1121
      %v1128 = vshll.u32 %v1127, 16
      %v1129 = vadd.s32 %v1128, %v1126
      %v1130 = vsel %vm638, %v1098, 2147483647
      %v1131 = vand.u32 %v1130, 65535
      %v1132 = vshra.s32 %v1130, 16
      %v1133 = vcvt.s32.f32 %v1131
      %v1134 = vcvt.s32.f32 %v1132
      %1135 = vmin.xlane.f32.xlu0 %v1134
      %v1136 = vpop.xlane.xlu0 %1135
      %vm1137 = vcmp.eq.f32.partialorder %v1134, %v1136
      %v1138 = vsel %vm1137, %v1133, inf
      %1139 = vmin.xlane.f32.xlu0 %v1138
      %v1140 = vpop.xlane.xlu0 %1139
      %v1141 = vcvt.f32.s32 %v1140
      %v1142 = vcvt.f32.s32 %v1136
      %v1143 = vshll.u32 %v1142, 16
      %v1144 = vadd.s32 %v1143, %v1141
      %v1145 = vsel %vm638, %v1099, 2147483647
      %v1146 = vand.u32 %v1145, 65535
      %v1147 = vshra.s32 %v1145, 16
      %v1148 = vcvt.s32.f32 %v1146
      %v1149 = vcvt.s32.f32 %v1147
      %1150 = vmin.xlane.f32.xlu0 %v1149
      %v1151 = vpop.xlane.xlu0 %1150
      %vm1152 = vcmp.eq.f32.partialorder %v1149, %v1151
      %v1153 = vsel %vm1152, %v1148, inf
      %1154 = vmin.xlane.f32.xlu0 %v1153
      %v1155 = vpop.xlane.xlu0 %1154
      %v1156 = vcvt.f32.s32 %v1155
      %v1157 = vcvt.f32.s32 %v1151
      %v1158 = vshll.u32 %v1157, 16
      %v1159 = vadd.s32 %v1158, %v1156
      %vm1160 = vcmp.eq.s32.totalorder %v953, %v1114
      %vm1161 = vcmp.eq.s32.totalorder %v953, %v1129
      %vm1162 = vcmp.eq.s32.totalorder %v953, %v1144
      %vm1163 = vcmp.eq.s32.totalorder %v953, %v1159
      %v1164 = vsel %vm1160, 1, 0
      %v1165 = vsel %vm1161, 1, 0
      %v1166 = vsel %vm1162, 1, 0
      %v1167 = vsel %vm1163, 1, 0
      %v1168 = vcvt.s32.f32 %v1164
      %v1169 = vcvt.s32.f32 %v1165
      %v1170 = vcvt.s32.f32 %v1166
      %v1171 = vcvt.s32.f32 %v1167
      %v1172 = vpack.c.bf16 %v1169, %v1168
      %v1173 = vpack.c.bf16 %v1171, %v1170
      %v1174 = vsel %vm1160, -inf, %v1076
      %v1175 = vsel %vm1161, -inf, %v1077
      %v1176 = vsel %vm1162, -inf, %v1078
      %v1177 = vsel %vm1163, -inf, %v1079
      %v1178 = vsel %vm638, %v1174, -inf
      %1179 = vmax.xlane.f32.xlu0 %v1178
      %v1180 = vpop.xlane.xlu0 %1179
      %v1181 = vsel %vm638, %v1175, -inf
      %1182 = vmax.xlane.f32.xlu0 %v1181
      %v1183 = vpop.xlane.xlu0 %1182
      %v1184 = vsel %vm638, %v1176, -inf
      %1185 = vmax.xlane.f32.xlu0 %v1184
      %v1186 = vpop.xlane.xlu0 %1185
      %v1187 = vsel %vm638, %v1177, -inf
      %1188 = vmax.xlane.f32.xlu0 %v1187
      %v1189 = vpop.xlane.xlu0 %1188
      %vm1190 = vcmp.ge.f32.partialorder %v1174, %v1180
      %vm1191 = vcmp.ge.f32.partialorder %v1175, %v1183
      %vm1192 = vcmp.ge.f32.partialorder %v1176, %v1186
      %vm1193 = vcmp.ge.f32.partialorder %v1177, %v1189
      %v1194 = vsel %vm1190, %v953, 32
      %v1195 = vsel %vm1191, %v953, 32
      %v1196 = vsel %vm1192, %v953, 32
      %v1197 = vsel %vm1193, %v953, 32
      %v1198 = vsel %vm638, %v1194, 2147483647
      %v1199 = vand.u32 %v1198, 65535
      %v1200 = vshra.s32 %v1198, 16
      %v1201 = vcvt.s32.f32 %v1199
      %v1202 = vcvt.s32.f32 %v1200
      %1203 = vmin.xlane.f32.xlu0 %v1202
      %v1204 = vpop.xlane.xlu0 %1203
      %vm1205 = vcmp.eq.f32.partialorder %v1202, %v1204
      %v1206 = vsel %vm1205, %v1201, inf
      %1207 = vmin.xlane.f32.xlu0 %v1206
      %v1208 = vpop.xlane.xlu0 %1207
      %v1209 = vcvt.f32.s32 %v1208
      %v1210 = vcvt.f32.s32 %v1204
      %v1211 = vshll.u32 %v1210, 16
      %v1212 = vadd.s32 %v1211, %v1209
      %v1213 = vsel %vm638, %v1195, 2147483647
      %v1214 = vand.u32 %v1213, 65535
      %v1215 = vshra.s32 %v1213, 16
      %v1216 = vcvt.s32.f32 %v1214
      %v1217 = vcvt.s32.f32 %v1215
      %1218 = vmin.xlane.f32.xlu0 %v1217
      %v1219 = vpop.xlane.xlu0 %1218
      %vm1220 = vcmp.eq.f32.partialorder %v1217, %v1219
      %v1221 = vsel %vm1220, %v1216, inf
      %1222 = vmin.xlane.f32.xlu0 %v1221
      %v1223 = vpop.xlane.xlu0 %1222
      %v1224 = vcvt.f32.s32 %v1223
      %v1225 = vcvt.f32.s32 %v1219
      %v1226 = vshll.u32 %v1225, 16
      %v1227 = vadd.s32 %v1226, %v1224
      %v1228 = vsel %vm638, %v1196, 2147483647
      %v1229 = vand.u32 %v1228, 65535
      %v1230 = vshra.s32 %v1228, 16
      %v1231 = vcvt.s32.f32 %v1229
      %v1232 = vcvt.s32.f32 %v1230
      %1233 = vmin.xlane.f32.xlu0 %v1232
      %v1234 = vpop.xlane.xlu0 %1233
      %vm1235 = vcmp.eq.f32.partialorder %v1232, %v1234
      %v1236 = vsel %vm1235, %v1231, inf
      %1237 = vmin.xlane.f32.xlu0 %v1236
      %v1238 = vpop.xlane.xlu0 %1237
      %v1239 = vcvt.f32.s32 %v1238
      %v1240 = vcvt.f32.s32 %v1234
      %v1241 = vshll.u32 %v1240, 16
      %v1242 = vadd.s32 %v1241, %v1239
      %v1243 = vsel %vm638, %v1197, 2147483647
      %v1244 = vand.u32 %v1243, 65535
      %v1245 = vshra.s32 %v1243, 16
      %v1246 = vcvt.s32.f32 %v1244
      %v1247 = vcvt.s32.f32 %v1245
      %1248 = vmin.xlane.f32.xlu0 %v1247
      %v1249 = vpop.xlane.xlu0 %1248
      %vm1250 = vcmp.eq.f32.partialorder %v1247, %v1249
      %v1251 = vsel %vm1250, %v1246, inf
      %1252 = vmin.xlane.f32.xlu0 %v1251
      %v1253 = vpop.xlane.xlu0 %1252
      %v1254 = vcvt.f32.s32 %v1253
      %v1255 = vcvt.f32.s32 %v1249
      %v1256 = vshll.u32 %v1255, 16
      %v1257 = vadd.s32 %v1256, %v1254
      %vm1258 = vcmp.eq.s32.totalorder %v953, %v1212
      %vm1259 = vcmp.eq.s32.totalorder %v953, %v1227
      %vm1260 = vcmp.eq.s32.totalorder %v953, %v1242
      %vm1261 = vcmp.eq.s32.totalorder %v953, %v1257
      %v1262 = vsel %vm1258, 1, 0
      %v1263 = vsel %vm1259, 1, 0
      %v1264 = vsel %vm1260, 1, 0
      %v1265 = vsel %vm1261, 1, 0
      %v1266 = vcvt.s32.f32 %v1262
      %v1267 = vcvt.s32.f32 %v1263
      %v1268 = vcvt.s32.f32 %v1264
      %v1269 = vcvt.s32.f32 %v1265
      %v1270 = vpack.c.bf16 %v1267, %v1266
      %v1271 = vpack.c.bf16 %v1269, %v1268
      %v1272 = vsel %vm1258, -inf, %v1174
      %v1273 = vsel %vm1259, -inf, %v1175
      %v1274 = vsel %vm1260, -inf, %v1176
      %v1275 = vsel %vm1261, -inf, %v1177
      %v1276 = vsel %vm638, %v1272, -inf
      %1277 = vmax.xlane.f32.xlu0 %v1276
      %v1278 = vpop.xlane.xlu0 %1277
      %v1279 = vsel %vm638, %v1273, -inf
      %1280 = vmax.xlane.f32.xlu0 %v1279
      %v1281 = vpop.xlane.xlu0 %1280
      %v1282 = vsel %vm638, %v1274, -inf
      %1283 = vmax.xlane.f32.xlu0 %v1282
      %v1284 = vpop.xlane.xlu0 %1283
      %v1285 = vsel %vm638, %v1275, -inf
      %1286 = vmax.xlane.f32.xlu0 %v1285
      %v1287 = vpop.xlane.xlu0 %1286
      %vm1288 = vcmp.ge.f32.partialorder %v1272, %v1278
      %vm1289 = vcmp.ge.f32.partialorder %v1273, %v1281
      %vm1290 = vcmp.ge.f32.partialorder %v1274, %v1284
      %vm1291 = vcmp.ge.f32.partialorder %v1275, %v1287
      %v1292 = vsel %vm1288, %v953, 32
      %v1293 = vsel %vm1289, %v953, 32
      %v1294 = vsel %vm1290, %v953, 32
      %v1295 = vsel %vm1291, %v953, 32
      %v1296 = vsel %vm638, %v1292, 2147483647
      %v1297 = vand.u32 %v1296, 65535
      %v1298 = vshra.s32 %v1296, 16
      %v1299 = vcvt.s32.f32 %v1297
      %v1300 = vcvt.s32.f32 %v1298
      %1301 = vmin.xlane.f32.xlu0 %v1300
      %v1302 = vpop.xlane.xlu0 %1301
      %vm1303 = vcmp.eq.f32.partialorder %v1300, %v1302
      %v1304 = vsel %vm1303, %v1299, inf
      %1305 = vmin.xlane.f32.xlu0 %v1304
      %v1306 = vpop.xlane.xlu0 %1305
      %v1307 = vcvt.f32.s32 %v1306
      %v1308 = vcvt.f32.s32 %v1302
      %v1309 = vshll.u32 %v1308, 16
      %v1310 = vadd.s32 %v1309, %v1307
      %v1311 = vsel %vm638, %v1293, 2147483647
      %v1312 = vand.u32 %v1311, 65535
      %v1313 = vshra.s32 %v1311, 16
      %v1314 = vcvt.s32.f32 %v1312
      %v1315 = vcvt.s32.f32 %v1313
      %1316 = vmin.xlane.f32.xlu0 %v1315
      %v1317 = vpop.xlane.xlu0 %1316
      %vm1318 = vcmp.eq.f32.partialorder %v1315, %v1317
      %v1319 = vsel %vm1318, %v1314, inf
      %1320 = vmin.xlane.f32.xlu0 %v1319
      %v1321 = vpop.xlane.xlu0 %1320
      %v1322 = vcvt.f32.s32 %v1321
      %v1323 = vcvt.f32.s32 %v1317
      %v1324 = vshll.u32 %v1323, 16
      %v1325 = vadd.s32 %v1324, %v1322
      %v1326 = vsel %vm638, %v1294, 2147483647
      %v1327 = vand.u32 %v1326, 65535
      %v1328 = vshra.s32 %v1326, 16
      %v1329 = vcvt.s32.f32 %v1327
      %v1330 = vcvt.s32.f32 %v1328
      %1331 = vmin.xlane.f32.xlu0 %v1330
      %v1332 = vpop.xlane.xlu0 %1331
      %vm1333 = vcmp.eq.f32.partialorder %v1330, %v1332
      %v1334 = vsel %vm1333, %v1329, inf
      %1335 = vmin.xlane.f32.xlu0 %v1334
      %v1336 = vpop.xlane.xlu0 %1335
      %v1337 = vcvt.f32.s32 %v1336
      %v1338 = vcvt.f32.s32 %v1332
      %v1339 = vshll.u32 %v1338, 16
      %v1340 = vadd.s32 %v1339, %v1337
      %v1341 = vsel %vm638, %v1295, 2147483647
      %v1342 = vand.u32 %v1341, 65535
      %v1343 = vshra.s32 %v1341, 16
      %v1344 = vcvt.s32.f32 %v1342
      %v1345 = vcvt.s32.f32 %v1343
      %1346 = vmin.xlane.f32.xlu0 %v1345
      %v1347 = vpop.xlane.xlu0 %1346
      %vm1348 = vcmp.eq.f32.partialorder %v1345, %v1347
      %v1349 = vsel %vm1348, %v1344, inf
      %1350 = vmin.xlane.f32.xlu0 %v1349
      %v1351 = vpop.xlane.xlu0 %1350
      %v1352 = vcvt.f32.s32 %v1351
      %v1353 = vcvt.f32.s32 %v1347
      %v1354 = vshll.u32 %v1353, 16
      %v1355 = vadd.s32 %v1354, %v1352
      %vm1356 = vcmp.eq.s32.totalorder %v953, %v1310
      %vm1357 = vcmp.eq.s32.totalorder %v953, %v1325
      %vm1358 = vcmp.eq.s32.totalorder %v953, %v1340
      %vm1359 = vcmp.eq.s32.totalorder %v953, %v1355
      %v1360 = vsel %vm1356, 1, 0
      %v1361 = vsel %vm1357, 1, 0
      %v1362 = vsel %vm1358, 1, 0
      %v1363 = vsel %vm1359, 1, 0
      %v1364 = vcvt.s32.f32 %v1360
      %v1365 = vcvt.s32.f32 %v1361
      %v1366 = vcvt.s32.f32 %v1362
      %v1367 = vcvt.s32.f32 %v1363
      %v1368 = vpack.c.bf16 %v1365, %v1364
      %v1369 = vpack.c.bf16 %v1367, %v1366
      %v1370 = vsel %vm1356, -inf, %v1272
      %v1371 = vsel %vm1357, -inf, %v1273
      %v1372 = vsel %vm1358, -inf, %v1274
      %v1373 = vsel %vm1359, -inf, %v1275
      %v1374 = vsel %vm638, %v1370, -inf
      %1375 = vmax.xlane.f32.xlu0 %v1374
      %v1376 = vpop.xlane.xlu0 %1375
      %v1377 = vsel %vm638, %v1371, -inf
      %1378 = vmax.xlane.f32.xlu0 %v1377
      %v1379 = vpop.xlane.xlu0 %1378
      %v1380 = vsel %vm638, %v1372, -inf
      %1381 = vmax.xlane.f32.xlu0 %v1380
      %v1382 = vpop.xlane.xlu0 %1381
      %v1383 = vsel %vm638, %v1373, -inf
      %1384 = vmax.xlane.f32.xlu0 %v1383
      %v1385 = vpop.xlane.xlu0 %1384
      %vm1386 = vcmp.ge.f32.partialorder %v1370, %v1376
      %vm1387 = vcmp.ge.f32.partialorder %v1371, %v1379
      %vm1388 = vcmp.ge.f32.partialorder %v1372, %v1382
      %vm1389 = vcmp.ge.f32.partialorder %v1373, %v1385
      %v1390 = vsel %vm1386, %v953, 32
      %v1391 = vsel %vm1387, %v953, 32
      %v1392 = vsel %vm1388, %v953, 32
      %v1393 = vsel %vm1389, %v953, 32
      %v1394 = vsel %vm638, %v1390, 2147483647
      %v1395 = vand.u32 %v1394, 65535
      %v1396 = vshra.s32 %v1394, 16
      %v1397 = vcvt.s32.f32 %v1395
      %v1398 = vcvt.s32.f32 %v1396
      %1399 = vmin.xlane.f32.xlu0 %v1398
      %v1400 = vpop.xlane.xlu0 %1399
      %vm1401 = vcmp.eq.f32.partialorder %v1398, %v1400
      %v1402 = vsel %vm1401, %v1397, inf
      %1403 = vmin.xlane.f32.xlu0 %v1402
      %v1404 = vpop.xlane.xlu0 %1403
      %v1405 = vcvt.f32.s32 %v1404
      %v1406 = vcvt.f32.s32 %v1400
      %v1407 = vshll.u32 %v1406, 16
      %v1408 = vadd.s32 %v1407, %v1405
      %v1409 = vsel %vm638, %v1391, 2147483647
      %v1410 = vand.u32 %v1409, 65535
      %v1411 = vshra.s32 %v1409, 16
      %v1412 = vcvt.s32.f32 %v1410
      %v1413 = vcvt.s32.f32 %v1411
      %1414 = vmin.xlane.f32.xlu0 %v1413
      %v1415 = vpop.xlane.xlu0 %1414
      %vm1416 = vcmp.eq.f32.partialorder %v1413, %v1415
      %v1417 = vsel %vm1416, %v1412, inf
      %1418 = vmin.xlane.f32.xlu0 %v1417
      %v1419 = vpop.xlane.xlu0 %1418
      %v1420 = vcvt.f32.s32 %v1419
      %v1421 = vcvt.f32.s32 %v1415
      %v1422 = vshll.u32 %v1421, 16
      %v1423 = vadd.s32 %v1422, %v1420
      %v1424 = vsel %vm638, %v1392, 2147483647
      %v1425 = vand.u32 %v1424, 65535
      %v1426 = vshra.s32 %v1424, 16
      %v1427 = vcvt.s32.f32 %v1425
      %v1428 = vcvt.s32.f32 %v1426
      %1429 = vmin.xlane.f32.xlu0 %v1428
      %v1430 = vpop.xlane.xlu0 %1429
      %vm1431 = vcmp.eq.f32.partialorder %v1428, %v1430
      %v1432 = vsel %vm1431, %v1427, inf
      %1433 = vmin.xlane.f32.xlu0 %v1432
      %v1434 = vpop.xlane.xlu0 %1433
      %v1435 = vcvt.f32.s32 %v1434
      %v1436 = vcvt.f32.s32 %v1430
      %v1437 = vshll.u32 %v1436, 16
      %v1438 = vadd.s32 %v1437, %v1435
      %v1439 = vsel %vm638, %v1393, 2147483647
      %v1440 = vand.u32 %v1439, 65535
      %v1441 = vshra.s32 %v1439, 16
      %v1442 = vcvt.s32.f32 %v1440
      %v1443 = vcvt.s32.f32 %v1441
      %1444 = vmin.xlane.f32.xlu0 %v1443
      %v1445 = vpop.xlane.xlu0 %1444
      %vm1446 = vcmp.eq.f32.partialorder %v1443, %v1445
      %v1447 = vsel %vm1446, %v1442, inf
      %1448 = vmin.xlane.f32.xlu0 %v1447
      %v1449 = vpop.xlane.xlu0 %1448
      %v1450 = vcvt.f32.s32 %v1449
      %v1451 = vcvt.f32.s32 %v1445
      %v1452 = vshll.u32 %v1451, 16
      %v1453 = vadd.s32 %v1452, %v1450
      %vm1454 = vcmp.eq.s32.totalorder %v953, %v1408
      %vm1455 = vcmp.eq.s32.totalorder %v953, %v1423
      %vm1456 = vcmp.eq.s32.totalorder %v953, %v1438
      %vm1457 = vcmp.eq.s32.totalorder %v953, %v1453
      %v1458 = vsel %vm1454, 1, 0
      %v1459 = vsel %vm1455, 1, 0
      %v1460 = vsel %vm1456, 1, 0
      %v1461 = vsel %vm1457, 1, 0
      %v1462 = vcvt.s32.f32 %v1458
      %v1463 = vcvt.s32.f32 %v1459
      %v1464 = vcvt.s32.f32 %v1460
      %v1465 = vcvt.s32.f32 %v1461
      %v1466 = vpack.c.bf16 %v1463, %v1462
      %v1467 = vpack.c.bf16 %v1465, %v1464
      %v1468 = vsel %vm1454, -inf, %v1370
      %v1469 = vsel %vm1455, -inf, %v1371
      %v1470 = vsel %vm1456, -inf, %v1372
      %v1471 = vsel %vm1457, -inf, %v1373
      %v1472 = vsel %vm638, %v1468, -inf
      %1473 = vmax.xlane.f32.xlu0 %v1472
      %v1474 = vpop.xlane.xlu0 %1473
      %v1475 = vsel %vm638, %v1469, -inf
      %1476 = vmax.xlane.f32.xlu0 %v1475
      %v1477 = vpop.xlane.xlu0 %1476
      %v1478 = vsel %vm638, %v1470, -inf
      %1479 = vmax.xlane.f32.xlu0 %v1478
      %v1480 = vpop.xlane.xlu0 %1479
      %v1481 = vsel %vm638, %v1471, -inf
      %1482 = vmax.xlane.f32.xlu0 %v1481
      %v1483 = vpop.xlane.xlu0 %1482
      %vm1484 = vcmp.ge.f32.partialorder %v1468, %v1474
      %vm1485 = vcmp.ge.f32.partialorder %v1469, %v1477
      %vm1486 = vcmp.ge.f32.partialorder %v1470, %v1480
      %vm1487 = vcmp.ge.f32.partialorder %v1471, %v1483
      %v1488 = vsel %vm1484, %v953, 32
      %v1489 = vsel %vm1485, %v953, 32
      %v1490 = vsel %vm1486, %v953, 32
      %v1491 = vsel %vm1487, %v953, 32
      %v1492 = vsel %vm638, %v1488, 2147483647
      %v1493 = vand.u32 %v1492, 65535
      %v1494 = vshra.s32 %v1492, 16
      %v1495 = vcvt.s32.f32 %v1493
      %v1496 = vcvt.s32.f32 %v1494
      %1497 = vmin.xlane.f32.xlu0 %v1496
      %v1498 = vpop.xlane.xlu0 %1497
      %vm1499 = vcmp.eq.f32.partialorder %v1496, %v1498
      %v1500 = vsel %vm1499, %v1495, inf
      %1501 = vmin.xlane.f32.xlu0 %v1500
      %v1502 = vpop.xlane.xlu0 %1501
      %v1503 = vcvt.f32.s32 %v1502
      %v1504 = vcvt.f32.s32 %v1498
      %v1505 = vshll.u32 %v1504, 16
      %v1506 = vadd.s32 %v1505, %v1503
      %v1507 = vsel %vm638, %v1489, 2147483647
      %v1508 = vand.u32 %v1507, 65535
      %v1509 = vshra.s32 %v1507, 16
      %v1510 = vcvt.s32.f32 %v1508
      %v1511 = vcvt.s32.f32 %v1509
      %1512 = vmin.xlane.f32.xlu0 %v1511
      %v1513 = vpop.xlane.xlu0 %1512
      %vm1514 = vcmp.eq.f32.partialorder %v1511, %v1513
      %v1515 = vsel %vm1514, %v1510, inf
      %1516 = vmin.xlane.f32.xlu0 %v1515
      %v1517 = vpop.xlane.xlu0 %1516
      %v1518 = vcvt.f32.s32 %v1517
      %v1519 = vcvt.f32.s32 %v1513
      %v1520 = vshll.u32 %v1519, 16
      %v1521 = vadd.s32 %v1520, %v1518
      %v1522 = vsel %vm638, %v1490, 2147483647
      %v1523 = vand.u32 %v1522, 65535
      %v1524 = vshra.s32 %v1522, 16
      %v1525 = vcvt.s32.f32 %v1523
      %v1526 = vcvt.s32.f32 %v1524
      %1527 = vmin.xlane.f32.xlu0 %v1526
      %v1528 = vpop.xlane.xlu0 %1527
      %vm1529 = vcmp.eq.f32.partialorder %v1526, %v1528
      %v1530 = vsel %vm1529, %v1525, inf
      %1531 = vmin.xlane.f32.xlu0 %v1530
      %v1532 = vpop.xlane.xlu0 %1531
      %v1533 = vcvt.f32.s32 %v1532
      %v1534 = vcvt.f32.s32 %v1528
      %v1535 = vshll.u32 %v1534, 16
      %v1536 = vadd.s32 %v1535, %v1533
      %v1537 = vsel %vm638, %v1491, 2147483647
      %v1538 = vand.u32 %v1537, 65535
      %v1539 = vshra.s32 %v1537, 16
      %v1540 = vcvt.s32.f32 %v1538
      %v1541 = vcvt.s32.f32 %v1539
      %1542 = vmin.xlane.f32.xlu0 %v1541
      %v1543 = vpop.xlane.xlu0 %1542
      %vm1544 = vcmp.eq.f32.partialorder %v1541, %v1543
      %v1545 = vsel %vm1544, %v1540, inf
      %1546 = vmin.xlane.f32.xlu0 %v1545
      %v1547 = vpop.xlane.xlu0 %1546
      %v1548 = vcvt.f32.s32 %v1547
      %v1549 = vcvt.f32.s32 %v1543
      %v1550 = vshll.u32 %v1549, 16
      %v1551 = vadd.s32 %v1550, %v1548
      %vm1552 = vcmp.eq.s32.totalorder %v953, %v1506
      %vm1553 = vcmp.eq.s32.totalorder %v953, %v1521
      %vm1554 = vcmp.eq.s32.totalorder %v953, %v1536
      %vm1555 = vcmp.eq.s32.totalorder %v953, %v1551
      %v1556 = vsel %vm1552, 1, 0
      %v1557 = vsel %vm1553, 1, 0
      %v1558 = vsel %vm1554, 1, 0
      %v1559 = vsel %vm1555, 1, 0
      %v1560 = vcvt.s32.f32 %v1556
      %v1561 = vcvt.s32.f32 %v1557
      %v1562 = vcvt.s32.f32 %v1558
      %v1563 = vcvt.s32.f32 %v1559
      %v1564 = vpack.c.bf16 %v1561, %v1560
      %v1565 = vpack.c.bf16 %v1563, %v1562
      %v1566 = vsel %vm1552, -inf, %v1468
      %v1567 = vsel %vm1553, -inf, %v1469
      %v1568 = vsel %vm1554, -inf, %v1470
      %v1569 = vsel %vm1555, -inf, %v1471
      %v1570 = vsel %vm638, %v1566, -inf
      %1571 = vmax.xlane.f32.xlu0 %v1570
      %v1572 = vpop.xlane.xlu0 %1571
      %v1573 = vsel %vm638, %v1567, -inf
      %1574 = vmax.xlane.f32.xlu0 %v1573
      %v1575 = vpop.xlane.xlu0 %1574
      %v1576 = vsel %vm638, %v1568, -inf
      %1577 = vmax.xlane.f32.xlu0 %v1576
      %v1578 = vpop.xlane.xlu0 %1577
      %v1579 = vsel %vm638, %v1569, -inf
      %1580 = vmax.xlane.f32.xlu0 %v1579
      %v1581 = vpop.xlane.xlu0 %1580
      %vm1582 = vcmp.ge.f32.partialorder %v1566, %v1572
      %vm1583 = vcmp.ge.f32.partialorder %v1567, %v1575
      %vm1584 = vcmp.ge.f32.partialorder %v1568, %v1578
      %vm1585 = vcmp.ge.f32.partialorder %v1569, %v1581
      %v1586 = vsel %vm1582, %v953, 32
      %v1587 = vsel %vm1583, %v953, 32
      %v1588 = vsel %vm1584, %v953, 32
      %v1589 = vsel %vm1585, %v953, 32
      %v1590 = vsel %vm638, %v1586, 2147483647
      %v1591 = vand.u32 %v1590, 65535
      %v1592 = vshra.s32 %v1590, 16
      %v1593 = vcvt.s32.f32 %v1591
      %v1594 = vcvt.s32.f32 %v1592
      %1595 = vmin.xlane.f32.xlu0 %v1594
      %v1596 = vpop.xlane.xlu0 %1595
      %vm1597 = vcmp.eq.f32.partialorder %v1594, %v1596
      %v1598 = vsel %vm1597, %v1593, inf
      %1599 = vmin.xlane.f32.xlu0 %v1598
      %v1600 = vpop.xlane.xlu0 %1599
      %v1601 = vcvt.f32.s32 %v1600
      %v1602 = vcvt.f32.s32 %v1596
      %v1603 = vshll.u32 %v1602, 16
      %v1604 = vadd.s32 %v1603, %v1601
      %v1605 = vsel %vm638, %v1587, 2147483647
      %v1606 = vand.u32 %v1605, 65535
      %v1607 = vshra.s32 %v1605, 16
      %v1608 = vcvt.s32.f32 %v1606
      %v1609 = vcvt.s32.f32 %v1607
      %1610 = vmin.xlane.f32.xlu0 %v1609
      %v1611 = vpop.xlane.xlu0 %1610
      %vm1612 = vcmp.eq.f32.partialorder %v1609, %v1611
      %v1613 = vsel %vm1612, %v1608, inf
      %1614 = vmin.xlane.f32.xlu0 %v1613
      %v1615 = vpop.xlane.xlu0 %1614
      %v1616 = vcvt.f32.s32 %v1615
      %v1617 = vcvt.f32.s32 %v1611
      %v1618 = vshll.u32 %v1617, 16
      %v1619 = vadd.s32 %v1618, %v1616
      %v1620 = vsel %vm638, %v1588, 2147483647
      %v1621 = vand.u32 %v1620, 65535
      %v1622 = vshra.s32 %v1620, 16
      %v1623 = vcvt.s32.f32 %v1621
      %v1624 = vcvt.s32.f32 %v1622
      %1625 = vmin.xlane.f32.xlu0 %v1624
      %v1626 = vpop.xlane.xlu0 %1625
      %vm1627 = vcmp.eq.f32.partialorder %v1624, %v1626
      %v1628 = vsel %vm1627, %v1623, inf
      %1629 = vmin.xlane.f32.xlu0 %v1628
      %v1630 = vpop.xlane.xlu0 %1629
      %v1631 = vcvt.f32.s32 %v1630
      %v1632 = vcvt.f32.s32 %v1626
      %v1633 = vshll.u32 %v1632, 16
      %v1634 = vadd.s32 %v1633, %v1631
      %v1635 = vsel %vm638, %v1589, 2147483647
      %v1636 = vand.u32 %v1635, 65535
      %v1637 = vshra.s32 %v1635, 16
      %v1638 = vcvt.s32.f32 %v1636
      %v1639 = vcvt.s32.f32 %v1637
      %1640 = vmin.xlane.f32.xlu0 %v1639
      %v1641 = vpop.xlane.xlu0 %1640
      %vm1642 = vcmp.eq.f32.partialorder %v1639, %v1641
      %v1643 = vsel %vm1642, %v1638, inf
      %1644 = vmin.xlane.f32.xlu0 %v1643
      %v1645 = vpop.xlane.xlu0 %1644
      %v1646 = vcvt.f32.s32 %v1645
      %v1647 = vcvt.f32.s32 %v1641
      %v1648 = vshll.u32 %v1647, 16
      %v1649 = vadd.s32 %v1648, %v1646
      %vm1650 = vcmp.eq.s32.totalorder %v953, %v1604
      %vm1651 = vcmp.eq.s32.totalorder %v953, %v1619
      %vm1652 = vcmp.eq.s32.totalorder %v953, %v1634
      %vm1653 = vcmp.eq.s32.totalorder %v953, %v1649
      %v1654 = vsel %vm1650, 1, 0
      %v1655 = vsel %vm1651, 1, 0
      %v1656 = vsel %vm1652, 1, 0
      %v1657 = vsel %vm1653, 1, 0
      %v1658 = vcvt.s32.f32 %v1654
      %v1659 = vcvt.s32.f32 %v1655
      %v1660 = vcvt.s32.f32 %v1656
      %v1661 = vcvt.s32.f32 %v1657
      %v1662 = vpack.c.bf16 %v1659, %v1658
      %v1663 = vpack.c.bf16 %v1661, %v1660
      %v1664 = vsel %vm1650, -inf, %v1566
      %v1665 = vsel %vm1651, -inf, %v1567
      %v1666 = vsel %vm1652, -inf, %v1568
      %v1667 = vsel %vm1653, -inf, %v1569
      %v1668 = vsel %vm638, %v1664, -inf
      %1669 = vmax.xlane.f32.xlu0 %v1668
      %v1670 = vpop.xlane.xlu0 %1669
      %v1671 = vsel %vm638, %v1665, -inf
      %1672 = vmax.xlane.f32.xlu0 %v1671
      %v1673 = vpop.xlane.xlu0 %1672
      %v1674 = vsel %vm638, %v1666, -inf
      %1675 = vmax.xlane.f32.xlu0 %v1674
      %v1676 = vpop.xlane.xlu0 %1675
      %v1677 = vsel %vm638, %v1667, -inf
      %1678 = vmax.xlane.f32.xlu0 %v1677
      %v1679 = vpop.xlane.xlu0 %1678
      %vm1680 = vcmp.ge.f32.partialorder %v1664, %v1670
      %vm1681 = vcmp.ge.f32.partialorder %v1665, %v1673
      %vm1682 = vcmp.ge.f32.partialorder %v1666, %v1676
      %vm1683 = vcmp.ge.f32.partialorder %v1667, %v1679
      %v1684 = vsel %vm1680, %v953, 32
      %v1685 = vsel %vm1681, %v953, 32
      %v1686 = vsel %vm1682, %v953, 32
      %v1687 = vsel %vm1683, %v953, 32
      %v1688 = vsel %vm638, %v1684, 2147483647
      %v1689 = vand.u32 %v1688, 65535
      %v1690 = vshra.s32 %v1688, 16
      %v1691 = vcvt.s32.f32 %v1689
      %v1692 = vcvt.s32.f32 %v1690
      %1693 = vmin.xlane.f32.xlu0 %v1692
      %v1694 = vpop.xlane.xlu0 %1693
      %vm1695 = vcmp.eq.f32.partialorder %v1692, %v1694
      %v1696 = vsel %vm1695, %v1691, inf
      %1697 = vmin.xlane.f32.xlu0 %v1696
      %v1698 = vpop.xlane.xlu0 %1697
      %v1699 = vcvt.f32.s32 %v1698
      %v1700 = vcvt.f32.s32 %v1694
      %v1701 = vshll.u32 %v1700, 16
      %v1702 = vadd.s32 %v1701, %v1699
      %v1703 = vsel %vm638, %v1685, 2147483647
      %v1704 = vand.u32 %v1703, 65535
      %v1705 = vshra.s32 %v1703, 16
      %v1706 = vcvt.s32.f32 %v1704
      %v1707 = vcvt.s32.f32 %v1705
      %1708 = vmin.xlane.f32.xlu0 %v1707
      %v1709 = vpop.xlane.xlu0 %1708
      %vm1710 = vcmp.eq.f32.partialorder %v1707, %v1709
      %v1711 = vsel %vm1710, %v1706, inf
      %1712 = vmin.xlane.f32.xlu0 %v1711
      %v1713 = vpop.xlane.xlu0 %1712
      %v1714 = vcvt.f32.s32 %v1713
      %v1715 = vcvt.f32.s32 %v1709
      %v1716 = vshll.u32 %v1715, 16
      %v1717 = vadd.s32 %v1716, %v1714
      %v1718 = vsel %vm638, %v1686, 2147483647
      %v1719 = vand.u32 %v1718, 65535
      %v1720 = vshra.s32 %v1718, 16
      %v1721 = vcvt.s32.f32 %v1719
      %v1722 = vcvt.s32.f32 %v1720
      %1723 = vmin.xlane.f32.xlu0 %v1722
      %v1724 = vpop.xlane.xlu0 %1723
      %vm1725 = vcmp.eq.f32.partialorder %v1722, %v1724
      %v1726 = vsel %vm1725, %v1721, inf
      %1727 = vmin.xlane.f32.xlu0 %v1726
      %v1728 = vpop.xlane.xlu0 %1727
      %v1729 = vcvt.f32.s32 %v1728
      %v1730 = vcvt.f32.s32 %v1724
      %v1731 = vshll.u32 %v1730, 16
      %v1732 = vadd.s32 %v1731, %v1729
      %v1733 = vsel %vm638, %v1687, 2147483647
      %v1734 = vand.u32 %v1733, 65535
      %v1735 = vshra.s32 %v1733, 16
      %v1736 = vcvt.s32.f32 %v1734
      %v1737 = vcvt.s32.f32 %v1735
      %1738 = vmin.xlane.f32.xlu0 %v1737
      %v1739 = vpop.xlane.xlu0 %1738
      %vm1740 = vcmp.eq.f32.partialorder %v1737, %v1739
      %v1741 = vsel %vm1740, %v1736, inf
      %1742 = vmin.xlane.f32.xlu0 %v1741
      %v1743 = vpop.xlane.xlu0 %1742
      %v1744 = vcvt.f32.s32 %v1743
      %v1745 = vcvt.f32.s32 %v1739
      %v1746 = vshll.u32 %v1745, 16
      %v1747 = vadd.s32 %v1746, %v1744
      %vm1748 = vcmp.eq.s32.totalorder %v953, %v1702
      %vm1749 = vcmp.eq.s32.totalorder %v953, %v1717
      %vm1750 = vcmp.eq.s32.totalorder %v953, %v1732
      %vm1751 = vcmp.eq.s32.totalorder %v953, %v1747
      %v1752 = vsel %vm1748, 1, 0
      %v1753 = vsel %vm1749, 1, 0
      %v1754 = vsel %vm1750, 1, 0
      %v1755 = vsel %vm1751, 1, 0
      %v1756 = vcvt.s32.f32 %v1752
      %v1757 = vcvt.s32.f32 %v1753
      %v1758 = vcvt.s32.f32 %v1754
      %v1759 = vcvt.s32.f32 %v1755
      %v1760 = vpack.c.bf16 %v1757, %v1756
      %v1761 = vpack.c.bf16 %v1759, %v1758
      %v1762 = vsel %vm1748, -inf, %v1664
      %v1763 = vsel %vm1749, -inf, %v1665
      %v1764 = vsel %vm1750, -inf, %v1666
      %v1765 = vsel %vm1751, -inf, %v1667
      %v1766 = vsel %vm638, %v1762, -inf
      %1767 = vmax.xlane.f32.xlu0 %v1766
      %v1768 = vpop.xlane.xlu0 %1767
      %v1769 = vsel %vm638, %v1763, -inf
      %1770 = vmax.xlane.f32.xlu0 %v1769
      %v1771 = vpop.xlane.xlu0 %1770
      %v1772 = vsel %vm638, %v1764, -inf
      %1773 = vmax.xlane.f32.xlu0 %v1772
      %v1774 = vpop.xlane.xlu0 %1773
      %v1775 = vsel %vm638, %v1765, -inf
      %1776 = vmax.xlane.f32.xlu0 %v1775
      %v1777 = vpop.xlane.xlu0 %1776
      %vm1778 = vcmp.ge.f32.partialorder %v1762, %v1768
      %vm1779 = vcmp.ge.f32.partialorder %v1763, %v1771
      %vm1780 = vcmp.ge.f32.partialorder %v1764, %v1774
      %vm1781 = vcmp.ge.f32.partialorder %v1765, %v1777
      %v1782 = vsel %vm1778, %v953, 32
      %v1783 = vsel %vm1779, %v953, 32
      %v1784 = vsel %vm1780, %v953, 32
      %v1785 = vsel %vm1781, %v953, 32
      %v1786 = vsel %vm638, %v1782, 2147483647
      %v1787 = vand.u32 %v1786, 65535
      %v1788 = vshra.s32 %v1786, 16
      %v1789 = vcvt.s32.f32 %v1787
      %v1790 = vcvt.s32.f32 %v1788
      %1791 = vmin.xlane.f32.xlu0 %v1790
      %v1792 = vpop.xlane.xlu0 %1791
      %vm1793 = vcmp.eq.f32.partialorder %v1790, %v1792
      %v1794 = vsel %vm1793, %v1789, inf
      %1795 = vmin.xlane.f32.xlu0 %v1794
      %v1796 = vpop.xlane.xlu0 %1795
      %v1797 = vcvt.f32.s32 %v1796
      %v1798 = vcvt.f32.s32 %v1792
      %v1799 = vshll.u32 %v1798, 16
      %v1800 = vadd.s32 %v1799, %v1797
      %v1801 = vsel %vm638, %v1783, 2147483647
      %v1802 = vand.u32 %v1801, 65535
      %v1803 = vshra.s32 %v1801, 16
      %v1804 = vcvt.s32.f32 %v1802
      %v1805 = vcvt.s32.f32 %v1803
      %1806 = vmin.xlane.f32.xlu0 %v1805
      %v1807 = vpop.xlane.xlu0 %1806
      %vm1808 = vcmp.eq.f32.partialorder %v1805, %v1807
      %v1809 = vsel %vm1808, %v1804, inf
      %1810 = vmin.xlane.f32.xlu0 %v1809
      %v1811 = vpop.xlane.xlu0 %1810
      %v1812 = vcvt.f32.s32 %v1811
      %v1813 = vcvt.f32.s32 %v1807
      %v1814 = vshll.u32 %v1813, 16
      %v1815 = vadd.s32 %v1814, %v1812
      %v1816 = vsel %vm638, %v1784, 2147483647
      %v1817 = vand.u32 %v1816, 65535
      %v1818 = vshra.s32 %v1816, 16
      %v1819 = vcvt.s32.f32 %v1817
      %v1820 = vcvt.s32.f32 %v1818
      %1821 = vmin.xlane.f32.xlu0 %v1820
      %v1822 = vpop.xlane.xlu0 %1821
      %vm1823 = vcmp.eq.f32.partialorder %v1820, %v1822
      %v1824 = vsel %vm1823, %v1819, inf
      %1825 = vmin.xlane.f32.xlu0 %v1824
      %v1826 = vpop.xlane.xlu0 %1825
      %v1827 = vcvt.f32.s32 %v1826
      %v1828 = vcvt.f32.s32 %v1822
      %v1829 = vshll.u32 %v1828, 16
      %v1830 = vadd.s32 %v1829, %v1827
      %v1831 = vsel %vm638, %v1785, 2147483647
      %v1832 = vand.u32 %v1831, 65535
      %v1833 = vshra.s32 %v1831, 16
      %v1834 = vcvt.s32.f32 %v1832
      %v1835 = vcvt.s32.f32 %v1833
      %1836 = vmin.xlane.f32.xlu0 %v1835
      %v1837 = vpop.xlane.xlu0 %1836
      %vm1838 = vcmp.eq.f32.partialorder %v1835, %v1837
      %v1839 = vsel %vm1838, %v1834, inf
      %1840 = vmin.xlane.f32.xlu0 %v1839
      %v1841 = vpop.xlane.xlu0 %1840
      %v1842 = vcvt.f32.s32 %v1841
      %v1843 = vcvt.f32.s32 %v1837
      %v1844 = vshll.u32 %v1843, 16
      %v1845 = vadd.s32 %v1844, %v1842
      %vm1846 = vcmp.eq.s32.totalorder %v953, %v1800
      %vm1847 = vcmp.eq.s32.totalorder %v953, %v1815
      %vm1848 = vcmp.eq.s32.totalorder %v953, %v1830
      %vm1849 = vcmp.eq.s32.totalorder %v953, %v1845
      %v1850 = vsel %vm1846, 1, 0
      %v1851 = vsel %vm1847, 1, 0
      %v1852 = vsel %vm1848, 1, 0
      %v1853 = vsel %vm1849, 1, 0
      %v1854 = vcvt.s32.f32 %v1850
      %v1855 = vcvt.s32.f32 %v1851
      %v1856 = vcvt.s32.f32 %v1852
      %v1857 = vcvt.s32.f32 %v1853
      %v1858 = vpack.c.bf16 %v1855, %v1854
      %v1859 = vpack.c.bf16 %v1857, %v1856
      %v1860 = vsel %vm1846, -inf, %v1762
      %v1861 = vsel %vm1847, -inf, %v1763
      %v1862 = vsel %vm1848, -inf, %v1764
      %v1863 = vsel %vm1849, -inf, %v1765
      %v1864 = vsel %vm638, %v1860, -inf
      %1865 = vmax.xlane.f32.xlu0 %v1864
      %v1866 = vpop.xlane.xlu0 %1865
      %v1867 = vsel %vm638, %v1861, -inf
      %1868 = vmax.xlane.f32.xlu0 %v1867
      %v1869 = vpop.xlane.xlu0 %1868
      %v1870 = vsel %vm638, %v1862, -inf
      %1871 = vmax.xlane.f32.xlu0 %v1870
      %v1872 = vpop.xlane.xlu0 %1871
      %v1873 = vsel %vm638, %v1863, -inf
      %1874 = vmax.xlane.f32.xlu0 %v1873
      %v1875 = vpop.xlane.xlu0 %1874
      %vm1876 = vcmp.ge.f32.partialorder %v1860, %v1866
      %vm1877 = vcmp.ge.f32.partialorder %v1861, %v1869
      %vm1878 = vcmp.ge.f32.partialorder %v1862, %v1872
      %vm1879 = vcmp.ge.f32.partialorder %v1863, %v1875
      %v1880 = vsel %vm1876, %v953, 32
      %v1881 = vsel %vm1877, %v953, 32
      %v1882 = vsel %vm1878, %v953, 32
      %v1883 = vsel %vm1879, %v953, 32
      %v1884 = vsel %vm638, %v1880, 2147483647
      %v1885 = vand.u32 %v1884, 65535
      %v1886 = vshra.s32 %v1884, 16
      %v1887 = vcvt.s32.f32 %v1885
      %v1888 = vcvt.s32.f32 %v1886
      %1889 = vmin.xlane.f32.xlu0 %v1888
      %v1890 = vpop.xlane.xlu0 %1889
      %vm1891 = vcmp.eq.f32.partialorder %v1888, %v1890
      %v1892 = vsel %vm1891, %v1887, inf
      %1893 = vmin.xlane.f32.xlu0 %v1892
      %v1894 = vpop.xlane.xlu0 %1893
      %v1895 = vcvt.f32.s32 %v1894
      %v1896 = vcvt.f32.s32 %v1890
      %v1897 = vshll.u32 %v1896, 16
      %v1898 = vadd.s32 %v1897, %v1895
      %v1899 = vsel %vm638, %v1881, 2147483647
      %v1900 = vand.u32 %v1899, 65535
      %v1901 = vshra.s32 %v1899, 16
      %v1902 = vcvt.s32.f32 %v1900
      %v1903 = vcvt.s32.f32 %v1901
      %1904 = vmin.xlane.f32.xlu0 %v1903
      %v1905 = vpop.xlane.xlu0 %1904
      %vm1906 = vcmp.eq.f32.partialorder %v1903, %v1905
      %v1907 = vsel %vm1906, %v1902, inf
      %1908 = vmin.xlane.f32.xlu0 %v1907
      %v1909 = vpop.xlane.xlu0 %1908
      %v1910 = vcvt.f32.s32 %v1909
      %v1911 = vcvt.f32.s32 %v1905
      %v1912 = vshll.u32 %v1911, 16
      %v1913 = vadd.s32 %v1912, %v1910
      %v1914 = vsel %vm638, %v1882, 2147483647
      %v1915 = vand.u32 %v1914, 65535
      %v1916 = vshra.s32 %v1914, 16
      %v1917 = vcvt.s32.f32 %v1915
      %v1918 = vcvt.s32.f32 %v1916
      %1919 = vmin.xlane.f32.xlu0 %v1918
      %v1920 = vpop.xlane.xlu0 %1919
      %vm1921 = vcmp.eq.f32.partialorder %v1918, %v1920
      %v1922 = vsel %vm1921, %v1917, inf
      %1923 = vmin.xlane.f32.xlu0 %v1922
      %v1924 = vpop.xlane.xlu0 %1923
      %v1925 = vcvt.f32.s32 %v1924
      %v1926 = vcvt.f32.s32 %v1920
      %v1927 = vshll.u32 %v1926, 16
      %v1928 = vadd.s32 %v1927, %v1925
      %v1929 = vsel %vm638, %v1883, 2147483647
      %v1930 = vand.u32 %v1929, 65535
      %v1931 = vshra.s32 %v1929, 16
      %v1932 = vcvt.s32.f32 %v1930
      %v1933 = vcvt.s32.f32 %v1931
      %1934 = vmin.xlane.f32.xlu0 %v1933
      %v1935 = vpop.xlane.xlu0 %1934
      %vm1936 = vcmp.eq.f32.partialorder %v1933, %v1935
      %v1937 = vsel %vm1936, %v1932, inf
      %1938 = vmin.xlane.f32.xlu0 %v1937
      %v1939 = vpop.xlane.xlu0 %1938
      %v1940 = vcvt.f32.s32 %v1939
      %v1941 = vcvt.f32.s32 %v1935
      %v1942 = vshll.u32 %v1941, 16
      %v1943 = vadd.s32 %v1942, %v1940
      %vm1944 = vcmp.eq.s32.totalorder %v953, %v1898
      %vm1945 = vcmp.eq.s32.totalorder %v953, %v1913
      %vm1946 = vcmp.eq.s32.totalorder %v953, %v1928
      %vm1947 = vcmp.eq.s32.totalorder %v953, %v1943
      %v1948 = vsel %vm1944, 1, 0
      %v1949 = vsel %vm1945, 1, 0
      %v1950 = vsel %vm1946, 1, 0
      %v1951 = vsel %vm1947, 1, 0
      %v1952 = vcvt.s32.f32 %v1948
      %v1953 = vcvt.s32.f32 %v1949
      %v1954 = vcvt.s32.f32 %v1950
      %v1955 = vcvt.s32.f32 %v1951
      %v1956 = vpack.c.bf16 %v1953, %v1952
      %v1957 = vpack.c.bf16 %v1955, %v1954
      %v1958 = vsel %vm1944, -inf, %v1860
      %v1959 = vsel %vm1945, -inf, %v1861
      %v1960 = vsel %vm1946, -inf, %v1862
      %v1961 = vsel %vm1947, -inf, %v1863
      %v1962 = vsel %vm638, %v1958, -inf
      %1963 = vmax.xlane.f32.xlu0 %v1962
      %v1964 = vpop.xlane.xlu0 %1963
      %v1965 = vsel %vm638, %v1959, -inf
      %1966 = vmax.xlane.f32.xlu0 %v1965
      %v1967 = vpop.xlane.xlu0 %1966
      %v1968 = vsel %vm638, %v1960, -inf
      %1969 = vmax.xlane.f32.xlu0 %v1968
      %v1970 = vpop.xlane.xlu0 %1969
      %v1971 = vsel %vm638, %v1961, -inf
      %1972 = vmax.xlane.f32.xlu0 %v1971
      %v1973 = vpop.xlane.xlu0 %1972
      %vm1974 = vcmp.ge.f32.partialorder %v1958, %v1964
      %vm1975 = vcmp.ge.f32.partialorder %v1959, %v1967
      %vm1976 = vcmp.ge.f32.partialorder %v1960, %v1970
      %vm1977 = vcmp.ge.f32.partialorder %v1961, %v1973
      %v1978 = vsel %vm1974, %v953, 32
      %v1979 = vsel %vm1975, %v953, 32
      %v1980 = vsel %vm1976, %v953, 32
      %v1981 = vsel %vm1977, %v953, 32
      %v1982 = vsel %vm638, %v1978, 2147483647
      %v1983 = vand.u32 %v1982, 65535
      %v1984 = vshra.s32 %v1982, 16
      %v1985 = vcvt.s32.f32 %v1983
      %v1986 = vcvt.s32.f32 %v1984
      %1987 = vmin.xlane.f32.xlu0 %v1986
      %v1988 = vpop.xlane.xlu0 %1987
      %vm1989 = vcmp.eq.f32.partialorder %v1986, %v1988
      %v1990 = vsel %vm1989, %v1985, inf
      %1991 = vmin.xlane.f32.xlu0 %v1990
      %v1992 = vpop.xlane.xlu0 %1991
      %v1993 = vcvt.f32.s32 %v1992
      %v1994 = vcvt.f32.s32 %v1988
      %v1995 = vshll.u32 %v1994, 16
      %v1996 = vadd.s32 %v1995, %v1993
      %v1997 = vsel %vm638, %v1979, 2147483647
      %v1998 = vand.u32 %v1997, 65535
      %v1999 = vshra.s32 %v1997, 16
      %v2000 = vcvt.s32.f32 %v1998
      %v2001 = vcvt.s32.f32 %v1999
      %2002 = vmin.xlane.f32.xlu0 %v2001
      %v2003 = vpop.xlane.xlu0 %2002
      %vm2004 = vcmp.eq.f32.partialorder %v2001, %v2003
      %v2005 = vsel %vm2004, %v2000, inf
      %2006 = vmin.xlane.f32.xlu0 %v2005
      %v2007 = vpop.xlane.xlu0 %2006
      %v2008 = vcvt.f32.s32 %v2007
      %v2009 = vcvt.f32.s32 %v2003
      %v2010 = vshll.u32 %v2009, 16
      %v2011 = vadd.s32 %v2010, %v2008
      %v2012 = vsel %vm638, %v1980, 2147483647
      %v2013 = vand.u32 %v2012, 65535
      %v2014 = vshra.s32 %v2012, 16
      %v2015 = vcvt.s32.f32 %v2013
      %v2016 = vcvt.s32.f32 %v2014
      %2017 = vmin.xlane.f32.xlu0 %v2016
      %v2018 = vpop.xlane.xlu0 %2017
      %vm2019 = vcmp.eq.f32.partialorder %v2016, %v2018
      %v2020 = vsel %vm2019, %v2015, inf
      %2021 = vmin.xlane.f32.xlu0 %v2020
      %v2022 = vpop.xlane.xlu0 %2021
      %v2023 = vcvt.f32.s32 %v2022
      %v2024 = vcvt.f32.s32 %v2018
      %v2025 = vshll.u32 %v2024, 16
      %v2026 = vadd.s32 %v2025, %v2023
      %v2027 = vsel %vm638, %v1981, 2147483647
      %v2028 = vand.u32 %v2027, 65535
      %v2029 = vshra.s32 %v2027, 16
      %v2030 = vcvt.s32.f32 %v2028
      %v2031 = vcvt.s32.f32 %v2029
      %2032 = vmin.xlane.f32.xlu0 %v2031
      %v2033 = vpop.xlane.xlu0 %2032
      %vm2034 = vcmp.eq.f32.partialorder %v2031, %v2033
      %v2035 = vsel %vm2034, %v2030, inf
      %2036 = vmin.xlane.f32.xlu0 %v2035
      %v2037 = vpop.xlane.xlu0 %2036
      %v2038 = vcvt.f32.s32 %v2037
      %v2039 = vcvt.f32.s32 %v2033
      %v2040 = vshll.u32 %v2039, 16
      %v2041 = vadd.s32 %v2040, %v2038
      %vm2042 = vcmp.eq.s32.totalorder %v953, %v1996
      %vm2043 = vcmp.eq.s32.totalorder %v953, %v2011
      %vm2044 = vcmp.eq.s32.totalorder %v953, %v2026
      %vm2045 = vcmp.eq.s32.totalorder %v953, %v2041
      %v2046 = vsel %vm2042, 1, 0
      %v2047 = vsel %vm2043, 1, 0
      %v2048 = vsel %vm2044, 1, 0
      %v2049 = vsel %vm2045, 1, 0
      %v2050 = vcvt.s32.f32 %v2046
      %v2051 = vcvt.s32.f32 %v2047
      %v2052 = vcvt.s32.f32 %v2048
      %v2053 = vcvt.s32.f32 %v2049
      %v2054 = vpack.c.bf16 %v2051, %v2050
      %v2055 = vpack.c.bf16 %v2053, %v2052
      %v2056 = vpack.c.bf16 %v944, %v943
      %v2057 = vpack.c.bf16 %v946, %v945
      %v2058 = vld [vmem:[%s8] sm:$0xf]
      %v2059 = vld [vmem:[%s8 + $0x4] sm:$0xf]
      %v2060 = vld [vmem:[%s8 + $0x8] sm:$0xf]
      %v2061 = vld [vmem:[%s8 + $0xc] sm:$0xf]
      %v2066 = vunpack.c.l.b16 %v2058
      %v2067 = vunpack.c.l.b16 %v2059
      %v2068 = vunpack.c.l.b16 %v2060
      %v2069 = vunpack.c.l.b16 %v2061
      %v2070 = vpack.c.b16 %v2067, %v2066
      %v2071 = vpack.c.b16 %v2069, %v2068
      %v2075 = vsel %vm638, %v2056, 0
      %v2078 = vsel %vm638, %v2057, 0
      %2080 = vmatprep.subr.bf16.mxu0 0
      %2081 = vmatpush1.bf16.msra.mxu0 %v2070
      %2082 = vmatprep.subr.bf16.mxu0 0
      %2083 = vmatpush1.bf16.msra.mxu0 %v2071
      %2084 = vmatprep.subr.bf16.mxu0 0
      %2085 = vmatpush1.bf16.msra.mxu0 0
      %2086 = vmatprep.subr.bf16.mxu0 0
      %2087 = vmatpush1.bf16.msra.mxu0 0
      %2088 = vmatprep.subr.bf16.mxu0 0
      %2089 = vmatpush1.bf16.msra.mxu0 0
      %2090 = vmatprep.subr.bf16.mxu0 0
      %2091 = vmatpush1.bf16.msra.mxu0 0
      %2092 = vmatprep.subr.bf16.mxu0 0
      %2093 = vmatpush1.bf16.msra.mxu0 0
      %2094 = vmatprep.subr.bf16.mxu0 0
      %2095 = vmatpush1.bf16.msra.mxu0 0
      %2096 = vmatprep.subr.bf16.mxu0 0
      %2097 = vmatpush1.bf16.msra.mxu0 0
      %2098 = vmatprep.subr.bf16.mxu0 0
      %2099 = vmatpush1.bf16.msra.mxu0 0
      %2100 = vmatprep.subr.bf16.mxu0 0
      %2101 = vmatpush1.bf16.msra.mxu0 0
      %2102 = vmatprep.subr.bf16.mxu0 0
      %2103 = vmatpush1.bf16.msra.mxu0 0
      %2104 = vmatprep.subr.bf16.mxu0 0
      %2105 = vmatpush1.bf16.msra.mxu0 0
      %2106 = vmatprep.subr.bf16.mxu0 0
      %2107 = vmatpush1.bf16.msra.mxu0 0
      %2108 = vmatprep.subr.bf16.mxu0 0
      %2109 = vmatpush1.bf16.msra.mxu0 0
      %2110 = vmatprep.subr.bf16.mxu0 0
      %2111 = vmatpush1.bf16.msra.mxu0 0
      %2112 = vmatprep.mubr.bf16.mxu0 0
      %2113 = vmatmul.mubr.bf16.gmra.mrb[0].mxu0 %v2075
      %v2114 = vpop.f32.mrb[0].mxu0
      %v2115 = vadd.f32 0.0, %v2114
      %v2116 = vpop.f32.mrb[0].mxu0
      %v2117 = vpop.f32.mrb[0].mxu0
      %v2118 = vadd.f32 0.0, %v2117
      %v2119 = vpop.f32.mrb[0].mxu0
      %2120 = vmatprep.mubr.bf16.mxu0 0
      %2121 = vmatmul.mubr.bf16.gmra.mrb[0].mxu0 %v2078
      %v2122 = vpop.f32.mrb[0].mxu0
      %v2123 = vadd.f32 0.0, %v2122
      %v2124 = vpop.f32.mrb[0].mxu0
      %v2125 = vpop.f32.mrb[0].mxu0
      %v2126 = vadd.f32 0.0, %v2125
      %v2127 = vpop.f32.mrb[0].mxu0
      %2128 = vdwg.mxu0
      %v2129 = vpack.c.bf16 %v2118, %v2115
      %v2130 = vpack.c.bf16 %v2126, %v2123
      %v2131 = vld [vmem:[%s9] sm:$0x1]
      %v2133 = vlaneseq
      %v2134 = vshrl.u32 %v2133, 7
      %v2135 = vsub.s32 0, %v2134
      %v2136 = vrot.slane %v2131, %v2135
      %2137 = vrot.lane.b32.xlu0 %v2136, 32
      %v2138 = vpop.permute.xlu0 %2137
      %v2140 = vadd.f32 %v2115, %v2138
      %v2141 = vadd.f32 %v2118, %v2138
      %v2142 = vadd.f32 %v2123, %v2138
      %v2143 = vadd.f32 %v2126, %v2138
      %v2145 = vsel %vm638, %v1172, 0
      %v2148 = vsel %vm638, %v1173, 0
      %v2151 = vsel %vm638, %v1270, 0
      %v2154 = vsel %vm638, %v1271, 0
      %v2157 = vsel %vm638, %v1368, 0
      %v2160 = vsel %vm638, %v1369, 0
      %v2163 = vsel %vm638, %v1466, 0
      %v2166 = vsel %vm638, %v1467, 0
      %v2169 = vsel %vm638, %v1564, 0
      %v2172 = vsel %vm638, %v1565, 0
      %v2175 = vsel %vm638, %v1662, 0
      %v2178 = vsel %vm638, %v1663, 0
      %v2181 = vsel %vm638, %v1760, 0
      %v2184 = vsel %vm638, %v1761, 0
      %v2187 = vsel %vm638, %v1858, 0
      %v2190 = vsel %vm638, %v1859, 0
      %v2193 = vsel %vm638, %v1956, 0
      %v2196 = vsel %vm638, %v1957, 0
      %v2199 = vsel %vm638, %v2054, 0
      %v2202 = vsel %vm638, %v2055, 0
      %2204 = vmatprep.subr.bf16.mxu0 0
      %2205 = vmatpush1.bf16.msra.mxu0 %v2129
      %2206 = vmatprep.subr.bf16.mxu0 0
      %2207 = vmatpush1.bf16.msra.mxu0 %v2130
      %2208 = vmatprep.subr.bf16.mxu0 0
      %2209 = vmatpush1.bf16.msra.mxu0 0
      %2210 = vmatprep.subr.bf16.mxu0 0
      %2211 = vmatpush1.bf16.msra.mxu0 0
      %2212 = vmatprep.subr.bf16.mxu0 0
      %2213 = vmatpush1.bf16.msra.mxu0 0
      %2214 = vmatprep.subr.bf16.mxu0 0
      %2215 = vmatpush1.bf16.msra.mxu0 0
      %2216 = vmatprep.subr.bf16.mxu0 0
      %2217 = vmatpush1.bf16.msra.mxu0 0
      %2218 = vmatprep.subr.bf16.mxu0 0
      %2219 = vmatpush1.bf16.msra.mxu0 0
      %2220 = vmatprep.subr.bf16.mxu0 0
      %2221 = vmatpush1.bf16.msra.mxu0 0
      %2222 = vmatprep.subr.bf16.mxu0 0
      %2223 = vmatpush1.bf16.msra.mxu0 0
      %2224 = vmatprep.subr.bf16.mxu0 0
      %2225 = vmatpush1.bf16.msra.mxu0 0
      %2226 = vmatprep.subr.bf16.mxu0 0
      %2227 = vmatpush1.bf16.msra.mxu0 0
      %2228 = vmatprep.subr.bf16.mxu0 0
      %2229 = vmatpush1.bf16.msra.mxu0 0
      %2230 = vmatprep.subr.bf16.mxu0 0
      %2231 = vmatpush1.bf16.msra.mxu0 0
      %2232 = vmatprep.subr.bf16.mxu0 0
      %2233 = vmatpush1.bf16.msra.mxu0 0
      %2234 = vmatprep.subr.bf16.mxu0 0
      %2235 = vmatpush1.bf16.msra.mxu0 0
      %2236 = vmatprep.mubr.bf16.mxu0 0
      %2237 = vmatmul.mubr.bf16.gmra.mrb[0].mxu0 %v2145
      %v2238 = vpop.f32.mrb[0].mxu0
      %v2239 = vadd.f32 0.0, %v2238
      %v2240 = vpop.f32.mrb[0].mxu0
      %v2241 = vpop.f32.mrb[0].mxu0
      %v2242 = vadd.f32 0.0, %v2241
      %v2243 = vpop.f32.mrb[0].mxu0
      %2244 = vmatprep.mubr.bf16.mxu0 0
      %2245 = vmatmul.mubr.bf16.gmra.mrb[0].mxu0 %v2148
      %v2246 = vpop.f32.mrb[0].mxu0
      %v2247 = vadd.f32 0.0, %v2246
      %v2248 = vpop.f32.mrb[0].mxu0
      %v2249 = vpop.f32.mrb[0].mxu0
      %v2250 = vadd.f32 0.0, %v2249
      %v2251 = vpop.f32.mrb[0].mxu0
      %2252 = vmatprep.mubr.bf16.mxu0 0
      %2253 = vmatmul.mubr.bf16.gmra.mrb[0].mxu0 %v2151
      %v2254 = vpop.f32.mrb[0].mxu0
      %v2255 = vadd.f32 0.0, %v2254
      %v2256 = vpop.f32.mrb[0].mxu0
      %v2257 = vpop.f32.mrb[0].mxu0
      %v2258 = vadd.f32 0.0, %v2257
      %v2259 = vpop.f32.mrb[0].mxu0
      %2260 = vmatprep.mubr.bf16.mxu0 0
      %2261 = vmatmul.mubr.bf16.gmra.mrb[0].mxu0 %v2154
      %v2262 = vpop.f32.mrb[0].mxu0
      %v2263 = vadd.f32 0.0, %v2262
      %v2264 = vpop.f32.mrb[0].mxu0
      %v2265 = vpop.f32.mrb[0].mxu0
      %v2266 = vadd.f32 0.0, %v2265
      %v2267 = vpop.f32.mrb[0].mxu0
      %2268 = vmatprep.mubr.bf16.mxu0 0
      %2269 = vmatmul.mubr.bf16.gmra.mrb[0].mxu0 %v2157
      %v2270 = vpop.f32.mrb[0].mxu0
      %v2271 = vadd.f32 0.0, %v2270
      %v2272 = vpop.f32.mrb[0].mxu0
      %v2273 = vpop.f32.mrb[0].mxu0
      %v2274 = vadd.f32 0.0, %v2273
      %v2275 = vpop.f32.mrb[0].mxu0
      %2276 = vmatprep.mubr.bf16.mxu0 0
      %2277 = vmatmul.mubr.bf16.gmra.mrb[0].mxu0 %v2160
      %v2278 = vpop.f32.mrb[0].mxu0
      %v2279 = vadd.f32 0.0, %v2278
      %v2280 = vpop.f32.mrb[0].mxu0
      %v2281 = vpop.f32.mrb[0].mxu0
      %v2282 = vadd.f32 0.0, %v2281
      %v2283 = vpop.f32.mrb[0].mxu0
      %2284 = vmatprep.mubr.bf16.mxu0 0
      %2285 = vmatmul.mubr.bf16.gmra.mrb[0].mxu0 %v2163
      %v2286 = vpop.f32.mrb[0].mxu0
      %v2287 = vadd.f32 0.0, %v2286
      %v2288 = vpop.f32.mrb[0].mxu0
      %v2289 = vpop.f32.mrb[0].mxu0
      %v2290 = vadd.f32 0.0, %v2289
      %v2291 = vpop.f32.mrb[0].mxu0
      %2292 = vmatprep.mubr.bf16.mxu0 0
      %2293 = vmatmul.mubr.bf16.gmra.mrb[0].mxu0 %v2166
      %v2294 = vpop.f32.mrb[0].mxu0
      %v2295 = vadd.f32 0.0, %v2294
      %v2296 = vpop.f32.mrb[0].mxu0
      %v2297 = vpop.f32.mrb[0].mxu0
      %v2298 = vadd.f32 0.0, %v2297
      %v2299 = vpop.f32.mrb[0].mxu0
      %2300 = vmatprep.mubr.bf16.mxu0 0
      %2301 = vmatmul.mubr.bf16.gmra.mrb[0].mxu0 %v2169
      %v2302 = vpop.f32.mrb[0].mxu0
      %v2303 = vadd.f32 0.0, %v2302
      %v2304 = vpop.f32.mrb[0].mxu0
      %v2305 = vpop.f32.mrb[0].mxu0
      %v2306 = vadd.f32 0.0, %v2305
      %v2307 = vpop.f32.mrb[0].mxu0
      %2308 = vmatprep.mubr.bf16.mxu0 0
      %2309 = vmatmul.mubr.bf16.gmra.mrb[0].mxu0 %v2172
      %v2310 = vpop.f32.mrb[0].mxu0
      %v2311 = vadd.f32 0.0, %v2310
      %v2312 = vpop.f32.mrb[0].mxu0
      %v2313 = vpop.f32.mrb[0].mxu0
      %v2314 = vadd.f32 0.0, %v2313
      %v2315 = vpop.f32.mrb[0].mxu0
      %2316 = vmatprep.mubr.bf16.mxu0 0
      %2317 = vmatmul.mubr.bf16.gmra.mrb[0].mxu0 %v2175
      %v2318 = vpop.f32.mrb[0].mxu0
      %v2319 = vadd.f32 0.0, %v2318
      %v2320 = vpop.f32.mrb[0].mxu0
      %v2321 = vpop.f32.mrb[0].mxu0
      %v2322 = vadd.f32 0.0, %v2321
      %v2323 = vpop.f32.mrb[0].mxu0
      %2324 = vmatprep.mubr.bf16.mxu0 0
      %2325 = vmatmul.mubr.bf16.gmra.mrb[0].mxu0 %v2178
      %v2326 = vpop.f32.mrb[0].mxu0
      %v2327 = vadd.f32 0.0, %v2326
      %v2328 = vpop.f32.mrb[0].mxu0
      %v2329 = vpop.f32.mrb[0].mxu0
      %v2330 = vadd.f32 0.0, %v2329
      %v2331 = vpop.f32.mrb[0].mxu0
      %2332 = vmatprep.mubr.bf16.mxu0 0
      %2333 = vmatmul.mubr.bf16.gmra.mrb[0].mxu0 %v2181
      %v2334 = vpop.f32.mrb[0].mxu0
      %v2335 = vadd.f32 0.0, %v2334
      %v2336 = vpop.f32.mrb[0].mxu0
      %v2337 = vpop.f32.mrb[0].mxu0
      %v2338 = vadd.f32 0.0, %v2337
      %v2339 = vpop.f32.mrb[0].mxu0
      %2340 = vmatprep.mubr.bf16.mxu0 0
      %2341 = vmatmul.mubr.bf16.gmra.mrb[0].mxu0 %v2184
      %v2342 = vpop.f32.mrb[0].mxu0
      %v2343 = vadd.f32 0.0, %v2342
      %v2344 = vpop.f32.mrb[0].mxu0
      %v2345 = vpop.f32.mrb[0].mxu0
      %v2346 = vadd.f32 0.0, %v2345
      %v2347 = vpop.f32.mrb[0].mxu0
      %2348 = vmatprep.mubr.bf16.mxu0 0
      %2349 = vmatmul.mubr.bf16.gmra.mrb[0].mxu0 %v2187
      %v2350 = vpop.f32.mrb[0].mxu0
      %v2351 = vadd.f32 0.0, %v2350
      %v2352 = vpop.f32.mrb[0].mxu0
      %v2353 = vpop.f32.mrb[0].mxu0
      %v2354 = vadd.f32 0.0, %v2353
      %v2355 = vpop.f32.mrb[0].mxu0
      %2356 = vmatprep.mubr.bf16.mxu0 0
      %2357 = vmatmul.mubr.bf16.gmra.mrb[0].mxu0 %v2190
      %v2358 = vpop.f32.mrb[0].mxu0
      %v2359 = vadd.f32 0.0, %v2358
      %v2360 = vpop.f32.mrb[0].mxu0
      %v2361 = vpop.f32.mrb[0].mxu0
      %v2362 = vadd.f32 0.0, %v2361
      %v2363 = vpop.f32.mrb[0].mxu0
      %2364 = vmatprep.mubr.bf16.mxu0 0
      %2365 = vmatmul.mubr.bf16.gmra.mrb[0].mxu0 %v2193
      %v2366 = vpop.f32.mrb[0].mxu0
      %v2367 = vadd.f32 0.0, %v2366
      %v2368 = vpop.f32.mrb[0].mxu0
      %v2369 = vpop.f32.mrb[0].mxu0
      %v2370 = vadd.f32 0.0, %v2369
      %v2371 = vpop.f32.mrb[0].mxu0
      %2372 = vmatprep.mubr.bf16.mxu0 0
      %2373 = vmatmul.mubr.bf16.gmra.mrb[0].mxu0 %v2196
      %v2374 = vpop.f32.mrb[0].mxu0
      %v2375 = vadd.f32 0.0, %v2374
      %v2376 = vpop.f32.mrb[0].mxu0
      %v2377 = vpop.f32.mrb[0].mxu0
      %v2378 = vadd.f32 0.0, %v2377
      %v2379 = vpop.f32.mrb[0].mxu0
      %2380 = vmatprep.mubr.bf16.mxu0 0
      %2381 = vmatmul.mubr.bf16.gmra.mrb[0].mxu0 %v2199
      %v2382 = vpop.f32.mrb[0].mxu0
      %v2383 = vadd.f32 0.0, %v2382
      %v2384 = vpop.f32.mrb[0].mxu0
      %v2385 = vpop.f32.mrb[0].mxu0
      %v2386 = vadd.f32 0.0, %v2385
      %v2387 = vpop.f32.mrb[0].mxu0
      %2388 = vmatprep.mubr.bf16.mxu0 0
      %2389 = vmatmul.mubr.bf16.gmra.mrb[0].mxu0 %v2202
      %v2390 = vpop.f32.mrb[0].mxu0
      %v2391 = vadd.f32 0.0, %v2390
      %v2392 = vpop.f32.mrb[0].mxu0
      %v2393 = vpop.f32.mrb[0].mxu0
      %v2394 = vadd.f32 0.0, %v2393
      %v2395 = vpop.f32.mrb[0].mxu0
      %2396 = vdwg.mxu0
      %v2397 = vmax.f32 %v2239, %v2255
      %v2398 = vmax.f32 %v2242, %v2258
      %v2399 = vmax.f32 %v2247, %v2263
      %v2400 = vmax.f32 %v2250, %v2266
      %v2401 = vmax.f32 %v2397, %v2271
      %v2402 = vmax.f32 %v2398, %v2274
      %v2403 = vmax.f32 %v2399, %v2279
      %v2404 = vmax.f32 %v2400, %v2282
      %v2405 = vmax.f32 %v2401, %v2287
      %v2406 = vmax.f32 %v2402, %v2290
      %v2407 = vmax.f32 %v2403, %v2295
      %v2408 = vmax.f32 %v2404, %v2298
      %v2409 = vmax.f32 %v2405, %v2303
      %v2410 = vmax.f32 %v2406, %v2306
      %v2411 = vmax.f32 %v2407, %v2311
      %v2412 = vmax.f32 %v2408, %v2314
      %v2413 = vmax.f32 %v2409, %v2319
      %v2414 = vmax.f32 %v2410, %v2322
      %v2415 = vmax.f32 %v2411, %v2327
      %v2416 = vmax.f32 %v2412, %v2330
      %v2417 = vmax.f32 %v2413, %v2335
      %v2418 = vmax.f32 %v2414, %v2338
      %v2419 = vmax.f32 %v2415, %v2343
      %v2420 = vmax.f32 %v2416, %v2346
      %v2421 = vmax.f32 %v2417, %v2351
      %v2422 = vmax.f32 %v2418, %v2354
      %v2423 = vmax.f32 %v2419, %v2359
      %v2424 = vmax.f32 %v2420, %v2362
      %v2425 = vmax.f32 %v2421, %v2367
      %v2426 = vmax.f32 %v2422, %v2370
      %v2427 = vmax.f32 %v2423, %v2375
      %v2428 = vmax.f32 %v2424, %v2378
      %v2429 = vmax.f32 %v2425, %v2383
      %v2430 = vmax.f32 %v2426, %v2386
      %v2431 = vmax.f32 %v2427, %v2391
      %v2432 = vmax.f32 %v2428, %v2394
      %2437 = vrot.lane.b32.xlu0 %v2140, 96
      %v2438 = vpop.permute.xlu0 %2437
      %2439 = vrot.lane.b32.xlu0 %v2141, 96
      %v2440 = vpop.permute.xlu0 %2439
      %2441 = vrot.lane.b32.xlu0 %v2142, 96
      %v2442 = vpop.permute.xlu0 %2441
      %2443 = vrot.lane.b32.xlu0 %v2143, 96
      %v2444 = vpop.permute.xlu0 %2443
      %v2449 = vadd.f32 %v2429, %v2438
      %v2450 = vadd.f32 %v2430, %v2440
      %v2451 = vadd.f32 %v2431, %v2442
      %v2452 = vadd.f32 %v2432, %v2444
      %vm2453 = vcmp.gt.f32.partialorder %v2449, 0.0
      %vm2454 = vcmp.gt.f32.partialorder %v2450, 0.0
      %vm2455 = vcmp.gt.f32.partialorder %v2451, 0.0
      %vm2456 = vcmp.gt.f32.partialorder %v2452, 0.0
      %v2457 = vmul.f32 %v2449, 0.2
      %v2458 = vmul.f32 %v2450, 0.2
      %v2459 = vmul.f32 %v2451, 0.2
      %v2460 = vmul.f32 %v2452, 0.2
      %v2461 = vsel %vm2453, %v2449, %v2457
      %v2462 = vsel %vm2454, %v2450, %v2458
      %v2463 = vsel %vm2455, %v2451, %v2459
      %v2464 = vsel %vm2456, %v2452, %v2460
      %v2466 = vsel %vm638, %v2461, 0
      %v2469 = vsel %vm638, %v2462, 0
      %v2472 = vsel %vm638, %v2463, 0
      %v2475 = vsel %vm638, %v2464, 0
      %2477 = vmatprep.subr.mxu0 0.0
      %2478 = vmatpush1.xpose.msra.mxu0 %v2466
      %2479 = vmatprep.subr.mxu0 0.0
      %2480 = vmatpush1.xpose.msra.mxu0 %v2469
      %2481 = vmatprep.subr.mxu0 0.0
      %2482 = vmatpush1.xpose.msra.mxu0 %v2472
      %2483 = vmatprep.subr.mxu0 0.0
      %2484 = vmatpush1.xpose.msra.mxu0 %v2475
      %2485 = vmatprep.subr.mxu0 0.0
      %2486 = vmatpush1.xpose.msra.mxu0 0.0
      %2487 = vmatprep.subr.mxu0 0.0
      %2488 = vmatpush1.xpose.msra.mxu0 0.0
      %2489 = vmatprep.subr.mxu0 0.0
      %2490 = vmatpush1.xpose.msra.mxu0 0.0
      %2491 = vmatprep.subr.mxu0 0.0
      %2492 = vmatpush1.xpose.msra.mxu0 0.0
      %2493 = vmatprep.subr.mxu0 0.0
      %2494 = vmatpush1.xpose.msra.mxu0 0.0
      %2495 = vmatprep.subr.mxu0 0.0
      %2496 = vmatpush1.xpose.msra.mxu0 0.0
      %2497 = vmatprep.subr.mxu0 0.0
      %2498 = vmatpush1.xpose.msra.mxu0 0.0
      %2499 = vmatprep.subr.mxu0 0.0
      %2500 = vmatpush1.xpose.msra.mxu0 0.0
      %2501 = vmatprep.subr.mxu0 0.0
      %2502 = vmatpush1.xpose.msra.mxu0 0.0
      %2503 = vmatprep.subr.mxu0 0.0
      %2504 = vmatpush1.xpose.msra.mxu0 0.0
      %2505 = vmatprep.subr.mxu0 0.0
      %2506 = vmatpush1.xpose.msra.mxu0 0.0
      %2507 = vmatprep.subr.mxu0 0.0
      %2508 = vmatpush1.xpose.msra.mxu0 0.0
      %2509 = vmatprep.subr.mxu0 0.0
      %2510 = vmatpush1.xpose.msra.mxu0 0.0
      %2511 = vmatprep.subr.mxu0 0.0
      %2512 = vmatpush1.xpose.msra.mxu0 0.0
      %2513 = vmatprep.subr.mxu0 0.0
      %2514 = vmatpush1.xpose.msra.mxu0 0.0
      %2515 = vmatprep.subr.mxu0 0.0
      %2516 = vmatpush1.xpose.msra.mxu0 0.0
      %2517 = vmatprep.subr.mxu0 0.0
      %2518 = vmatpush1.xpose.msra.mxu0 0.0
      %2519 = vmatprep.subr.mxu0 0.0
      %2520 = vmatpush1.xpose.msra.mxu0 0.0
      %2521 = vmatprep.subr.mxu0 0.0
      %2522 = vmatpush1.xpose.msra.mxu0 0.0
      %2523 = vmatprep.subr.mxu0 0.0
      %2524 = vmatpush1.xpose.msra.mxu0 0.0
      %2525 = vmatprep.subr.mxu0 0.0
      %2526 = vmatpush1.xpose.msra.mxu0 0.0
      %2527 = vmatprep.subr.mxu0 0.0
      %2528 = vmatpush1.xpose.msra.mxu0 0.0
      %2529 = vmatprep.subr.mxu0 0.0
      %2530 = vmatpush1.xpose.msra.mxu0 0.0
      %2531 = vmatprep.subr.mxu0 0.0
      %2532 = vmatpush1.xpose.msra.mxu0 0.0
      %2533 = vmatprep.subr.mxu0 0.0
      %2534 = vmatpush1.xpose.msra.mxu0 0.0
      %2535 = vmatprep.subr.mxu0 0.0
      %2536 = vmatpush1.xpose.msra.mxu0 0.0
      %2537 = vmatprep.subr.mxu0 0.0
      %2538 = vmatpush1.xpose.msra.mxu0 0.0
      %2539 = vmatprep.subr.mxu0 0.0
      %2540 = vmatpush1.xpose.msra.mxu0 0.0
      %2541 = vmatprep.mubr.f32.mxu0 0.0
      %2542 = vmatmul.mubr.f32.gmra.mrb[0].mxu0 %v2466
      %v2543 = vpop.f32.mrb[0].mxu0
      %v2544 = vadd.f32 0.0, %v2543
      %v2545 = vpop.f32.mrb[0].mxu0
      %2546 = vmatprep.mubr.f32.mxu0 0.0
      %2547 = vmatmul.mubr.f32.gmra.mrb[0].mxu0 %v2469
      %v2548 = vpop.f32.mrb[0].mxu0
      %v2549 = vadd.f32 0.0, %v2548
      %v2550 = vpop.f32.mrb[0].mxu0
      %2551 = vmatprep.mubr.f32.mxu0 0.0
      %2552 = vmatmul.mubr.f32.gmra.mrb[0].mxu0 %v2472
      %v2553 = vpop.f32.mrb[0].mxu0
      %v2554 = vadd.f32 0.0, %v2553
      %v2555 = vpop.f32.mrb[0].mxu0
      %2556 = vmatprep.mubr.f32.mxu0 0.0
      %2557 = vmatmul.mubr.f32.gmra.mrb[0].mxu0 %v2475
      %v2558 = vpop.f32.mrb[0].mxu0
      %v2559 = vadd.f32 0.0, %v2558
      %v2560 = vpop.f32.mrb[0].mxu0
      %2561 = vdwg.mxu0
      %v2562 = vsel %vm954, %v2544, 0.0
      %v2563 = vsel %vm955, %v2549, 0.0
      %v2564 = vsel %vm956, %v2554, 0.0
      %v2565 = vsel %vm957, %v2559, 0.0
      %v2566 = vsel %vm638, %v2562, 0.0
      %v2567 = vsel %vm638, %v2563, 0.0
      %v2568 = vadd.f32 %v2566, %v2567
      %v2569 = vsel %vm638, %v2564, 0.0
      %v2570 = vadd.f32 %v2568, %v2569
      %v2571 = vsel %vm638, %v2565, 0.0
      %v2572 = vadd.f32 %v2570, %v2571
      %v2573 = vrot.slane %v2572, 4
      %v2574 = vadd.f32 %v2572, %v2573
      %v2575 = vrot.slane %v2574, 2
      %v2576 = vadd.f32 %v2574, %v2575
      %v2577 = vrot.slane %v2576, 1
      %v2578 = vadd.f32 %v2576, %v2577
      %v2579 = vmul.f32 %v2544, 2.0
      %v2580 = vmul.f32 %v2549, 2.0
      %v2581 = vmul.f32 %v2554, 2.0
      %v2582 = vmul.f32 %v2559, 2.0
      %v2583 = vsub.f32 %v2579, %v2578
      %v2584 = vsub.f32 %v2580, %v2578
      %v2585 = vsub.f32 %v2581, %v2578
      %v2586 = vsub.f32 %v2582, %v2578
      %v2587 = vsel %vm638, %v2583, -inf
      %2588 = vmax.xlane.f32.xlu0 %v2587
      %v2589 = vpop.xlane.xlu0 %2588
      %v2590 = vsel %vm638, %v2584, -inf
      %2591 = vmax.xlane.f32.xlu0 %v2590
      %v2592 = vpop.xlane.xlu0 %2591
      %v2593 = vsel %vm638, %v2585, -inf
      %2594 = vmax.xlane.f32.xlu0 %v2593
      %v2595 = vpop.xlane.xlu0 %2594
      %v2596 = vsel %vm638, %v2586, -inf
      %2597 = vmax.xlane.f32.xlu0 %v2596
      %v2598 = vpop.xlane.xlu0 %2597
      %vm2599 = vcmp.ge.f32.partialorder %v2583, %v2589
      %vm2600 = vcmp.ge.f32.partialorder %v2584, %v2592
      %vm2601 = vcmp.ge.f32.partialorder %v2585, %v2595
      %vm2602 = vcmp.ge.f32.partialorder %v2586, %v2598
      %v2603 = vsel %vm2599, %v953, 32
      %v2604 = vsel %vm2600, %v953, 32
      %v2605 = vsel %vm2601, %v953, 32
      %v2606 = vsel %vm2602, %v953, 32
      %v2607 = vsel %vm638, %v2603, 2147483647
      %v2608 = vand.u32 %v2607, 65535
      %v2609 = vshra.s32 %v2607, 16
      %v2610 = vcvt.s32.f32 %v2608
      %v2611 = vcvt.s32.f32 %v2609
      %2612 = vmin.xlane.f32.xlu0 %v2611
      %v2613 = vpop.xlane.xlu0 %2612
      %vm2614 = vcmp.eq.f32.partialorder %v2611, %v2613
      %v2615 = vsel %vm2614, %v2610, inf
      %2616 = vmin.xlane.f32.xlu0 %v2615
      %v2617 = vpop.xlane.xlu0 %2616
      %v2618 = vcvt.f32.s32 %v2617
      %v2619 = vcvt.f32.s32 %v2613
      %v2620 = vshll.u32 %v2619, 16
      %v2621 = vadd.s32 %v2620, %v2618
      %v2622 = vsel %vm638, %v2604, 2147483647
      %v2623 = vand.u32 %v2622, 65535
      %v2624 = vshra.s32 %v2622, 16
      %v2625 = vcvt.s32.f32 %v2623
      %v2626 = vcvt.s32.f32 %v2624
      %2627 = vmin.xlane.f32.xlu0 %v2626
      %v2628 = vpop.xlane.xlu0 %2627
      %vm2629 = vcmp.eq.f32.partialorder %v2626, %v2628
      %v2630 = vsel %vm2629, %v2625, inf
      %2631 = vmin.xlane.f32.xlu0 %v2630
      %v2632 = vpop.xlane.xlu0 %2631
      %v2633 = vcvt.f32.s32 %v2632
      %v2634 = vcvt.f32.s32 %v2628
      %v2635 = vshll.u32 %v2634, 16
      %v2636 = vadd.s32 %v2635, %v2633
      %v2637 = vsel %vm638, %v2605, 2147483647
      %v2638 = vand.u32 %v2637, 65535
      %v2639 = vshra.s32 %v2637, 16
      %v2640 = vcvt.s32.f32 %v2638
      %v2641 = vcvt.s32.f32 %v2639
      %2642 = vmin.xlane.f32.xlu0 %v2641
      %v2643 = vpop.xlane.xlu0 %2642
      %vm2644 = vcmp.eq.f32.partialorder %v2641, %v2643
      %v2645 = vsel %vm2644, %v2640, inf
      %2646 = vmin.xlane.f32.xlu0 %v2645
      %v2647 = vpop.xlane.xlu0 %2646
      %v2648 = vcvt.f32.s32 %v2647
      %v2649 = vcvt.f32.s32 %v2643
      %v2650 = vshll.u32 %v2649, 16
      %v2651 = vadd.s32 %v2650, %v2648
      %v2652 = vsel %vm638, %v2606, 2147483647
      %v2653 = vand.u32 %v2652, 65535
      %v2654 = vshra.s32 %v2652, 16
      %v2655 = vcvt.s32.f32 %v2653
      %v2656 = vcvt.s32.f32 %v2654
      %2657 = vmin.xlane.f32.xlu0 %v2656
      %v2658 = vpop.xlane.xlu0 %2657
      %vm2659 = vcmp.eq.f32.partialorder %v2656, %v2658
      %v2660 = vsel %vm2659, %v2655, inf
      %2661 = vmin.xlane.f32.xlu0 %v2660
      %v2662 = vpop.xlane.xlu0 %2661
      %v2663 = vcvt.f32.s32 %v2662
      %v2664 = vcvt.f32.s32 %v2658
      %v2665 = vshll.u32 %v2664, 16
      %v2666 = vadd.s32 %v2665, %v2663
      %vm2667 = vcmp.eq.s32.totalorder %v953, %v2621
      %vm2668 = vcmp.eq.s32.totalorder %v953, %v2636
      %vm2669 = vcmp.eq.s32.totalorder %v953, %v2651
      %vm2670 = vcmp.eq.s32.totalorder %v953, %v2666
      %v2671 = vsel %vm2667, 1, 0
      %v2672 = vsel %vm2668, 1, 0
      %v2673 = vsel %vm2669, 1, 0
      %v2674 = vsel %vm2670, 1, 0
      %v2675 = vcvt.s32.f32 %v2671
      %v2676 = vcvt.s32.f32 %v2672
      %v2677 = vcvt.s32.f32 %v2673
      %v2678 = vcvt.s32.f32 %v2674
      %v2679 = vpack.c.bf16 %v2676, %v2675
      %v2680 = vpack.c.bf16 %v2678, %v2677
      %v2681 = vsel %vm2667, -inf, %v2583
      %v2682 = vsel %vm2668, -inf, %v2584
      %v2683 = vsel %vm2669, -inf, %v2585
      %v2684 = vsel %vm2670, -inf, %v2586
      %v2685 = vsel %vm638, %v2681, -inf
      %2686 = vmax.xlane.f32.xlu0 %v2685
      %v2687 = vpop.xlane.xlu0 %2686
      %v2688 = vsel %vm638, %v2682, -inf
      %2689 = vmax.xlane.f32.xlu0 %v2688
      %v2690 = vpop.xlane.xlu0 %2689
      %v2691 = vsel %vm638, %v2683, -inf
      %2692 = vmax.xlane.f32.xlu0 %v2691
      %v2693 = vpop.xlane.xlu0 %2692
      %v2694 = vsel %vm638, %v2684, -inf
      %2695 = vmax.xlane.f32.xlu0 %v2694
      %v2696 = vpop.xlane.xlu0 %2695
      %vm2697 = vcmp.ge.f32.partialorder %v2681, %v2687
      %vm2698 = vcmp.ge.f32.partialorder %v2682, %v2690
      %vm2699 = vcmp.ge.f32.partialorder %v2683, %v2693
      %vm2700 = vcmp.ge.f32.partialorder %v2684, %v2696
      %v2701 = vsel %vm2697, %v953, 32
      %v2702 = vsel %vm2698, %v953, 32
      %v2703 = vsel %vm2699, %v953, 32
      %v2704 = vsel %vm2700, %v953, 32
      %v2705 = vsel %vm638, %v2701, 2147483647
      %v2706 = vand.u32 %v2705, 65535
      %v2707 = vshra.s32 %v2705, 16
      %v2708 = vcvt.s32.f32 %v2706
      %v2709 = vcvt.s32.f32 %v2707
      %2710 = vmin.xlane.f32.xlu0 %v2709
      %v2711 = vpop.xlane.xlu0 %2710
      %vm2712 = vcmp.eq.f32.partialorder %v2709, %v2711
      %v2713 = vsel %vm2712, %v2708, inf
      %2714 = vmin.xlane.f32.xlu0 %v2713
      %v2715 = vpop.xlane.xlu0 %2714
      %v2716 = vcvt.f32.s32 %v2715
      %v2717 = vcvt.f32.s32 %v2711
      %v2718 = vshll.u32 %v2717, 16
      %v2719 = vadd.s32 %v2718, %v2716
      %v2720 = vsel %vm638, %v2702, 2147483647
      %v2721 = vand.u32 %v2720, 65535
      %v2722 = vshra.s32 %v2720, 16
      %v2723 = vcvt.s32.f32 %v2721
      %v2724 = vcvt.s32.f32 %v2722
      %2725 = vmin.xlane.f32.xlu0 %v2724
      %v2726 = vpop.xlane.xlu0 %2725
      %vm2727 = vcmp.eq.f32.partialorder %v2724, %v2726
      %v2728 = vsel %vm2727, %v2723, inf
      %2729 = vmin.xlane.f32.xlu0 %v2728
      %v2730 = vpop.xlane.xlu0 %2729
      %v2731 = vcvt.f32.s32 %v2730
      %v2732 = vcvt.f32.s32 %v2726
      %v2733 = vshll.u32 %v2732, 16
      %v2734 = vadd.s32 %v2733, %v2731
      %v2735 = vsel %vm638, %v2703, 2147483647
      %v2736 = vand.u32 %v2735, 65535
      %v2737 = vshra.s32 %v2735, 16
      %v2738 = vcvt.s32.f32 %v2736
      %v2739 = vcvt.s32.f32 %v2737
      %2740 = vmin.xlane.f32.xlu0 %v2739
      %v2741 = vpop.xlane.xlu0 %2740
      %vm2742 = vcmp.eq.f32.partialorder %v2739, %v2741
      %v2743 = vsel %vm2742, %v2738, inf
      %2744 = vmin.xlane.f32.xlu0 %v2743
      %v2745 = vpop.xlane.xlu0 %2744
      %v2746 = vcvt.f32.s32 %v2745
      %v2747 = vcvt.f32.s32 %v2741
      %v2748 = vshll.u32 %v2747, 16
      %v2749 = vadd.s32 %v2748, %v2746
      %v2750 = vsel %vm638, %v2704, 2147483647
      %v2751 = vand.u32 %v2750, 65535
      %v2752 = vshra.s32 %v2750, 16
      %v2753 = vcvt.s32.f32 %v2751
      %v2754 = vcvt.s32.f32 %v2752
      %2755 = vmin.xlane.f32.xlu0 %v2754
      %v2756 = vpop.xlane.xlu0 %2755
      %vm2757 = vcmp.eq.f32.partialorder %v2754, %v2756
      %v2758 = vsel %vm2757, %v2753, inf
      %2759 = vmin.xlane.f32.xlu0 %v2758
      %v2760 = vpop.xlane.xlu0 %2759
      %v2761 = vcvt.f32.s32 %v2760
      %v2762 = vcvt.f32.s32 %v2756
      %v2763 = vshll.u32 %v2762, 16
      %v2764 = vadd.s32 %v2763, %v2761
      %vm2765 = vcmp.eq.s32.totalorder %v953, %v2719
      %vm2766 = vcmp.eq.s32.totalorder %v953, %v2734
      %vm2767 = vcmp.eq.s32.totalorder %v953, %v2749
      %vm2768 = vcmp.eq.s32.totalorder %v953, %v2764
      %v2769 = vsel %vm2765, 1, 0
      %v2770 = vsel %vm2766, 1, 0
      %v2771 = vsel %vm2767, 1, 0
      %v2772 = vsel %vm2768, 1, 0
      %v2773 = vcvt.s32.f32 %v2769
      %v2774 = vcvt.s32.f32 %v2770
      %v2775 = vcvt.s32.f32 %v2771
      %v2776 = vcvt.s32.f32 %v2772
      %v2777 = vpack.c.bf16 %v2774, %v2773
      %v2778 = vpack.c.bf16 %v2776, %v2775
      %v2779 = vsel %vm2765, -inf, %v2681
      %v2780 = vsel %vm2766, -inf, %v2682
      %v2781 = vsel %vm2767, -inf, %v2683
      %v2782 = vsel %vm2768, -inf, %v2684
      %v2783 = vsel %vm638, %v2779, -inf
      %2784 = vmax.xlane.f32.xlu0 %v2783
      %v2785 = vpop.xlane.xlu0 %2784
      %v2786 = vsel %vm638, %v2780, -inf
      %2787 = vmax.xlane.f32.xlu0 %v2786
      %v2788 = vpop.xlane.xlu0 %2787
      %v2789 = vsel %vm638, %v2781, -inf
      %2790 = vmax.xlane.f32.xlu0 %v2789
      %v2791 = vpop.xlane.xlu0 %2790
      %v2792 = vsel %vm638, %v2782, -inf
      %2793 = vmax.xlane.f32.xlu0 %v2792
      %v2794 = vpop.xlane.xlu0 %2793
      %vm2795 = vcmp.ge.f32.partialorder %v2779, %v2785
      %vm2796 = vcmp.ge.f32.partialorder %v2780, %v2788
      %vm2797 = vcmp.ge.f32.partialorder %v2781, %v2791
      %vm2798 = vcmp.ge.f32.partialorder %v2782, %v2794
      %v2799 = vsel %vm2795, %v953, 32
      %v2800 = vsel %vm2796, %v953, 32
      %v2801 = vsel %vm2797, %v953, 32
      %v2802 = vsel %vm2798, %v953, 32
      %v2803 = vsel %vm638, %v2799, 2147483647
      %v2804 = vand.u32 %v2803, 65535
      %v2805 = vshra.s32 %v2803, 16
      %v2806 = vcvt.s32.f32 %v2804
      %v2807 = vcvt.s32.f32 %v2805
      %2808 = vmin.xlane.f32.xlu0 %v2807
      %v2809 = vpop.xlane.xlu0 %2808
      %vm2810 = vcmp.eq.f32.partialorder %v2807, %v2809
      %v2811 = vsel %vm2810, %v2806, inf
      %2812 = vmin.xlane.f32.xlu0 %v2811
      %v2813 = vpop.xlane.xlu0 %2812
      %v2814 = vcvt.f32.s32 %v2813
      %v2815 = vcvt.f32.s32 %v2809
      %v2816 = vshll.u32 %v2815, 16
      %v2817 = vadd.s32 %v2816, %v2814
      %v2818 = vsel %vm638, %v2800, 2147483647
      %v2819 = vand.u32 %v2818, 65535
      %v2820 = vshra.s32 %v2818, 16
      %v2821 = vcvt.s32.f32 %v2819
      %v2822 = vcvt.s32.f32 %v2820
      %2823 = vmin.xlane.f32.xlu0 %v2822
      %v2824 = vpop.xlane.xlu0 %2823
      %vm2825 = vcmp.eq.f32.partialorder %v2822, %v2824
      %v2826 = vsel %vm2825, %v2821, inf
      %2827 = vmin.xlane.f32.xlu0 %v2826
      %v2828 = vpop.xlane.xlu0 %2827
      %v2829 = vcvt.f32.s32 %v2828
      %v2830 = vcvt.f32.s32 %v2824
      %v2831 = vshll.u32 %v2830, 16
      %v2832 = vadd.s32 %v2831, %v2829
      %v2833 = vsel %vm638, %v2801, 2147483647
      %v2834 = vand.u32 %v2833, 65535
      %v2835 = vshra.s32 %v2833, 16
      %v2836 = vcvt.s32.f32 %v2834
      %v2837 = vcvt.s32.f32 %v2835
      %2838 = vmin.xlane.f32.xlu0 %v2837
      %v2839 = vpop.xlane.xlu0 %2838
      %vm2840 = vcmp.eq.f32.partialorder %v2837, %v2839
      %v2841 = vsel %vm2840, %v2836, inf
      %2842 = vmin.xlane.f32.xlu0 %v2841
      %v2843 = vpop.xlane.xlu0 %2842
      %v2844 = vcvt.f32.s32 %v2843
      %v2845 = vcvt.f32.s32 %v2839
      %v2846 = vshll.u32 %v2845, 16
      %v2847 = vadd.s32 %v2846, %v2844
      %v2848 = vsel %vm638, %v2802, 2147483647
      %v2849 = vand.u32 %v2848, 65535
      %v2850 = vshra.s32 %v2848, 16
      %v2851 = vcvt.s32.f32 %v2849
      %v2852 = vcvt.s32.f32 %v2850
      %2853 = vmin.xlane.f32.xlu0 %v2852
      %v2854 = vpop.xlane.xlu0 %2853
      %vm2855 = vcmp.eq.f32.partialorder %v2852, %v2854
      %v2856 = vsel %vm2855, %v2851, inf
      %2857 = vmin.xlane.f32.xlu0 %v2856
      %v2858 = vpop.xlane.xlu0 %2857
      %v2859 = vcvt.f32.s32 %v2858
      %v2860 = vcvt.f32.s32 %v2854
      %v2861 = vshll.u32 %v2860, 16
      %v2862 = vadd.s32 %v2861, %v2859
      %vm2863 = vcmp.eq.s32.totalorder %v953, %v2817
      %vm2864 = vcmp.eq.s32.totalorder %v953, %v2832
      %vm2865 = vcmp.eq.s32.totalorder %v953, %v2847
      %vm2866 = vcmp.eq.s32.totalorder %v953, %v2862
      %v2867 = vsel %vm2863, 1, 0
      %v2868 = vsel %vm2864, 1, 0
      %v2869 = vsel %vm2865, 1, 0
      %v2870 = vsel %vm2866, 1, 0
      %v2871 = vcvt.s32.f32 %v2867
      %v2872 = vcvt.s32.f32 %v2868
      %v2873 = vcvt.s32.f32 %v2869
      %v2874 = vcvt.s32.f32 %v2870
      %v2875 = vpack.c.bf16 %v2872, %v2871
      %v2876 = vpack.c.bf16 %v2874, %v2873
      %v2877 = vsel %vm2863, -inf, %v2779
      %v2878 = vsel %vm2864, -inf, %v2780
      %v2879 = vsel %vm2865, -inf, %v2781
      %v2880 = vsel %vm2866, -inf, %v2782
      %v2881 = vsel %vm638, %v2877, -inf
      %2882 = vmax.xlane.f32.xlu0 %v2881
      %v2883 = vpop.xlane.xlu0 %2882
      %v2884 = vsel %vm638, %v2878, -inf
      %2885 = vmax.xlane.f32.xlu0 %v2884
      %v2886 = vpop.xlane.xlu0 %2885
      %v2887 = vsel %vm638, %v2879, -inf
      %2888 = vmax.xlane.f32.xlu0 %v2887
      %v2889 = vpop.xlane.xlu0 %2888
      %v2890 = vsel %vm638, %v2880, -inf
      %2891 = vmax.xlane.f32.xlu0 %v2890
      %v2892 = vpop.xlane.xlu0 %2891
      %vm2893 = vcmp.ge.f32.partialorder %v2877, %v2883
      %vm2894 = vcmp.ge.f32.partialorder %v2878, %v2886
      %vm2895 = vcmp.ge.f32.partialorder %v2879, %v2889
      %vm2896 = vcmp.ge.f32.partialorder %v2880, %v2892
      %v2897 = vsel %vm2893, %v953, 32
      %v2898 = vsel %vm2894, %v953, 32
      %v2899 = vsel %vm2895, %v953, 32
      %v2900 = vsel %vm2896, %v953, 32
      %v2901 = vsel %vm638, %v2897, 2147483647
      %v2902 = vand.u32 %v2901, 65535
      %v2903 = vshra.s32 %v2901, 16
      %v2904 = vcvt.s32.f32 %v2902
      %v2905 = vcvt.s32.f32 %v2903
      %2906 = vmin.xlane.f32.xlu0 %v2905
      %v2907 = vpop.xlane.xlu0 %2906
      %vm2908 = vcmp.eq.f32.partialorder %v2905, %v2907
      %v2909 = vsel %vm2908, %v2904, inf
      %2910 = vmin.xlane.f32.xlu0 %v2909
      %v2911 = vpop.xlane.xlu0 %2910
      %v2912 = vcvt.f32.s32 %v2911
      %v2913 = vcvt.f32.s32 %v2907
      %v2914 = vshll.u32 %v2913, 16
      %v2915 = vadd.s32 %v2914, %v2912
      %v2916 = vsel %vm638, %v2898, 2147483647
      %v2917 = vand.u32 %v2916, 65535
      %v2918 = vshra.s32 %v2916, 16
      %v2919 = vcvt.s32.f32 %v2917
      %v2920 = vcvt.s32.f32 %v2918
      %2921 = vmin.xlane.f32.xlu0 %v2920
      %v2922 = vpop.xlane.xlu0 %2921
      %vm2923 = vcmp.eq.f32.partialorder %v2920, %v2922
      %v2924 = vsel %vm2923, %v2919, inf
      %2925 = vmin.xlane.f32.xlu0 %v2924
      %v2926 = vpop.xlane.xlu0 %2925
      %v2927 = vcvt.f32.s32 %v2926
      %v2928 = vcvt.f32.s32 %v2922
      %v2929 = vshll.u32 %v2928, 16
      %v2930 = vadd.s32 %v2929, %v2927
      %v2931 = vsel %vm638, %v2899, 2147483647
      %v2932 = vand.u32 %v2931, 65535
      %v2933 = vshra.s32 %v2931, 16
      %v2934 = vcvt.s32.f32 %v2932
      %v2935 = vcvt.s32.f32 %v2933
      %2936 = vmin.xlane.f32.xlu0 %v2935
      %v2937 = vpop.xlane.xlu0 %2936
      %vm2938 = vcmp.eq.f32.partialorder %v2935, %v2937
      %v2939 = vsel %vm2938, %v2934, inf
      %2940 = vmin.xlane.f32.xlu0 %v2939
      %v2941 = vpop.xlane.xlu0 %2940
      %v2942 = vcvt.f32.s32 %v2941
      %v2943 = vcvt.f32.s32 %v2937
      %v2944 = vshll.u32 %v2943, 16
      %v2945 = vadd.s32 %v2944, %v2942
      %v2946 = vsel %vm638, %v2900, 2147483647
      %v2947 = vand.u32 %v2946, 65535
      %v2948 = vshra.s32 %v2946, 16
      %v2949 = vcvt.s32.f32 %v2947
      %v2950 = vcvt.s32.f32 %v2948
      %2951 = vmin.xlane.f32.xlu0 %v2950
      %v2952 = vpop.xlane.xlu0 %2951
      %vm2953 = vcmp.eq.f32.partialorder %v2950, %v2952
      %v2954 = vsel %vm2953, %v2949, inf
      %2955 = vmin.xlane.f32.xlu0 %v2954
      %v2956 = vpop.xlane.xlu0 %2955
      %v2957 = vcvt.f32.s32 %v2956
      %v2958 = vcvt.f32.s32 %v2952
      %v2959 = vshll.u32 %v2958, 16
      %v2960 = vadd.s32 %v2959, %v2957
      %vm2961 = vcmp.eq.s32.totalorder %v953, %v2915
      %vm2962 = vcmp.eq.s32.totalorder %v953, %v2930
      %vm2963 = vcmp.eq.s32.totalorder %v953, %v2945
      %vm2964 = vcmp.eq.s32.totalorder %v953, %v2960
      %v2965 = vsel %vm2961, 1, 0
      %v2966 = vsel %vm2962, 1, 0
      %v2967 = vsel %vm2963, 1, 0
      %v2968 = vsel %vm2964, 1, 0
      %v2969 = vcvt.s32.f32 %v2965
      %v2970 = vcvt.s32.f32 %v2966
      %v2971 = vcvt.s32.f32 %v2967
      %v2972 = vcvt.s32.f32 %v2968
      %v2973 = vpack.c.bf16 %v2970, %v2969
      %v2974 = vpack.c.bf16 %v2972, %v2971
      %v2975 = vsel %vm2961, -inf, %v2877
      %v2976 = vsel %vm2962, -inf, %v2878
      %v2977 = vsel %vm2963, -inf, %v2879
      %v2978 = vsel %vm2964, -inf, %v2880
      %v2979 = vsel %vm638, %v2975, -inf
      %2980 = vmax.xlane.f32.xlu0 %v2979
      %v2981 = vpop.xlane.xlu0 %2980
      %v2982 = vsel %vm638, %v2976, -inf
      %2983 = vmax.xlane.f32.xlu0 %v2982
      %v2984 = vpop.xlane.xlu0 %2983
      %v2985 = vsel %vm638, %v2977, -inf
      %2986 = vmax.xlane.f32.xlu0 %v2985
      %v2987 = vpop.xlane.xlu0 %2986
      %v2988 = vsel %vm638, %v2978, -inf
      %2989 = vmax.xlane.f32.xlu0 %v2988
      %v2990 = vpop.xlane.xlu0 %2989
      %vm2991 = vcmp.ge.f32.partialorder %v2975, %v2981
      %vm2992 = vcmp.ge.f32.partialorder %v2976, %v2984
      %vm2993 = vcmp.ge.f32.partialorder %v2977, %v2987
      %vm2994 = vcmp.ge.f32.partialorder %v2978, %v2990
      %v2995 = vsel %vm2991, %v953, 32
      %v2996 = vsel %vm2992, %v953, 32
      %v2997 = vsel %vm2993, %v953, 32
      %v2998 = vsel %vm2994, %v953, 32
      %v2999 = vsel %vm638, %v2995, 2147483647
      %v3000 = vand.u32 %v2999, 65535
      %v3001 = vshra.s32 %v2999, 16
      %v3002 = vcvt.s32.f32 %v3000
      %v3003 = vcvt.s32.f32 %v3001
      %3004 = vmin.xlane.f32.xlu0 %v3003
      %v3005 = vpop.xlane.xlu0 %3004
      %vm3006 = vcmp.eq.f32.partialorder %v3003, %v3005
      %v3007 = vsel %vm3006, %v3002, inf
      %3008 = vmin.xlane.f32.xlu0 %v3007
      %v3009 = vpop.xlane.xlu0 %3008
      %v3010 = vcvt.f32.s32 %v3009
      %v3011 = vcvt.f32.s32 %v3005
      %v3012 = vshll.u32 %v3011, 16
      %v3013 = vadd.s32 %v3012, %v3010
      %v3014 = vsel %vm638, %v2996, 2147483647
      %v3015 = vand.u32 %v3014, 65535
      %v3016 = vshra.s32 %v3014, 16
      %v3017 = vcvt.s32.f32 %v3015
      %v3018 = vcvt.s32.f32 %v3016
      %3019 = vmin.xlane.f32.xlu0 %v3018
      %v3020 = vpop.xlane.xlu0 %3019
      %vm3021 = vcmp.eq.f32.partialorder %v3018, %v3020
      %v3022 = vsel %vm3021, %v3017, inf
      %3023 = vmin.xlane.f32.xlu0 %v3022
      %v3024 = vpop.xlane.xlu0 %3023
      %v3025 = vcvt.f32.s32 %v3024
      %v3026 = vcvt.f32.s32 %v3020
      %v3027 = vshll.u32 %v3026, 16
      %v3028 = vadd.s32 %v3027, %v3025
      %v3029 = vsel %vm638, %v2997, 2147483647
      %v3030 = vand.u32 %v3029, 65535
      %v3031 = vshra.s32 %v3029, 16
      %v3032 = vcvt.s32.f32 %v3030
      %v3033 = vcvt.s32.f32 %v3031
      %3034 = vmin.xlane.f32.xlu0 %v3033
      %v3035 = vpop.xlane.xlu0 %3034
      %vm3036 = vcmp.eq.f32.partialorder %v3033, %v3035
      %v3037 = vsel %vm3036, %v3032, inf
      %3038 = vmin.xlane.f32.xlu0 %v3037
      %v3039 = vpop.xlane.xlu0 %3038
      %v3040 = vcvt.f32.s32 %v3039
      %v3041 = vcvt.f32.s32 %v3035
      %v3042 = vshll.u32 %v3041, 16
      %v3043 = vadd.s32 %v3042, %v3040
      %v3044 = vsel %vm638, %v2998, 2147483647
      %v3045 = vand.u32 %v3044, 65535
      %v3046 = vshra.s32 %v3044, 16
      %v3047 = vcvt.s32.f32 %v3045
      %v3048 = vcvt.s32.f32 %v3046
      %3049 = vmin.xlane.f32.xlu0 %v3048
      %v3050 = vpop.xlane.xlu0 %3049
      %vm3051 = vcmp.eq.f32.partialorder %v3048, %v3050
      %v3052 = vsel %vm3051, %v3047, inf
      %3053 = vmin.xlane.f32.xlu0 %v3052
      %v3054 = vpop.xlane.xlu0 %3053
      %v3055 = vcvt.f32.s32 %v3054
      %v3056 = vcvt.f32.s32 %v3050
      %v3057 = vshll.u32 %v3056, 16
      %v3058 = vadd.s32 %v3057, %v3055
      %vm3059 = vcmp.eq.s32.totalorder %v953, %v3013
      %vm3060 = vcmp.eq.s32.totalorder %v953, %v3028
      %vm3061 = vcmp.eq.s32.totalorder %v953, %v3043
      %vm3062 = vcmp.eq.s32.totalorder %v953, %v3058
      %v3063 = vsel %vm3059, 1, 0
      %v3064 = vsel %vm3060, 1, 0
      %v3065 = vsel %vm3061, 1, 0
      %v3066 = vsel %vm3062, 1, 0
      %v3067 = vcvt.s32.f32 %v3063
      %v3068 = vcvt.s32.f32 %v3064
      %v3069 = vcvt.s32.f32 %v3065
      %v3070 = vcvt.s32.f32 %v3066
      %v3071 = vpack.c.bf16 %v3068, %v3067
      %v3072 = vpack.c.bf16 %v3070, %v3069
      %v3073 = vsel %vm3059, -inf, %v2975
      %v3074 = vsel %vm3060, -inf, %v2976
      %v3075 = vsel %vm3061, -inf, %v2977
      %v3076 = vsel %vm3062, -inf, %v2978
      %v3077 = vsel %vm638, %v3073, -inf
      %3078 = vmax.xlane.f32.xlu0 %v3077
      %v3079 = vpop.xlane.xlu0 %3078
      %v3080 = vsel %vm638, %v3074, -inf
      %3081 = vmax.xlane.f32.xlu0 %v3080
      %v3082 = vpop.xlane.xlu0 %3081
      %v3083 = vsel %vm638, %v3075, -inf
      %3084 = vmax.xlane.f32.xlu0 %v3083
      %v3085 = vpop.xlane.xlu0 %3084
      %v3086 = vsel %vm638, %v3076, -inf
      %3087 = vmax.xlane.f32.xlu0 %v3086
      %v3088 = vpop.xlane.xlu0 %3087
      %vm3089 = vcmp.ge.f32.partialorder %v3073, %v3079
      %vm3090 = vcmp.ge.f32.partialorder %v3074, %v3082
      %vm3091 = vcmp.ge.f32.partialorder %v3075, %v3085
      %vm3092 = vcmp.ge.f32.partialorder %v3076, %v3088
      %v3093 = vsel %vm3089, %v953, 32
      %v3094 = vsel %vm3090, %v953, 32
      %v3095 = vsel %vm3091, %v953, 32
      %v3096 = vsel %vm3092, %v953, 32
      %v3097 = vsel %vm638, %v3093, 2147483647
      %v3098 = vand.u32 %v3097, 65535
      %v3099 = vshra.s32 %v3097, 16
      %v3100 = vcvt.s32.f32 %v3098
      %v3101 = vcvt.s32.f32 %v3099
      %3102 = vmin.xlane.f32.xlu0 %v3101
      %v3103 = vpop.xlane.xlu0 %3102
      %vm3104 = vcmp.eq.f32.partialorder %v3101, %v3103
      %v3105 = vsel %vm3104, %v3100, inf
      %3106 = vmin.xlane.f32.xlu0 %v3105
      %v3107 = vpop.xlane.xlu0 %3106
      %v3108 = vcvt.f32.s32 %v3107
      %v3109 = vcvt.f32.s32 %v3103
      %v3110 = vshll.u32 %v3109, 16
      %v3111 = vadd.s32 %v3110, %v3108
      %v3112 = vsel %vm638, %v3094, 2147483647
      %v3113 = vand.u32 %v3112, 65535
      %v3114 = vshra.s32 %v3112, 16
      %v3115 = vcvt.s32.f32 %v3113
      %v3116 = vcvt.s32.f32 %v3114
      %3117 = vmin.xlane.f32.xlu0 %v3116
      %v3118 = vpop.xlane.xlu0 %3117
      %vm3119 = vcmp.eq.f32.partialorder %v3116, %v3118
      %v3120 = vsel %vm3119, %v3115, inf
      %3121 = vmin.xlane.f32.xlu0 %v3120
      %v3122 = vpop.xlane.xlu0 %3121
      %v3123 = vcvt.f32.s32 %v3122
      %v3124 = vcvt.f32.s32 %v3118
      %v3125 = vshll.u32 %v3124, 16
      %v3126 = vadd.s32 %v3125, %v3123
      %v3127 = vsel %vm638, %v3095, 2147483647
      %v3128 = vand.u32 %v3127, 65535
      %v3129 = vshra.s32 %v3127, 16
      %v3130 = vcvt.s32.f32 %v3128
      %v3131 = vcvt.s32.f32 %v3129
      %3132 = vmin.xlane.f32.xlu0 %v3131
      %v3133 = vpop.xlane.xlu0 %3132
      %vm3134 = vcmp.eq.f32.partialorder %v3131, %v3133
      %v3135 = vsel %vm3134, %v3130, inf
      %3136 = vmin.xlane.f32.xlu0 %v3135
      %v3137 = vpop.xlane.xlu0 %3136
      %v3138 = vcvt.f32.s32 %v3137
      %v3139 = vcvt.f32.s32 %v3133
      %v3140 = vshll.u32 %v3139, 16
      %v3141 = vadd.s32 %v3140, %v3138
      %v3142 = vsel %vm638, %v3096, 2147483647
      %v3143 = vand.u32 %v3142, 65535
      %v3144 = vshra.s32 %v3142, 16
      %v3145 = vcvt.s32.f32 %v3143
      %v3146 = vcvt.s32.f32 %v3144
      %3147 = vmin.xlane.f32.xlu0 %v3146
      %v3148 = vpop.xlane.xlu0 %3147
      %vm3149 = vcmp.eq.f32.partialorder %v3146, %v3148
      %v3150 = vsel %vm3149, %v3145, inf
      %3151 = vmin.xlane.f32.xlu0 %v3150
      %v3152 = vpop.xlane.xlu0 %3151
      %v3153 = vcvt.f32.s32 %v3152
      %v3154 = vcvt.f32.s32 %v3148
      %v3155 = vshll.u32 %v3154, 16
      %v3156 = vadd.s32 %v3155, %v3153
      %vm3157 = vcmp.eq.s32.totalorder %v953, %v3111
      %vm3158 = vcmp.eq.s32.totalorder %v953, %v3126
      %vm3159 = vcmp.eq.s32.totalorder %v953, %v3141
      %vm3160 = vcmp.eq.s32.totalorder %v953, %v3156
      %v3161 = vsel %vm3157, 1, 0
      %v3162 = vsel %vm3158, 1, 0
      %v3163 = vsel %vm3159, 1, 0
      %v3164 = vsel %vm3160, 1, 0
      %v3165 = vcvt.s32.f32 %v3161
      %v3166 = vcvt.s32.f32 %v3162
      %v3167 = vcvt.s32.f32 %v3163
      %v3168 = vcvt.s32.f32 %v3164
      %v3169 = vpack.c.bf16 %v3166, %v3165
      %v3170 = vpack.c.bf16 %v3168, %v3167
      %v3171 = vsel %vm3157, -inf, %v3073
      %v3172 = vsel %vm3158, -inf, %v3074
      %v3173 = vsel %vm3159, -inf, %v3075
      %v3174 = vsel %vm3160, -inf, %v3076
      %v3175 = vsel %vm638, %v3171, -inf
      %3176 = vmax.xlane.f32.xlu0 %v3175
      %v3177 = vpop.xlane.xlu0 %3176
      %v3178 = vsel %vm638, %v3172, -inf
      %3179 = vmax.xlane.f32.xlu0 %v3178
      %v3180 = vpop.xlane.xlu0 %3179
      %v3181 = vsel %vm638, %v3173, -inf
      %3182 = vmax.xlane.f32.xlu0 %v3181
      %v3183 = vpop.xlane.xlu0 %3182
      %v3184 = vsel %vm638, %v3174, -inf
      %3185 = vmax.xlane.f32.xlu0 %v3184
      %v3186 = vpop.xlane.xlu0 %3185
      %vm3187 = vcmp.ge.f32.partialorder %v3171, %v3177
      %vm3188 = vcmp.ge.f32.partialorder %v3172, %v3180
      %vm3189 = vcmp.ge.f32.partialorder %v3173, %v3183
      %vm3190 = vcmp.ge.f32.partialorder %v3174, %v3186
      %v3191 = vsel %vm3187, %v953, 32
      %v3192 = vsel %vm3188, %v953, 32
      %v3193 = vsel %vm3189, %v953, 32
      %v3194 = vsel %vm3190, %v953, 32
      %v3195 = vsel %vm638, %v3191, 2147483647
      %v3196 = vand.u32 %v3195, 65535
      %v3197 = vshra.s32 %v3195, 16
      %v3198 = vcvt.s32.f32 %v3196
      %v3199 = vcvt.s32.f32 %v3197
      %3200 = vmin.xlane.f32.xlu0 %v3199
      %v3201 = vpop.xlane.xlu0 %3200
      %vm3202 = vcmp.eq.f32.partialorder %v3199, %v3201
      %v3203 = vsel %vm3202, %v3198, inf
      %3204 = vmin.xlane.f32.xlu0 %v3203
      %v3205 = vpop.xlane.xlu0 %3204
      %v3206 = vcvt.f32.s32 %v3205
      %v3207 = vcvt.f32.s32 %v3201
      %v3208 = vshll.u32 %v3207, 16
      %v3209 = vadd.s32 %v3208, %v3206
      %v3210 = vsel %vm638, %v3192, 2147483647
      %v3211 = vand.u32 %v3210, 65535
      %v3212 = vshra.s32 %v3210, 16
      %v3213 = vcvt.s32.f32 %v3211
      %v3214 = vcvt.s32.f32 %v3212
      %3215 = vmin.xlane.f32.xlu0 %v3214
      %v3216 = vpop.xlane.xlu0 %3215
      %vm3217 = vcmp.eq.f32.partialorder %v3214, %v3216
      %v3218 = vsel %vm3217, %v3213, inf
      %3219 = vmin.xlane.f32.xlu0 %v3218
      %v3220 = vpop.xlane.xlu0 %3219
      %v3221 = vcvt.f32.s32 %v3220
      %v3222 = vcvt.f32.s32 %v3216
      %v3223 = vshll.u32 %v3222, 16
      %v3224 = vadd.s32 %v3223, %v3221
      %v3225 = vsel %vm638, %v3193, 2147483647
      %v3226 = vand.u32 %v3225, 65535
      %v3227 = vshra.s32 %v3225, 16
      %v3228 = vcvt.s32.f32 %v3226
      %v3229 = vcvt.s32.f32 %v3227
      %3230 = vmin.xlane.f32.xlu0 %v3229
      %v3231 = vpop.xlane.xlu0 %3230
      %vm3232 = vcmp.eq.f32.partialorder %v3229, %v3231
      %v3233 = vsel %vm3232, %v3228, inf
      %3234 = vmin.xlane.f32.xlu0 %v3233
      %v3235 = vpop.xlane.xlu0 %3234
      %v3236 = vcvt.f32.s32 %v3235
      %v3237 = vcvt.f32.s32 %v3231
      %v3238 = vshll.u32 %v3237, 16
      %v3239 = vadd.s32 %v3238, %v3236
      %v3240 = vsel %vm638, %v3194, 2147483647
      %v3241 = vand.u32 %v3240, 65535
      %v3242 = vshra.s32 %v3240, 16
      %v3243 = vcvt.s32.f32 %v3241
      %v3244 = vcvt.s32.f32 %v3242
      %3245 = vmin.xlane.f32.xlu0 %v3244
      %v3246 = vpop.xlane.xlu0 %3245
      %vm3247 = vcmp.eq.f32.partialorder %v3244, %v3246
      %v3248 = vsel %vm3247, %v3243, inf
      %3249 = vmin.xlane.f32.xlu0 %v3248
      %v3250 = vpop.xlane.xlu0 %3249
      %v3251 = vcvt.f32.s32 %v3250
      %v3252 = vcvt.f32.s32 %v3246
      %v3253 = vshll.u32 %v3252, 16
      %v3254 = vadd.s32 %v3253, %v3251
      %vm3255 = vcmp.eq.s32.totalorder %v953, %v3209
      %vm3256 = vcmp.eq.s32.totalorder %v953, %v3224
      %vm3257 = vcmp.eq.s32.totalorder %v953, %v3239
      %vm3258 = vcmp.eq.s32.totalorder %v953, %v3254
      %v3259 = vsel %vm3255, 1, 0
      %v3260 = vsel %vm3256, 1, 0
      %v3261 = vsel %vm3257, 1, 0
      %v3262 = vsel %vm3258, 1, 0
      %v3263 = vcvt.s32.f32 %v3259
      %v3264 = vcvt.s32.f32 %v3260
      %v3265 = vcvt.s32.f32 %v3261
      %v3266 = vcvt.s32.f32 %v3262
      %v3267 = vpack.c.bf16 %v3264, %v3263
      %v3268 = vpack.c.bf16 %v3266, %v3265
      %v3269 = vsel %vm3255, -inf, %v3171
      %v3270 = vsel %vm3256, -inf, %v3172
      %v3271 = vsel %vm3257, -inf, %v3173
      %v3272 = vsel %vm3258, -inf, %v3174
      %v3273 = vsel %vm638, %v3269, -inf
      %3274 = vmax.xlane.f32.xlu0 %v3273
      %v3275 = vpop.xlane.xlu0 %3274
      %v3276 = vsel %vm638, %v3270, -inf
      %3277 = vmax.xlane.f32.xlu0 %v3276
      %v3278 = vpop.xlane.xlu0 %3277
      %v3279 = vsel %vm638, %v3271, -inf
      %3280 = vmax.xlane.f32.xlu0 %v3279
      %v3281 = vpop.xlane.xlu0 %3280
      %v3282 = vsel %vm638, %v3272, -inf
      %3283 = vmax.xlane.f32.xlu0 %v3282
      %v3284 = vpop.xlane.xlu0 %3283
      %vm3285 = vcmp.ge.f32.partialorder %v3269, %v3275
      %vm3286 = vcmp.ge.f32.partialorder %v3270, %v3278
      %vm3287 = vcmp.ge.f32.partialorder %v3271, %v3281
      %vm3288 = vcmp.ge.f32.partialorder %v3272, %v3284
      %v3289 = vsel %vm3285, %v953, 32
      %v3290 = vsel %vm3286, %v953, 32
      %v3291 = vsel %vm3287, %v953, 32
      %v3292 = vsel %vm3288, %v953, 32
      %v3293 = vsel %vm638, %v3289, 2147483647
      %v3294 = vand.u32 %v3293, 65535
      %v3295 = vshra.s32 %v3293, 16
      %v3296 = vcvt.s32.f32 %v3294
      %v3297 = vcvt.s32.f32 %v3295
      %3298 = vmin.xlane.f32.xlu0 %v3297
      %v3299 = vpop.xlane.xlu0 %3298
      %vm3300 = vcmp.eq.f32.partialorder %v3297, %v3299
      %v3301 = vsel %vm3300, %v3296, inf
      %3302 = vmin.xlane.f32.xlu0 %v3301
      %v3303 = vpop.xlane.xlu0 %3302
      %v3304 = vcvt.f32.s32 %v3303
      %v3305 = vcvt.f32.s32 %v3299
      %v3306 = vshll.u32 %v3305, 16
      %v3307 = vadd.s32 %v3306, %v3304
      %v3308 = vsel %vm638, %v3290, 2147483647
      %v3309 = vand.u32 %v3308, 65535
      %v3310 = vshra.s32 %v3308, 16
      %v3311 = vcvt.s32.f32 %v3309
      %v3312 = vcvt.s32.f32 %v3310
      %3313 = vmin.xlane.f32.xlu0 %v3312
      %v3314 = vpop.xlane.xlu0 %3313
      %vm3315 = vcmp.eq.f32.partialorder %v3312, %v3314
      %v3316 = vsel %vm3315, %v3311, inf
      %3317 = vmin.xlane.f32.xlu0 %v3316
      %v3318 = vpop.xlane.xlu0 %3317
      %v3319 = vcvt.f32.s32 %v3318
      %v3320 = vcvt.f32.s32 %v3314
      %v3321 = vshll.u32 %v3320, 16
      %v3322 = vadd.s32 %v3321, %v3319
      %v3323 = vsel %vm638, %v3291, 2147483647
      %v3324 = vand.u32 %v3323, 65535
      %v3325 = vshra.s32 %v3323, 16
      %v3326 = vcvt.s32.f32 %v3324
      %v3327 = vcvt.s32.f32 %v3325
      %3328 = vmin.xlane.f32.xlu0 %v3327
      %v3329 = vpop.xlane.xlu0 %3328
      %vm3330 = vcmp.eq.f32.partialorder %v3327, %v3329
      %v3331 = vsel %vm3330, %v3326, inf
      %3332 = vmin.xlane.f32.xlu0 %v3331
      %v3333 = vpop.xlane.xlu0 %3332
      %v3334 = vcvt.f32.s32 %v3333
      %v3335 = vcvt.f32.s32 %v3329
      %v3336 = vshll.u32 %v3335, 16
      %v3337 = vadd.s32 %v3336, %v3334
      %v3338 = vsel %vm638, %v3292, 2147483647
      %v3339 = vand.u32 %v3338, 65535
      %v3340 = vshra.s32 %v3338, 16
      %v3341 = vcvt.s32.f32 %v3339
      %v3342 = vcvt.s32.f32 %v3340
      %3343 = vmin.xlane.f32.xlu0 %v3342
      %v3344 = vpop.xlane.xlu0 %3343
      %vm3345 = vcmp.eq.f32.partialorder %v3342, %v3344
      %v3346 = vsel %vm3345, %v3341, inf
      %3347 = vmin.xlane.f32.xlu0 %v3346
      %v3348 = vpop.xlane.xlu0 %3347
      %v3349 = vcvt.f32.s32 %v3348
      %v3350 = vcvt.f32.s32 %v3344
      %v3351 = vshll.u32 %v3350, 16
      %v3352 = vadd.s32 %v3351, %v3349
      %vm3353 = vcmp.eq.s32.totalorder %v953, %v3307
      %vm3354 = vcmp.eq.s32.totalorder %v953, %v3322
      %vm3355 = vcmp.eq.s32.totalorder %v953, %v3337
      %vm3356 = vcmp.eq.s32.totalorder %v953, %v3352
      %v3357 = vsel %vm3353, 1, 0
      %v3358 = vsel %vm3354, 1, 0
      %v3359 = vsel %vm3355, 1, 0
      %v3360 = vsel %vm3356, 1, 0
      %v3361 = vcvt.s32.f32 %v3357
      %v3362 = vcvt.s32.f32 %v3358
      %v3363 = vcvt.s32.f32 %v3359
      %v3364 = vcvt.s32.f32 %v3360
      %v3365 = vpack.c.bf16 %v3362, %v3361
      %v3366 = vpack.c.bf16 %v3364, %v3363
      %v3367 = vsel %vm3353, -inf, %v3269
      %v3368 = vsel %vm3354, -inf, %v3270
      %v3369 = vsel %vm3355, -inf, %v3271
      %v3370 = vsel %vm3356, -inf, %v3272
      %v3371 = vsel %vm638, %v3367, -inf
      %3372 = vmax.xlane.f32.xlu0 %v3371
      %v3373 = vpop.xlane.xlu0 %3372
      %v3374 = vsel %vm638, %v3368, -inf
      %3375 = vmax.xlane.f32.xlu0 %v3374
      %v3376 = vpop.xlane.xlu0 %3375
      %v3377 = vsel %vm638, %v3369, -inf
      %3378 = vmax.xlane.f32.xlu0 %v3377
      %v3379 = vpop.xlane.xlu0 %3378
      %v3380 = vsel %vm638, %v3370, -inf
      %3381 = vmax.xlane.f32.xlu0 %v3380
      %v3382 = vpop.xlane.xlu0 %3381
      %vm3383 = vcmp.ge.f32.partialorder %v3367, %v3373
      %vm3384 = vcmp.ge.f32.partialorder %v3368, %v3376
      %vm3385 = vcmp.ge.f32.partialorder %v3369, %v3379
      %vm3386 = vcmp.ge.f32.partialorder %v3370, %v3382
      %v3387 = vsel %vm3383, %v953, 32
      %v3388 = vsel %vm3384, %v953, 32
      %v3389 = vsel %vm3385, %v953, 32
      %v3390 = vsel %vm3386, %v953, 32
      %v3391 = vsel %vm638, %v3387, 2147483647
      %v3392 = vand.u32 %v3391, 65535
      %v3393 = vshra.s32 %v3391, 16
      %v3394 = vcvt.s32.f32 %v3392
      %v3395 = vcvt.s32.f32 %v3393
      %3396 = vmin.xlane.f32.xlu0 %v3395
      %v3397 = vpop.xlane.xlu0 %3396
      %vm3398 = vcmp.eq.f32.partialorder %v3395, %v3397
      %v3399 = vsel %vm3398, %v3394, inf
      %3400 = vmin.xlane.f32.xlu0 %v3399
      %v3401 = vpop.xlane.xlu0 %3400
      %v3402 = vcvt.f32.s32 %v3401
      %v3403 = vcvt.f32.s32 %v3397
      %v3404 = vshll.u32 %v3403, 16
      %v3405 = vadd.s32 %v3404, %v3402
      %v3406 = vsel %vm638, %v3388, 2147483647
      %v3407 = vand.u32 %v3406, 65535
      %v3408 = vshra.s32 %v3406, 16
      %v3409 = vcvt.s32.f32 %v3407
      %v3410 = vcvt.s32.f32 %v3408
      %3411 = vmin.xlane.f32.xlu0 %v3410
      %v3412 = vpop.xlane.xlu0 %3411
      %vm3413 = vcmp.eq.f32.partialorder %v3410, %v3412
      %v3414 = vsel %vm3413, %v3409, inf
      %3415 = vmin.xlane.f32.xlu0 %v3414
      %v3416 = vpop.xlane.xlu0 %3415
      %v3417 = vcvt.f32.s32 %v3416
      %v3418 = vcvt.f32.s32 %v3412
      %v3419 = vshll.u32 %v3418, 16
      %v3420 = vadd.s32 %v3419, %v3417
      %v3421 = vsel %vm638, %v3389, 2147483647
      %v3422 = vand.u32 %v3421, 65535
      %v3423 = vshra.s32 %v3421, 16
      %v3424 = vcvt.s32.f32 %v3422
      %v3425 = vcvt.s32.f32 %v3423
      %3426 = vmin.xlane.f32.xlu0 %v3425
      %v3427 = vpop.xlane.xlu0 %3426
      %vm3428 = vcmp.eq.f32.partialorder %v3425, %v3427
      %v3429 = vsel %vm3428, %v3424, inf
      %3430 = vmin.xlane.f32.xlu0 %v3429
      %v3431 = vpop.xlane.xlu0 %3430
      %v3432 = vcvt.f32.s32 %v3431
      %v3433 = vcvt.f32.s32 %v3427
      %v3434 = vshll.u32 %v3433, 16
      %v3435 = vadd.s32 %v3434, %v3432
      %v3436 = vsel %vm638, %v3390, 2147483647
      %v3437 = vand.u32 %v3436, 65535
      %v3438 = vshra.s32 %v3436, 16
      %v3439 = vcvt.s32.f32 %v3437
      %v3440 = vcvt.s32.f32 %v3438
      %3441 = vmin.xlane.f32.xlu0 %v3440
      %v3442 = vpop.xlane.xlu0 %3441
      %vm3443 = vcmp.eq.f32.partialorder %v3440, %v3442
      %v3444 = vsel %vm3443, %v3439, inf
      %3445 = vmin.xlane.f32.xlu0 %v3444
      %v3446 = vpop.xlane.xlu0 %3445
      %v3447 = vcvt.f32.s32 %v3446
      %v3448 = vcvt.f32.s32 %v3442
      %v3449 = vshll.u32 %v3448, 16
      %v3450 = vadd.s32 %v3449, %v3447
      %vm3451 = vcmp.eq.s32.totalorder %v953, %v3405
      %vm3452 = vcmp.eq.s32.totalorder %v953, %v3420
      %vm3453 = vcmp.eq.s32.totalorder %v953, %v3435
      %vm3454 = vcmp.eq.s32.totalorder %v953, %v3450
      %v3455 = vsel %vm3451, 1, 0
      %v3456 = vsel %vm3452, 1, 0
      %v3457 = vsel %vm3453, 1, 0
      %v3458 = vsel %vm3454, 1, 0
      %v3459 = vcvt.s32.f32 %v3455
      %v3460 = vcvt.s32.f32 %v3456
      %v3461 = vcvt.s32.f32 %v3457
      %v3462 = vcvt.s32.f32 %v3458
      %v3463 = vpack.c.bf16 %v3460, %v3459
      %v3464 = vpack.c.bf16 %v3462, %v3461
      %v3465 = vsel %vm3451, -inf, %v3367
      %v3466 = vsel %vm3452, -inf, %v3368
      %v3467 = vsel %vm3453, -inf, %v3369
      %v3468 = vsel %vm3454, -inf, %v3370
      %v3469 = vsel %vm638, %v3465, -inf
      %3470 = vmax.xlane.f32.xlu0 %v3469
      %v3471 = vpop.xlane.xlu0 %3470
      %v3472 = vsel %vm638, %v3466, -inf
      %3473 = vmax.xlane.f32.xlu0 %v3472
      %v3474 = vpop.xlane.xlu0 %3473
      %v3475 = vsel %vm638, %v3467, -inf
      %3476 = vmax.xlane.f32.xlu0 %v3475
      %v3477 = vpop.xlane.xlu0 %3476
      %v3478 = vsel %vm638, %v3468, -inf
      %3479 = vmax.xlane.f32.xlu0 %v3478
      %v3480 = vpop.xlane.xlu0 %3479
      %vm3481 = vcmp.ge.f32.partialorder %v3465, %v3471
      %vm3482 = vcmp.ge.f32.partialorder %v3466, %v3474
      %vm3483 = vcmp.ge.f32.partialorder %v3467, %v3477
      %vm3484 = vcmp.ge.f32.partialorder %v3468, %v3480
      %v3485 = vsel %vm3481, %v953, 32
      %v3486 = vsel %vm3482, %v953, 32
      %v3487 = vsel %vm3483, %v953, 32
      %v3488 = vsel %vm3484, %v953, 32
      %v3489 = vsel %vm638, %v3485, 2147483647
      %v3490 = vand.u32 %v3489, 65535
      %v3491 = vshra.s32 %v3489, 16
      %v3492 = vcvt.s32.f32 %v3490
      %v3493 = vcvt.s32.f32 %v3491
      %3494 = vmin.xlane.f32.xlu0 %v3493
      %v3495 = vpop.xlane.xlu0 %3494
      %vm3496 = vcmp.eq.f32.partialorder %v3493, %v3495
      %v3497 = vsel %vm3496, %v3492, inf
      %3498 = vmin.xlane.f32.xlu0 %v3497
      %v3499 = vpop.xlane.xlu0 %3498
      %v3500 = vcvt.f32.s32 %v3499
      %v3501 = vcvt.f32.s32 %v3495
      %v3502 = vshll.u32 %v3501, 16
      %v3503 = vadd.s32 %v3502, %v3500
      %v3504 = vsel %vm638, %v3486, 2147483647
      %v3505 = vand.u32 %v3504, 65535
      %v3506 = vshra.s32 %v3504, 16
      %v3507 = vcvt.s32.f32 %v3505
      %v3508 = vcvt.s32.f32 %v3506
      %3509 = vmin.xlane.f32.xlu0 %v3508
      %v3510 = vpop.xlane.xlu0 %3509
      %vm3511 = vcmp.eq.f32.partialorder %v3508, %v3510
      %v3512 = vsel %vm3511, %v3507, inf
      %3513 = vmin.xlane.f32.xlu0 %v3512
      %v3514 = vpop.xlane.xlu0 %3513
      %v3515 = vcvt.f32.s32 %v3514
      %v3516 = vcvt.f32.s32 %v3510
      %v3517 = vshll.u32 %v3516, 16
      %v3518 = vadd.s32 %v3517, %v3515
      %v3519 = vsel %vm638, %v3487, 2147483647
      %v3520 = vand.u32 %v3519, 65535
      %v3521 = vshra.s32 %v3519, 16
      %v3522 = vcvt.s32.f32 %v3520
      %v3523 = vcvt.s32.f32 %v3521
      %3524 = vmin.xlane.f32.xlu0 %v3523
      %v3525 = vpop.xlane.xlu0 %3524
      %vm3526 = vcmp.eq.f32.partialorder %v3523, %v3525
      %v3527 = vsel %vm3526, %v3522, inf
      %3528 = vmin.xlane.f32.xlu0 %v3527
      %v3529 = vpop.xlane.xlu0 %3528
      %v3530 = vcvt.f32.s32 %v3529
      %v3531 = vcvt.f32.s32 %v3525
      %v3532 = vshll.u32 %v3531, 16
      %v3533 = vadd.s32 %v3532, %v3530
      %v3534 = vsel %vm638, %v3488, 2147483647
      %v3535 = vand.u32 %v3534, 65535
      %v3536 = vshra.s32 %v3534, 16
      %v3537 = vcvt.s32.f32 %v3535
      %v3538 = vcvt.s32.f32 %v3536
      %3539 = vmin.xlane.f32.xlu0 %v3538
      %v3540 = vpop.xlane.xlu0 %3539
      %vm3541 = vcmp.eq.f32.partialorder %v3538, %v3540
      %v3542 = vsel %vm3541, %v3537, inf
      %3543 = vmin.xlane.f32.xlu0 %v3542
      %v3544 = vpop.xlane.xlu0 %3543
      %v3545 = vcvt.f32.s32 %v3544
      %v3546 = vcvt.f32.s32 %v3540
      %v3547 = vshll.u32 %v3546, 16
      %v3548 = vadd.s32 %v3547, %v3545
      %vm3549 = vcmp.eq.s32.totalorder %v953, %v3503
      %vm3550 = vcmp.eq.s32.totalorder %v953, %v3518
      %vm3551 = vcmp.eq.s32.totalorder %v953, %v3533
      %vm3552 = vcmp.eq.s32.totalorder %v953, %v3548
      %v3553 = vsel %vm3549, 1, 0
      %v3554 = vsel %vm3550, 1, 0
      %v3555 = vsel %vm3551, 1, 0
      %v3556 = vsel %vm3552, 1, 0
      %v3557 = vcvt.s32.f32 %v3553
      %v3558 = vcvt.s32.f32 %v3554
      %v3559 = vcvt.s32.f32 %v3555
      %v3560 = vcvt.s32.f32 %v3556
      %v3561 = vpack.c.bf16 %v3558, %v3557
      %v3562 = vpack.c.bf16 %v3560, %v3559
      %v3563 = vpack.c.bf16 %v2462, %v2461
      %v3564 = vpack.c.bf16 %v2464, %v2463
      %s3565 = scalar_lea.vmem %s8, 16
      %v3566 = vld [vmem:[%s3565] sm:$0xf]
      %v3567 = vld [vmem:[%s3565 + $0x4] sm:$0xf]
      %v3568 = vld [vmem:[%s3565 + $0x8] sm:$0xf]
      %v3569 = vld [vmem:[%s3565 + $0xc] sm:$0xf]
      %v3574 = vunpack.c.l.b16 %v3566
      %v3575 = vunpack.c.l.b16 %v3567
      %v3576 = vunpack.c.l.b16 %v3568
      %v3577 = vunpack.c.l.b16 %v3569
      %v3578 = vpack.c.b16 %v3575, %v3574
      %v3579 = vpack.c.b16 %v3577, %v3576
      %v3583 = vsel %vm638, %v3563, 0
      %v3586 = vsel %vm638, %v3564, 0
      %3588 = vmatprep.subr.bf16.mxu0 0
      %3589 = vmatpush1.bf16.msra.mxu0 %v3578
      %3590 = vmatprep.subr.bf16.mxu0 0
      %3591 = vmatpush1.bf16.msra.mxu0 %v3579
      %3592 = vmatprep.subr.bf16.mxu0 0
      %3593 = vmatpush1.bf16.msra.mxu0 0
      %3594 = vmatprep.subr.bf16.mxu0 0
      %3595 = vmatpush1.bf16.msra.mxu0 0
      %3596 = vmatprep.subr.bf16.mxu0 0
      %3597 = vmatpush1.bf16.msra.mxu0 0
      %3598 = vmatprep.subr.bf16.mxu0 0
      %3599 = vmatpush1.bf16.msra.mxu0 0
      %3600 = vmatprep.subr.bf16.mxu0 0
      %3601 = vmatpush1.bf16.msra.mxu0 0
      %3602 = vmatprep.subr.bf16.mxu0 0
      %3603 = vmatpush1.bf16.msra.mxu0 0
      %3604 = vmatprep.subr.bf16.mxu0 0
      %3605 = vmatpush1.bf16.msra.mxu0 0
      %3606 = vmatprep.subr.bf16.mxu0 0
      %3607 = vmatpush1.bf16.msra.mxu0 0
      %3608 = vmatprep.subr.bf16.mxu0 0
      %3609 = vmatpush1.bf16.msra.mxu0 0
      %3610 = vmatprep.subr.bf16.mxu0 0
      %3611 = vmatpush1.bf16.msra.mxu0 0
      %3612 = vmatprep.subr.bf16.mxu0 0
      %3613 = vmatpush1.bf16.msra.mxu0 0
      %3614 = vmatprep.subr.bf16.mxu0 0
      %3615 = vmatpush1.bf16.msra.mxu0 0
      %3616 = vmatprep.subr.bf16.mxu0 0
      %3617 = vmatpush1.bf16.msra.mxu0 0
      %3618 = vmatprep.subr.bf16.mxu0 0
      %3619 = vmatpush1.bf16.msra.mxu0 0
      %3620 = vmatprep.mubr.bf16.mxu0 0
      %3621 = vmatmul.mubr.bf16.gmra.mrb[0].mxu0 %v3583
      %v3622 = vpop.f32.mrb[0].mxu0
      %v3623 = vadd.f32 0.0, %v3622
      %v3624 = vpop.f32.mrb[0].mxu0
      %v3625 = vpop.f32.mrb[0].mxu0
      %v3626 = vadd.f32 0.0, %v3625
      %v3627 = vpop.f32.mrb[0].mxu0
      %3628 = vmatprep.mubr.bf16.mxu0 0
      %3629 = vmatmul.mubr.bf16.gmra.mrb[0].mxu0 %v3586
      %v3630 = vpop.f32.mrb[0].mxu0
      %v3631 = vadd.f32 0.0, %v3630
      %v3632 = vpop.f32.mrb[0].mxu0
      %v3633 = vpop.f32.mrb[0].mxu0
      %v3634 = vadd.f32 0.0, %v3633
      %v3635 = vpop.f32.mrb[0].mxu0
      %3636 = vdwg.mxu0
      %v3637 = vpack.c.bf16 %v3626, %v3623
      %v3638 = vpack.c.bf16 %v3634, %v3631
      %s3639 = scalar_lea.vmem %s9, 1
      %v3640 = vld [vmem:[%s3639] sm:$0x1]
      %v3642 = vlaneseq
      %v3643 = vshrl.u32 %v3642, 7
      %v3644 = vsub.s32 0, %v3643
      %v3645 = vrot.slane %v3640, %v3644
      %3646 = vrot.lane.b32.xlu0 %v3645, 32
      %v3647 = vpop.permute.xlu0 %3646
      %v3649 = vadd.f32 %v3623, %v3647
      %v3650 = vadd.f32 %v3626, %v3647
      %v3651 = vadd.f32 %v3631, %v3647
      %v3652 = vadd.f32 %v3634, %v3647
      %v3654 = vsel %vm638, %v2679, 0
      %v3657 = vsel %vm638, %v2680, 0
      %v3660 = vsel %vm638, %v2777, 0
      %v3663 = vsel %vm638, %v2778, 0
      %v3666 = vsel %vm638, %v2875, 0
      %v3669 = vsel %vm638, %v2876, 0
      %v3672 = vsel %vm638, %v2973, 0
      %v3675 = vsel %vm638, %v2974, 0
      %v3678 = vsel %vm638, %v3071, 0
      %v3681 = vsel %vm638, %v3072, 0
      %v3684 = vsel %vm638, %v3169, 0
      %v3687 = vsel %vm638, %v3170, 0
      %v3690 = vsel %vm638, %v3267, 0
      %v3693 = vsel %vm638, %v3268, 0
      %v3696 = vsel %vm638, %v3365, 0
      %v3699 = vsel %vm638, %v3366, 0
      %v3702 = vsel %vm638, %v3463, 0
      %v3705 = vsel %vm638, %v3464, 0
      %v3708 = vsel %vm638, %v3561, 0
      %v3711 = vsel %vm638, %v3562, 0
      %3713 = vmatprep.subr.bf16.mxu0 0
      %3714 = vmatpush1.bf16.msra.mxu0 %v3637
      %3715 = vmatprep.subr.bf16.mxu0 0
      %3716 = vmatpush1.bf16.msra.mxu0 %v3638
      %3717 = vmatprep.subr.bf16.mxu0 0
      %3718 = vmatpush1.bf16.msra.mxu0 0
      %3719 = vmatprep.subr.bf16.mxu0 0
      %3720 = vmatpush1.bf16.msra.mxu0 0
      %3721 = vmatprep.subr.bf16.mxu0 0
      %3722 = vmatpush1.bf16.msra.mxu0 0
      %3723 = vmatprep.subr.bf16.mxu0 0
      %3724 = vmatpush1.bf16.msra.mxu0 0
      %3725 = vmatprep.subr.bf16.mxu0 0
      %3726 = vmatpush1.bf16.msra.mxu0 0
      %3727 = vmatprep.subr.bf16.mxu0 0
      %3728 = vmatpush1.bf16.msra.mxu0 0
      %3729 = vmatprep.subr.bf16.mxu0 0
      %3730 = vmatpush1.bf16.msra.mxu0 0
      %3731 = vmatprep.subr.bf16.mxu0 0
      %3732 = vmatpush1.bf16.msra.mxu0 0
      %3733 = vmatprep.subr.bf16.mxu0 0
      %3734 = vmatpush1.bf16.msra.mxu0 0
      %3735 = vmatprep.subr.bf16.mxu0 0
      %3736 = vmatpush1.bf16.msra.mxu0 0
      %3737 = vmatprep.subr.bf16.mxu0 0
      %3738 = vmatpush1.bf16.msra.mxu0 0
      %3739 = vmatprep.subr.bf16.mxu0 0
      %3740 = vmatpush1.bf16.msra.mxu0 0
      %3741 = vmatprep.subr.bf16.mxu0 0
      %3742 = vmatpush1.bf16.msra.mxu0 0
      %3743 = vmatprep.subr.bf16.mxu0 0
      %3744 = vmatpush1.bf16.msra.mxu0 0
      %3745 = vmatprep.mubr.bf16.mxu0 0
      %3746 = vmatmul.mubr.bf16.gmra.mrb[0].mxu0 %v3654
      %v3747 = vpop.f32.mrb[0].mxu0
      %v3748 = vadd.f32 0.0, %v3747
      %v3749 = vpop.f32.mrb[0].mxu0
      %v3750 = vpop.f32.mrb[0].mxu0
      %v3751 = vadd.f32 0.0, %v3750
      %v3752 = vpop.f32.mrb[0].mxu0
      %3753 = vmatprep.mubr.bf16.mxu0 0
      %3754 = vmatmul.mubr.bf16.gmra.mrb[0].mxu0 %v3657
      %v3755 = vpop.f32.mrb[0].mxu0
      %v3756 = vadd.f32 0.0, %v3755
      %v3757 = vpop.f32.mrb[0].mxu0
      %v3758 = vpop.f32.mrb[0].mxu0
      %v3759 = vadd.f32 0.0, %v3758
      %v3760 = vpop.f32.mrb[0].mxu0
      %3761 = vmatprep.mubr.bf16.mxu0 0
      %3762 = vmatmul.mubr.bf16.gmra.mrb[0].mxu0 %v3660
      %v3763 = vpop.f32.mrb[0].mxu0
      %v3764 = vadd.f32 0.0, %v3763
      %v3765 = vpop.f32.mrb[0].mxu0
      %v3766 = vpop.f32.mrb[0].mxu0
      %v3767 = vadd.f32 0.0, %v3766
      %v3768 = vpop.f32.mrb[0].mxu0
      %3769 = vmatprep.mubr.bf16.mxu0 0
      %3770 = vmatmul.mubr.bf16.gmra.mrb[0].mxu0 %v3663
      %v3771 = vpop.f32.mrb[0].mxu0
      %v3772 = vadd.f32 0.0, %v3771
      %v3773 = vpop.f32.mrb[0].mxu0
      %v3774 = vpop.f32.mrb[0].mxu0
      %v3775 = vadd.f32 0.0, %v3774
      %v3776 = vpop.f32.mrb[0].mxu0
      %3777 = vmatprep.mubr.bf16.mxu0 0
      %3778 = vmatmul.mubr.bf16.gmra.mrb[0].mxu0 %v3666
      %v3779 = vpop.f32.mrb[0].mxu0
      %v3780 = vadd.f32 0.0, %v3779
      %v3781 = vpop.f32.mrb[0].mxu0
      %v3782 = vpop.f32.mrb[0].mxu0
      %v3783 = vadd.f32 0.0, %v3782
      %v3784 = vpop.f32.mrb[0].mxu0
      %3785 = vmatprep.mubr.bf16.mxu0 0
      %3786 = vmatmul.mubr.bf16.gmra.mrb[0].mxu0 %v3669
      %v3787 = vpop.f32.mrb[0].mxu0
      %v3788 = vadd.f32 0.0, %v3787
      %v3789 = vpop.f32.mrb[0].mxu0
      %v3790 = vpop.f32.mrb[0].mxu0
      %v3791 = vadd.f32 0.0, %v3790
      %v3792 = vpop.f32.mrb[0].mxu0
      %3793 = vmatprep.mubr.bf16.mxu0 0
      %3794 = vmatmul.mubr.bf16.gmra.mrb[0].mxu0 %v3672
      %v3795 = vpop.f32.mrb[0].mxu0
      %v3796 = vadd.f32 0.0, %v3795
      %v3797 = vpop.f32.mrb[0].mxu0
      %v3798 = vpop.f32.mrb[0].mxu0
      %v3799 = vadd.f32 0.0, %v3798
      %v3800 = vpop.f32.mrb[0].mxu0
      %3801 = vmatprep.mubr.bf16.mxu0 0
      %3802 = vmatmul.mubr.bf16.gmra.mrb[0].mxu0 %v3675
      %v3803 = vpop.f32.mrb[0].mxu0
      %v3804 = vadd.f32 0.0, %v3803
      %v3805 = vpop.f32.mrb[0].mxu0
      %v3806 = vpop.f32.mrb[0].mxu0
      %v3807 = vadd.f32 0.0, %v3806
      %v3808 = vpop.f32.mrb[0].mxu0
      %3809 = vmatprep.mubr.bf16.mxu0 0
      %3810 = vmatmul.mubr.bf16.gmra.mrb[0].mxu0 %v3678
      %v3811 = vpop.f32.mrb[0].mxu0
      %v3812 = vadd.f32 0.0, %v3811
      %v3813 = vpop.f32.mrb[0].mxu0
      %v3814 = vpop.f32.mrb[0].mxu0
      %v3815 = vadd.f32 0.0, %v3814
      %v3816 = vpop.f32.mrb[0].mxu0
      %3817 = vmatprep.mubr.bf16.mxu0 0
      %3818 = vmatmul.mubr.bf16.gmra.mrb[0].mxu0 %v3681
      %v3819 = vpop.f32.mrb[0].mxu0
      %v3820 = vadd.f32 0.0, %v3819
      %v3821 = vpop.f32.mrb[0].mxu0
      %v3822 = vpop.f32.mrb[0].mxu0
      %v3823 = vadd.f32 0.0, %v3822
      %v3824 = vpop.f32.mrb[0].mxu0
      %3825 = vmatprep.mubr.bf16.mxu0 0
      %3826 = vmatmul.mubr.bf16.gmra.mrb[0].mxu0 %v3684
      %v3827 = vpop.f32.mrb[0].mxu0
      %v3828 = vadd.f32 0.0, %v3827
      %v3829 = vpop.f32.mrb[0].mxu0
      %v3830 = vpop.f32.mrb[0].mxu0
      %v3831 = vadd.f32 0.0, %v3830
      %v3832 = vpop.f32.mrb[0].mxu0
      %3833 = vmatprep.mubr.bf16.mxu0 0
      %3834 = vmatmul.mubr.bf16.gmra.mrb[0].mxu0 %v3687
      %v3835 = vpop.f32.mrb[0].mxu0
      %v3836 = vadd.f32 0.0, %v3835
      %v3837 = vpop.f32.mrb[0].mxu0
      %v3838 = vpop.f32.mrb[0].mxu0
      %v3839 = vadd.f32 0.0, %v3838
      %v3840 = vpop.f32.mrb[0].mxu0
      %3841 = vmatprep.mubr.bf16.mxu0 0
      %3842 = vmatmul.mubr.bf16.gmra.mrb[0].mxu0 %v3690
      %v3843 = vpop.f32.mrb[0].mxu0
      %v3844 = vadd.f32 0.0, %v3843
      %v3845 = vpop.f32.mrb[0].mxu0
      %v3846 = vpop.f32.mrb[0].mxu0
      %v3847 = vadd.f32 0.0, %v3846
      %v3848 = vpop.f32.mrb[0].mxu0
      %3849 = vmatprep.mubr.bf16.mxu0 0
      %3850 = vmatmul.mubr.bf16.gmra.mrb[0].mxu0 %v3693
      %v3851 = vpop.f32.mrb[0].mxu0
      %v3852 = vadd.f32 0.0, %v3851
      %v3853 = vpop.f32.mrb[0].mxu0
      %v3854 = vpop.f32.mrb[0].mxu0
      %v3855 = vadd.f32 0.0, %v3854
      %v3856 = vpop.f32.mrb[0].mxu0
      %3857 = vmatprep.mubr.bf16.mxu0 0
      %3858 = vmatmul.mubr.bf16.gmra.mrb[0].mxu0 %v3696
      %v3859 = vpop.f32.mrb[0].mxu0
      %v3860 = vadd.f32 0.0, %v3859
      %v3861 = vpop.f32.mrb[0].mxu0
      %v3862 = vpop.f32.mrb[0].mxu0
      %v3863 = vadd.f32 0.0, %v3862
      %v3864 = vpop.f32.mrb[0].mxu0
      %3865 = vmatprep.mubr.bf16.mxu0 0
      %3866 = vmatmul.mubr.bf16.gmra.mrb[0].mxu0 %v3699
      %v3867 = vpop.f32.mrb[0].mxu0
      %v3868 = vadd.f32 0.0, %v3867
      %v3869 = vpop.f32.mrb[0].mxu0
      %v3870 = vpop.f32.mrb[0].mxu0
      %v3871 = vadd.f32 0.0, %v3870
      %v3872 = vpop.f32.mrb[0].mxu0
      %3873 = vmatprep.mubr.bf16.mxu0 0
      %3874 = vmatmul.mubr.bf16.gmra.mrb[0].mxu0 %v3702
      %v3875 = vpop.f32.mrb[0].mxu0
      %v3876 = vadd.f32 0.0, %v3875
      %v3877 = vpop.f32.mrb[0].mxu0
      %v3878 = vpop.f32.mrb[0].mxu0
      %v3879 = vadd.f32 0.0, %v3878
      %v3880 = vpop.f32.mrb[0].mxu0
      %3881 = vmatprep.mubr.bf16.mxu0 0
      %3882 = vmatmul.mubr.bf16.gmra.mrb[0].mxu0 %v3705
      %v3883 = vpop.f32.mrb[0].mxu0
      %v3884 = vadd.f32 0.0, %v3883
      %v3885 = vpop.f32.mrb[0].mxu0
      %v3886 = vpop.f32.mrb[0].mxu0
      %v3887 = vadd.f32 0.0, %v3886
      %v3888 = vpop.f32.mrb[0].mxu0
      %3889 = vmatprep.mubr.bf16.mxu0 0
      %3890 = vmatmul.mubr.bf16.gmra.mrb[0].mxu0 %v3708
      %v3891 = vpop.f32.mrb[0].mxu0
      %v3892 = vadd.f32 0.0, %v3891
      %v3893 = vpop.f32.mrb[0].mxu0
      %v3894 = vpop.f32.mrb[0].mxu0
      %v3895 = vadd.f32 0.0, %v3894
      %v3896 = vpop.f32.mrb[0].mxu0
      %3897 = vmatprep.mubr.bf16.mxu0 0
      %3898 = vmatmul.mubr.bf16.gmra.mrb[0].mxu0 %v3711
      %v3899 = vpop.f32.mrb[0].mxu0
      %v3900 = vadd.f32 0.0, %v3899
      %v3901 = vpop.f32.mrb[0].mxu0
      %v3902 = vpop.f32.mrb[0].mxu0
      %v3903 = vadd.f32 0.0, %v3902
      %v3904 = vpop.f32.mrb[0].mxu0
      %3905 = vdwg.mxu0
      %v3906 = vmax.f32 %v3748, %v3764
      %v3907 = vmax.f32 %v3751, %v3767
      %v3908 = vmax.f32 %v3756, %v3772
      %v3909 = vmax.f32 %v3759, %v3775
      %v3910 = vmax.f32 %v3906, %v3780
      %v3911 = vmax.f32 %v3907, %v3783
      %v3912 = vmax.f32 %v3908, %v3788
      %v3913 = vmax.f32 %v3909, %v3791
      %v3914 = vmax.f32 %v3910, %v3796
      %v3915 = vmax.f32 %v3911, %v3799
      %v3916 = vmax.f32 %v3912, %v3804
      %v3917 = vmax.f32 %v3913, %v3807
      %v3918 = vmax.f32 %v3914, %v3812
      %v3919 = vmax.f32 %v3915, %v3815
      %v3920 = vmax.f32 %v3916, %v3820
      %v3921 = vmax.f32 %v3917, %v3823
      %v3922 = vmax.f32 %v3918, %v3828
      %v3923 = vmax.f32 %v3919, %v3831
      %v3924 = vmax.f32 %v3920, %v3836
      %v3925 = vmax.f32 %v3921, %v3839
      %v3926 = vmax.f32 %v3922, %v3844
      %v3927 = vmax.f32 %v3923, %v3847
      %v3928 = vmax.f32 %v3924, %v3852
      %v3929 = vmax.f32 %v3925, %v3855
      %v3930 = vmax.f32 %v3926, %v3860
      %v3931 = vmax.f32 %v3927, %v3863
      %v3932 = vmax.f32 %v3928, %v3868
      %v3933 = vmax.f32 %v3929, %v3871
      %v3934 = vmax.f32 %v3930, %v3876
      %v3935 = vmax.f32 %v3931, %v3879
      %v3936 = vmax.f32 %v3932, %v3884
      %v3937 = vmax.f32 %v3933, %v3887
      %v3938 = vmax.f32 %v3934, %v3892
      %v3939 = vmax.f32 %v3935, %v3895
      %v3940 = vmax.f32 %v3936, %v3900
      %v3941 = vmax.f32 %v3937, %v3903
      %3946 = vrot.lane.b32.xlu0 %v3649, 96
      %v3947 = vpop.permute.xlu0 %3946
      %3948 = vrot.lane.b32.xlu0 %v3650, 96
      %v3949 = vpop.permute.xlu0 %3948
      %3950 = vrot.lane.b32.xlu0 %v3651, 96
      %v3951 = vpop.permute.xlu0 %3950
      %3952 = vrot.lane.b32.xlu0 %v3652, 96
      %v3953 = vpop.permute.xlu0 %3952
      %v3958 = vadd.f32 %v3938, %v3947
      %v3959 = vadd.f32 %v3939, %v3949
      %v3960 = vadd.f32 %v3940, %v3951
      %v3961 = vadd.f32 %v3941, %v3953
      %vm3962 = vcmp.gt.f32.partialorder %v3958, 0.0
      %vm3963 = vcmp.gt.f32.partialorder %v3959, 0.0
      %vm3964 = vcmp.gt.f32.partialorder %v3960, 0.0
      %vm3965 = vcmp.gt.f32.partialorder %v3961, 0.0
      %v3966 = vmul.f32 %v3958, 0.2
      %v3967 = vmul.f32 %v3959, 0.2
      %v3968 = vmul.f32 %v3960, 0.2
      %v3969 = vmul.f32 %v3961, 0.2
      %v3970 = vsel %vm3962, %v3958, %v3966
      %v3971 = vsel %vm3963, %v3959, %v3967
      %v3972 = vsel %vm3964, %v3960, %v3968
      %v3973 = vsel %vm3965, %v3961, %v3969
      %v3975 = vsel %vm638, %v3970, 0
      %v3978 = vsel %vm638, %v3971, 0
      %v3981 = vsel %vm638, %v3972, 0
      %v3984 = vsel %vm638, %v3973, 0
      %3986 = vmatprep.subr.mxu0 0.0
      %3987 = vmatpush1.xpose.msra.mxu0 %v3975
      %3988 = vmatprep.subr.mxu0 0.0
      %3989 = vmatpush1.xpose.msra.mxu0 %v3978
      %3990 = vmatprep.subr.mxu0 0.0
      %3991 = vmatpush1.xpose.msra.mxu0 %v3981
      %3992 = vmatprep.subr.mxu0 0.0
      %3993 = vmatpush1.xpose.msra.mxu0 %v3984
      %3994 = vmatprep.subr.mxu0 0.0
      %3995 = vmatpush1.xpose.msra.mxu0 0.0
      %3996 = vmatprep.subr.mxu0 0.0
      %3997 = vmatpush1.xpose.msra.mxu0 0.0
      %3998 = vmatprep.subr.mxu0 0.0
      %3999 = vmatpush1.xpose.msra.mxu0 0.0
      %4000 = vmatprep.subr.mxu0 0.0
      %4001 = vmatpush1.xpose.msra.mxu0 0.0
      %4002 = vmatprep.subr.mxu0 0.0
      %4003 = vmatpush1.xpose.msra.mxu0 0.0
      %4004 = vmatprep.subr.mxu0 0.0
      %4005 = vmatpush1.xpose.msra.mxu0 0.0
      %4006 = vmatprep.subr.mxu0 0.0
      %4007 = vmatpush1.xpose.msra.mxu0 0.0
      %4008 = vmatprep.subr.mxu0 0.0
      %4009 = vmatpush1.xpose.msra.mxu0 0.0
      %4010 = vmatprep.subr.mxu0 0.0
      %4011 = vmatpush1.xpose.msra.mxu0 0.0
      %4012 = vmatprep.subr.mxu0 0.0
      %4013 = vmatpush1.xpose.msra.mxu0 0.0
      %4014 = vmatprep.subr.mxu0 0.0
      %4015 = vmatpush1.xpose.msra.mxu0 0.0
      %4016 = vmatprep.subr.mxu0 0.0
      %4017 = vmatpush1.xpose.msra.mxu0 0.0
      %4018 = vmatprep.subr.mxu0 0.0
      %4019 = vmatpush1.xpose.msra.mxu0 0.0
      %4020 = vmatprep.subr.mxu0 0.0
      %4021 = vmatpush1.xpose.msra.mxu0 0.0
      %4022 = vmatprep.subr.mxu0 0.0
      %4023 = vmatpush1.xpose.msra.mxu0 0.0
      %4024 = vmatprep.subr.mxu0 0.0
      %4025 = vmatpush1.xpose.msra.mxu0 0.0
      %4026 = vmatprep.subr.mxu0 0.0
      %4027 = vmatpush1.xpose.msra.mxu0 0.0
      %4028 = vmatprep.subr.mxu0 0.0
      %4029 = vmatpush1.xpose.msra.mxu0 0.0
      %4030 = vmatprep.subr.mxu0 0.0
      %4031 = vmatpush1.xpose.msra.mxu0 0.0
      %4032 = vmatprep.subr.mxu0 0.0
      %4033 = vmatpush1.xpose.msra.mxu0 0.0
      %4034 = vmatprep.subr.mxu0 0.0
      %4035 = vmatpush1.xpose.msra.mxu0 0.0
      %4036 = vmatprep.subr.mxu0 0.0
      %4037 = vmatpush1.xpose.msra.mxu0 0.0
      %4038 = vmatprep.subr.mxu0 0.0
      %4039 = vmatpush1.xpose.msra.mxu0 0.0
      %4040 = vmatprep.subr.mxu0 0.0
      %4041 = vmatpush1.xpose.msra.mxu0 0.0
      %4042 = vmatprep.subr.mxu0 0.0
      %4043 = vmatpush1.xpose.msra.mxu0 0.0
      %4044 = vmatprep.subr.mxu0 0.0
      %4045 = vmatpush1.xpose.msra.mxu0 0.0
      %4046 = vmatprep.subr.mxu0 0.0
      %4047 = vmatpush1.xpose.msra.mxu0 0.0
      %4048 = vmatprep.subr.mxu0 0.0
      %4049 = vmatpush1.xpose.msra.mxu0 0.0
      %4050 = vmatprep.mubr.f32.mxu0 0.0
      %4051 = vmatmul.mubr.f32.gmra.mrb[0].mxu0 %v3975
      %v4052 = vpop.f32.mrb[0].mxu0
      %v4053 = vadd.f32 0.0, %v4052
      %v4054 = vpop.f32.mrb[0].mxu0
      %4055 = vmatprep.mubr.f32.mxu0 0.0
      %4056 = vmatmul.mubr.f32.gmra.mrb[0].mxu0 %v3978
      %v4057 = vpop.f32.mrb[0].mxu0
      %v4058 = vadd.f32 0.0, %v4057
      %v4059 = vpop.f32.mrb[0].mxu0
      %4060 = vmatprep.mubr.f32.mxu0 0.0
      %4061 = vmatmul.mubr.f32.gmra.mrb[0].mxu0 %v3981
      %v4062 = vpop.f32.mrb[0].mxu0
      %v4063 = vadd.f32 0.0, %v4062
      %v4064 = vpop.f32.mrb[0].mxu0
      %4065 = vmatprep.mubr.f32.mxu0 0.0
      %4066 = vmatmul.mubr.f32.gmra.mrb[0].mxu0 %v3984
      %v4067 = vpop.f32.mrb[0].mxu0
      %v4068 = vadd.f32 0.0, %v4067
      %v4069 = vpop.f32.mrb[0].mxu0
      %4070 = vdwg.mxu0
      %v4071 = vsel %vm954, %v4053, 0.0
      %v4072 = vsel %vm955, %v4058, 0.0
      %v4073 = vsel %vm956, %v4063, 0.0
      %v4074 = vsel %vm957, %v4068, 0.0
      %v4075 = vsel %vm638, %v4071, 0.0
      %v4076 = vsel %vm638, %v4072, 0.0
      %v4077 = vadd.f32 %v4075, %v4076
      %v4078 = vsel %vm638, %v4073, 0.0
      %v4079 = vadd.f32 %v4077, %v4078
      %v4080 = vsel %vm638, %v4074, 0.0
      %v4081 = vadd.f32 %v4079, %v4080
      %v4082 = vrot.slane %v4081, 4
      %v4083 = vadd.f32 %v4081, %v4082
      %v4084 = vrot.slane %v4083, 2
      %v4085 = vadd.f32 %v4083, %v4084
      %v4086 = vrot.slane %v4085, 1
      %v4087 = vadd.f32 %v4085, %v4086
      %v4088 = vmul.f32 %v4053, 2.0
      %v4089 = vmul.f32 %v4058, 2.0
      %v4090 = vmul.f32 %v4063, 2.0
      %v4091 = vmul.f32 %v4068, 2.0
      %v4092 = vsub.f32 %v4088, %v4087
      %v4093 = vsub.f32 %v4089, %v4087
      %v4094 = vsub.f32 %v4090, %v4087
      %v4095 = vsub.f32 %v4091, %v4087
      %v4096 = vsel %vm638, %v4092, -inf
      %4097 = vmax.xlane.f32.xlu0 %v4096
      %v4098 = vpop.xlane.xlu0 %4097
      %v4099 = vsel %vm638, %v4093, -inf
      %4100 = vmax.xlane.f32.xlu0 %v4099
      %v4101 = vpop.xlane.xlu0 %4100
      %v4102 = vsel %vm638, %v4094, -inf
      %4103 = vmax.xlane.f32.xlu0 %v4102
      %v4104 = vpop.xlane.xlu0 %4103
      %v4105 = vsel %vm638, %v4095, -inf
      %4106 = vmax.xlane.f32.xlu0 %v4105
      %v4107 = vpop.xlane.xlu0 %4106
      %vm4108 = vcmp.ge.f32.partialorder %v4092, %v4098
      %vm4109 = vcmp.ge.f32.partialorder %v4093, %v4101
      %vm4110 = vcmp.ge.f32.partialorder %v4094, %v4104
      %vm4111 = vcmp.ge.f32.partialorder %v4095, %v4107
      %v4112 = vsel %vm4108, %v953, 32
      %v4113 = vsel %vm4109, %v953, 32
      %v4114 = vsel %vm4110, %v953, 32
      %v4115 = vsel %vm4111, %v953, 32
      %v4116 = vsel %vm638, %v4112, 2147483647
      %v4117 = vand.u32 %v4116, 65535
      %v4118 = vshra.s32 %v4116, 16
      %v4119 = vcvt.s32.f32 %v4117
      %v4120 = vcvt.s32.f32 %v4118
      %4121 = vmin.xlane.f32.xlu0 %v4120
      %v4122 = vpop.xlane.xlu0 %4121
      %vm4123 = vcmp.eq.f32.partialorder %v4120, %v4122
      %v4124 = vsel %vm4123, %v4119, inf
      %4125 = vmin.xlane.f32.xlu0 %v4124
      %v4126 = vpop.xlane.xlu0 %4125
      %v4127 = vcvt.f32.s32 %v4126
      %v4128 = vcvt.f32.s32 %v4122
      %v4129 = vshll.u32 %v4128, 16
      %v4130 = vadd.s32 %v4129, %v4127
      %v4131 = vsel %vm638, %v4113, 2147483647
      %v4132 = vand.u32 %v4131, 65535
      %v4133 = vshra.s32 %v4131, 16
      %v4134 = vcvt.s32.f32 %v4132
      %v4135 = vcvt.s32.f32 %v4133
      %4136 = vmin.xlane.f32.xlu0 %v4135
      %v4137 = vpop.xlane.xlu0 %4136
      %vm4138 = vcmp.eq.f32.partialorder %v4135, %v4137
      %v4139 = vsel %vm4138, %v4134, inf
      %4140 = vmin.xlane.f32.xlu0 %v4139
      %v4141 = vpop.xlane.xlu0 %4140
      %v4142 = vcvt.f32.s32 %v4141
      %v4143 = vcvt.f32.s32 %v4137
      %v4144 = vshll.u32 %v4143, 16
      %v4145 = vadd.s32 %v4144, %v4142
      %v4146 = vsel %vm638, %v4114, 2147483647
      %v4147 = vand.u32 %v4146, 65535
      %v4148 = vshra.s32 %v4146, 16
      %v4149 = vcvt.s32.f32 %v4147
      %v4150 = vcvt.s32.f32 %v4148
      %4151 = vmin.xlane.f32.xlu0 %v4150
      %v4152 = vpop.xlane.xlu0 %4151
      %vm4153 = vcmp.eq.f32.partialorder %v4150, %v4152
      %v4154 = vsel %vm4153, %v4149, inf
      %4155 = vmin.xlane.f32.xlu0 %v4154
      %v4156 = vpop.xlane.xlu0 %4155
      %v4157 = vcvt.f32.s32 %v4156
      %v4158 = vcvt.f32.s32 %v4152
      %v4159 = vshll.u32 %v4158, 16
      %v4160 = vadd.s32 %v4159, %v4157
      %v4161 = vsel %vm638, %v4115, 2147483647
      %v4162 = vand.u32 %v4161, 65535
      %v4163 = vshra.s32 %v4161, 16
      %v4164 = vcvt.s32.f32 %v4162
      %v4165 = vcvt.s32.f32 %v4163
      %4166 = vmin.xlane.f32.xlu0 %v4165
      %v4167 = vpop.xlane.xlu0 %4166
      %vm4168 = vcmp.eq.f32.partialorder %v4165, %v4167
      %v4169 = vsel %vm4168, %v4164, inf
      %4170 = vmin.xlane.f32.xlu0 %v4169
      %v4171 = vpop.xlane.xlu0 %4170
      %v4172 = vcvt.f32.s32 %v4171
      %v4173 = vcvt.f32.s32 %v4167
      %v4174 = vshll.u32 %v4173, 16
      %v4175 = vadd.s32 %v4174, %v4172
      %vm4176 = vcmp.eq.s32.totalorder %v953, %v4130
      %vm4177 = vcmp.eq.s32.totalorder %v953, %v4145
      %vm4178 = vcmp.eq.s32.totalorder %v953, %v4160
      %vm4179 = vcmp.eq.s32.totalorder %v953, %v4175
      %v4180 = vsel %vm4176, 1, 0
      %v4181 = vsel %vm4177, 1, 0
      %v4182 = vsel %vm4178, 1, 0
      %v4183 = vsel %vm4179, 1, 0
      %v4184 = vcvt.s32.f32 %v4180
      %v4185 = vcvt.s32.f32 %v4181
      %v4186 = vcvt.s32.f32 %v4182
      %v4187 = vcvt.s32.f32 %v4183
      %v4188 = vpack.c.bf16 %v4185, %v4184
      %v4189 = vpack.c.bf16 %v4187, %v4186
      %v4190 = vsel %vm4176, -inf, %v4092
      %v4191 = vsel %vm4177, -inf, %v4093
      %v4192 = vsel %vm4178, -inf, %v4094
      %v4193 = vsel %vm4179, -inf, %v4095
      %v4194 = vsel %vm638, %v4190, -inf
      %4195 = vmax.xlane.f32.xlu0 %v4194
      %v4196 = vpop.xlane.xlu0 %4195
      %v4197 = vsel %vm638, %v4191, -inf
      %4198 = vmax.xlane.f32.xlu0 %v4197
      %v4199 = vpop.xlane.xlu0 %4198
      %v4200 = vsel %vm638, %v4192, -inf
      %4201 = vmax.xlane.f32.xlu0 %v4200
      %v4202 = vpop.xlane.xlu0 %4201
      %v4203 = vsel %vm638, %v4193, -inf
      %4204 = vmax.xlane.f32.xlu0 %v4203
      %v4205 = vpop.xlane.xlu0 %4204
      %vm4206 = vcmp.ge.f32.partialorder %v4190, %v4196
      %vm4207 = vcmp.ge.f32.partialorder %v4191, %v4199
      %vm4208 = vcmp.ge.f32.partialorder %v4192, %v4202
      %vm4209 = vcmp.ge.f32.partialorder %v4193, %v4205
      %v4210 = vsel %vm4206, %v953, 32
      %v4211 = vsel %vm4207, %v953, 32
      %v4212 = vsel %vm4208, %v953, 32
      %v4213 = vsel %vm4209, %v953, 32
      %v4214 = vsel %vm638, %v4210, 2147483647
      %v4215 = vand.u32 %v4214, 65535
      %v4216 = vshra.s32 %v4214, 16
      %v4217 = vcvt.s32.f32 %v4215
      %v4218 = vcvt.s32.f32 %v4216
      %4219 = vmin.xlane.f32.xlu0 %v4218
      %v4220 = vpop.xlane.xlu0 %4219
      %vm4221 = vcmp.eq.f32.partialorder %v4218, %v4220
      %v4222 = vsel %vm4221, %v4217, inf
      %4223 = vmin.xlane.f32.xlu0 %v4222
      %v4224 = vpop.xlane.xlu0 %4223
      %v4225 = vcvt.f32.s32 %v4224
      %v4226 = vcvt.f32.s32 %v4220
      %v4227 = vshll.u32 %v4226, 16
      %v4228 = vadd.s32 %v4227, %v4225
      %v4229 = vsel %vm638, %v4211, 2147483647
      %v4230 = vand.u32 %v4229, 65535
      %v4231 = vshra.s32 %v4229, 16
      %v4232 = vcvt.s32.f32 %v4230
      %v4233 = vcvt.s32.f32 %v4231
      %4234 = vmin.xlane.f32.xlu0 %v4233
      %v4235 = vpop.xlane.xlu0 %4234
      %vm4236 = vcmp.eq.f32.partialorder %v4233, %v4235
      %v4237 = vsel %vm4236, %v4232, inf
      %4238 = vmin.xlane.f32.xlu0 %v4237
      %v4239 = vpop.xlane.xlu0 %4238
      %v4240 = vcvt.f32.s32 %v4239
      %v4241 = vcvt.f32.s32 %v4235
      %v4242 = vshll.u32 %v4241, 16
      %v4243 = vadd.s32 %v4242, %v4240
      %v4244 = vsel %vm638, %v4212, 2147483647
      %v4245 = vand.u32 %v4244, 65535
      %v4246 = vshra.s32 %v4244, 16
      %v4247 = vcvt.s32.f32 %v4245
      %v4248 = vcvt.s32.f32 %v4246
      %4249 = vmin.xlane.f32.xlu0 %v4248
      %v4250 = vpop.xlane.xlu0 %4249
      %vm4251 = vcmp.eq.f32.partialorder %v4248, %v4250
      %v4252 = vsel %vm4251, %v4247, inf
      %4253 = vmin.xlane.f32.xlu0 %v4252
      %v4254 = vpop.xlane.xlu0 %4253
      %v4255 = vcvt.f32.s32 %v4254
      %v4256 = vcvt.f32.s32 %v4250
      %v4257 = vshll.u32 %v4256, 16
      %v4258 = vadd.s32 %v4257, %v4255
      %v4259 = vsel %vm638, %v4213, 2147483647
      %v4260 = vand.u32 %v4259, 65535
      %v4261 = vshra.s32 %v4259, 16
      %v4262 = vcvt.s32.f32 %v4260
      %v4263 = vcvt.s32.f32 %v4261
      %4264 = vmin.xlane.f32.xlu0 %v4263
      %v4265 = vpop.xlane.xlu0 %4264
      %vm4266 = vcmp.eq.f32.partialorder %v4263, %v4265
      %v4267 = vsel %vm4266, %v4262, inf
      %4268 = vmin.xlane.f32.xlu0 %v4267
      %v4269 = vpop.xlane.xlu0 %4268
      %v4270 = vcvt.f32.s32 %v4269
      %v4271 = vcvt.f32.s32 %v4265
      %v4272 = vshll.u32 %v4271, 16
      %v4273 = vadd.s32 %v4272, %v4270
      %vm4274 = vcmp.eq.s32.totalorder %v953, %v4228
      %vm4275 = vcmp.eq.s32.totalorder %v953, %v4243
      %vm4276 = vcmp.eq.s32.totalorder %v953, %v4258
      %vm4277 = vcmp.eq.s32.totalorder %v953, %v4273
      %v4278 = vsel %vm4274, 1, 0
      %v4279 = vsel %vm4275, 1, 0
      %v4280 = vsel %vm4276, 1, 0
      %v4281 = vsel %vm4277, 1, 0
      %v4282 = vcvt.s32.f32 %v4278
      %v4283 = vcvt.s32.f32 %v4279
      %v4284 = vcvt.s32.f32 %v4280
      %v4285 = vcvt.s32.f32 %v4281
      %v4286 = vpack.c.bf16 %v4283, %v4282
      %v4287 = vpack.c.bf16 %v4285, %v4284
      %v4288 = vsel %vm4274, -inf, %v4190
      %v4289 = vsel %vm4275, -inf, %v4191
      %v4290 = vsel %vm4276, -inf, %v4192
      %v4291 = vsel %vm4277, -inf, %v4193
      %v4292 = vsel %vm638, %v4288, -inf
      %4293 = vmax.xlane.f32.xlu0 %v4292
      %v4294 = vpop.xlane.xlu0 %4293
      %v4295 = vsel %vm638, %v4289, -inf
      %4296 = vmax.xlane.f32.xlu0 %v4295
      %v4297 = vpop.xlane.xlu0 %4296
      %v4298 = vsel %vm638, %v4290, -inf
      %4299 = vmax.xlane.f32.xlu0 %v4298
      %v4300 = vpop.xlane.xlu0 %4299
      %v4301 = vsel %vm638, %v4291, -inf
      %4302 = vmax.xlane.f32.xlu0 %v4301
      %v4303 = vpop.xlane.xlu0 %4302
      %vm4304 = vcmp.ge.f32.partialorder %v4288, %v4294
      %vm4305 = vcmp.ge.f32.partialorder %v4289, %v4297
      %vm4306 = vcmp.ge.f32.partialorder %v4290, %v4300
      %vm4307 = vcmp.ge.f32.partialorder %v4291, %v4303
      %v4308 = vsel %vm4304, %v953, 32
      %v4309 = vsel %vm4305, %v953, 32
      %v4310 = vsel %vm4306, %v953, 32
      %v4311 = vsel %vm4307, %v953, 32
      %v4312 = vsel %vm638, %v4308, 2147483647
      %v4313 = vand.u32 %v4312, 65535
      %v4314 = vshra.s32 %v4312, 16
      %v4315 = vcvt.s32.f32 %v4313
      %v4316 = vcvt.s32.f32 %v4314
      %4317 = vmin.xlane.f32.xlu0 %v4316
      %v4318 = vpop.xlane.xlu0 %4317
      %vm4319 = vcmp.eq.f32.partialorder %v4316, %v4318
      %v4320 = vsel %vm4319, %v4315, inf
      %4321 = vmin.xlane.f32.xlu0 %v4320
      %v4322 = vpop.xlane.xlu0 %4321
      %v4323 = vcvt.f32.s32 %v4322
      %v4324 = vcvt.f32.s32 %v4318
      %v4325 = vshll.u32 %v4324, 16
      %v4326 = vadd.s32 %v4325, %v4323
      %v4327 = vsel %vm638, %v4309, 2147483647
      %v4328 = vand.u32 %v4327, 65535
      %v4329 = vshra.s32 %v4327, 16
      %v4330 = vcvt.s32.f32 %v4328
      %v4331 = vcvt.s32.f32 %v4329
      %4332 = vmin.xlane.f32.xlu0 %v4331
      %v4333 = vpop.xlane.xlu0 %4332
      %vm4334 = vcmp.eq.f32.partialorder %v4331, %v4333
      %v4335 = vsel %vm4334, %v4330, inf
      %4336 = vmin.xlane.f32.xlu0 %v4335
      %v4337 = vpop.xlane.xlu0 %4336
      %v4338 = vcvt.f32.s32 %v4337
      %v4339 = vcvt.f32.s32 %v4333
      %v4340 = vshll.u32 %v4339, 16
      %v4341 = vadd.s32 %v4340, %v4338
      %v4342 = vsel %vm638, %v4310, 2147483647
      %v4343 = vand.u32 %v4342, 65535
      %v4344 = vshra.s32 %v4342, 16
      %v4345 = vcvt.s32.f32 %v4343
      %v4346 = vcvt.s32.f32 %v4344
      %4347 = vmin.xlane.f32.xlu0 %v4346
      %v4348 = vpop.xlane.xlu0 %4347
      %vm4349 = vcmp.eq.f32.partialorder %v4346, %v4348
      %v4350 = vsel %vm4349, %v4345, inf
      %4351 = vmin.xlane.f32.xlu0 %v4350
      %v4352 = vpop.xlane.xlu0 %4351
      %v4353 = vcvt.f32.s32 %v4352
      %v4354 = vcvt.f32.s32 %v4348
      %v4355 = vshll.u32 %v4354, 16
      %v4356 = vadd.s32 %v4355, %v4353
      %v4357 = vsel %vm638, %v4311, 2147483647
      %v4358 = vand.u32 %v4357, 65535
      %v4359 = vshra.s32 %v4357, 16
      %v4360 = vcvt.s32.f32 %v4358
      %v4361 = vcvt.s32.f32 %v4359
      %4362 = vmin.xlane.f32.xlu0 %v4361
      %v4363 = vpop.xlane.xlu0 %4362
      %vm4364 = vcmp.eq.f32.partialorder %v4361, %v4363
      %v4365 = vsel %vm4364, %v4360, inf
      %4366 = vmin.xlane.f32.xlu0 %v4365
      %v4367 = vpop.xlane.xlu0 %4366
      %v4368 = vcvt.f32.s32 %v4367
      %v4369 = vcvt.f32.s32 %v4363
      %v4370 = vshll.u32 %v4369, 16
      %v4371 = vadd.s32 %v4370, %v4368
      %vm4372 = vcmp.eq.s32.totalorder %v953, %v4326
      %vm4373 = vcmp.eq.s32.totalorder %v953, %v4341
      %vm4374 = vcmp.eq.s32.totalorder %v953, %v4356
      %vm4375 = vcmp.eq.s32.totalorder %v953, %v4371
      %v4376 = vsel %vm4372, 1, 0
      %v4377 = vsel %vm4373, 1, 0
      %v4378 = vsel %vm4374, 1, 0
      %v4379 = vsel %vm4375, 1, 0
      %v4380 = vcvt.s32.f32 %v4376
      %v4381 = vcvt.s32.f32 %v4377
      %v4382 = vcvt.s32.f32 %v4378
      %v4383 = vcvt.s32.f32 %v4379
      %v4384 = vpack.c.bf16 %v4381, %v4380
      %v4385 = vpack.c.bf16 %v4383, %v4382
      %v4386 = vsel %vm4372, -inf, %v4288
      %v4387 = vsel %vm4373, -inf, %v4289
      %v4388 = vsel %vm4374, -inf, %v4290
      %v4389 = vsel %vm4375, -inf, %v4291
      %v4390 = vsel %vm638, %v4386, -inf
      %4391 = vmax.xlane.f32.xlu0 %v4390
      %v4392 = vpop.xlane.xlu0 %4391
      %v4393 = vsel %vm638, %v4387, -inf
      %4394 = vmax.xlane.f32.xlu0 %v4393
      %v4395 = vpop.xlane.xlu0 %4394
      %v4396 = vsel %vm638, %v4388, -inf
      %4397 = vmax.xlane.f32.xlu0 %v4396
      %v4398 = vpop.xlane.xlu0 %4397
      %v4399 = vsel %vm638, %v4389, -inf
      %4400 = vmax.xlane.f32.xlu0 %v4399
      %v4401 = vpop.xlane.xlu0 %4400
      %vm4402 = vcmp.ge.f32.partialorder %v4386, %v4392
      %vm4403 = vcmp.ge.f32.partialorder %v4387, %v4395
      %vm4404 = vcmp.ge.f32.partialorder %v4388, %v4398
      %vm4405 = vcmp.ge.f32.partialorder %v4389, %v4401
      %v4406 = vsel %vm4402, %v953, 32
      %v4407 = vsel %vm4403, %v953, 32
      %v4408 = vsel %vm4404, %v953, 32
      %v4409 = vsel %vm4405, %v953, 32
      %v4410 = vsel %vm638, %v4406, 2147483647
      %v4411 = vand.u32 %v4410, 65535
      %v4412 = vshra.s32 %v4410, 16
      %v4413 = vcvt.s32.f32 %v4411
      %v4414 = vcvt.s32.f32 %v4412
      %4415 = vmin.xlane.f32.xlu0 %v4414
      %v4416 = vpop.xlane.xlu0 %4415
      %vm4417 = vcmp.eq.f32.partialorder %v4414, %v4416
      %v4418 = vsel %vm4417, %v4413, inf
      %4419 = vmin.xlane.f32.xlu0 %v4418
      %v4420 = vpop.xlane.xlu0 %4419
      %v4421 = vcvt.f32.s32 %v4420
      %v4422 = vcvt.f32.s32 %v4416
      %v4423 = vshll.u32 %v4422, 16
      %v4424 = vadd.s32 %v4423, %v4421
      %v4425 = vsel %vm638, %v4407, 2147483647
      %v4426 = vand.u32 %v4425, 65535
      %v4427 = vshra.s32 %v4425, 16
      %v4428 = vcvt.s32.f32 %v4426
      %v4429 = vcvt.s32.f32 %v4427
      %4430 = vmin.xlane.f32.xlu0 %v4429
      %v4431 = vpop.xlane.xlu0 %4430
      %vm4432 = vcmp.eq.f32.partialorder %v4429, %v4431
      %v4433 = vsel %vm4432, %v4428, inf
      %4434 = vmin.xlane.f32.xlu0 %v4433
      %v4435 = vpop.xlane.xlu0 %4434
      %v4436 = vcvt.f32.s32 %v4435
      %v4437 = vcvt.f32.s32 %v4431
      %v4438 = vshll.u32 %v4437, 16
      %v4439 = vadd.s32 %v4438, %v4436
      %v4440 = vsel %vm638, %v4408, 2147483647
      %v4441 = vand.u32 %v4440, 65535
      %v4442 = vshra.s32 %v4440, 16
      %v4443 = vcvt.s32.f32 %v4441
      %v4444 = vcvt.s32.f32 %v4442
      %4445 = vmin.xlane.f32.xlu0 %v4444
      %v4446 = vpop.xlane.xlu0 %4445
      %vm4447 = vcmp.eq.f32.partialorder %v4444, %v4446
      %v4448 = vsel %vm4447, %v4443, inf
      %4449 = vmin.xlane.f32.xlu0 %v4448
      %v4450 = vpop.xlane.xlu0 %4449
      %v4451 = vcvt.f32.s32 %v4450
      %v4452 = vcvt.f32.s32 %v4446
      %v4453 = vshll.u32 %v4452, 16
      %v4454 = vadd.s32 %v4453, %v4451
      %v4455 = vsel %vm638, %v4409, 2147483647
      %v4456 = vand.u32 %v4455, 65535
      %v4457 = vshra.s32 %v4455, 16
      %v4458 = vcvt.s32.f32 %v4456
      %v4459 = vcvt.s32.f32 %v4457
      %4460 = vmin.xlane.f32.xlu0 %v4459
      %v4461 = vpop.xlane.xlu0 %4460
      %vm4462 = vcmp.eq.f32.partialorder %v4459, %v4461
      %v4463 = vsel %vm4462, %v4458, inf
      %4464 = vmin.xlane.f32.xlu0 %v4463
      %v4465 = vpop.xlane.xlu0 %4464
      %v4466 = vcvt.f32.s32 %v4465
      %v4467 = vcvt.f32.s32 %v4461
      %v4468 = vshll.u32 %v4467, 16
      %v4469 = vadd.s32 %v4468, %v4466
      %vm4470 = vcmp.eq.s32.totalorder %v953, %v4424
      %vm4471 = vcmp.eq.s32.totalorder %v953, %v4439
      %vm4472 = vcmp.eq.s32.totalorder %v953, %v4454
      %vm4473 = vcmp.eq.s32.totalorder %v953, %v4469
      %v4474 = vsel %vm4470, 1, 0
      %v4475 = vsel %vm4471, 1, 0
      %v4476 = vsel %vm4472, 1, 0
      %v4477 = vsel %vm4473, 1, 0
      %v4478 = vcvt.s32.f32 %v4474
      %v4479 = vcvt.s32.f32 %v4475
      %v4480 = vcvt.s32.f32 %v4476
      %v4481 = vcvt.s32.f32 %v4477
      %v4482 = vpack.c.bf16 %v4479, %v4478
      %v4483 = vpack.c.bf16 %v4481, %v4480
      %v4484 = vsel %vm4470, -inf, %v4386
      %v4485 = vsel %vm4471, -inf, %v4387
      %v4486 = vsel %vm4472, -inf, %v4388
      %v4487 = vsel %vm4473, -inf, %v4389
      %v4488 = vsel %vm638, %v4484, -inf
      %4489 = vmax.xlane.f32.xlu0 %v4488
      %v4490 = vpop.xlane.xlu0 %4489
      %v4491 = vsel %vm638, %v4485, -inf
      %4492 = vmax.xlane.f32.xlu0 %v4491
      %v4493 = vpop.xlane.xlu0 %4492
      %v4494 = vsel %vm638, %v4486, -inf
      %4495 = vmax.xlane.f32.xlu0 %v4494
      %v4496 = vpop.xlane.xlu0 %4495
      %v4497 = vsel %vm638, %v4487, -inf
      %4498 = vmax.xlane.f32.xlu0 %v4497
      %v4499 = vpop.xlane.xlu0 %4498
      %vm4500 = vcmp.ge.f32.partialorder %v4484, %v4490
      %vm4501 = vcmp.ge.f32.partialorder %v4485, %v4493
      %vm4502 = vcmp.ge.f32.partialorder %v4486, %v4496
      %vm4503 = vcmp.ge.f32.partialorder %v4487, %v4499
      %v4504 = vsel %vm4500, %v953, 32
      %v4505 = vsel %vm4501, %v953, 32
      %v4506 = vsel %vm4502, %v953, 32
      %v4507 = vsel %vm4503, %v953, 32
      %v4508 = vsel %vm638, %v4504, 2147483647
      %v4509 = vand.u32 %v4508, 65535
      %v4510 = vshra.s32 %v4508, 16
      %v4511 = vcvt.s32.f32 %v4509
      %v4512 = vcvt.s32.f32 %v4510
      %4513 = vmin.xlane.f32.xlu0 %v4512
      %v4514 = vpop.xlane.xlu0 %4513
      %vm4515 = vcmp.eq.f32.partialorder %v4512, %v4514
      %v4516 = vsel %vm4515, %v4511, inf
      %4517 = vmin.xlane.f32.xlu0 %v4516
      %v4518 = vpop.xlane.xlu0 %4517
      %v4519 = vcvt.f32.s32 %v4518
      %v4520 = vcvt.f32.s32 %v4514
      %v4521 = vshll.u32 %v4520, 16
      %v4522 = vadd.s32 %v4521, %v4519
      %v4523 = vsel %vm638, %v4505, 2147483647
      %v4524 = vand.u32 %v4523, 65535
      %v4525 = vshra.s32 %v4523, 16
      %v4526 = vcvt.s32.f32 %v4524
      %v4527 = vcvt.s32.f32 %v4525
      %4528 = vmin.xlane.f32.xlu0 %v4527
      %v4529 = vpop.xlane.xlu0 %4528
      %vm4530 = vcmp.eq.f32.partialorder %v4527, %v4529
      %v4531 = vsel %vm4530, %v4526, inf
      %4532 = vmin.xlane.f32.xlu0 %v4531
      %v4533 = vpop.xlane.xlu0 %4532
      %v4534 = vcvt.f32.s32 %v4533
      %v4535 = vcvt.f32.s32 %v4529
      %v4536 = vshll.u32 %v4535, 16
      %v4537 = vadd.s32 %v4536, %v4534
      %v4538 = vsel %vm638, %v4506, 2147483647
      %v4539 = vand.u32 %v4538, 65535
      %v4540 = vshra.s32 %v4538, 16
      %v4541 = vcvt.s32.f32 %v4539
      %v4542 = vcvt.s32.f32 %v4540
      %4543 = vmin.xlane.f32.xlu0 %v4542
      %v4544 = vpop.xlane.xlu0 %4543
      %vm4545 = vcmp.eq.f32.partialorder %v4542, %v4544
      %v4546 = vsel %vm4545, %v4541, inf
      %4547 = vmin.xlane.f32.xlu0 %v4546
      %v4548 = vpop.xlane.xlu0 %4547
      %v4549 = vcvt.f32.s32 %v4548
      %v4550 = vcvt.f32.s32 %v4544
      %v4551 = vshll.u32 %v4550, 16
      %v4552 = vadd.s32 %v4551, %v4549
      %v4553 = vsel %vm638, %v4507, 2147483647
      %v4554 = vand.u32 %v4553, 65535
      %v4555 = vshra.s32 %v4553, 16
      %v4556 = vcvt.s32.f32 %v4554
      %v4557 = vcvt.s32.f32 %v4555
      %4558 = vmin.xlane.f32.xlu0 %v4557
      %v4559 = vpop.xlane.xlu0 %4558
      %vm4560 = vcmp.eq.f32.partialorder %v4557, %v4559
      %v4561 = vsel %vm4560, %v4556, inf
      %4562 = vmin.xlane.f32.xlu0 %v4561
      %v4563 = vpop.xlane.xlu0 %4562
      %v4564 = vcvt.f32.s32 %v4563
      %v4565 = vcvt.f32.s32 %v4559
      %v4566 = vshll.u32 %v4565, 16
      %v4567 = vadd.s32 %v4566, %v4564
      %vm4568 = vcmp.eq.s32.totalorder %v953, %v4522
      %vm4569 = vcmp.eq.s32.totalorder %v953, %v4537
      %vm4570 = vcmp.eq.s32.totalorder %v953, %v4552
      %vm4571 = vcmp.eq.s32.totalorder %v953, %v4567
      %v4572 = vsel %vm4568, 1, 0
      %v4573 = vsel %vm4569, 1, 0
      %v4574 = vsel %vm4570, 1, 0
      %v4575 = vsel %vm4571, 1, 0
      %v4576 = vcvt.s32.f32 %v4572
      %v4577 = vcvt.s32.f32 %v4573
      %v4578 = vcvt.s32.f32 %v4574
      %v4579 = vcvt.s32.f32 %v4575
      %v4580 = vpack.c.bf16 %v4577, %v4576
      %v4581 = vpack.c.bf16 %v4579, %v4578
      %v4582 = vsel %vm4568, -inf, %v4484
      %v4583 = vsel %vm4569, -inf, %v4485
      %v4584 = vsel %vm4570, -inf, %v4486
      %v4585 = vsel %vm4571, -inf, %v4487
      %v4586 = vsel %vm638, %v4582, -inf
      %4587 = vmax.xlane.f32.xlu0 %v4586
      %v4588 = vpop.xlane.xlu0 %4587
      %v4589 = vsel %vm638, %v4583, -inf
      %4590 = vmax.xlane.f32.xlu0 %v4589
      %v4591 = vpop.xlane.xlu0 %4590
      %v4592 = vsel %vm638, %v4584, -inf
      %4593 = vmax.xlane.f32.xlu0 %v4592
      %v4594 = vpop.xlane.xlu0 %4593
      %v4595 = vsel %vm638, %v4585, -inf
      %4596 = vmax.xlane.f32.xlu0 %v4595
      %v4597 = vpop.xlane.xlu0 %4596
      %vm4598 = vcmp.ge.f32.partialorder %v4582, %v4588
      %vm4599 = vcmp.ge.f32.partialorder %v4583, %v4591
      %vm4600 = vcmp.ge.f32.partialorder %v4584, %v4594
      %vm4601 = vcmp.ge.f32.partialorder %v4585, %v4597
      %v4602 = vsel %vm4598, %v953, 32
      %v4603 = vsel %vm4599, %v953, 32
      %v4604 = vsel %vm4600, %v953, 32
      %v4605 = vsel %vm4601, %v953, 32
      %v4606 = vsel %vm638, %v4602, 2147483647
      %v4607 = vand.u32 %v4606, 65535
      %v4608 = vshra.s32 %v4606, 16
      %v4609 = vcvt.s32.f32 %v4607
      %v4610 = vcvt.s32.f32 %v4608
      %4611 = vmin.xlane.f32.xlu0 %v4610
      %v4612 = vpop.xlane.xlu0 %4611
      %vm4613 = vcmp.eq.f32.partialorder %v4610, %v4612
      %v4614 = vsel %vm4613, %v4609, inf
      %4615 = vmin.xlane.f32.xlu0 %v4614
      %v4616 = vpop.xlane.xlu0 %4615
      %v4617 = vcvt.f32.s32 %v4616
      %v4618 = vcvt.f32.s32 %v4612
      %v4619 = vshll.u32 %v4618, 16
      %v4620 = vadd.s32 %v4619, %v4617
      %v4621 = vsel %vm638, %v4603, 2147483647
      %v4622 = vand.u32 %v4621, 65535
      %v4623 = vshra.s32 %v4621, 16
      %v4624 = vcvt.s32.f32 %v4622
      %v4625 = vcvt.s32.f32 %v4623
      %4626 = vmin.xlane.f32.xlu0 %v4625
      %v4627 = vpop.xlane.xlu0 %4626
      %vm4628 = vcmp.eq.f32.partialorder %v4625, %v4627
      %v4629 = vsel %vm4628, %v4624, inf
      %4630 = vmin.xlane.f32.xlu0 %v4629
      %v4631 = vpop.xlane.xlu0 %4630
      %v4632 = vcvt.f32.s32 %v4631
      %v4633 = vcvt.f32.s32 %v4627
      %v4634 = vshll.u32 %v4633, 16
      %v4635 = vadd.s32 %v4634, %v4632
      %v4636 = vsel %vm638, %v4604, 2147483647
      %v4637 = vand.u32 %v4636, 65535
      %v4638 = vshra.s32 %v4636, 16
      %v4639 = vcvt.s32.f32 %v4637
      %v4640 = vcvt.s32.f32 %v4638
      %4641 = vmin.xlane.f32.xlu0 %v4640
      %v4642 = vpop.xlane.xlu0 %4641
      %vm4643 = vcmp.eq.f32.partialorder %v4640, %v4642
      %v4644 = vsel %vm4643, %v4639, inf
      %4645 = vmin.xlane.f32.xlu0 %v4644
      %v4646 = vpop.xlane.xlu0 %4645
      %v4647 = vcvt.f32.s32 %v4646
      %v4648 = vcvt.f32.s32 %v4642
      %v4649 = vshll.u32 %v4648, 16
      %v4650 = vadd.s32 %v4649, %v4647
      %v4651 = vsel %vm638, %v4605, 2147483647
      %v4652 = vand.u32 %v4651, 65535
      %v4653 = vshra.s32 %v4651, 16
      %v4654 = vcvt.s32.f32 %v4652
      %v4655 = vcvt.s32.f32 %v4653
      %4656 = vmin.xlane.f32.xlu0 %v4655
      %v4657 = vpop.xlane.xlu0 %4656
      %vm4658 = vcmp.eq.f32.partialorder %v4655, %v4657
      %v4659 = vsel %vm4658, %v4654, inf
      %4660 = vmin.xlane.f32.xlu0 %v4659
      %v4661 = vpop.xlane.xlu0 %4660
      %v4662 = vcvt.f32.s32 %v4661
      %v4663 = vcvt.f32.s32 %v4657
      %v4664 = vshll.u32 %v4663, 16
      %v4665 = vadd.s32 %v4664, %v4662
      %vm4666 = vcmp.eq.s32.totalorder %v953, %v4620
      %vm4667 = vcmp.eq.s32.totalorder %v953, %v4635
      %vm4668 = vcmp.eq.s32.totalorder %v953, %v4650
      %vm4669 = vcmp.eq.s32.totalorder %v953, %v4665
      %v4670 = vsel %vm4666, 1, 0
      %v4671 = vsel %vm4667, 1, 0
      %v4672 = vsel %vm4668, 1, 0
      %v4673 = vsel %vm4669, 1, 0
      %v4674 = vcvt.s32.f32 %v4670
      %v4675 = vcvt.s32.f32 %v4671
      %v4676 = vcvt.s32.f32 %v4672
      %v4677 = vcvt.s32.f32 %v4673
      %v4678 = vpack.c.bf16 %v4675, %v4674
      %v4679 = vpack.c.bf16 %v4677, %v4676
      %v4680 = vsel %vm4666, -inf, %v4582
      %v4681 = vsel %vm4667, -inf, %v4583
      %v4682 = vsel %vm4668, -inf, %v4584
      %v4683 = vsel %vm4669, -inf, %v4585
      %v4684 = vsel %vm638, %v4680, -inf
      %4685 = vmax.xlane.f32.xlu0 %v4684
      %v4686 = vpop.xlane.xlu0 %4685
      %v4687 = vsel %vm638, %v4681, -inf
      %4688 = vmax.xlane.f32.xlu0 %v4687
      %v4689 = vpop.xlane.xlu0 %4688
      %v4690 = vsel %vm638, %v4682, -inf
      %4691 = vmax.xlane.f32.xlu0 %v4690
      %v4692 = vpop.xlane.xlu0 %4691
      %v4693 = vsel %vm638, %v4683, -inf
      %4694 = vmax.xlane.f32.xlu0 %v4693
      %v4695 = vpop.xlane.xlu0 %4694
      %vm4696 = vcmp.ge.f32.partialorder %v4680, %v4686
      %vm4697 = vcmp.ge.f32.partialorder %v4681, %v4689
      %vm4698 = vcmp.ge.f32.partialorder %v4682, %v4692
      %vm4699 = vcmp.ge.f32.partialorder %v4683, %v4695
      %v4700 = vsel %vm4696, %v953, 32
      %v4701 = vsel %vm4697, %v953, 32
      %v4702 = vsel %vm4698, %v953, 32
      %v4703 = vsel %vm4699, %v953, 32
      %v4704 = vsel %vm638, %v4700, 2147483647
      %v4705 = vand.u32 %v4704, 65535
      %v4706 = vshra.s32 %v4704, 16
      %v4707 = vcvt.s32.f32 %v4705
      %v4708 = vcvt.s32.f32 %v4706
      %4709 = vmin.xlane.f32.xlu0 %v4708
      %v4710 = vpop.xlane.xlu0 %4709
      %vm4711 = vcmp.eq.f32.partialorder %v4708, %v4710
      %v4712 = vsel %vm4711, %v4707, inf
      %4713 = vmin.xlane.f32.xlu0 %v4712
      %v4714 = vpop.xlane.xlu0 %4713
      %v4715 = vcvt.f32.s32 %v4714
      %v4716 = vcvt.f32.s32 %v4710
      %v4717 = vshll.u32 %v4716, 16
      %v4718 = vadd.s32 %v4717, %v4715
      %v4719 = vsel %vm638, %v4701, 2147483647
      %v4720 = vand.u32 %v4719, 65535
      %v4721 = vshra.s32 %v4719, 16
      %v4722 = vcvt.s32.f32 %v4720
      %v4723 = vcvt.s32.f32 %v4721
      %4724 = vmin.xlane.f32.xlu0 %v4723
      %v4725 = vpop.xlane.xlu0 %4724
      %vm4726 = vcmp.eq.f32.partialorder %v4723, %v4725
      %v4727 = vsel %vm4726, %v4722, inf
      %4728 = vmin.xlane.f32.xlu0 %v4727
      %v4729 = vpop.xlane.xlu0 %4728
      %v4730 = vcvt.f32.s32 %v4729
      %v4731 = vcvt.f32.s32 %v4725
      %v4732 = vshll.u32 %v4731, 16
      %v4733 = vadd.s32 %v4732, %v4730
      %v4734 = vsel %vm638, %v4702, 2147483647
      %v4735 = vand.u32 %v4734, 65535
      %v4736 = vshra.s32 %v4734, 16
      %v4737 = vcvt.s32.f32 %v4735
      %v4738 = vcvt.s32.f32 %v4736
      %4739 = vmin.xlane.f32.xlu0 %v4738
      %v4740 = vpop.xlane.xlu0 %4739
      %vm4741 = vcmp.eq.f32.partialorder %v4738, %v4740
      %v4742 = vsel %vm4741, %v4737, inf
      %4743 = vmin.xlane.f32.xlu0 %v4742
      %v4744 = vpop.xlane.xlu0 %4743
      %v4745 = vcvt.f32.s32 %v4744
      %v4746 = vcvt.f32.s32 %v4740
      %v4747 = vshll.u32 %v4746, 16
      %v4748 = vadd.s32 %v4747, %v4745
      %v4749 = vsel %vm638, %v4703, 2147483647
      %v4750 = vand.u32 %v4749, 65535
      %v4751 = vshra.s32 %v4749, 16
      %v4752 = vcvt.s32.f32 %v4750
      %v4753 = vcvt.s32.f32 %v4751
      %4754 = vmin.xlane.f32.xlu0 %v4753
      %v4755 = vpop.xlane.xlu0 %4754
      %vm4756 = vcmp.eq.f32.partialorder %v4753, %v4755
      %v4757 = vsel %vm4756, %v4752, inf
      %4758 = vmin.xlane.f32.xlu0 %v4757
      %v4759 = vpop.xlane.xlu0 %4758
      %v4760 = vcvt.f32.s32 %v4759
      %v4761 = vcvt.f32.s32 %v4755
      %v4762 = vshll.u32 %v4761, 16
      %v4763 = vadd.s32 %v4762, %v4760
      %vm4764 = vcmp.eq.s32.totalorder %v953, %v4718
      %vm4765 = vcmp.eq.s32.totalorder %v953, %v4733
      %vm4766 = vcmp.eq.s32.totalorder %v953, %v4748
      %vm4767 = vcmp.eq.s32.totalorder %v953, %v4763
      %v4768 = vsel %vm4764, 1, 0
      %v4769 = vsel %vm4765, 1, 0
      %v4770 = vsel %vm4766, 1, 0
      %v4771 = vsel %vm4767, 1, 0
      %v4772 = vcvt.s32.f32 %v4768
      %v4773 = vcvt.s32.f32 %v4769
      %v4774 = vcvt.s32.f32 %v4770
      %v4775 = vcvt.s32.f32 %v4771
      %v4776 = vpack.c.bf16 %v4773, %v4772
      %v4777 = vpack.c.bf16 %v4775, %v4774
      %v4778 = vsel %vm4764, -inf, %v4680
      %v4779 = vsel %vm4765, -inf, %v4681
      %v4780 = vsel %vm4766, -inf, %v4682
      %v4781 = vsel %vm4767, -inf, %v4683
      %v4782 = vsel %vm638, %v4778, -inf
      %4783 = vmax.xlane.f32.xlu0 %v4782
      %v4784 = vpop.xlane.xlu0 %4783
      %v4785 = vsel %vm638, %v4779, -inf
      %4786 = vmax.xlane.f32.xlu0 %v4785
      %v4787 = vpop.xlane.xlu0 %4786
      %v4788 = vsel %vm638, %v4780, -inf
      %4789 = vmax.xlane.f32.xlu0 %v4788
      %v4790 = vpop.xlane.xlu0 %4789
      %v4791 = vsel %vm638, %v4781, -inf
      %4792 = vmax.xlane.f32.xlu0 %v4791
      %v4793 = vpop.xlane.xlu0 %4792
      %vm4794 = vcmp.ge.f32.partialorder %v4778, %v4784
      %vm4795 = vcmp.ge.f32.partialorder %v4779, %v4787
      %vm4796 = vcmp.ge.f32.partialorder %v4780, %v4790
      %vm4797 = vcmp.ge.f32.partialorder %v4781, %v4793
      %v4798 = vsel %vm4794, %v953, 32
      %v4799 = vsel %vm4795, %v953, 32
      %v4800 = vsel %vm4796, %v953, 32
      %v4801 = vsel %vm4797, %v953, 32
      %v4802 = vsel %vm638, %v4798, 2147483647
      %v4803 = vand.u32 %v4802, 65535
      %v4804 = vshra.s32 %v4802, 16
      %v4805 = vcvt.s32.f32 %v4803
      %v4806 = vcvt.s32.f32 %v4804
      %4807 = vmin.xlane.f32.xlu0 %v4806
      %v4808 = vpop.xlane.xlu0 %4807
      %vm4809 = vcmp.eq.f32.partialorder %v4806, %v4808
      %v4810 = vsel %vm4809, %v4805, inf
      %4811 = vmin.xlane.f32.xlu0 %v4810
      %v4812 = vpop.xlane.xlu0 %4811
      %v4813 = vcvt.f32.s32 %v4812
      %v4814 = vcvt.f32.s32 %v4808
      %v4815 = vshll.u32 %v4814, 16
      %v4816 = vadd.s32 %v4815, %v4813
      %v4817 = vsel %vm638, %v4799, 2147483647
      %v4818 = vand.u32 %v4817, 65535
      %v4819 = vshra.s32 %v4817, 16
      %v4820 = vcvt.s32.f32 %v4818
      %v4821 = vcvt.s32.f32 %v4819
      %4822 = vmin.xlane.f32.xlu0 %v4821
      %v4823 = vpop.xlane.xlu0 %4822
      %vm4824 = vcmp.eq.f32.partialorder %v4821, %v4823
      %v4825 = vsel %vm4824, %v4820, inf
      %4826 = vmin.xlane.f32.xlu0 %v4825
      %v4827 = vpop.xlane.xlu0 %4826
      %v4828 = vcvt.f32.s32 %v4827
      %v4829 = vcvt.f32.s32 %v4823
      %v4830 = vshll.u32 %v4829, 16
      %v4831 = vadd.s32 %v4830, %v4828
      %v4832 = vsel %vm638, %v4800, 2147483647
      %v4833 = vand.u32 %v4832, 65535
      %v4834 = vshra.s32 %v4832, 16
      %v4835 = vcvt.s32.f32 %v4833
      %v4836 = vcvt.s32.f32 %v4834
      %4837 = vmin.xlane.f32.xlu0 %v4836
      %v4838 = vpop.xlane.xlu0 %4837
      %vm4839 = vcmp.eq.f32.partialorder %v4836, %v4838
      %v4840 = vsel %vm4839, %v4835, inf
      %4841 = vmin.xlane.f32.xlu0 %v4840
      %v4842 = vpop.xlane.xlu0 %4841
      %v4843 = vcvt.f32.s32 %v4842
      %v4844 = vcvt.f32.s32 %v4838
      %v4845 = vshll.u32 %v4844, 16
      %v4846 = vadd.s32 %v4845, %v4843
      %v4847 = vsel %vm638, %v4801, 2147483647
      %v4848 = vand.u32 %v4847, 65535
      %v4849 = vshra.s32 %v4847, 16
      %v4850 = vcvt.s32.f32 %v4848
      %v4851 = vcvt.s32.f32 %v4849
      %4852 = vmin.xlane.f32.xlu0 %v4851
      %v4853 = vpop.xlane.xlu0 %4852
      %vm4854 = vcmp.eq.f32.partialorder %v4851, %v4853
      %v4855 = vsel %vm4854, %v4850, inf
      %4856 = vmin.xlane.f32.xlu0 %v4855
      %v4857 = vpop.xlane.xlu0 %4856
      %v4858 = vcvt.f32.s32 %v4857
      %v4859 = vcvt.f32.s32 %v4853
      %v4860 = vshll.u32 %v4859, 16
      %v4861 = vadd.s32 %v4860, %v4858
      %vm4862 = vcmp.eq.s32.totalorder %v953, %v4816
      %vm4863 = vcmp.eq.s32.totalorder %v953, %v4831
      %vm4864 = vcmp.eq.s32.totalorder %v953, %v4846
      %vm4865 = vcmp.eq.s32.totalorder %v953, %v4861
      %v4866 = vsel %vm4862, 1, 0
      %v4867 = vsel %vm4863, 1, 0
      %v4868 = vsel %vm4864, 1, 0
      %v4869 = vsel %vm4865, 1, 0
      %v4870 = vcvt.s32.f32 %v4866
      %v4871 = vcvt.s32.f32 %v4867
      %v4872 = vcvt.s32.f32 %v4868
      %v4873 = vcvt.s32.f32 %v4869
      %v4874 = vpack.c.bf16 %v4871, %v4870
      %v4875 = vpack.c.bf16 %v4873, %v4872
      %v4876 = vsel %vm4862, -inf, %v4778
      %v4877 = vsel %vm4863, -inf, %v4779
      %v4878 = vsel %vm4864, -inf, %v4780
      %v4879 = vsel %vm4865, -inf, %v4781
      %v4880 = vsel %vm638, %v4876, -inf
      %4881 = vmax.xlane.f32.xlu0 %v4880
      %v4882 = vpop.xlane.xlu0 %4881
      %v4883 = vsel %vm638, %v4877, -inf
      %4884 = vmax.xlane.f32.xlu0 %v4883
      %v4885 = vpop.xlane.xlu0 %4884
      %v4886 = vsel %vm638, %v4878, -inf
      %4887 = vmax.xlane.f32.xlu0 %v4886
      %v4888 = vpop.xlane.xlu0 %4887
      %v4889 = vsel %vm638, %v4879, -inf
      %4890 = vmax.xlane.f32.xlu0 %v4889
      %v4891 = vpop.xlane.xlu0 %4890
      %vm4892 = vcmp.ge.f32.partialorder %v4876, %v4882
      %vm4893 = vcmp.ge.f32.partialorder %v4877, %v4885
      %vm4894 = vcmp.ge.f32.partialorder %v4878, %v4888
      %vm4895 = vcmp.ge.f32.partialorder %v4879, %v4891
      %v4896 = vsel %vm4892, %v953, 32
      %v4897 = vsel %vm4893, %v953, 32
      %v4898 = vsel %vm4894, %v953, 32
      %v4899 = vsel %vm4895, %v953, 32
      %v4900 = vsel %vm638, %v4896, 2147483647
      %v4901 = vand.u32 %v4900, 65535
      %v4902 = vshra.s32 %v4900, 16
      %v4903 = vcvt.s32.f32 %v4901
      %v4904 = vcvt.s32.f32 %v4902
      %4905 = vmin.xlane.f32.xlu0 %v4904
      %v4906 = vpop.xlane.xlu0 %4905
      %vm4907 = vcmp.eq.f32.partialorder %v4904, %v4906
      %v4908 = vsel %vm4907, %v4903, inf
      %4909 = vmin.xlane.f32.xlu0 %v4908
      %v4910 = vpop.xlane.xlu0 %4909
      %v4911 = vcvt.f32.s32 %v4910
      %v4912 = vcvt.f32.s32 %v4906
      %v4913 = vshll.u32 %v4912, 16
      %v4914 = vadd.s32 %v4913, %v4911
      %v4915 = vsel %vm638, %v4897, 2147483647
      %v4916 = vand.u32 %v4915, 65535
      %v4917 = vshra.s32 %v4915, 16
      %v4918 = vcvt.s32.f32 %v4916
      %v4919 = vcvt.s32.f32 %v4917
      %4920 = vmin.xlane.f32.xlu0 %v4919
      %v4921 = vpop.xlane.xlu0 %4920
      %vm4922 = vcmp.eq.f32.partialorder %v4919, %v4921
      %v4923 = vsel %vm4922, %v4918, inf
      %4924 = vmin.xlane.f32.xlu0 %v4923
      %v4925 = vpop.xlane.xlu0 %4924
      %v4926 = vcvt.f32.s32 %v4925
      %v4927 = vcvt.f32.s32 %v4921
      %v4928 = vshll.u32 %v4927, 16
      %v4929 = vadd.s32 %v4928, %v4926
      %v4930 = vsel %vm638, %v4898, 2147483647
      %v4931 = vand.u32 %v4930, 65535
      %v4932 = vshra.s32 %v4930, 16
      %v4933 = vcvt.s32.f32 %v4931
      %v4934 = vcvt.s32.f32 %v4932
      %4935 = vmin.xlane.f32.xlu0 %v4934
      %v4936 = vpop.xlane.xlu0 %4935
      %vm4937 = vcmp.eq.f32.partialorder %v4934, %v4936
      %v4938 = vsel %vm4937, %v4933, inf
      %4939 = vmin.xlane.f32.xlu0 %v4938
      %v4940 = vpop.xlane.xlu0 %4939
      %v4941 = vcvt.f32.s32 %v4940
      %v4942 = vcvt.f32.s32 %v4936
      %v4943 = vshll.u32 %v4942, 16
      %v4944 = vadd.s32 %v4943, %v4941
      %v4945 = vsel %vm638, %v4899, 2147483647
      %v4946 = vand.u32 %v4945, 65535
      %v4947 = vshra.s32 %v4945, 16
      %v4948 = vcvt.s32.f32 %v4946
      %v4949 = vcvt.s32.f32 %v4947
      %4950 = vmin.xlane.f32.xlu0 %v4949
      %v4951 = vpop.xlane.xlu0 %4950
      %vm4952 = vcmp.eq.f32.partialorder %v4949, %v4951
      %v4953 = vsel %vm4952, %v4948, inf
      %4954 = vmin.xlane.f32.xlu0 %v4953
      %v4955 = vpop.xlane.xlu0 %4954
      %v4956 = vcvt.f32.s32 %v4955
      %v4957 = vcvt.f32.s32 %v4951
      %v4958 = vshll.u32 %v4957, 16
      %v4959 = vadd.s32 %v4958, %v4956
      %vm4960 = vcmp.eq.s32.totalorder %v953, %v4914
      %vm4961 = vcmp.eq.s32.totalorder %v953, %v4929
      %vm4962 = vcmp.eq.s32.totalorder %v953, %v4944
      %vm4963 = vcmp.eq.s32.totalorder %v953, %v4959
      %v4964 = vsel %vm4960, 1, 0
      %v4965 = vsel %vm4961, 1, 0
      %v4966 = vsel %vm4962, 1, 0
      %v4967 = vsel %vm4963, 1, 0
      %v4968 = vcvt.s32.f32 %v4964
      %v4969 = vcvt.s32.f32 %v4965
      %v4970 = vcvt.s32.f32 %v4966
      %v4971 = vcvt.s32.f32 %v4967
      %v4972 = vpack.c.bf16 %v4969, %v4968
      %v4973 = vpack.c.bf16 %v4971, %v4970
      %v4974 = vsel %vm4960, -inf, %v4876
      %v4975 = vsel %vm4961, -inf, %v4877
      %v4976 = vsel %vm4962, -inf, %v4878
      %v4977 = vsel %vm4963, -inf, %v4879
      %v4978 = vsel %vm638, %v4974, -inf
      %4979 = vmax.xlane.f32.xlu0 %v4978
      %v4980 = vpop.xlane.xlu0 %4979
      %v4981 = vsel %vm638, %v4975, -inf
      %4982 = vmax.xlane.f32.xlu0 %v4981
      %v4983 = vpop.xlane.xlu0 %4982
      %v4984 = vsel %vm638, %v4976, -inf
      %4985 = vmax.xlane.f32.xlu0 %v4984
      %v4986 = vpop.xlane.xlu0 %4985
      %v4987 = vsel %vm638, %v4977, -inf
      %4988 = vmax.xlane.f32.xlu0 %v4987
      %v4989 = vpop.xlane.xlu0 %4988
      %vm4990 = vcmp.ge.f32.partialorder %v4974, %v4980
      %vm4991 = vcmp.ge.f32.partialorder %v4975, %v4983
      %vm4992 = vcmp.ge.f32.partialorder %v4976, %v4986
      %vm4993 = vcmp.ge.f32.partialorder %v4977, %v4989
      %v4994 = vsel %vm4990, %v953, 32
      %v4995 = vsel %vm4991, %v953, 32
      %v4996 = vsel %vm4992, %v953, 32
      %v4997 = vsel %vm4993, %v953, 32
      %v4998 = vsel %vm638, %v4994, 2147483647
      %v4999 = vand.u32 %v4998, 65535
      %v5000 = vshra.s32 %v4998, 16
      %v5001 = vcvt.s32.f32 %v4999
      %v5002 = vcvt.s32.f32 %v5000
      %5003 = vmin.xlane.f32.xlu0 %v5002
      %v5004 = vpop.xlane.xlu0 %5003
      %vm5005 = vcmp.eq.f32.partialorder %v5002, %v5004
      %v5006 = vsel %vm5005, %v5001, inf
      %5007 = vmin.xlane.f32.xlu0 %v5006
      %v5008 = vpop.xlane.xlu0 %5007
      %v5009 = vcvt.f32.s32 %v5008
      %v5010 = vcvt.f32.s32 %v5004
      %v5011 = vshll.u32 %v5010, 16
      %v5012 = vadd.s32 %v5011, %v5009
      %v5013 = vsel %vm638, %v4995, 2147483647
      %v5014 = vand.u32 %v5013, 65535
      %v5015 = vshra.s32 %v5013, 16
      %v5016 = vcvt.s32.f32 %v5014
      %v5017 = vcvt.s32.f32 %v5015
      %5018 = vmin.xlane.f32.xlu0 %v5017
      %v5019 = vpop.xlane.xlu0 %5018
      %vm5020 = vcmp.eq.f32.partialorder %v5017, %v5019
      %v5021 = vsel %vm5020, %v5016, inf
      %5022 = vmin.xlane.f32.xlu0 %v5021
      %v5023 = vpop.xlane.xlu0 %5022
      %v5024 = vcvt.f32.s32 %v5023
      %v5025 = vcvt.f32.s32 %v5019
      %v5026 = vshll.u32 %v5025, 16
      %v5027 = vadd.s32 %v5026, %v5024
      %v5028 = vsel %vm638, %v4996, 2147483647
      %v5029 = vand.u32 %v5028, 65535
      %v5030 = vshra.s32 %v5028, 16
      %v5031 = vcvt.s32.f32 %v5029
      %v5032 = vcvt.s32.f32 %v5030
      %5033 = vmin.xlane.f32.xlu0 %v5032
      %v5034 = vpop.xlane.xlu0 %5033
      %vm5035 = vcmp.eq.f32.partialorder %v5032, %v5034
      %v5036 = vsel %vm5035, %v5031, inf
      %5037 = vmin.xlane.f32.xlu0 %v5036
      %v5038 = vpop.xlane.xlu0 %5037
      %v5039 = vcvt.f32.s32 %v5038
      %v5040 = vcvt.f32.s32 %v5034
      %v5041 = vshll.u32 %v5040, 16
      %v5042 = vadd.s32 %v5041, %v5039
      %v5043 = vsel %vm638, %v4997, 2147483647
      %v5044 = vand.u32 %v5043, 65535
      %v5045 = vshra.s32 %v5043, 16
      %v5046 = vcvt.s32.f32 %v5044
      %v5047 = vcvt.s32.f32 %v5045
      %5048 = vmin.xlane.f32.xlu0 %v5047
      %v5049 = vpop.xlane.xlu0 %5048
      %vm5050 = vcmp.eq.f32.partialorder %v5047, %v5049
      %v5051 = vsel %vm5050, %v5046, inf
      %5052 = vmin.xlane.f32.xlu0 %v5051
      %v5053 = vpop.xlane.xlu0 %5052
      %v5054 = vcvt.f32.s32 %v5053
      %v5055 = vcvt.f32.s32 %v5049
      %v5056 = vshll.u32 %v5055, 16
      %v5057 = vadd.s32 %v5056, %v5054
      %vm5058 = vcmp.eq.s32.totalorder %v953, %v5012
      %vm5059 = vcmp.eq.s32.totalorder %v953, %v5027
      %vm5060 = vcmp.eq.s32.totalorder %v953, %v5042
      %vm5061 = vcmp.eq.s32.totalorder %v953, %v5057
      %v5062 = vsel %vm5058, 1, 0
      %v5063 = vsel %vm5059, 1, 0
      %v5064 = vsel %vm5060, 1, 0
      %v5065 = vsel %vm5061, 1, 0
      %v5066 = vcvt.s32.f32 %v5062
      %v5067 = vcvt.s32.f32 %v5063
      %v5068 = vcvt.s32.f32 %v5064
      %v5069 = vcvt.s32.f32 %v5065
      %v5070 = vpack.c.bf16 %v5067, %v5066
      %v5071 = vpack.c.bf16 %v5069, %v5068
      %v5072 = vpack.c.bf16 %v3971, %v3970
      %v5073 = vpack.c.bf16 %v3973, %v3972
      %s5074 = scalar_lea.vmem %s8, 32
      %v5075 = vld [vmem:[%s5074] sm:$0xf]
      %v5076 = vld [vmem:[%s5074 + $0x4] sm:$0xf]
      %v5077 = vld [vmem:[%s5074 + $0x8] sm:$0xf]
      %v5078 = vld [vmem:[%s5074 + $0xc] sm:$0xf]
      %v5083 = vunpack.c.l.b16 %v5075
      %v5084 = vunpack.c.l.b16 %v5076
      %v5085 = vunpack.c.l.b16 %v5077
      %v5086 = vunpack.c.l.b16 %v5078
      %v5087 = vpack.c.b16 %v5084, %v5083
      %v5088 = vpack.c.b16 %v5086, %v5085
      %v5092 = vsel %vm638, %v5072, 0
      %v5095 = vsel %vm638, %v5073, 0
      %5097 = vmatprep.subr.bf16.mxu0 0
      %5098 = vmatpush1.bf16.msra.mxu0 %v5087
      %5099 = vmatprep.subr.bf16.mxu0 0
      %5100 = vmatpush1.bf16.msra.mxu0 %v5088
      %5101 = vmatprep.subr.bf16.mxu0 0
      %5102 = vmatpush1.bf16.msra.mxu0 0
      %5103 = vmatprep.subr.bf16.mxu0 0
      %5104 = vmatpush1.bf16.msra.mxu0 0
      %5105 = vmatprep.subr.bf16.mxu0 0
      %5106 = vmatpush1.bf16.msra.mxu0 0
      %5107 = vmatprep.subr.bf16.mxu0 0
      %5108 = vmatpush1.bf16.msra.mxu0 0
      %5109 = vmatprep.subr.bf16.mxu0 0
      %5110 = vmatpush1.bf16.msra.mxu0 0
      %5111 = vmatprep.subr.bf16.mxu0 0
      %5112 = vmatpush1.bf16.msra.mxu0 0
      %5113 = vmatprep.subr.bf16.mxu0 0
      %5114 = vmatpush1.bf16.msra.mxu0 0
      %5115 = vmatprep.subr.bf16.mxu0 0
      %5116 = vmatpush1.bf16.msra.mxu0 0
      %5117 = vmatprep.subr.bf16.mxu0 0
      %5118 = vmatpush1.bf16.msra.mxu0 0
      %5119 = vmatprep.subr.bf16.mxu0 0
      %5120 = vmatpush1.bf16.msra.mxu0 0
      %5121 = vmatprep.subr.bf16.mxu0 0
      %5122 = vmatpush1.bf16.msra.mxu0 0
      %5123 = vmatprep.subr.bf16.mxu0 0
      %5124 = vmatpush1.bf16.msra.mxu0 0
      %5125 = vmatprep.subr.bf16.mxu0 0
      %5126 = vmatpush1.bf16.msra.mxu0 0
      %5127 = vmatprep.subr.bf16.mxu0 0
      %5128 = vmatpush1.bf16.msra.mxu0 0
      %5129 = vmatprep.mubr.bf16.mxu0 0
      %5130 = vmatmul.mubr.bf16.gmra.mrb[0].mxu0 %v5092
      %v5131 = vpop.f32.mrb[0].mxu0
      %v5132 = vadd.f32 0.0, %v5131
      %v5133 = vpop.f32.mrb[0].mxu0
      %v5134 = vpop.f32.mrb[0].mxu0
      %v5135 = vadd.f32 0.0, %v5134
      %v5136 = vpop.f32.mrb[0].mxu0
      %5137 = vmatprep.mubr.bf16.mxu0 0
      %5138 = vmatmul.mubr.bf16.gmra.mrb[0].mxu0 %v5095
      %v5139 = vpop.f32.mrb[0].mxu0
      %v5140 = vadd.f32 0.0, %v5139
      %v5141 = vpop.f32.mrb[0].mxu0
      %v5142 = vpop.f32.mrb[0].mxu0
      %v5143 = vadd.f32 0.0, %v5142
      %v5144 = vpop.f32.mrb[0].mxu0
      %5145 = vdwg.mxu0
      %v5146 = vpack.c.bf16 %v5135, %v5132
      %v5147 = vpack.c.bf16 %v5143, %v5140
      %s5148 = scalar_lea.vmem %s9, 2
      %v5149 = vld [vmem:[%s5148] sm:$0x1]
      %v5151 = vlaneseq
      %v5152 = vshrl.u32 %v5151, 7
      %v5153 = vsub.s32 0, %v5152
      %v5154 = vrot.slane %v5149, %v5153
      %5155 = vrot.lane.b32.xlu0 %v5154, 32
      %v5156 = vpop.permute.xlu0 %5155
      %v5158 = vadd.f32 %v5132, %v5156
      %v5159 = vadd.f32 %v5135, %v5156
      %v5160 = vadd.f32 %v5140, %v5156
      %v5161 = vadd.f32 %v5143, %v5156
      %v5163 = vsel %vm638, %v4188, 0
      %v5166 = vsel %vm638, %v4189, 0
      %v5169 = vsel %vm638, %v4286, 0
      %v5172 = vsel %vm638, %v4287, 0
      %v5175 = vsel %vm638, %v4384, 0
      %v5178 = vsel %vm638, %v4385, 0
      %v5181 = vsel %vm638, %v4482, 0
      %v5184 = vsel %vm638, %v4483, 0
      %v5187 = vsel %vm638, %v4580, 0
      %v5190 = vsel %vm638, %v4581, 0
      %v5193 = vsel %vm638, %v4678, 0
      %v5196 = vsel %vm638, %v4679, 0
      %v5199 = vsel %vm638, %v4776, 0
      %v5202 = vsel %vm638, %v4777, 0
      %v5205 = vsel %vm638, %v4874, 0
      %v5208 = vsel %vm638, %v4875, 0
      %v5211 = vsel %vm638, %v4972, 0
      %v5214 = vsel %vm638, %v4973, 0
      %v5217 = vsel %vm638, %v5070, 0
      %v5220 = vsel %vm638, %v5071, 0
      %5222 = vmatprep.subr.bf16.mxu0 0
      %5223 = vmatpush1.bf16.msra.mxu0 %v5146
      %5224 = vmatprep.subr.bf16.mxu0 0
      %5225 = vmatpush1.bf16.msra.mxu0 %v5147
      %5226 = vmatprep.subr.bf16.mxu0 0
      %5227 = vmatpush1.bf16.msra.mxu0 0
      %5228 = vmatprep.subr.bf16.mxu0 0
      %5229 = vmatpush1.bf16.msra.mxu0 0
      %5230 = vmatprep.subr.bf16.mxu0 0
      %5231 = vmatpush1.bf16.msra.mxu0 0
      %5232 = vmatprep.subr.bf16.mxu0 0
      %5233 = vmatpush1.bf16.msra.mxu0 0
      %5234 = vmatprep.subr.bf16.mxu0 0
      %5235 = vmatpush1.bf16.msra.mxu0 0
      %5236 = vmatprep.subr.bf16.mxu0 0
      %5237 = vmatpush1.bf16.msra.mxu0 0
      %5238 = vmatprep.subr.bf16.mxu0 0
      %5239 = vmatpush1.bf16.msra.mxu0 0
      %5240 = vmatprep.subr.bf16.mxu0 0
      %5241 = vmatpush1.bf16.msra.mxu0 0
      %5242 = vmatprep.subr.bf16.mxu0 0
      %5243 = vmatpush1.bf16.msra.mxu0 0
      %5244 = vmatprep.subr.bf16.mxu0 0
      %5245 = vmatpush1.bf16.msra.mxu0 0
      %5246 = vmatprep.subr.bf16.mxu0 0
      %5247 = vmatpush1.bf16.msra.mxu0 0
      %5248 = vmatprep.subr.bf16.mxu0 0
      %5249 = vmatpush1.bf16.msra.mxu0 0
      %5250 = vmatprep.subr.bf16.mxu0 0
      %5251 = vmatpush1.bf16.msra.mxu0 0
      %5252 = vmatprep.subr.bf16.mxu0 0
      %5253 = vmatpush1.bf16.msra.mxu0 0
      %5254 = vmatprep.mubr.bf16.mxu0 0
      %5255 = vmatmul.mubr.bf16.gmra.mrb[0].mxu0 %v5163
      %v5256 = vpop.f32.mrb[0].mxu0
      %v5257 = vadd.f32 0.0, %v5256
      %v5258 = vpop.f32.mrb[0].mxu0
      %v5259 = vpop.f32.mrb[0].mxu0
      %v5260 = vadd.f32 0.0, %v5259
      %v5261 = vpop.f32.mrb[0].mxu0
      %5262 = vmatprep.mubr.bf16.mxu0 0
      %5263 = vmatmul.mubr.bf16.gmra.mrb[0].mxu0 %v5166
      %v5264 = vpop.f32.mrb[0].mxu0
      %v5265 = vadd.f32 0.0, %v5264
      %v5266 = vpop.f32.mrb[0].mxu0
      %v5267 = vpop.f32.mrb[0].mxu0
      %v5268 = vadd.f32 0.0, %v5267
      %v5269 = vpop.f32.mrb[0].mxu0
      %5270 = vmatprep.mubr.bf16.mxu0 0
      %5271 = vmatmul.mubr.bf16.gmra.mrb[0].mxu0 %v5169
      %v5272 = vpop.f32.mrb[0].mxu0
      %v5273 = vadd.f32 0.0, %v5272
      %v5274 = vpop.f32.mrb[0].mxu0
      %v5275 = vpop.f32.mrb[0].mxu0
      %v5276 = vadd.f32 0.0, %v5275
      %v5277 = vpop.f32.mrb[0].mxu0
      %5278 = vmatprep.mubr.bf16.mxu0 0
      %5279 = vmatmul.mubr.bf16.gmra.mrb[0].mxu0 %v5172
      %v5280 = vpop.f32.mrb[0].mxu0
      %v5281 = vadd.f32 0.0, %v5280
      %v5282 = vpop.f32.mrb[0].mxu0
      %v5283 = vpop.f32.mrb[0].mxu0
      %v5284 = vadd.f32 0.0, %v5283
      %v5285 = vpop.f32.mrb[0].mxu0
      %5286 = vmatprep.mubr.bf16.mxu0 0
      %5287 = vmatmul.mubr.bf16.gmra.mrb[0].mxu0 %v5175
      %v5288 = vpop.f32.mrb[0].mxu0
      %v5289 = vadd.f32 0.0, %v5288
      %v5290 = vpop.f32.mrb[0].mxu0
      %v5291 = vpop.f32.mrb[0].mxu0
      %v5292 = vadd.f32 0.0, %v5291
      %v5293 = vpop.f32.mrb[0].mxu0
      %5294 = vmatprep.mubr.bf16.mxu0 0
      %5295 = vmatmul.mubr.bf16.gmra.mrb[0].mxu0 %v5178
      %v5296 = vpop.f32.mrb[0].mxu0
      %v5297 = vadd.f32 0.0, %v5296
      %v5298 = vpop.f32.mrb[0].mxu0
      %v5299 = vpop.f32.mrb[0].mxu0
      %v5300 = vadd.f32 0.0, %v5299
      %v5301 = vpop.f32.mrb[0].mxu0
      %5302 = vmatprep.mubr.bf16.mxu0 0
      %5303 = vmatmul.mubr.bf16.gmra.mrb[0].mxu0 %v5181
      %v5304 = vpop.f32.mrb[0].mxu0
      %v5305 = vadd.f32 0.0, %v5304
      %v5306 = vpop.f32.mrb[0].mxu0
      %v5307 = vpop.f32.mrb[0].mxu0
      %v5308 = vadd.f32 0.0, %v5307
      %v5309 = vpop.f32.mrb[0].mxu0
      %5310 = vmatprep.mubr.bf16.mxu0 0
      %5311 = vmatmul.mubr.bf16.gmra.mrb[0].mxu0 %v5184
      %v5312 = vpop.f32.mrb[0].mxu0
      %v5313 = vadd.f32 0.0, %v5312
      %v5314 = vpop.f32.mrb[0].mxu0
      %v5315 = vpop.f32.mrb[0].mxu0
      %v5316 = vadd.f32 0.0, %v5315
      %v5317 = vpop.f32.mrb[0].mxu0
      %5318 = vmatprep.mubr.bf16.mxu0 0
      %5319 = vmatmul.mubr.bf16.gmra.mrb[0].mxu0 %v5187
      %v5320 = vpop.f32.mrb[0].mxu0
      %v5321 = vadd.f32 0.0, %v5320
      %v5322 = vpop.f32.mrb[0].mxu0
      %v5323 = vpop.f32.mrb[0].mxu0
      %v5324 = vadd.f32 0.0, %v5323
      %v5325 = vpop.f32.mrb[0].mxu0
      %5326 = vmatprep.mubr.bf16.mxu0 0
      %5327 = vmatmul.mubr.bf16.gmra.mrb[0].mxu0 %v5190
      %v5328 = vpop.f32.mrb[0].mxu0
      %v5329 = vadd.f32 0.0, %v5328
      %v5330 = vpop.f32.mrb[0].mxu0
      %v5331 = vpop.f32.mrb[0].mxu0
      %v5332 = vadd.f32 0.0, %v5331
      %v5333 = vpop.f32.mrb[0].mxu0
      %5334 = vmatprep.mubr.bf16.mxu0 0
      %5335 = vmatmul.mubr.bf16.gmra.mrb[0].mxu0 %v5193
      %v5336 = vpop.f32.mrb[0].mxu0
      %v5337 = vadd.f32 0.0, %v5336
      %v5338 = vpop.f32.mrb[0].mxu0
      %v5339 = vpop.f32.mrb[0].mxu0
      %v5340 = vadd.f32 0.0, %v5339
      %v5341 = vpop.f32.mrb[0].mxu0
      %5342 = vmatprep.mubr.bf16.mxu0 0
      %5343 = vmatmul.mubr.bf16.gmra.mrb[0].mxu0 %v5196
      %v5344 = vpop.f32.mrb[0].mxu0
      %v5345 = vadd.f32 0.0, %v5344
      %v5346 = vpop.f32.mrb[0].mxu0
      %v5347 = vpop.f32.mrb[0].mxu0
      %v5348 = vadd.f32 0.0, %v5347
      %v5349 = vpop.f32.mrb[0].mxu0
      %5350 = vmatprep.mubr.bf16.mxu0 0
      %5351 = vmatmul.mubr.bf16.gmra.mrb[0].mxu0 %v5199
      %v5352 = vpop.f32.mrb[0].mxu0
      %v5353 = vadd.f32 0.0, %v5352
      %v5354 = vpop.f32.mrb[0].mxu0
      %v5355 = vpop.f32.mrb[0].mxu0
      %v5356 = vadd.f32 0.0, %v5355
      %v5357 = vpop.f32.mrb[0].mxu0
      %5358 = vmatprep.mubr.bf16.mxu0 0
      %5359 = vmatmul.mubr.bf16.gmra.mrb[0].mxu0 %v5202
      %v5360 = vpop.f32.mrb[0].mxu0
      %v5361 = vadd.f32 0.0, %v5360
      %v5362 = vpop.f32.mrb[0].mxu0
      %v5363 = vpop.f32.mrb[0].mxu0
      %v5364 = vadd.f32 0.0, %v5363
      %v5365 = vpop.f32.mrb[0].mxu0
      %5366 = vmatprep.mubr.bf16.mxu0 0
      %5367 = vmatmul.mubr.bf16.gmra.mrb[0].mxu0 %v5205
      %v5368 = vpop.f32.mrb[0].mxu0
      %v5369 = vadd.f32 0.0, %v5368
      %v5370 = vpop.f32.mrb[0].mxu0
      %v5371 = vpop.f32.mrb[0].mxu0
      %v5372 = vadd.f32 0.0, %v5371
      %v5373 = vpop.f32.mrb[0].mxu0
      %5374 = vmatprep.mubr.bf16.mxu0 0
      %5375 = vmatmul.mubr.bf16.gmra.mrb[0].mxu0 %v5208
      %v5376 = vpop.f32.mrb[0].mxu0
      %v5377 = vadd.f32 0.0, %v5376
      %v5378 = vpop.f32.mrb[0].mxu0
      %v5379 = vpop.f32.mrb[0].mxu0
      %v5380 = vadd.f32 0.0, %v5379
      %v5381 = vpop.f32.mrb[0].mxu0
      %5382 = vmatprep.mubr.bf16.mxu0 0
      %5383 = vmatmul.mubr.bf16.gmra.mrb[0].mxu0 %v5211
      %v5384 = vpop.f32.mrb[0].mxu0
      %v5385 = vadd.f32 0.0, %v5384
      %v5386 = vpop.f32.mrb[0].mxu0
      %v5387 = vpop.f32.mrb[0].mxu0
      %v5388 = vadd.f32 0.0, %v5387
      %v5389 = vpop.f32.mrb[0].mxu0
      %5390 = vmatprep.mubr.bf16.mxu0 0
      %5391 = vmatmul.mubr.bf16.gmra.mrb[0].mxu0 %v5214
      %v5392 = vpop.f32.mrb[0].mxu0
      %v5393 = vadd.f32 0.0, %v5392
      %v5394 = vpop.f32.mrb[0].mxu0
      %v5395 = vpop.f32.mrb[0].mxu0
      %v5396 = vadd.f32 0.0, %v5395
      %v5397 = vpop.f32.mrb[0].mxu0
      %5398 = vmatprep.mubr.bf16.mxu0 0
      %5399 = vmatmul.mubr.bf16.gmra.mrb[0].mxu0 %v5217
      %v5400 = vpop.f32.mrb[0].mxu0
      %v5401 = vadd.f32 0.0, %v5400
      %v5402 = vpop.f32.mrb[0].mxu0
      %v5403 = vpop.f32.mrb[0].mxu0
      %v5404 = vadd.f32 0.0, %v5403
      %v5405 = vpop.f32.mrb[0].mxu0
      %5406 = vmatprep.mubr.bf16.mxu0 0
      %5407 = vmatmul.mubr.bf16.gmra.mrb[0].mxu0 %v5220
      %v5408 = vpop.f32.mrb[0].mxu0
      %v5409 = vadd.f32 0.0, %v5408
      %v5410 = vpop.f32.mrb[0].mxu0
      %v5411 = vpop.f32.mrb[0].mxu0
      %v5412 = vadd.f32 0.0, %v5411
      %v5413 = vpop.f32.mrb[0].mxu0
      %5414 = vdwg.mxu0
      %v5415 = vmax.f32 %v5257, %v5273
      %v5416 = vmax.f32 %v5260, %v5276
      %v5417 = vmax.f32 %v5265, %v5281
      %v5418 = vmax.f32 %v5268, %v5284
      %v5419 = vmax.f32 %v5415, %v5289
      %v5420 = vmax.f32 %v5416, %v5292
      %v5421 = vmax.f32 %v5417, %v5297
      %v5422 = vmax.f32 %v5418, %v5300
      %v5423 = vmax.f32 %v5419, %v5305
      %v5424 = vmax.f32 %v5420, %v5308
      %v5425 = vmax.f32 %v5421, %v5313
      %v5426 = vmax.f32 %v5422, %v5316
      %v5427 = vmax.f32 %v5423, %v5321
      %v5428 = vmax.f32 %v5424, %v5324
      %v5429 = vmax.f32 %v5425, %v5329
      %v5430 = vmax.f32 %v5426, %v5332
      %v5431 = vmax.f32 %v5427, %v5337
      %v5432 = vmax.f32 %v5428, %v5340
      %v5433 = vmax.f32 %v5429, %v5345
      %v5434 = vmax.f32 %v5430, %v5348
      %v5435 = vmax.f32 %v5431, %v5353
      %v5436 = vmax.f32 %v5432, %v5356
      %v5437 = vmax.f32 %v5433, %v5361
      %v5438 = vmax.f32 %v5434, %v5364
      %v5439 = vmax.f32 %v5435, %v5369
      %v5440 = vmax.f32 %v5436, %v5372
      %v5441 = vmax.f32 %v5437, %v5377
      %v5442 = vmax.f32 %v5438, %v5380
      %v5443 = vmax.f32 %v5439, %v5385
      %v5444 = vmax.f32 %v5440, %v5388
      %v5445 = vmax.f32 %v5441, %v5393
      %v5446 = vmax.f32 %v5442, %v5396
      %v5447 = vmax.f32 %v5443, %v5401
      %v5448 = vmax.f32 %v5444, %v5404
      %v5449 = vmax.f32 %v5445, %v5409
      %v5450 = vmax.f32 %v5446, %v5412
      %5455 = vrot.lane.b32.xlu0 %v5158, 96
      %v5456 = vpop.permute.xlu0 %5455
      %5457 = vrot.lane.b32.xlu0 %v5159, 96
      %v5458 = vpop.permute.xlu0 %5457
      %5459 = vrot.lane.b32.xlu0 %v5160, 96
      %v5460 = vpop.permute.xlu0 %5459
      %5461 = vrot.lane.b32.xlu0 %v5161, 96
      %v5462 = vpop.permute.xlu0 %5461
      %v5467 = vadd.f32 %v5447, %v5456
      %v5468 = vadd.f32 %v5448, %v5458
      %v5469 = vadd.f32 %v5449, %v5460
      %v5470 = vadd.f32 %v5450, %v5462
      %vm5471 = vcmp.gt.f32.partialorder %v5467, 0.0
      %vm5472 = vcmp.gt.f32.partialorder %v5468, 0.0
      %vm5473 = vcmp.gt.f32.partialorder %v5469, 0.0
      %vm5474 = vcmp.gt.f32.partialorder %v5470, 0.0
      %v5475 = vmul.f32 %v5467, 0.2
      %v5476 = vmul.f32 %v5468, 0.2
      %v5477 = vmul.f32 %v5469, 0.2
      %v5478 = vmul.f32 %v5470, 0.2
      %v5479 = vsel %vm5471, %v5467, %v5475
      %v5480 = vsel %vm5472, %v5468, %v5476
      %v5481 = vsel %vm5473, %v5469, %v5477
      %v5482 = vsel %vm5474, %v5470, %v5478
      %v5483 = vmul.f32 %v5479, %v5479
      %v5484 = vmul.f32 %v5480, %v5480
      %v5485 = vmul.f32 %v5481, %v5481
      %v5486 = vmul.f32 %v5482, %v5482
      %v5487 = vsel %vm638, %v5483, 0.0
      %5488 = vadd.xlane.f32.xlu0 %v5487
      %v5489 = vpop.xlane.xlu0 %5488
      %v5490 = vsel %vm638, %v5484, 0.0
      %5491 = vadd.xlane.f32.xlu0 %v5490
      %v5492 = vpop.xlane.xlu0 %5491
      %v5493 = vsel %vm638, %v5485, 0.0
      %5494 = vadd.xlane.f32.xlu0 %v5493
      %v5495 = vpop.xlane.xlu0 %5494
      %v5496 = vsel %vm638, %v5486, 0.0
      %5497 = vadd.xlane.f32.xlu0 %v5496
      %v5498 = vpop.xlane.xlu0 %5497
      %v5499 = vadd.f32 %v5489, 1e-12
      %v5500 = vadd.f32 %v5492, 1e-12
      %v5501 = vadd.f32 %v5495, 1e-12
      %v5502 = vadd.f32 %v5498, 1e-12
      %v5503 = vrsqrt.pop %v5499
      %v5504 = vrsqrt.pop %v5500
      %v5505 = vrsqrt.pop %v5501
      %v5506 = vrsqrt.pop %v5502
      %v5507 = vmul.f32 %v5479, %v5503
      %v5508 = vmul.f32 %v5480, %v5504
      %v5509 = vmul.f32 %v5481, %v5505
      %v5510 = vmul.f32 %v5482, %v5506
      %v5511 = vpack.c.bf16 %v5508, %v5507
      %v5512 = vpack.c.bf16 %v5510, %v5509
      %v5513 = vmul.f32 %v462, %v462
      %v5514 = vmul.f32 %v463, %v463
      %v5515 = vmul.f32 %v464, %v464
      %v5516 = vmul.f32 %v465, %v465
      %v5517 = vmul.f32 %v466, %v466
      %v5518 = vmul.f32 %v467, %v467
      %v5519 = vmul.f32 %v468, %v468
      %v5520 = vmul.f32 %v469, %v469
      %v5521 = vadd.f32 %v5513, %v5515
      %v5522 = vadd.f32 %v5521, %v5517
      %v5523 = vadd.f32 %v5522, %v5519
      %v5524 = vrot.slane %v5523, 4
      %v5525 = vadd.f32 %v5523, %v5524
      %v5526 = vrot.slane %v5525, 2
      %v5527 = vadd.f32 %v5525, %v5526
      %v5528 = vrot.slane %v5527, 1
      %v5529 = vadd.f32 %v5527, %v5528
      %v5530 = vadd.f32 %v5514, %v5516
      %v5531 = vadd.f32 %v5530, %v5518
      %v5532 = vadd.f32 %v5531, %v5520
      %v5533 = vrot.slane %v5532, 4
      %v5534 = vadd.f32 %v5532, %v5533
      %v5535 = vrot.slane %v5534, 2
      %v5536 = vadd.f32 %v5534, %v5535
      %v5537 = vrot.slane %v5536, 1
      %v5538 = vadd.f32 %v5536, %v5537
      %v5539 = vadd.f32 %v5529, 1e-12
      %v5540 = vadd.f32 %v5538, 1e-12
      %v5541 = vrsqrt.pop %v5539
      %v5542 = vrsqrt.pop %v5540
      %v5543 = vmul.f32 %v462, %v5541
      %v5544 = vmul.f32 %v463, %v5542
      %v5545 = vmul.f32 %v464, %v5541
      %v5546 = vmul.f32 %v465, %v5542
      %v5547 = vmul.f32 %v466, %v5541
      %v5548 = vmul.f32 %v467, %v5542
      %v5549 = vmul.f32 %v468, %v5541
      %v5550 = vmul.f32 %v469, %v5542
      %v5551 = vpack.c.bf16 %v5545, %v5543
      %v5552 = vpack.c.bf16 %v5546, %v5544
      %v5553 = vpack.c.bf16 %v5549, %v5547
      %v5554 = vpack.c.bf16 %v5550, %v5548
      %v5556 = vsel %vm638, %v5511, 0
      %v5559 = vsel %vm638, %v5512, 0
      %5561 = vmatprep.subr.bf16.mxu0 %v5552
      %5562 = vmatpush1.bf16.msra.mxu0 %v5551
      %5563 = vmatprep.subr.bf16.mxu0 %v5554
      %5564 = vmatpush1.bf16.msra.mxu0 %v5553
      %5565 = vmatprep.subr.bf16.mxu0 0
      %5566 = vmatpush1.bf16.msra.mxu0 0
      %5567 = vmatprep.subr.bf16.mxu0 0
      %5568 = vmatpush1.bf16.msra.mxu0 0
      %5569 = vmatprep.subr.bf16.mxu0 0
      %5570 = vmatpush1.bf16.msra.mxu0 0
      %5571 = vmatprep.subr.bf16.mxu0 0
      %5572 = vmatpush1.bf16.msra.mxu0 0
      %5573 = vmatprep.subr.bf16.mxu0 0
      %5574 = vmatpush1.bf16.msra.mxu0 0
      %5575 = vmatprep.subr.bf16.mxu0 0
      %5576 = vmatpush1.bf16.msra.mxu0 0
      %5577 = vmatprep.subr.bf16.mxu0 0
      %5578 = vmatpush1.bf16.msra.mxu0 0
      %5579 = vmatprep.subr.bf16.mxu0 0
      %5580 = vmatpush1.bf16.msra.mxu0 0
      %5581 = vmatprep.subr.bf16.mxu0 0
      %5582 = vmatpush1.bf16.msra.mxu0 0
      %5583 = vmatprep.subr.bf16.mxu0 0
      %5584 = vmatpush1.bf16.msra.mxu0 0
      %5585 = vmatprep.subr.bf16.mxu0 0
      %5586 = vmatpush1.bf16.msra.mxu0 0
      %5587 = vmatprep.subr.bf16.mxu0 0
      %5588 = vmatpush1.bf16.msra.mxu0 0
      %5589 = vmatprep.subr.bf16.mxu0 0
      %5590 = vmatpush1.bf16.msra.mxu0 0
      %5591 = vmatprep.subr.bf16.mxu0 0
      %5592 = vmatpush1.bf16.msra.mxu0 0
      %5593 = vmatprep.mubr.bf16.mxu0 0
      %5594 = vmatmul.mubr.bf16.gmra.mrb[0].mxu0 %v5556
      %v5595 = vpop.f32.mrb[0].mxu0
      %v5596 = vadd.f32 0.0, %v5595
      %v5597 = vpop.f32.mrb[0].mxu0
      %v5598 = vadd.f32 0.0, %v5597
      %v5599 = vpop.f32.mrb[0].mxu0
      %v5600 = vadd.f32 0.0, %v5599
      %v5601 = vpop.f32.mrb[0].mxu0
      %v5602 = vadd.f32 0.0, %v5601
      %5603 = vmatprep.mubr.bf16.mxu0 0
      %5604 = vmatmul.mubr.bf16.gmra.mrb[0].mxu0 %v5559
      %v5605 = vpop.f32.mrb[0].mxu0
      %v5606 = vadd.f32 0.0, %v5605
      %v5607 = vpop.f32.mrb[0].mxu0
      %v5608 = vadd.f32 0.0, %v5607
      %v5609 = vpop.f32.mrb[0].mxu0
      %v5610 = vadd.f32 0.0, %v5609
      %v5611 = vpop.f32.mrb[0].mxu0
      %v5612 = vadd.f32 0.0, %v5611
      %5613 = vdwg.mxu0
      %v5614 = vld [vmem:[%s455] sm:$0xff]
      %v5616 = vcombine.high %v5614, %v5614
      %v5618 = vpack.c.bf16 %v5614, %v5614
      %v5619 = vpack.c.bf16 %v5616, %v5616
      %v5620 = vld [vmem:[%s10] sm:$0x3]
      %v5621 = vld [vmem:[%s11] sm:$0x3]
      %v5622 = vpack.c.bf16 %v5600, %v5596
      %v5623 = vpack.c.bf16 %v5602, %v5598
      %v5624 = vpack.c.bf16 %v5610, %v5606
      %v5625 = vpack.c.bf16 %v5612, %v5608
      %v5627 = vsel %vm638, %v5621, 0
      %5629 = vmatprep.subr.bf16.mxu0 %v5623
      %5630 = vmatpush1.bf16.msra.mxu0 %v5622
      %5631 = vmatprep.subr.bf16.mxu0 %v5625
      %5632 = vmatpush1.bf16.msra.mxu0 %v5624
      %5633 = vmatprep.subr.bf16.mxu0 0
      %5634 = vmatpush1.bf16.msra.mxu0 0
      %5635 = vmatprep.subr.bf16.mxu0 0
      %5636 = vmatpush1.bf16.msra.mxu0 0
      %5637 = vmatprep.subr.bf16.mxu0 0
      %5638 = vmatpush1.bf16.msra.mxu0 0
      %5639 = vmatprep.subr.bf16.mxu0 0
      %5640 = vmatpush1.bf16.msra.mxu0 0
      %5641 = vmatprep.subr.bf16.mxu0 0
      %5642 = vmatpush1.bf16.msra.mxu0 0
      %5643 = vmatprep.subr.bf16.mxu0 0
      %5644 = vmatpush1.bf16.msra.mxu0 0
      %5645 = vmatprep.subr.bf16.mxu0 0
      %5646 = vmatpush1.bf16.msra.mxu0 0
      %5647 = vmatprep.subr.bf16.mxu0 0
      %5648 = vmatpush1.bf16.msra.mxu0 0
      %5649 = vmatprep.subr.bf16.mxu0 0
      %5650 = vmatpush1.bf16.msra.mxu0 0
      %5651 = vmatprep.subr.bf16.mxu0 0
      %5652 = vmatpush1.bf16.msra.mxu0 0
      %5653 = vmatprep.subr.bf16.mxu0 0
      %5654 = vmatpush1.bf16.msra.mxu0 0
      %5655 = vmatprep.subr.bf16.mxu0 0
      %5656 = vmatpush1.bf16.msra.mxu0 0
      %5657 = vmatprep.subr.bf16.mxu0 0
      %5658 = vmatpush1.bf16.msra.mxu0 0
      %5659 = vmatprep.subr.bf16.mxu0 0
      %5660 = vmatpush1.bf16.msra.mxu0 0
      %5661 = vmatprep.mubr.bf16.mxu0 0
      %5662 = vmatmul.mubr.bf16.gmra.mrb[0].mxu0 %v5627
      %v5663 = vpop.f32.mrb[0].mxu0
      %v5664 = vadd.f32 0.0, %v5663
      %v5665 = vpop.f32.mrb[0].mxu0
      %v5666 = vadd.f32 0.0, %v5665
      %v5667 = vpop.f32.mrb[0].mxu0
      %v5668 = vpop.f32.mrb[0].mxu0
      %5669 = vdwg.mxu0
      %vm5670 = vcmask 31744
      %v5672 = vsel %vm5670, %v5620, 0
      %vm5674 = vcmask 1041408
      %v5676 = vsel %vm5674, %v5618, 0
      %v5679 = vsel %vm5674, %v5619, 0
      %5681 = vmatprep.subr.bf16.mxu0 %v5679
      %5682 = vmatpush1.bf16.msra.mxu0 %v5676
      %5683 = vmatprep.subr.bf16.mxu0 0
      %5684 = vmatpush1.bf16.msra.mxu0 0
      %5685 = vmatprep.subr.bf16.mxu0 0
      %5686 = vmatpush1.bf16.msra.mxu0 0
      %5687 = vmatprep.subr.bf16.mxu0 0
      %5688 = vmatpush1.bf16.msra.mxu0 0
      %5689 = vmatprep.subr.bf16.mxu0 0
      %5690 = vmatpush1.bf16.msra.mxu0 0
      %5691 = vmatprep.subr.bf16.mxu0 0
      %5692 = vmatpush1.bf16.msra.mxu0 0
      %5693 = vmatprep.subr.bf16.mxu0 0
      %5694 = vmatpush1.bf16.msra.mxu0 0
      %5695 = vmatprep.subr.bf16.mxu0 0
      %5696 = vmatpush1.bf16.msra.mxu0 0
      %5697 = vmatprep.subr.bf16.mxu0 0
      %5698 = vmatpush1.bf16.msra.mxu0 0
      %5699 = vmatprep.subr.bf16.mxu0 0
      %5700 = vmatpush1.bf16.msra.mxu0 0
      %5701 = vmatprep.subr.bf16.mxu0 0
      %5702 = vmatpush1.bf16.msra.mxu0 0
      %5703 = vmatprep.subr.bf16.mxu0 0
      %5704 = vmatpush1.bf16.msra.mxu0 0
      %5705 = vmatprep.subr.bf16.mxu0 0
      %5706 = vmatpush1.bf16.msra.mxu0 0
      %5707 = vmatprep.subr.bf16.mxu0 0
      %5708 = vmatpush1.bf16.msra.mxu0 0
      %5709 = vmatprep.subr.bf16.mxu0 0
      %5710 = vmatpush1.bf16.msra.mxu0 0
      %5711 = vmatprep.subr.bf16.mxu0 0
      %5712 = vmatpush1.bf16.msra.mxu0 0
      %5713 = vmatprep.mubr.bf16.mxu0 0
      %5714 = vmatmul.mubr.bf16.gmra.mrb[0].mxu0 %v5672
      %v5715 = vpop.f32.mrb[0].mxu0
      %v5716 = vadd.f32 %v5664, %v5715
      %v5717 = vpop.f32.mrb[0].mxu0
      %v5718 = vadd.f32 %v5666, %v5717
      %v5719 = vpop.f32.mrb[0].mxu0
      %v5720 = vpop.f32.mrb[0].mxu0
      %5721 = vdwg.mxu0
      %v5722 = vld [vmem:[%s12] sm:$0xf]
      %5724 = vset.pattern.permute.xlu0 0
      %5725 = vperm.xlu0 %5724, %v5722
      %v5726 = vpop.permute.xlu0 %5725
      %v5728 = vadd.f32 %v5716, %v5726
      %v5729 = vadd.f32 %v5718, %v5726
      %v5730 = vmax.f32 %v5728, 0.0
      %v5731 = vmax.f32 %v5729, 0.0
      %v5734 = vcombine.low %v5730, %v5731
      %5736 = vst [vmem:[%s460] sm:$0xff] %v5734
      %p5737 = scmp.lt.s32.totalorder %s24, 1
      %s5738 = scalar_select %p5737, %s24, 1
      %s5739 = smul.addr %s5738, 2
      %s5740 = smul.addr %s5739, 4
      %s5741 = scalar_lea.vmem %s13, %s5740
      // Predicated region
      $region73: #{domain_alignment_forward.1} parent=71 // pred_check
        %p5742 = pneg %p325
      $region74: #{domain_alignment_forward.1} parent=71 // pred_check_branch
        %5744 = sbr.rel (%p5742) target = $region76
      $region75: #{domain_alignment_forward.1} parent=71 // pred_region
        _
      $region76: #{domain_alignment_forward.1} parent=71 // pred_fallthru
        _
    $region72: #{domain_alignment_forward.1} parent=5 // pred_fallthru
      _
    %p5745 = scmp.le.s32.totalorder 2, %s19
    // Predicated region
    $region77: #{domain_alignment_forward.1} parent=5 // pred_check
      %p5746 = pneg %p5745
    $region78: #{domain_alignment_forward.1} parent=5 // pred_check_branch
      %5748 = sbr.rel (%p5746) target = $region80
    $region79: #{domain_alignment_forward.1} parent=5 // pred_region
      %s5749 = ssub.s32 %s19, 2
      // Predicated region
      $region81: #{domain_alignment_forward.1} parent=79 // pred_check
        %p5750 = pneg %p331
      $region82: #{domain_alignment_forward.1} parent=79 // pred_check_branch
        %5752 = sbr.rel (%p5750) target = $region84
      $region83: #{domain_alignment_forward.1} parent=79 // pred_region
        %p5753 = scmp.lt.s32.totalorder %s25, 1
        %s5754 = scalar_select %p5753, %s25, 1
        %s5755 = smul.addr %s5754, 2
        %s5756 = smul.addr %s5755, 4
        %s5757 = scalar_lea.vmem %s13, %s5756
      $region84: #{domain_alignment_forward.1} parent=79 // pred_fallthru
        _
    $region80: #{domain_alignment_forward.1} parent=5 // pred_fallthru
      _
  $region6: #{domain_alignment_forward.1} parent=0 // loop_footer
    %s23 = sadd.s32 1, %s19
  $region7: #{domain_alignment_forward.1} parent=0 // loop_footer_branch
    %18 = sbr.rel target = $region3
  $region8: #{domain_alignment_forward.1} parent=0 // loop_exit
    _

</llo_original>
